<compile_context>
chip_gen: v7x
topology: tpu7x:2x2x1
jax: 0.10.0
libtpu: 0.0.40
codegen_flags: <defaults>
</compile_context>

<pallas_src>
import functools
import math

import jax
import jax.numpy as jnp
from jax.experimental import pallas as pl
from jax.experimental.pallas import tpu as pltpu


# --------------------------------------------------------------------------------------
# Kernel 1: 2x2 average pool + nearest upsample + highpass (high = upsample(low) - x)
# --------------------------------------------------------------------------------------
def pool_kernel(x_ref, low_ref, high_ref):
    x = x_ref[0].astype(jnp.float32)                    # (Hl, ws, Wl, ws, C)
    ws = x.shape[1]
    s = x[:, 0]
    for i in range(1, ws):
        s = s + x[:, i]                                 # (Hl, Wl, ws, C)
    low = jnp.sum(s, axis=2) * (1.0 / float(ws * ws))   # (Hl, Wl, C)
    low_ref[0] = low.astype(low_ref.dtype)
    # high = nearest-upsample(low) - x, via implicit broadcast (no materialized
    # full-size broadcast_to).
    high_ref[0] = (low[:, None, :, None, :] - x).astype(high_ref.dtype)


def pool_and_highpass(xh, ws):
    B, H, W, C = xh.shape
    Hl, Wl = H // ws, W // ws
    x6 = xh.reshape(B, Hl, ws, Wl, ws, C)
    low, high6 = pl.pallas_call(
        pool_kernel,
        grid=(B,),
        in_specs=[pl.BlockSpec((1, Hl, ws, Wl, ws, C), lambda b: (b, 0, 0, 0, 0, 0))],
        out_specs=(pl.BlockSpec((1, Hl, Wl, C), lambda b: (b, 0, 0, 0)),
                   pl.BlockSpec((1, Hl, ws, Wl, ws, C), lambda b: (b, 0, 0, 0, 0, 0))),
        out_shape=(jax.ShapeDtypeStruct((B, Hl, Wl, C), xh.dtype),
                   jax.ShapeDtypeStruct(x6.shape, xh.dtype)),
        compiler_params=pltpu.CompilerParams(
            dimension_semantics=("parallel",),
            vmem_limit_bytes=32 * 1024 * 1024),
    )(x6)
    return low, high6.reshape(B, H, W, C)


# --------------------------------------------------------------------------------------
# Kernel 2: fused depthwise-separable conv
#   3x3 depthwise (padding=1) + bias on the VPU, then ONE (H*W, Cin)x(Cin, Cout) MXU
#   matmul (bf16 operands, f32 accumulate) for the pointwise 1x1 conv + bias.
# --------------------------------------------------------------------------------------
def dsc_kernel(xpad_ref, dww_ref, dwb_ref, pww_ref, pwb_ref, out_ref):
    _, Hp, Wp, cin = xpad_ref.shape
    H, W = Hp - 2, Wp - 2
    dww = dww_ref[...].astype(jnp.float32)              # (9, Cin)
    dwb = dwb_ref[...].astype(jnp.float32)              # (1, Cin)
    pwb = pwb_ref[...].astype(jnp.float32)              # (1, Cout)

    # Hoist the width (sublane) shifts out of the 3x3 loop: 3 shifted views, not 9.
    xw = [xpad_ref[0, :, dj:dj + W, :].astype(jnp.float32) for dj in range(3)]

    acc = jnp.zeros((H, W, cin), jnp.float32)
    for di in range(3):
        for dj in range(3):
            k = di * 3 + dj
            acc = acc + xw[dj][di:di + H] * dww[k:k + 1, :]   # major-axis row slice
    acc = acc + dwb

    # Pointwise conv: flatten spatial dims (lane dim unchanged) -> one big MXU matmul.
    rows = acc.reshape(H * W, cin).astype(jnp.bfloat16)
    pww = pww_ref[...].astype(jnp.bfloat16)                   # (Cin, Cout)
    y = jnp.dot(rows, pww, preferred_element_type=jnp.float32) + pwb
    out_ref[0] = y.reshape(H, W, y.shape[-1]).astype(out_ref.dtype)


def dsc(x, p):
    B, H, W, cin = x.shape
    cout = p["pw_w"].shape[1]
    # TODO(synk): the host-side pad costs one extra HBM round trip of the activation;
    # replace with halo-row DMA (overlapping row tiles) if H*W becomes large.
    xpad = jnp.pad(x, ((0, 0), (1, 1), (1, 1), (0, 0)))
    return pl.pallas_call(
        dsc_kernel,
        grid=(B,),
        in_specs=[
            pl.BlockSpec((1, H + 2, W + 2, cin), lambda b: (b, 0, 0, 0)),
            pl.BlockSpec((9, cin), lambda b: (0, 0)),
            pl.BlockSpec((1, cin), lambda b: (0, 0)),
            pl.BlockSpec((cin, cout), lambda b: (0, 0)),
            pl.BlockSpec((1, cout), lambda b: (0, 0)),
        ],
        out_specs=pl.BlockSpec((1, H, W, cout), lambda b: (b, 0, 0, 0)),
        out_shape=jax.ShapeDtypeStruct((B, H, W, cout), x.dtype),
        compiler_params=pltpu.CompilerParams(
            dimension_semantics=("parallel",),
            vmem_limit_bytes=32 * 1024 * 1024),
    )(xpad, p["dw_w"], p["dw_b"], p["pw_w"], p["pw_b"])


# --------------------------------------------------------------------------------------
# Kernel 3: low-frequency attention.
#   Inputs keep channels last (lane-dense): q (B, N, l_dim), kv (B, Nl, 2*l_dim).
#   Per head: q_h k_h^T gives lane-dense (Lq, Lk) scores, softmax with EUP reciprocal,
#   bf16 MXU operands with f32 accumulation.  All head outputs are concatenated and
#   written with a single lane-dense (Lq, l_heads*hd) store per grid step.
# --------------------------------------------------------------------------------------
def lo_attn_kernel(q_ref, kv_ref, o_ref, *, l_heads, hd, l_dim, scale):
    outs = []
    for h in range(l_heads):                              # static, small head loop
        q = q_ref[0, :, h * hd:(h + 1) * hd].astype(jnp.bfloat16)              # (Lq, hd)
        k = kv_ref[0, :, h * hd:(h + 1) * hd].astype(jnp.bfloat16)             # (Lk, hd)
        v = kv_ref[0, :, l_dim + h * hd:l_dim + (h + 1) * hd].astype(jnp.bfloat16)
        s = jax.lax.dot_general(q, k, (((1,), (1,)), ((), ())),
                                preferred_element_type=jnp.float32) * scale    # (Lq, Lk)
        s = s - jnp.max(s, axis=-1, keepdims=True)
        p = jnp.exp(s)
        p = p * pl.reciprocal(jnp.sum(p, axis=-1, keepdims=True), approx=True)
        o = jax.lax.dot_general(p.astype(jnp.bfloat16), v, (((1,), (0,)), ((), ())),
                                preferred_element_type=jnp.float32)            # (Lq, hd)
        outs.append(o)
    # Single lane-dense store (channel order [l_heads][hd], matching the reference).
    o_ref[0] = jnp.concatenate(outs, axis=-1).astype(o_ref.dtype)


def lo_attention(q, kv, l_heads, hd, l_dim, scale):
    B, N, _ = q.shape
    Nl = kv.shape[1]
    lq_t = N
    for cand in (512, 256, 128):
        if N > cand and N % cand == 0:
            lq_t = cand
            break
    kern = functools.partial(lo_attn_kernel, l_heads=l_heads, hd=hd,
                             l_dim=l_dim, scale=float(scale))
    return pl.pallas_call(
        kern,
        grid=(B, N // lq_t),
        in_specs=[
            pl.BlockSpec((1, lq_t, l_dim), lambda b, i: (b, i, 0)),
            pl.BlockSpec((1, Nl, 2 * l_dim), lambda b, i: (b, 0, 0)),
        ],
        out_specs=pl.BlockSpec((1, lq_t, l_dim), lambda b, i: (b, i, 0)),
        out_shape=jax.ShapeDtypeStruct((B, N, l_dim), q.dtype),
        compiler_params=pltpu.CompilerParams(
            dimension_semantics=("parallel", "parallel"),
            vmem_limit_bytes=32 * 1024 * 1024),
    )(q, kv)


# --------------------------------------------------------------------------------------
# Kernel 4: high-frequency window attention (tiny L = ws*ws, tiny hd).
#   Pure VPU: operands are (L, D, G) with the big flattened group axis
#   G = B * windows * heads on the 128-lane axis; no MXU, no masked 4-lane stores.
# --------------------------------------------------------------------------------------
def hi_attn_kernel(q_ref, k_ref, v_ref, o_ref, *, scale):
    q = q_ref[...].astype(jnp.float32)                    # (L, D, G)
    k = k_ref[...].astype(jnp.float32)
    v = v_ref[...].astype(jnp.float32)
    # scores s[i, j, g] = scale * sum_d q[i, d, g] * k[j, d, g]
    s = jnp.sum(q[:, None, :, :] * k[None, :, :, :], axis=2, keepdims=True) * scale
    m = jnp.max(s, axis=1, keepdims=True)                 # (L, 1, 1, G)
    p = jnp.exp(s - m)                                    # (L, L, 1, G)
    denom = jnp.sum(p, axis=1, keepdims=True)             # (L, 1, 1, G)
    p = p * pl.reciprocal(denom, approx=True)
    # o[i, d, g] = sum_j p[i, j, g] * v[j, d, g]
    o = jnp.sum(p * v[None, :, :, :], axis=1)             # (L, D, G)
    o_ref[...] = o.astype(o_ref.dtype)


def hi_attention(q, k, v, scale):
    L, D, G = q.shape
    gt = G
    for cand in (512, 256, 128):
        if G >= cand and G % cand == 0:
            gt = cand
            break
    spec = pl.BlockSpec((L, D, gt), lambda i: (0, 0, i))
    kern = functools.partial(hi_attn_kernel, scale=float(scale))
    return pl.pallas_call(
        kern,
        grid=(G // gt,),
        in_specs=[spec, spec, spec],
        out_specs=spec,
        out_shape=jax.ShapeDtypeStruct((L, D, G), q.dtype),
        compiler_params=pltpu.CompilerParams(
            dimension_semantics=("parallel",),
            vmem_limit_bytes=32 * 1024 * 1024),
    )(q, k, v)


# --------------------------------------------------------------------------------------
# Parameters & forward (glue reshapes/transposes in plain JAX)
# --------------------------------------------------------------------------------------
def init_dsc(key, cin, cout):
    k1, k2, k3, k4 = jax.random.split(key, 4)
    return {
        "dw_w": jax.random.normal(k1, (9, cin), jnp.float32) * 0.1,    # (ky*kx, Cin)
        "dw_b": jax.random.normal(k2, (1, cin), jnp.float32) * 0.1,
        "pw_w": jax.random.normal(k3, (cin, cout), jnp.float32) * 0.1,
        "pw_b": jax.random.normal(k4, (1, cout), jnp.float32) * 0.1,
    }


def init_params(key, dim, num_heads=8, alpha=0.5, window_size=2):
    head_dim = dim // num_heads
    l_heads = int(num_heads * alpha)
    l_dim = l_heads * head_dim
    h_heads = num_heads - l_heads
    h_dim = h_heads * head_dim
    if window_size == 1:
        h_heads, h_dim = 0, 0
        l_heads, l_dim = num_heads, dim
    keys = jax.random.split(key, 5)
    params = {}
    if l_heads > 0:
        params["l_q"] = init_dsc(keys[0], dim, l_dim)
        params["l_kv"] = init_dsc(keys[1], dim, l_dim * 2)
        params["l_proj"] = init_dsc(keys[2], l_dim, l_dim)
    if h_heads > 0:
        params["h_qkv"] = init_dsc(keys[3], dim, h_dim * 3)
        params["h_proj"] = init_dsc(keys[4], h_dim, h_dim)
    meta = dict(dim=dim, head_dim=head_dim, l_heads=l_heads, l_dim=l_dim,
                h_heads=h_heads, h_dim=h_dim, ws=window_size,
                scale=head_dim ** (-0.5))
    return params, meta


def fc_hilo1_forward(x, params, meta):
    B, N, C = x.shape
    H = W = int(round(math.sqrt(N)))
    ws = meta["ws"]
    hd = meta["head_dim"]
    scale = meta["scale"]
    l_heads, h_heads = meta["l_heads"], meta["h_heads"]
    l_dim, h_dim = meta["l_dim"], meta["h_dim"]

    xh = x.reshape(B, H, W, C)                            # NHWC
    if ws > 1:
        low, high = pool_and_highpass(xh, ws)             # (B,Hl,Wl,C), (B,H,W,C)
    else:
        low, high = xh, None

    outs = []
    if l_heads > 0:
        lq = dsc(xh, params["l_q"])                       # (B,H,W,l_dim)
        lkv = dsc(low if ws > 1 else xh, params["l_kv"])  # (B,Hl,Wl,2*l_dim)
        q2 = lq.reshape(B, H * W, l_dim)                  # channels stay on lanes
        kv2 = lkv.reshape(B, -1, 2 * l_dim)
        lo = lo_attention(q2, kv2, l_heads, hd, l_dim, scale)   # (B, N, l_dim)
        outs.append(dsc(lo.reshape(B, H, W, l_dim), params["l_proj"]))

    if h_heads > 0:
        Hg, Wg = H // ws, W // ws
        L = ws * ws
        G = B * Hg * Wg * h_heads
        hqkv = dsc(high, params["h_qkv"])                 # (B,H,W,3*h_dim)
        t = hqkv.reshape(B, Hg, ws, Wg, ws, 3, h_heads, hd)
        # one transpose in: (3, ws_i, ws_j, hd, B, Hg, Wg, h_heads)
        t = t.transpose(5, 2, 4, 7, 0, 1, 3, 6)
        hq = t[0].reshape(L, hd, G)
        hk = t[1].reshape(L, hd, G)
        hv = t[2].reshape(L, hd, G)
        ho = hi_attention(hq, hk, hv, scale)              # (L, hd, G)
        # one transpose out: (B, Hg, ws_i, Wg, ws_j, h_heads, hd) -> (B, H, W, h_dim)
        ho = ho.reshape(ws, ws, hd, B, Hg, Wg, h_heads)
        ho = ho.transpose(3, 4, 0, 5, 1, 6, 2)
        outs.append(dsc(ho.reshape(B, H, W, h_dim), params["h_proj"]))

    out = outs[0] if len(outs) == 1 else jnp.concatenate(outs, axis=-1)
    return out.reshape(B, N, C)


if __name__ == "__main__":
    dim, num_heads, window_size, alpha = 32, 8, 2, 0.5
    B, H, W = 2, 8, 8
    N = H * W

    key = jax.random.PRNGKey(0)
    kx, kp = jax.random.split(key)
    x = jax.random.normal(kx, (B, N, dim), jnp.float32)
    params, meta = init_params(kp, dim, num_heads, alpha, window_size)

    fwd = jax.jit(functools.partial(fc_hilo1_forward, params=params, meta=meta))
    out = jax.block_until_ready(fwd(x))

    assert out.shape == (B, N, dim), out.shape
    assert bool(jnp.all(jnp.isfinite(out)))
    print("KERNEL_OK")
</pallas_src>

<mosaic_0001>
module attributes {stable_mosaic.version = 11 : i64} {
  func.func @pool_kernel(%arg0: i32, %arg1: memref<1x4x2x4x2x32xf32, #tpu.memory_space<vmem>>, %arg2: memref<1x4x4x32xf32, #tpu.memory_space<vmem>>, %arg3: memref<1x4x2x4x2x32xf32, #tpu.memory_space<vmem>>) attributes {dimension_semantics = [#tpu.dimension_semantics<parallel>], iteration_bounds = array<i64: 2>, scalar_prefetch = 0 : i64, scratch_operands = 0 : i64, tpu.core_type = #tpu.core_type<tc>, window_params = [{transform_indices = @transform_0, window_bounds = array<i64: 1, 4, 2, 4, 2, 32>}, {transform_indices = @transform_1, window_bounds = array<i64: 1, 4, 4, 32>}, {transform_indices = @transform_2, window_bounds = array<i64: 1, 4, 2, 4, 2, 32>}]} {
    %c0 = arith.constant 0 : index
    %c0_0 = arith.constant 0 : index
    %c0_1 = arith.constant 0 : index
    %c0_2 = arith.constant 0 : index
    %c0_3 = arith.constant 0 : index
    %c0_4 = arith.constant 0 : index
    %0 = vector.load %arg1[%c0, %c0_0, %c0_1, %c0_2, %c0_3, %c0_4] : memref<1x4x2x4x2x32xf32, #tpu.memory_space<vmem>>, vector<1x4x2x4x2x32xf32>
    %1 = vector.shape_cast %0 : vector<1x4x2x4x2x32xf32> to vector<4x2x4x2x32xf32>
    %2 = vector.extract_strided_slice %1 {offsets = [0, 0, 0, 0, 0], sizes = [4, 1, 4, 2, 32], strides = [1, 1, 1, 1, 1]} : vector<4x2x4x2x32xf32> to vector<4x1x4x2x32xf32>
    %3 = vector.shape_cast %2 : vector<4x1x4x2x32xf32> to vector<4x4x2x32xf32>
    %4 = vector.extract_strided_slice %1 {offsets = [0, 1, 0, 0, 0], sizes = [4, 1, 4, 2, 32], strides = [1, 1, 1, 1, 1]} : vector<4x2x4x2x32xf32> to vector<4x1x4x2x32xf32>
    %5 = vector.shape_cast %4 : vector<4x1x4x2x32xf32> to vector<4x4x2x32xf32>
    %6 = arith.addf %3, %5 : vector<4x4x2x32xf32>
    %cst = arith.constant dense<0.000000e+00> : vector<4x4x32xf32>
    %7 = vector.multi_reduction <add>, %6, %cst [2] : vector<4x4x2x32xf32> to vector<4x4x32xf32>
    %cst_5 = arith.constant 2.500000e-01 : f32
    %8 = vector.broadcast %cst_5 : f32 to vector<4x4x32xf32>
    %9 = arith.mulf %7, %8 : vector<4x4x32xf32>
    %c0_6 = arith.constant 0 : index
    %c0_7 = arith.constant 0 : index
    %c0_8 = arith.constant 0 : index
    %c0_9 = arith.constant 0 : index
    %10 = vector.load %arg2[%c0_6, %c0_7, %c0_8, %c0_9] : memref<1x4x4x32xf32, #tpu.memory_space<vmem>>, vector<1x4x4x32xf32>
    %11 = vector.shape_cast %10 : vector<1x4x4x32xf32> to vector<4x4x32xf32>
    %12 = vector.shape_cast %9 : vector<4x4x32xf32> to vector<1x4x4x32xf32>
    tpu.vector_store %arg2[%c0_6, %c0_7, %c0_8, %c0_9], %12 {strides = array<i32>} : memref<1x4x4x32xf32, #tpu.memory_space<vmem>>, vector<1x4x4x32xf32>,
    %13 = vector.shape_cast %9 : vector<4x4x32xf32> to vector<4x1x4x1x32xf32>
    %14 = vector.broadcast %13 : vector<4x1x4x1x32xf32> to vector<4x2x4x2x32xf32>
    %15 = arith.subf %14, %1 : vector<4x2x4x2x32xf32>
    %c0_10 = arith.constant 0 : index
    %c0_11 = arith.constant 0 : index
    %c0_12 = arith.constant 0 : index
    %c0_13 = arith.constant 0 : index
    %c0_14 = arith.constant 0 : index
    %c0_15 = arith.constant 0 : index
    %16 = vector.load %arg3[%c0_10, %c0_11, %c0_12, %c0_13, %c0_14, %c0_15] : memref<1x4x2x4x2x32xf32, #tpu.memory_space<vmem>>, vector<1x4x2x4x2x32xf32>
    %17 = vector.shape_cast %16 : vector<1x4x2x4x2x32xf32> to vector<4x2x4x2x32xf32>
    %18 = vector.shape_cast %15 : vector<4x2x4x2x32xf32> to vector<1x4x2x4x2x32xf32>
    tpu.vector_store %arg3[%c0_10, %c0_11, %c0_12, %c0_13, %c0_14, %c0_15], %18 {strides = array<i32>} : memref<1x4x2x4x2x32xf32, #tpu.memory_space<vmem>>, vector<1x4x2x4x2x32xf32>,
    return
  }
  func.func @transform_0(%arg0: i32) -> (i32, i32, i32, i32, i32, i32) {
    %c0_i32 = arith.constant 0 : i32
    %c0_i32_0 = arith.constant 0 : i32
    %c0_i32_1 = arith.constant 0 : i32
    %c0_i32_2 = arith.constant 0 : i32
    %c0_i32_3 = arith.constant 0 : i32
    %c0_i32_4 = arith.constant 0 : i32
    return %arg0, %c0_i32, %c0_i32_0, %c0_i32_1, %c0_i32_2, %c0_i32_3 : i32, i32, i32, i32, i32, i32
  }
  func.func @transform_1(%arg0: i32) -> (i32, i32, i32, i32) {
    %c0_i32 = arith.constant 0 : i32
    %c0_i32_0 = arith.constant 0 : i32
    %c0_i32_1 = arith.constant 0 : i32
    %c0_i32_2 = arith.constant 0 : i32
    return %arg0, %c0_i32, %c0_i32_0, %c0_i32_1 : i32, i32, i32, i32
  }
  func.func @transform_2(%arg0: i32) -> (i32, i32, i32, i32, i32, i32) {
    %c0_i32 = arith.constant 0 : i32
    %c0_i32_0 = arith.constant 0 : i32
    %c0_i32_1 = arith.constant 0 : i32
    %c0_i32_2 = arith.constant 0 : i32
    %c0_i32_3 = arith.constant 0 : i32
    %c0_i32_4 = arith.constant 0 : i32
    return %arg0, %c0_i32, %c0_i32_0, %c0_i32_1, %c0_i32_2, %c0_i32_3 : i32, i32, i32, i32, i32, i32
  }
}

module attributes {stable_mosaic.version = 11 : i64} {
  func.func @dsc_kernel(%arg0: i32, %arg1: memref<1x6x6x32xf32, #tpu.memory_space<vmem>>, %arg2: memref<9x32xf32, #tpu.memory_space<vmem>>, %arg3: memref<1x32xf32, #tpu.memory_space<vmem>>, %arg4: memref<32x32xf32, #tpu.memory_space<vmem>>, %arg5: memref<1x32xf32, #tpu.memory_space<vmem>>, %arg6: memref<1x4x4x32xf32, #tpu.memory_space<vmem>>) attributes {dimension_semantics = [#tpu.dimension_semantics<parallel>], iteration_bounds = array<i64: 2>, scalar_prefetch = 0 : i64, scratch_operands = 0 : i64, tpu.core_type = #tpu.core_type<tc>, window_params = [{transform_indices = @transform_0, window_bounds = array<i64: 1, 6, 6, 32>}, {pipeline_mode = #tpu.pipeline_mode<synchronous>, transform_indices = @transform_1, window_bounds = array<i64: 9, 32>}, {pipeline_mode = #tpu.pipeline_mode<synchronous>, transform_indices = @transform_2, window_bounds = array<i64: 1, 32>}, {pipeline_mode = #tpu.pipeline_mode<synchronous>, transform_indices = @transform_3, window_bounds = array<i64: 32, 32>}, {pipeline_mode = #tpu.pipeline_mode<synchronous>, transform_indices = @transform_4, window_bounds = array<i64: 1, 32>}, {transform_indices = @transform_5, window_bounds = array<i64: 1, 4, 4, 32>}]} {
    %c0 = arith.constant 0 : index
    %c0_0 = arith.constant 0 : index
    %0 = vector.load %arg2[%c0, %c0_0] : memref<9x32xf32, #tpu.memory_space<vmem>>, vector<9x32xf32>
    %c0_1 = arith.constant 0 : index
    %c0_2 = arith.constant 0 : index
    %1 = vector.load %arg3[%c0_1, %c0_2] : memref<1x32xf32, #tpu.memory_space<vmem>>, vector<1x32xf32>
    %c0_3 = arith.constant 0 : index
    %c0_4 = arith.constant 0 : index
    %2 = vector.load %arg5[%c0_3, %c0_4] : memref<1x32xf32, #tpu.memory_space<vmem>>, vector<1x32xf32>
    %c0_5 = arith.constant 0 : index
    %c0_6 = arith.constant 0 : index
    %c0_7 = arith.constant 0 : index
    %c0_8 = arith.constant 0 : index
    %3 = vector.load %arg1[%c0_5, %c0_6, %c0_7, %c0_8] : memref<1x6x6x32xf32, #tpu.memory_space<vmem>>, vector<1x6x4x32xf32>
    %4 = vector.shape_cast %3 : vector<1x6x4x32xf32> to vector<6x4x32xf32>
    %c0_9 = arith.constant 0 : index
    %c0_10 = arith.constant 0 : index
    %c1 = arith.constant 1 : index
    %c0_11 = arith.constant 0 : index
    %5 = vector.load %arg1[%c0_9, %c0_10, %c1, %c0_11] : memref<1x6x6x32xf32, #tpu.memory_space<vmem>>, vector<1x6x4x32xf32>
    %6 = vector.shape_cast %5 : vector<1x6x4x32xf32> to vector<6x4x32xf32>
    %c0_12 = arith.constant 0 : index
    %c0_13 = arith.constant 0 : index
    %c2 = arith.constant 2 : index
    %c0_14 = arith.constant 0 : index
    %7 = vector.load %arg1[%c0_12, %c0_13, %c2, %c0_14] : memref<1x6x6x32xf32, #tpu.memory_space<vmem>>, vector<1x6x4x32xf32>
    %8 = vector.shape_cast %7 : vector<1x6x4x32xf32> to vector<6x4x32xf32>
    %cst = arith.constant 0.000000e+00 : f32
    %9 = vector.broadcast %cst : f32 to vector<4x4x32xf32>
    %10 = vector.extract_strided_slice %4 {offsets = [0, 0, 0], sizes = [4, 4, 32], strides = [1, 1, 1]} : vector<6x4x32xf32> to vector<4x4x32xf32>
    %11 = vector.extract_strided_slice %0 {offsets = [0, 0], sizes = [1, 32], strides = [1, 1]} : vector<9x32xf32> to vector<1x32xf32>
    %12 = vector.shape_cast %11 : vector<1x32xf32> to vector<1x1x32xf32>
    %13 = vector.broadcast %12 : vector<1x1x32xf32> to vector<4x4x32xf32>
    %14 = arith.mulf %10, %13 : vector<4x4x32xf32>
    %15 = arith.addf %9, %14 : vector<4x4x32xf32>
    %16 = vector.extract_strided_slice %6 {offsets = [0, 0, 0], sizes = [4, 4, 32], strides = [1, 1, 1]} : vector<6x4x32xf32> to vector<4x4x32xf32>
    %17 = vector.extract_strided_slice %0 {offsets = [1, 0], sizes = [1, 32], strides = [1, 1]} : vector<9x32xf32> to vector<1x32xf32>
    %18 = vector.shape_cast %17 : vector<1x32xf32> to vector<1x1x32xf32>
    %19 = vector.broadcast %18 : vector<1x1x32xf32> to vector<4x4x32xf32>
    %20 = arith.mulf %16, %19 : vector<4x4x32xf32>
    %21 = arith.addf %15, %20 : vector<4x4x32xf32>
    %22 = vector.extract_strided_slice %8 {offsets = [0, 0, 0], sizes = [4, 4, 32], strides = [1, 1, 1]} : vector<6x4x32xf32> to vector<4x4x32xf32>
    %23 = vector.extract_strided_slice %0 {offsets = [2, 0], sizes = [1, 32], strides = [1, 1]} : vector<9x32xf32> to vector<1x32xf32>
    %24 = vector.shape_cast %23 : vector<1x32xf32> to vector<1x1x32xf32>
    %25 = vector.broadcast %24 : vector<1x1x32xf32> to vector<4x4x32xf32>
    %26 = arith.mulf %22, %25 : vector<4x4x32xf32>
    %27 = arith.addf %21, %26 : vector<4x4x32xf32>
    %28 = vector.extract_strided_slice %4 {offsets = [1, 0, 0], sizes = [4, 4, 32], strides = [1, 1, 1]} : vector<6x4x32xf32> to vector<4x4x32xf32>
    %29 = vector.extract_strided_slice %0 {offsets = [3, 0], sizes = [1, 32], strides = [1, 1]} : vector<9x32xf32> to vector<1x32xf32>
    %30 = vector.shape_cast %29 : vector<1x32xf32> to vector<1x1x32xf32>
    %31 = vector.broadcast %30 : vector<1x1x32xf32> to vector<4x4x32xf32>
    %32 = arith.mulf %28, %31 : vector<4x4x32xf32>
    %33 = arith.addf %27, %32 : vector<4x4x32xf32>
    %34 = vector.extract_strided_slice %6 {offsets = [1, 0, 0], sizes = [4, 4, 32], strides = [1, 1, 1]} : vector<6x4x32xf32> to vector<4x4x32xf32>
    %35 = vector.extract_strided_slice %0 {offsets = [4, 0], sizes = [1, 32], strides = [1, 1]} : vector<9x32xf32> to vector<1x32xf32>
    %36 = vector.shape_cast %35 : vector<1x32xf32> to vector<1x1x32xf32>
    %37 = vector.broadcast %36 : vector<1x1x32xf32> to vector<4x4x32xf32>
    %38 = arith.mulf %34, %37 : vector<4x4x32xf32>
    %39 = arith.addf %33, %38 : vector<4x4x32xf32>
    %40 = vector.extract_strided_slice %8 {offsets = [1, 0, 0], sizes = [4, 4, 32], strides = [1, 1, 1]} : vector<6x4x32xf32> to vector<4x4x32xf32>
    %41 = vector.extract_strided_slice %0 {offsets = [5, 0], sizes = [1, 32], strides = [1, 1]} : vector<9x32xf32> to vector<1x32xf32>
    %42 = vector.shape_cast %41 : vector<1x32xf32> to vector<1x1x32xf32>
    %43 = vector.broadcast %42 : vector<1x1x32xf32> to vector<4x4x32xf32>
    %44 = arith.mulf %40, %43 : vector<4x4x32xf32>
    %45 = arith.addf %39, %44 : vector<4x4x32xf32>
    %46 = vector.extract_strided_slice %4 {offsets = [2, 0, 0], sizes = [4, 4, 32], strides = [1, 1, 1]} : vector<6x4x32xf32> to vector<4x4x32xf32>
    %47 = vector.extract_strided_slice %0 {offsets = [6, 0], sizes = [1, 32], strides = [1, 1]} : vector<9x32xf32> to vector<1x32xf32>
    %48 = vector.shape_cast %47 : vector<1x32xf32> to vector<1x1x32xf32>
    %49 = vector.broadcast %48 : vector<1x1x32xf32> to vector<4x4x32xf32>
    %50 = arith.mulf %46, %49 : vector<4x4x32xf32>
    %51 = arith.addf %45, %50 : vector<4x4x32xf32>
    %52 = vector.extract_strided_slice %6 {offsets = [2, 0, 0], sizes = [4, 4, 32], strides = [1, 1, 1]} : vector<6x4x32xf32> to vector<4x4x32xf32>
    %53 = vector.extract_strided_slice %0 {offsets = [7, 0], sizes = [1, 32], strides = [1, 1]} : vector<9x32xf32> to vector<1x32xf32>
    %54 = vector.shape_cast %53 : vector<1x32xf32> to vector<1x1x32xf32>
    %55 = vector.broadcast %54 : vector<1x1x32xf32> to vector<4x4x32xf32>
    %56 = arith.mulf %52, %55 : vector<4x4x32xf32>
    %57 = arith.addf %51, %56 : vector<4x4x32xf32>
    %58 = vector.extract_strided_slice %8 {offsets = [2, 0, 0], sizes = [4, 4, 32], strides = [1, 1, 1]} : vector<6x4x32xf32> to vector<4x4x32xf32>
    %59 = vector.extract_strided_slice %0 {offsets = [8, 0], sizes = [1, 32], strides = [1, 1]} : vector<9x32xf32> to vector<1x32xf32>
    %60 = vector.shape_cast %59 : vector<1x32xf32> to vector<1x1x32xf32>
    %61 = vector.broadcast %60 : vector<1x1x32xf32> to vector<4x4x32xf32>
    %62 = arith.mulf %58, %61 : vector<4x4x32xf32>
    %63 = arith.addf %57, %62 : vector<4x4x32xf32>
    %64 = vector.shape_cast %1 : vector<1x32xf32> to vector<1x1x32xf32>
    %65 = vector.broadcast %64 : vector<1x1x32xf32> to vector<4x4x32xf32>
    %66 = arith.addf %63, %65 : vector<4x4x32xf32>
    %67 = vector.shape_cast %66 : vector<4x4x32xf32> to vector<16x32xf32>
    %68 = arith.truncf %67 : vector<16x32xf32> to vector<16x32xbf16>
    %c0_15 = arith.constant 0 : index
    %c0_16 = arith.constant 0 : index
    %69 = vector.load %arg4[%c0_15, %c0_16] : memref<32x32xf32, #tpu.memory_space<vmem>>, vector<32x32xf32>
    %70 = arith.truncf %69 : vector<32x32xf32> to vector<32x32xbf16>
    %cst_17 = arith.constant dense<0.000000e+00> : vector<16x32xf32>
    %71 = tpu.matmul %68, %70, %cst_17 {dimension_numbers = #tpu.dot_dimension_numbers<[1], [0], [0], [1], [0, 0, 1, 1], [], []>} : vector<16x32xbf16>, vector<32x32xbf16>, vector<16x32xf32> -> vector<16x32xf32>
    %72 = vector.broadcast %2 : vector<1x32xf32> to vector<16x32xf32>
    %73 = arith.addf %71, %72 : vector<16x32xf32>
    %74 = vector.shape_cast %73 : vector<16x32xf32> to vector<4x4x32xf32>
    %c0_18 = arith.constant 0 : index
    %c0_19 = arith.constant 0 : index
    %c0_20 = arith.constant 0 : index
    %c0_21 = arith.constant 0 : index
    %75 = vector.load %arg6[%c0_18, %c0_19, %c0_20, %c0_21] : memref<1x4x4x32xf32, #tpu.memory_space<vmem>>, vector<1x4x4x32xf32>
    %76 = vector.shape_cast %75 : vector<1x4x4x32xf32> to vector<4x4x32xf32>
    %77 = vector.shape_cast %74 : vector<4x4x32xf32> to vector<1x4x4x32xf32>
    tpu.vector_store %arg6[%c0_18, %c0_19, %c0_20, %c0_21], %77 {strides = array<i32>} : memref<1x4x4x32xf32, #tpu.memory_space<vmem>>, vector<1x4x4x32xf32>,
    return
  }
  func.func @transform_0(%arg0: i32) -> (i32, i32, i32, i32) {
    %c0_i32 = arith.constant 0 : i32
    %c0_i32_0 = arith.constant 0 : i32
    %c0_i32_1 = arith.constant 0 : i32
    %c0_i32_2 = arith.constant 0 : i32
    return %arg0, %c0_i32, %c0_i32_0, %c0_i32_1 : i32, i32, i32, i32
  }
  func.func @transform_1(%arg0: i32) -> (i32, i32) {
    %c0_i32 = arith.constant 0 : i32
    %c0_i32_0 = arith.constant 0 : i32
    %c0_i32_1 = arith.constant 0 : i32
    return %c0_i32, %c0_i32_0 : i32, i32
  }
  func.func @transform_2(%arg0: i32) -> (i32, i32) {
    %c0_i32 = arith.constant 0 : i32
    %c0_i32_0 = arith.constant 0 : i32
    %c0_i32_1 = arith.constant 0 : i32
    return %c0_i32, %c0_i32_0 : i32, i32
  }
  func.func @transform_3(%arg0: i32) -> (i32, i32) {
    %c0_i32 = arith.constant 0 : i32
    %c0_i32_0 = arith.constant 0 : i32
    %c0_i32_1 = arith.constant 0 : i32
    return %c0_i32, %c0_i32_0 : i32, i32
  }
  func.func @transform_4(%arg0: i32) -> (i32, i32) {
    %c0_i32 = arith.constant 0 : i32
    %c0_i32_0 = arith.constant 0 : i32
    %c0_i32_1 = arith.constant 0 : i32
    return %c0_i32, %c0_i32_0 : i32, i32
  }
  func.func @transform_5(%arg0: i32) -> (i32, i32, i32, i32) {
    %c0_i32 = arith.constant 0 : i32
    %c0_i32_0 = arith.constant 0 : i32
    %c0_i32_1 = arith.constant 0 : i32
    %c0_i32_2 = arith.constant 0 : i32
    return %arg0, %c0_i32, %c0_i32_0, %c0_i32_1 : i32, i32, i32, i32
  }
}

module attributes {stable_mosaic.version = 11 : i64} {
  func.func @dsc_kernel(%arg0: i32, %arg1: memref<1x10x10x32xf32, #tpu.memory_space<vmem>>, %arg2: memref<9x32xf32, #tpu.memory_space<vmem>>, %arg3: memref<1x32xf32, #tpu.memory_space<vmem>>, %arg4: memref<32x16xf32, #tpu.memory_space<vmem>>, %arg5: memref<1x16xf32, #tpu.memory_space<vmem>>, %arg6: memref<1x8x8x16xf32, #tpu.memory_space<vmem>>) attributes {dimension_semantics = [#tpu.dimension_semantics<parallel>], iteration_bounds = array<i64: 2>, scalar_prefetch = 0 : i64, scratch_operands = 0 : i64, tpu.core_type = #tpu.core_type<tc>, window_params = [{transform_indices = @transform_0, window_bounds = array<i64: 1, 10, 10, 32>}, {pipeline_mode = #tpu.pipeline_mode<synchronous>, transform_indices = @transform_1, window_bounds = array<i64: 9, 32>}, {pipeline_mode = #tpu.pipeline_mode<synchronous>, transform_indices = @transform_2, window_bounds = array<i64: 1, 32>}, {pipeline_mode = #tpu.pipeline_mode<synchronous>, transform_indices = @transform_3, window_bounds = array<i64: 32, 16>}, {pipeline_mode = #tpu.pipeline_mode<synchronous>, transform_indices = @transform_4, window_bounds = array<i64: 1, 16>}, {transform_indices = @transform_5, window_bounds = array<i64: 1, 8, 8, 16>}]} {
    %c0 = arith.constant 0 : index
    %c0_0 = arith.constant 0 : index
    %0 = vector.load %arg2[%c0, %c0_0] : memref<9x32xf32, #tpu.memory_space<vmem>>, vector<9x32xf32>
    %c0_1 = arith.constant 0 : index
    %c0_2 = arith.constant 0 : index
    %1 = vector.load %arg3[%c0_1, %c0_2] : memref<1x32xf32, #tpu.memory_space<vmem>>, vector<1x32xf32>
    %c0_3 = arith.constant 0 : index
    %c0_4 = arith.constant 0 : index
    %2 = vector.load %arg5[%c0_3, %c0_4] : memref<1x16xf32, #tpu.memory_space<vmem>>, vector<1x16xf32>
    %c0_5 = arith.constant 0 : index
    %c0_6 = arith.constant 0 : index
    %c0_7 = arith.constant 0 : index
    %c0_8 = arith.constant 0 : index
    %3 = vector.load %arg1[%c0_5, %c0_6, %c0_7, %c0_8] : memref<1x10x10x32xf32, #tpu.memory_space<vmem>>, vector<1x10x8x32xf32>
    %4 = vector.shape_cast %3 : vector<1x10x8x32xf32> to vector<10x8x32xf32>
    %c0_9 = arith.constant 0 : index
    %c0_10 = arith.constant 0 : index
    %c1 = arith.constant 1 : index
    %c0_11 = arith.constant 0 : index
    %5 = vector.load %arg1[%c0_9, %c0_10, %c1, %c0_11] : memref<1x10x10x32xf32, #tpu.memory_space<vmem>>, vector<1x10x8x32xf32>
    %6 = vector.shape_cast %5 : vector<1x10x8x32xf32> to vector<10x8x32xf32>
    %c0_12 = arith.constant 0 : index
    %c0_13 = arith.constant 0 : index
    %c2 = arith.constant 2 : index
    %c0_14 = arith.constant 0 : index
    %7 = vector.load %arg1[%c0_12, %c0_13, %c2, %c0_14] : memref<1x10x10x32xf32, #tpu.memory_space<vmem>>, vector<1x10x8x32xf32>
    %8 = vector.shape_cast %7 : vector<1x10x8x32xf32> to vector<10x8x32xf32>
    %cst = arith.constant 0.000000e+00 : f32
    %9 = vector.broadcast %cst : f32 to vector<8x8x32xf32>
    %10 = vector.extract_strided_slice %4 {offsets = [0, 0, 0], sizes = [8, 8, 32], strides = [1, 1, 1]} : vector<10x8x32xf32> to vector<8x8x32xf32>
    %11 = vector.extract_strided_slice %0 {offsets = [0, 0], sizes = [1, 32], strides = [1, 1]} : vector<9x32xf32> to vector<1x32xf32>
    %12 = vector.shape_cast %11 : vector<1x32xf32> to vector<1x1x32xf32>
    %13 = vector.broadcast %12 : vector<1x1x32xf32> to vector<8x8x32xf32>
    %14 = arith.mulf %10, %13 : vector<8x8x32xf32>
    %15 = arith.addf %9, %14 : vector<8x8x32xf32>
    %16 = vector.extract_strided_slice %6 {offsets = [0, 0, 0], sizes = [8, 8, 32], strides = [1, 1, 1]} : vector<10x8x32xf32> to vector<8x8x32xf32>
    %17 = vector.extract_strided_slice %0 {offsets = [1, 0], sizes = [1, 32], strides = [1, 1]} : vector<9x32xf32> to vector<1x32xf32>
    %18 = vector.shape_cast %17 : vector<1x32xf32> to vector<1x1x32xf32>
    %19 = vector.broadcast %18 : vector<1x1x32xf32> to vector<8x8x32xf32>
    %20 = arith.mulf %16, %19 : vector<8x8x32xf32>
    %21 = arith.addf %15, %20 : vector<8x8x32xf32>
    %22 = vector.extract_strided_slice %8 {offsets = [0, 0, 0], sizes = [8, 8, 32], strides = [1, 1, 1]} : vector<10x8x32xf32> to vector<8x8x32xf32>
    %23 = vector.extract_strided_slice %0 {offsets = [2, 0], sizes = [1, 32], strides = [1, 1]} : vector<9x32xf32> to vector<1x32xf32>
    %24 = vector.shape_cast %23 : vector<1x32xf32> to vector<1x1x32xf32>
    %25 = vector.broadcast %24 : vector<1x1x32xf32> to vector<8x8x32xf32>
    %26 = arith.mulf %22, %25 : vector<8x8x32xf32>
    %27 = arith.addf %21, %26 : vector<8x8x32xf32>
    %28 = vector.extract_strided_slice %4 {offsets = [1, 0, 0], sizes = [8, 8, 32], strides = [1, 1, 1]} : vector<10x8x32xf32> to vector<8x8x32xf32>
    %29 = vector.extract_strided_slice %0 {offsets = [3, 0], sizes = [1, 32], strides = [1, 1]} : vector<9x32xf32> to vector<1x32xf32>
    %30 = vector.shape_cast %29 : vector<1x32xf32> to vector<1x1x32xf32>
    %31 = vector.broadcast %30 : vector<1x1x32xf32> to vector<8x8x32xf32>
    %32 = arith.mulf %28, %31 : vector<8x8x32xf32>
    %33 = arith.addf %27, %32 : vector<8x8x32xf32>
    %34 = vector.extract_strided_slice %6 {offsets = [1, 0, 0], sizes = [8, 8, 32], strides = [1, 1, 1]} : vector<10x8x32xf32> to vector<8x8x32xf32>
    %35 = vector.extract_strided_slice %0 {offsets = [4, 0], sizes = [1, 32], strides = [1, 1]} : vector<9x32xf32> to vector<1x32xf32>
    %36 = vector.shape_cast %35 : vector<1x32xf32> to vector<1x1x32xf32>
    %37 = vector.broadcast %36 : vector<1x1x32xf32> to vector<8x8x32xf32>
    %38 = arith.mulf %34, %37 : vector<8x8x32xf32>
    %39 = arith.addf %33, %38 : vector<8x8x32xf32>
    %40 = vector.extract_strided_slice %8 {offsets = [1, 0, 0], sizes = [8, 8, 32], strides = [1, 1, 1]} : vector<10x8x32xf32> to vector<8x8x32xf32>
    %41 = vector.extract_strided_slice %0 {offsets = [5, 0], sizes = [1, 32], strides = [1, 1]} : vector<9x32xf32> to vector<1x32xf32>
    %42 = vector.shape_cast %41 : vector<1x32xf32> to vector<1x1x32xf32>
    %43 = vector.broadcast %42 : vector<1x1x32xf32> to vector<8x8x32xf32>
    %44 = arith.mulf %40, %43 : vector<8x8x32xf32>
    %45 = arith.addf %39, %44 : vector<8x8x32xf32>
    %46 = vector.extract_strided_slice %4 {offsets = [2, 0, 0], sizes = [8, 8, 32], strides = [1, 1, 1]} : vector<10x8x32xf32> to vector<8x8x32xf32>
    %47 = vector.extract_strided_slice %0 {offsets = [6, 0], sizes = [1, 32], strides = [1, 1]} : vector<9x32xf32> to vector<1x32xf32>
    %48 = vector.shape_cast %47 : vector<1x32xf32> to vector<1x1x32xf32>
    %49 = vector.broadcast %48 : vector<1x1x32xf32> to vector<8x8x32xf32>
    %50 = arith.mulf %46, %49 : vector<8x8x32xf32>
    %51 = arith.addf %45, %50 : vector<8x8x32xf32>
    %52 = vector.extract_strided_slice %6 {offsets = [2, 0, 0], sizes = [8, 8, 32], strides = [1, 1, 1]} : vector<10x8x32xf32> to vector<8x8x32xf32>
    %53 = vector.extract_strided_slice %0 {offsets = [7, 0], sizes = [1, 32], strides = [1, 1]} : vector<9x32xf32> to vector<1x32xf32>
    %54 = vector.shape_cast %53 : vector<1x32xf32> to vector<1x1x32xf32>
    %55 = vector.broadcast %54 : vector<1x1x32xf32> to vector<8x8x32xf32>
    %56 = arith.mulf %52, %55 : vector<8x8x32xf32>
    %57 = arith.addf %51, %56 : vector<8x8x32xf32>
    %58 = vector.extract_strided_slice %8 {offsets = [2, 0, 0], sizes = [8, 8, 32], strides = [1, 1, 1]} : vector<10x8x32xf32> to vector<8x8x32xf32>
    %59 = vector.extract_strided_slice %0 {offsets = [8, 0], sizes = [1, 32], strides = [1, 1]} : vector<9x32xf32> to vector<1x32xf32>
    %60 = vector.shape_cast %59 : vector<1x32xf32> to vector<1x1x32xf32>
    %61 = vector.broadcast %60 : vector<1x1x32xf32> to vector<8x8x32xf32>
    %62 = arith.mulf %58, %61 : vector<8x8x32xf32>
    %63 = arith.addf %57, %62 : vector<8x8x32xf32>
    %64 = vector.shape_cast %1 : vector<1x32xf32> to vector<1x1x32xf32>
    %65 = vector.broadcast %64 : vector<1x1x32xf32> to vector<8x8x32xf32>
    %66 = arith.addf %63, %65 : vector<8x8x32xf32>
    %67 = vector.shape_cast %66 : vector<8x8x32xf32> to vector<64x32xf32>
    %68 = arith.truncf %67 : vector<64x32xf32> to vector<64x32xbf16>
    %c0_15 = arith.constant 0 : index
    %c0_16 = arith.constant 0 : index
    %69 = vector.load %arg4[%c0_15, %c0_16] : memref<32x16xf32, #tpu.memory_space<vmem>>, vector<32x16xf32>
    %70 = arith.truncf %69 : vector<32x16xf32> to vector<32x16xbf16>
    %cst_17 = arith.constant dense<0.000000e+00> : vector<64x16xf32>
    %71 = tpu.matmul %68, %70, %cst_17 {dimension_numbers = #tpu.dot_dimension_numbers<[1], [0], [0], [1], [0, 0, 1, 1], [], []>} : vector<64x32xbf16>, vector<32x16xbf16>, vector<64x16xf32> -> vector<64x16xf32>
    %72 = vector.broadcast %2 : vector<1x16xf32> to vector<64x16xf32>
    %73 = arith.addf %71, %72 : vector<64x16xf32>
    %74 = vector.shape_cast %73 : vector<64x16xf32> to vector<8x8x16xf32>
    %c0_18 = arith.constant 0 : index
    %c0_19 = arith.constant 0 : index
    %c0_20 = arith.constant 0 : index
    %c0_21 = arith.constant 0 : index
    %75 = vector.load %arg6[%c0_18, %c0_19, %c0_20, %c0_21] : memref<1x8x8x16xf32, #tpu.memory_space<vmem>>, vector<1x8x8x16xf32>
    %76 = vector.shape_cast %75 : vector<1x8x8x16xf32> to vector<8x8x16xf32>
    %77 = vector.shape_cast %74 : vector<8x8x16xf32> to vector<1x8x8x16xf32>
    tpu.vector_store %arg6[%c0_18, %c0_19, %c0_20, %c0_21], %77 {strides = array<i32>} : memref<1x8x8x16xf32, #tpu.memory_space<vmem>>, vector<1x8x8x16xf32>,
    return
  }
  func.func @transform_0(%arg0: i32) -> (i32, i32, i32, i32) {
    %c0_i32 = arith.constant 0 : i32
    %c0_i32_0 = arith.constant 0 : i32
    %c0_i32_1 = arith.constant 0 : i32
    %c0_i32_2 = arith.constant 0 : i32
    return %arg0, %c0_i32, %c0_i32_0, %c0_i32_1 : i32, i32, i32, i32
  }
  func.func @transform_1(%arg0: i32) -> (i32, i32) {
    %c0_i32 = arith.constant 0 : i32
    %c0_i32_0 = arith.constant 0 : i32
    %c0_i32_1 = arith.constant 0 : i32
    return %c0_i32, %c0_i32_0 : i32, i32
  }
  func.func @transform_2(%arg0: i32) -> (i32, i32) {
    %c0_i32 = arith.constant 0 : i32
    %c0_i32_0 = arith.constant 0 : i32
    %c0_i32_1 = arith.constant 0 : i32
    return %c0_i32, %c0_i32_0 : i32, i32
  }
  func.func @transform_3(%arg0: i32) -> (i32, i32) {
    %c0_i32 = arith.constant 0 : i32
    %c0_i32_0 = arith.constant 0 : i32
    %c0_i32_1 = arith.constant 0 : i32
    return %c0_i32, %c0_i32_0 : i32, i32
  }
  func.func @transform_4(%arg0: i32) -> (i32, i32) {
    %c0_i32 = arith.constant 0 : i32
    %c0_i32_0 = arith.constant 0 : i32
    %c0_i32_1 = arith.constant 0 : i32
    return %c0_i32, %c0_i32_0 : i32, i32
  }
  func.func @transform_5(%arg0: i32) -> (i32, i32, i32, i32) {
    %c0_i32 = arith.constant 0 : i32
    %c0_i32_0 = arith.constant 0 : i32
    %c0_i32_1 = arith.constant 0 : i32
    %c0_i32_2 = arith.constant 0 : i32
    return %arg0, %c0_i32, %c0_i32_0, %c0_i32_1 : i32, i32, i32, i32
  }
}

module attributes {stable_mosaic.version = 11 : i64} {
  func.func @dsc_kernel(%arg0: i32, %arg1: memref<1x10x10x32xf32, #tpu.memory_space<vmem>>, %arg2: memref<9x32xf32, #tpu.memory_space<vmem>>, %arg3: memref<1x32xf32, #tpu.memory_space<vmem>>, %arg4: memref<32x48xf32, #tpu.memory_space<vmem>>, %arg5: memref<1x48xf32, #tpu.memory_space<vmem>>, %arg6: memref<1x8x8x48xf32, #tpu.memory_space<vmem>>) attributes {dimension_semantics = [#tpu.dimension_semantics<parallel>], iteration_bounds = array<i64: 2>, scalar_prefetch = 0 : i64, scratch_operands = 0 : i64, tpu.core_type = #tpu.core_type<tc>, window_params = [{transform_indices = @transform_0, window_bounds = array<i64: 1, 10, 10, 32>}, {pipeline_mode = #tpu.pipeline_mode<synchronous>, transform_indices = @transform_1, window_bounds = array<i64: 9, 32>}, {pipeline_mode = #tpu.pipeline_mode<synchronous>, transform_indices = @transform_2, window_bounds = array<i64: 1, 32>}, {pipeline_mode = #tpu.pipeline_mode<synchronous>, transform_indices = @transform_3, window_bounds = array<i64: 32, 48>}, {pipeline_mode = #tpu.pipeline_mode<synchronous>, transform_indices = @transform_4, window_bounds = array<i64: 1, 48>}, {transform_indices = @transform_5, window_bounds = array<i64: 1, 8, 8, 48>}]} {
    %c0 = arith.constant 0 : index
    %c0_0 = arith.constant 0 : index
    %0 = vector.load %arg2[%c0, %c0_0] : memref<9x32xf32, #tpu.memory_space<vmem>>, vector<9x32xf32>
    %c0_1 = arith.constant 0 : index
    %c0_2 = arith.constant 0 : index
    %1 = vector.load %arg3[%c0_1, %c0_2] : memref<1x32xf32, #tpu.memory_space<vmem>>, vector<1x32xf32>
    %c0_3 = arith.constant 0 : index
    %c0_4 = arith.constant 0 : index
    %2 = vector.load %arg5[%c0_3, %c0_4] : memref<1x48xf32, #tpu.memory_space<vmem>>, vector<1x48xf32>
    %c0_5 = arith.constant 0 : index
    %c0_6 = arith.constant 0 : index
    %c0_7 = arith.constant 0 : index
    %c0_8 = arith.constant 0 : index
    %3 = vector.load %arg1[%c0_5, %c0_6, %c0_7, %c0_8] : memref<1x10x10x32xf32, #tpu.memory_space<vmem>>, vector<1x10x8x32xf32>
    %4 = vector.shape_cast %3 : vector<1x10x8x32xf32> to vector<10x8x32xf32>
    %c0_9 = arith.constant 0 : index
    %c0_10 = arith.constant 0 : index
    %c1 = arith.constant 1 : index
    %c0_11 = arith.constant 0 : index
    %5 = vector.load %arg1[%c0_9, %c0_10, %c1, %c0_11] : memref<1x10x10x32xf32, #tpu.memory_space<vmem>>, vector<1x10x8x32xf32>
    %6 = vector.shape_cast %5 : vector<1x10x8x32xf32> to vector<10x8x32xf32>
    %c0_12 = arith.constant 0 : index
    %c0_13 = arith.constant 0 : index
    %c2 = arith.constant 2 : index
    %c0_14 = arith.constant 0 : index
    %7 = vector.load %arg1[%c0_12, %c0_13, %c2, %c0_14] : memref<1x10x10x32xf32, #tpu.memory_space<vmem>>, vector<1x10x8x32xf32>
    %8 = vector.shape_cast %7 : vector<1x10x8x32xf32> to vector<10x8x32xf32>
    %cst = arith.constant 0.000000e+00 : f32
    %9 = vector.broadcast %cst : f32 to vector<8x8x32xf32>
    %10 = vector.extract_strided_slice %4 {offsets = [0, 0, 0], sizes = [8, 8, 32], strides = [1, 1, 1]} : vector<10x8x32xf32> to vector<8x8x32xf32>
    %11 = vector.extract_strided_slice %0 {offsets = [0, 0], sizes = [1, 32], strides = [1, 1]} : vector<9x32xf32> to vector<1x32xf32>
    %12 = vector.shape_cast %11 : vector<1x32xf32> to vector<1x1x32xf32>
    %13 = vector.broadcast %12 : vector<1x1x32xf32> to vector<8x8x32xf32>
    %14 = arith.mulf %10, %13 : vector<8x8x32xf32>
    %15 = arith.addf %9, %14 : vector<8x8x32xf32>
    %16 = vector.extract_strided_slice %6 {offsets = [0, 0, 0], sizes = [8, 8, 32], strides = [1, 1, 1]} : vector<10x8x32xf32> to vector<8x8x32xf32>
    %17 = vector.extract_strided_slice %0 {offsets = [1, 0], sizes = [1, 32], strides = [1, 1]} : vector<9x32xf32> to vector<1x32xf32>
    %18 = vector.shape_cast %17 : vector<1x32xf32> to vector<1x1x32xf32>
    %19 = vector.broadcast %18 : vector<1x1x32xf32> to vector<8x8x32xf32>
    %20 = arith.mulf %16, %19 : vector<8x8x32xf32>
    %21 = arith.addf %15, %20 : vector<8x8x32xf32>
    %22 = vector.extract_strided_slice %8 {offsets = [0, 0, 0], sizes = [8, 8, 32], strides = [1, 1, 1]} : vector<10x8x32xf32> to vector<8x8x32xf32>
    %23 = vector.extract_strided_slice %0 {offsets = [2, 0], sizes = [1, 32], strides = [1, 1]} : vector<9x32xf32> to vector<1x32xf32>
    %24 = vector.shape_cast %23 : vector<1x32xf32> to vector<1x1x32xf32>
    %25 = vector.broadcast %24 : vector<1x1x32xf32> to vector<8x8x32xf32>
    %26 = arith.mulf %22, %25 : vector<8x8x32xf32>
    %27 = arith.addf %21, %26 : vector<8x8x32xf32>
    %28 = vector.extract_strided_slice %4 {offsets = [1, 0, 0], sizes = [8, 8, 32], strides = [1, 1, 1]} : vector<10x8x32xf32> to vector<8x8x32xf32>
    %29 = vector.extract_strided_slice %0 {offsets = [3, 0], sizes = [1, 32], strides = [1, 1]} : vector<9x32xf32> to vector<1x32xf32>
    %30 = vector.shape_cast %29 : vector<1x32xf32> to vector<1x1x32xf32>
    %31 = vector.broadcast %30 : vector<1x1x32xf32> to vector<8x8x32xf32>
    %32 = arith.mulf %28, %31 : vector<8x8x32xf32>
    %33 = arith.addf %27, %32 : vector<8x8x32xf32>
    %34 = vector.extract_strided_slice %6 {offsets = [1, 0, 0], sizes = [8, 8, 32], strides = [1, 1, 1]} : vector<10x8x32xf32> to vector<8x8x32xf32>
    %35 = vector.extract_strided_slice %0 {offsets = [4, 0], sizes = [1, 32], strides = [1, 1]} : vector<9x32xf32> to vector<1x32xf32>
    %36 = vector.shape_cast %35 : vector<1x32xf32> to vector<1x1x32xf32>
    %37 = vector.broadcast %36 : vector<1x1x32xf32> to vector<8x8x32xf32>
    %38 = arith.mulf %34, %37 : vector<8x8x32xf32>
    %39 = arith.addf %33, %38 : vector<8x8x32xf32>
    %40 = vector.extract_strided_slice %8 {offsets = [1, 0, 0], sizes = [8, 8, 32], strides = [1, 1, 1]} : vector<10x8x32xf32> to vector<8x8x32xf32>
    %41 = vector.extract_strided_slice %0 {offsets = [5, 0], sizes = [1, 32], strides = [1, 1]} : vector<9x32xf32> to vector<1x32xf32>
    %42 = vector.shape_cast %41 : vector<1x32xf32> to vector<1x1x32xf32>
    %43 = vector.broadcast %42 : vector<1x1x32xf32> to vector<8x8x32xf32>
    %44 = arith.mulf %40, %43 : vector<8x8x32xf32>
    %45 = arith.addf %39, %44 : vector<8x8x32xf32>
    %46 = vector.extract_strided_slice %4 {offsets = [2, 0, 0], sizes = [8, 8, 32], strides = [1, 1, 1]} : vector<10x8x32xf32> to vector<8x8x32xf32>
    %47 = vector.extract_strided_slice %0 {offsets = [6, 0], sizes = [1, 32], strides = [1, 1]} : vector<9x32xf32> to vector<1x32xf32>
    %48 = vector.shape_cast %47 : vector<1x32xf32> to vector<1x1x32xf32>
    %49 = vector.broadcast %48 : vector<1x1x32xf32> to vector<8x8x32xf32>
    %50 = arith.mulf %46, %49 : vector<8x8x32xf32>
    %51 = arith.addf %45, %50 : vector<8x8x32xf32>
    %52 = vector.extract_strided_slice %6 {offsets = [2, 0, 0], sizes = [8, 8, 32], strides = [1, 1, 1]} : vector<10x8x32xf32> to vector<8x8x32xf32>
    %53 = vector.extract_strided_slice %0 {offsets = [7, 0], sizes = [1, 32], strides = [1, 1]} : vector<9x32xf32> to vector<1x32xf32>
    %54 = vector.shape_cast %53 : vector<1x32xf32> to vector<1x1x32xf32>
    %55 = vector.broadcast %54 : vector<1x1x32xf32> to vector<8x8x32xf32>
    %56 = arith.mulf %52, %55 : vector<8x8x32xf32>
    %57 = arith.addf %51, %56 : vector<8x8x32xf32>
    %58 = vector.extract_strided_slice %8 {offsets = [2, 0, 0], sizes = [8, 8, 32], strides = [1, 1, 1]} : vector<10x8x32xf32> to vector<8x8x32xf32>
    %59 = vector.extract_strided_slice %0 {offsets = [8, 0], sizes = [1, 32], strides = [1, 1]} : vector<9x32xf32> to vector<1x32xf32>
    %60 = vector.shape_cast %59 : vector<1x32xf32> to vector<1x1x32xf32>
    %61 = vector.broadcast %60 : vector<1x1x32xf32> to vector<8x8x32xf32>
    %62 = arith.mulf %58, %61 : vector<8x8x32xf32>
    %63 = arith.addf %57, %62 : vector<8x8x32xf32>
    %64 = vector.shape_cast %1 : vector<1x32xf32> to vector<1x1x32xf32>
    %65 = vector.broadcast %64 : vector<1x1x32xf32> to vector<8x8x32xf32>
    %66 = arith.addf %63, %65 : vector<8x8x32xf32>
    %67 = vector.shape_cast %66 : vector<8x8x32xf32> to vector<64x32xf32>
    %68 = arith.truncf %67 : vector<64x32xf32> to vector<64x32xbf16>
    %c0_15 = arith.constant 0 : index
    %c0_16 = arith.constant 0 : index
    %69 = vector.load %arg4[%c0_15, %c0_16] : memref<32x48xf32, #tpu.memory_space<vmem>>, vector<32x48xf32>
    %70 = arith.truncf %69 : vector<32x48xf32> to vector<32x48xbf16>
    %cst_17 = arith.constant dense<0.000000e+00> : vector<64x48xf32>
    %71 = tpu.matmul %68, %70, %cst_17 {dimension_numbers = #tpu.dot_dimension_numbers<[1], [0], [0], [1], [0, 0, 1, 1], [], []>} : vector<64x32xbf16>, vector<32x48xbf16>, vector<64x48xf32> -> vector<64x48xf32>
    %72 = vector.broadcast %2 : vector<1x48xf32> to vector<64x48xf32>
    %73 = arith.addf %71, %72 : vector<64x48xf32>
    %74 = vector.shape_cast %73 : vector<64x48xf32> to vector<8x8x48xf32>
    %c0_18 = arith.constant 0 : index
    %c0_19 = arith.constant 0 : index
    %c0_20 = arith.constant 0 : index
    %c0_21 = arith.constant 0 : index
    %75 = vector.load %arg6[%c0_18, %c0_19, %c0_20, %c0_21] : memref<1x8x8x48xf32, #tpu.memory_space<vmem>>, vector<1x8x8x48xf32>
    %76 = vector.shape_cast %75 : vector<1x8x8x48xf32> to vector<8x8x48xf32>
    %77 = vector.shape_cast %74 : vector<8x8x48xf32> to vector<1x8x8x48xf32>
    tpu.vector_store %arg6[%c0_18, %c0_19, %c0_20, %c0_21], %77 {strides = array<i32>} : memref<1x8x8x48xf32, #tpu.memory_space<vmem>>, vector<1x8x8x48xf32>,
    return
  }
  func.func @transform_0(%arg0: i32) -> (i32, i32, i32, i32) {
    %c0_i32 = arith.constant 0 : i32
    %c0_i32_0 = arith.constant 0 : i32
    %c0_i32_1 = arith.constant 0 : i32
    %c0_i32_2 = arith.constant 0 : i32
    return %arg0, %c0_i32, %c0_i32_0, %c0_i32_1 : i32, i32, i32, i32
  }
  func.func @transform_1(%arg0: i32) -> (i32, i32) {
    %c0_i32 = arith.constant 0 : i32
    %c0_i32_0 = arith.constant 0 : i32
    %c0_i32_1 = arith.constant 0 : i32
    return %c0_i32, %c0_i32_0 : i32, i32
  }
  func.func @transform_2(%arg0: i32) -> (i32, i32) {
    %c0_i32 = arith.constant 0 : i32
    %c0_i32_0 = arith.constant 0 : i32
    %c0_i32_1 = arith.constant 0 : i32
    return %c0_i32, %c0_i32_0 : i32, i32
  }
  func.func @transform_3(%arg0: i32) -> (i32, i32) {
    %c0_i32 = arith.constant 0 : i32
    %c0_i32_0 = arith.constant 0 : i32
    %c0_i32_1 = arith.constant 0 : i32
    return %c0_i32, %c0_i32_0 : i32, i32
  }
  func.func @transform_4(%arg0: i32) -> (i32, i32) {
    %c0_i32 = arith.constant 0 : i32
    %c0_i32_0 = arith.constant 0 : i32
    %c0_i32_1 = arith.constant 0 : i32
    return %c0_i32, %c0_i32_0 : i32, i32
  }
  func.func @transform_5(%arg0: i32) -> (i32, i32, i32, i32) {
    %c0_i32 = arith.constant 0 : i32
    %c0_i32_0 = arith.constant 0 : i32
    %c0_i32_1 = arith.constant 0 : i32
    %c0_i32_2 = arith.constant 0 : i32
    return %arg0, %c0_i32, %c0_i32_0, %c0_i32_1 : i32, i32, i32, i32
  }
}

module attributes {stable_mosaic.version = 11 : i64} {
  func.func @lo_attn_kernel(%arg0: i32, %arg1: i32, %arg2: memref<1x64x16xf32, #tpu.memory_space<vmem>>, %arg3: memref<1x16x32xf32, #tpu.memory_space<vmem>>, %arg4: memref<1x64x16xf32, #tpu.memory_space<vmem>>) attributes {dimension_semantics = [#tpu.dimension_semantics<parallel>, #tpu.dimension_semantics<parallel>], iteration_bounds = array<i64: 2, 1>, scalar_prefetch = 0 : i64, scratch_operands = 0 : i64, tpu.core_type = #tpu.core_type<tc>, window_params = [{transform_indices = @transform_0, window_bounds = array<i64: 1, 64, 16>}, {transform_indices = @transform_1, window_bounds = array<i64: 1, 16, 32>}, {transform_indices = @transform_2, window_bounds = array<i64: 1, 64, 16>}]} {
    %c0 = arith.constant 0 : index
    %c0_0 = arith.constant 0 : index
    %c0_1 = arith.constant 0 : index
    %0 = vector.load %arg2[%c0, %c0_0, %c0_1] : memref<1x64x16xf32, #tpu.memory_space<vmem>>, vector<1x64x4xf32>
    %1 = vector.shape_cast %0 : vector<1x64x4xf32> to vector<64x4xf32>
    %2 = arith.truncf %1 : vector<64x4xf32> to vector<64x4xbf16>
    %c0_2 = arith.constant 0 : index
    %c0_3 = arith.constant 0 : index
    %c0_4 = arith.constant 0 : index
    %3 = vector.load %arg3[%c0_2, %c0_3, %c0_4] : memref<1x16x32xf32, #tpu.memory_space<vmem>>, vector<1x16x4xf32>
    %4 = vector.shape_cast %3 : vector<1x16x4xf32> to vector<16x4xf32>
    %5 = arith.truncf %4 : vector<16x4xf32> to vector<16x4xbf16>
    %c0_5 = arith.constant 0 : index
    %c0_6 = arith.constant 0 : index
    %c16 = arith.constant 16 : index
    %6 = vector.load %arg3[%c0_5, %c0_6, %c16] : memref<1x16x32xf32, #tpu.memory_space<vmem>>, vector<1x16x4xf32>
    %7 = vector.shape_cast %6 : vector<1x16x4xf32> to vector<16x4xf32>
    %8 = arith.truncf %7 : vector<16x4xf32> to vector<16x4xbf16>
    %cst = arith.constant dense<0.000000e+00> : vector<64x16xf32>
    %9 = tpu.matmul %2, %5, %cst {dimension_numbers = #tpu.dot_dimension_numbers<[1], [1], [0], [0], [0, 0, 1, 0], [], []>} : vector<64x4xbf16>, vector<16x4xbf16>, vector<64x16xf32> -> vector<64x16xf32>
    %cst_7 = arith.constant 5.000000e-01 : f32
    %10 = vector.broadcast %cst_7 : f32 to vector<64x16xf32>
    %11 = arith.mulf %9, %10 : vector<64x16xf32>
    %cst_8 = arith.constant dense<0xFF800000> : vector<64xf32>
    %12 = vector.multi_reduction <maximumf>, %11, %cst_8 [1] : vector<64x16xf32> to vector<64xf32>
    %13 = vector.shape_cast %12 : vector<64xf32> to vector<64x1xf32>
    %14 = vector.broadcast %13 : vector<64x1xf32> to vector<64x16xf32>
    %15 = arith.subf %11, %14 : vector<64x16xf32>
    %16 = math.exp %15 : vector<64x16xf32>
    %cst_9 = arith.constant dense<0.000000e+00> : vector<64xf32>
    %17 = vector.multi_reduction <add>, %16, %cst_9 [1] : vector<64x16xf32> to vector<64xf32>
    %18 = vector.shape_cast %17 : vector<64xf32> to vector<64x1xf32>
    %19 = tpu.reciprocal %18 {approx = true} : vector<64x1xf32> -> vector<64x1xf32>
    %20 = vector.broadcast %19 : vector<64x1xf32> to vector<64x16xf32>
    %21 = arith.mulf %16, %20 : vector<64x16xf32>
    %22 = arith.truncf %21 : vector<64x16xf32> to vector<64x16xbf16>
    %cst_10 = arith.constant dense<0.000000e+00> : vector<64x4xf32>
    %23 = tpu.matmul %22, %8, %cst_10 {dimension_numbers = #tpu.dot_dimension_numbers<[1], [0], [0], [1], [0, 0, 1, 1], [], []>} : vector<64x16xbf16>, vector<16x4xbf16>, vector<64x4xf32> -> vector<64x4xf32>
    %c0_11 = arith.constant 0 : index
    %c0_12 = arith.constant 0 : index
    %c4 = arith.constant 4 : index
    %24 = vector.load %arg2[%c0_11, %c0_12, %c4] : memref<1x64x16xf32, #tpu.memory_space<vmem>>, vector<1x64x4xf32>
    %25 = vector.shape_cast %24 : vector<1x64x4xf32> to vector<64x4xf32>
    %26 = arith.truncf %25 : vector<64x4xf32> to vector<64x4xbf16>
    %c0_13 = arith.constant 0 : index
    %c0_14 = arith.constant 0 : index
    %c4_15 = arith.constant 4 : index
    %27 = vector.load %arg3[%c0_13, %c0_14, %c4_15] : memref<1x16x32xf32, #tpu.memory_space<vmem>>, vector<1x16x4xf32>
    %28 = vector.shape_cast %27 : vector<1x16x4xf32> to vector<16x4xf32>
    %29 = arith.truncf %28 : vector<16x4xf32> to vector<16x4xbf16>
    %c0_16 = arith.constant 0 : index
    %c0_17 = arith.constant 0 : index
    %c20 = arith.constant 20 : index
    %30 = vector.load %arg3[%c0_16, %c0_17, %c20] : memref<1x16x32xf32, #tpu.memory_space<vmem>>, vector<1x16x4xf32>
    %31 = vector.shape_cast %30 : vector<1x16x4xf32> to vector<16x4xf32>
    %32 = arith.truncf %31 : vector<16x4xf32> to vector<16x4xbf16>
    %cst_18 = arith.constant dense<0.000000e+00> : vector<64x16xf32>
    %33 = tpu.matmul %26, %29, %cst_18 {dimension_numbers = #tpu.dot_dimension_numbers<[1], [1], [0], [0], [0, 0, 1, 0], [], []>} : vector<64x4xbf16>, vector<16x4xbf16>, vector<64x16xf32> -> vector<64x16xf32>
    %cst_19 = arith.constant 5.000000e-01 : f32
    %34 = vector.broadcast %cst_19 : f32 to vector<64x16xf32>
    %35 = arith.mulf %33, %34 : vector<64x16xf32>
    %cst_20 = arith.constant dense<0xFF800000> : vector<64xf32>
    %36 = vector.multi_reduction <maximumf>, %35, %cst_20 [1] : vector<64x16xf32> to vector<64xf32>
    %37 = vector.shape_cast %36 : vector<64xf32> to vector<64x1xf32>
    %38 = vector.broadcast %37 : vector<64x1xf32> to vector<64x16xf32>
    %39 = arith.subf %35, %38 : vector<64x16xf32>
    %40 = math.exp %39 : vector<64x16xf32>
    %cst_21 = arith.constant dense<0.000000e+00> : vector<64xf32>
    %41 = vector.multi_reduction <add>, %40, %cst_21 [1] : vector<64x16xf32> to vector<64xf32>
    %42 = vector.shape_cast %41 : vector<64xf32> to vector<64x1xf32>
    %43 = tpu.reciprocal %42 {approx = true} : vector<64x1xf32> -> vector<64x1xf32>
    %44 = vector.broadcast %43 : vector<64x1xf32> to vector<64x16xf32>
    %45 = arith.mulf %40, %44 : vector<64x16xf32>
    %46 = arith.truncf %45 : vector<64x16xf32> to vector<64x16xbf16>
    %cst_22 = arith.constant dense<0.000000e+00> : vector<64x4xf32>
    %47 = tpu.matmul %46, %32, %cst_22 {dimension_numbers = #tpu.dot_dimension_numbers<[1], [0], [0], [1], [0, 0, 1, 1], [], []>} : vector<64x16xbf16>, vector<16x4xbf16>, vector<64x4xf32> -> vector<64x4xf32>
    %c0_23 = arith.constant 0 : index
    %c0_24 = arith.constant 0 : index
    %c8 = arith.constant 8 : index
    %48 = vector.load %arg2[%c0_23, %c0_24, %c8] : memref<1x64x16xf32, #tpu.memory_space<vmem>>, vector<1x64x4xf32>
    %49 = vector.shape_cast %48 : vector<1x64x4xf32> to vector<64x4xf32>
    %50 = arith.truncf %49 : vector<64x4xf32> to vector<64x4xbf16>
    %c0_25 = arith.constant 0 : index
    %c0_26 = arith.constant 0 : index
    %c8_27 = arith.constant 8 : index
    %51 = vector.load %arg3[%c0_25, %c0_26, %c8_27] : memref<1x16x32xf32, #tpu.memory_space<vmem>>, vector<1x16x4xf32>
    %52 = vector.shape_cast %51 : vector<1x16x4xf32> to vector<16x4xf32>
    %53 = arith.truncf %52 : vector<16x4xf32> to vector<16x4xbf16>
    %c0_28 = arith.constant 0 : index
    %c0_29 = arith.constant 0 : index
    %c24 = arith.constant 24 : index
    %54 = vector.load %arg3[%c0_28, %c0_29, %c24] : memref<1x16x32xf32, #tpu.memory_space<vmem>>, vector<1x16x4xf32>
    %55 = vector.shape_cast %54 : vector<1x16x4xf32> to vector<16x4xf32>
    %56 = arith.truncf %55 : vector<16x4xf32> to vector<16x4xbf16>
    %cst_30 = arith.constant dense<0.000000e+00> : vector<64x16xf32>
    %57 = tpu.matmul %50, %53, %cst_30 {dimension_numbers = #tpu.dot_dimension_numbers<[1], [1], [0], [0], [0, 0, 1, 0], [], []>} : vector<64x4xbf16>, vector<16x4xbf16>, vector<64x16xf32> -> vector<64x16xf32>
    %cst_31 = arith.constant 5.000000e-01 : f32
    %58 = vector.broadcast %cst_31 : f32 to vector<64x16xf32>
    %59 = arith.mulf %57, %58 : vector<64x16xf32>
    %cst_32 = arith.constant dense<0xFF800000> : vector<64xf32>
    %60 = vector.multi_reduction <maximumf>, %59, %cst_32 [1] : vector<64x16xf32> to vector<64xf32>
    %61 = vector.shape_cast %60 : vector<64xf32> to vector<64x1xf32>
    %62 = vector.broadcast %61 : vector<64x1xf32> to vector<64x16xf32>
    %63 = arith.subf %59, %62 : vector<64x16xf32>
    %64 = math.exp %63 : vector<64x16xf32>
    %cst_33 = arith.constant dense<0.000000e+00> : vector<64xf32>
    %65 = vector.multi_reduction <add>, %64, %cst_33 [1] : vector<64x16xf32> to vector<64xf32>
    %66 = vector.shape_cast %65 : vector<64xf32> to vector<64x1xf32>
    %67 = tpu.reciprocal %66 {approx = true} : vector<64x1xf32> -> vector<64x1xf32>
    %68 = vector.broadcast %67 : vector<64x1xf32> to vector<64x16xf32>
    %69 = arith.mulf %64, %68 : vector<64x16xf32>
    %70 = arith.truncf %69 : vector<64x16xf32> to vector<64x16xbf16>
    %cst_34 = arith.constant dense<0.000000e+00> : vector<64x4xf32>
    %71 = tpu.matmul %70, %56, %cst_34 {dimension_numbers = #tpu.dot_dimension_numbers<[1], [0], [0], [1], [0, 0, 1, 1], [], []>} : vector<64x16xbf16>, vector<16x4xbf16>, vector<64x4xf32> -> vector<64x4xf32>
    %c0_35 = arith.constant 0 : index
    %c0_36 = arith.constant 0 : index
    %c12 = arith.constant 12 : index
    %72 = vector.load %arg2[%c0_35, %c0_36, %c12] : memref<1x64x16xf32, #tpu.memory_space<vmem>>, vector<1x64x4xf32>
    %73 = vector.shape_cast %72 : vector<1x64x4xf32> to vector<64x4xf32>
    %74 = arith.truncf %73 : vector<64x4xf32> to vector<64x4xbf16>
    %c0_37 = arith.constant 0 : index
    %c0_38 = arith.constant 0 : index
    %c12_39 = arith.constant 12 : index
    %75 = vector.load %arg3[%c0_37, %c0_38, %c12_39] : memref<1x16x32xf32, #tpu.memory_space<vmem>>, vector<1x16x4xf32>
    %76 = vector.shape_cast %75 : vector<1x16x4xf32> to vector<16x4xf32>
    %77 = arith.truncf %76 : vector<16x4xf32> to vector<16x4xbf16>
    %c0_40 = arith.constant 0 : index
    %c0_41 = arith.constant 0 : index
    %c28 = arith.constant 28 : index
    %78 = vector.load %arg3[%c0_40, %c0_41, %c28] : memref<1x16x32xf32, #tpu.memory_space<vmem>>, vector<1x16x4xf32>
    %79 = vector.shape_cast %78 : vector<1x16x4xf32> to vector<16x4xf32>
    %80 = arith.truncf %79 : vector<16x4xf32> to vector<16x4xbf16>
    %cst_42 = arith.constant dense<0.000000e+00> : vector<64x16xf32>
    %81 = tpu.matmul %74, %77, %cst_42 {dimension_numbers = #tpu.dot_dimension_numbers<[1], [1], [0], [0], [0, 0, 1, 0], [], []>} : vector<64x4xbf16>, vector<16x4xbf16>, vector<64x16xf32> -> vector<64x16xf32>
    %cst_43 = arith.constant 5.000000e-01 : f32
    %82 = vector.broadcast %cst_43 : f32 to vector<64x16xf32>
    %83 = arith.mulf %81, %82 : vector<64x16xf32>
    %cst_44 = arith.constant dense<0xFF800000> : vector<64xf32>
    %84 = vector.multi_reduction <maximumf>, %83, %cst_44 [1] : vector<64x16xf32> to vector<64xf32>
    %85 = vector.shape_cast %84 : vector<64xf32> to vector<64x1xf32>
    %86 = vector.broadcast %85 : vector<64x1xf32> to vector<64x16xf32>
    %87 = arith.subf %83, %86 : vector<64x16xf32>
    %88 = math.exp %87 : vector<64x16xf32>
    %cst_45 = arith.constant dense<0.000000e+00> : vector<64xf32>
    %89 = vector.multi_reduction <add>, %88, %cst_45 [1] : vector<64x16xf32> to vector<64xf32>
    %90 = vector.shape_cast %89 : vector<64xf32> to vector<64x1xf32>
    %91 = tpu.reciprocal %90 {approx = true} : vector<64x1xf32> -> vector<64x1xf32>
    %92 = vector.broadcast %91 : vector<64x1xf32> to vector<64x16xf32>
    %93 = arith.mulf %88, %92 : vector<64x16xf32>
    %94 = arith.truncf %93 : vector<64x16xf32> to vector<64x16xbf16>
    %cst_46 = arith.constant dense<0.000000e+00> : vector<64x4xf32>
    %95 = tpu.matmul %94, %80, %cst_46 {dimension_numbers = #tpu.dot_dimension_numbers<[1], [0], [0], [1], [0, 0, 1, 1], [], []>} : vector<64x16xbf16>, vector<16x4xbf16>, vector<64x4xf32> -> vector<64x4xf32>
    %96 = tpu.concatenate %23, %47, %71, %95 in 1 : vector<64x4xf32>, vector<64x4xf32>, vector<64x4xf32>, vector<64x4xf32> -> vector<64x16xf32>
    %c0_47 = arith.constant 0 : index
    %c0_48 = arith.constant 0 : index
    %c0_49 = arith.constant 0 : index
    %97 = vector.load %arg4[%c0_47, %c0_48, %c0_49] : memref<1x64x16xf32, #tpu.memory_space<vmem>>, vector<1x64x16xf32>
    %98 = vector.shape_cast %97 : vector<1x64x16xf32> to vector<64x16xf32>
    %99 = vector.shape_cast %96 : vector<64x16xf32> to vector<1x64x16xf32>
    tpu.vector_store %arg4[%c0_47, %c0_48, %c0_49], %99 {strides = array<i32>} : memref<1x64x16xf32, #tpu.memory_space<vmem>>, vector<1x64x16xf32>,
    return
  }
  func.func @transform_0(%arg0: i32, %arg1: i32) -> (i32, i32, i32) {
    %c0_i32 = arith.constant 0 : i32
    %c0_i32_0 = arith.constant 0 : i32
    return %arg0, %arg1, %c0_i32 : i32, i32, i32
  }
  func.func @transform_1(%arg0: i32, %arg1: i32) -> (i32, i32, i32) {
    %c0_i32 = arith.constant 0 : i32
    %c0_i32_0 = arith.constant 0 : i32
    %c0_i32_1 = arith.constant 0 : i32
    return %arg0, %c0_i32, %c0_i32_0 : i32, i32, i32
  }
  func.func @transform_2(%arg0: i32, %arg1: i32) -> (i32, i32, i32) {
    %c0_i32 = arith.constant 0 : i32
    %c0_i32_0 = arith.constant 0 : i32
    return %arg0, %arg1, %c0_i32 : i32, i32, i32
  }
}

module attributes {stable_mosaic.version = 11 : i64} {
  func.func @dsc_kernel(%arg0: i32, %arg1: memref<1x10x10x16xf32, #tpu.memory_space<vmem>>, %arg2: memref<9x16xf32, #tpu.memory_space<vmem>>, %arg3: memref<1x16xf32, #tpu.memory_space<vmem>>, %arg4: memref<16x16xf32, #tpu.memory_space<vmem>>, %arg5: memref<1x16xf32, #tpu.memory_space<vmem>>, %arg6: memref<1x8x8x16xf32, #tpu.memory_space<vmem>>) attributes {dimension_semantics = [#tpu.dimension_semantics<parallel>], iteration_bounds = array<i64: 2>, scalar_prefetch = 0 : i64, scratch_operands = 0 : i64, tpu.core_type = #tpu.core_type<tc>, window_params = [{transform_indices = @transform_0, window_bounds = array<i64: 1, 10, 10, 16>}, {pipeline_mode = #tpu.pipeline_mode<synchronous>, transform_indices = @transform_1, window_bounds = array<i64: 9, 16>}, {pipeline_mode = #tpu.pipeline_mode<synchronous>, transform_indices = @transform_2, window_bounds = array<i64: 1, 16>}, {pipeline_mode = #tpu.pipeline_mode<synchronous>, transform_indices = @transform_3, window_bounds = array<i64: 16, 16>}, {pipeline_mode = #tpu.pipeline_mode<synchronous>, transform_indices = @transform_4, window_bounds = array<i64: 1, 16>}, {transform_indices = @transform_5, window_bounds = array<i64: 1, 8, 8, 16>}]} {
    %c0 = arith.constant 0 : index
    %c0_0 = arith.constant 0 : index
    %0 = vector.load %arg2[%c0, %c0_0] : memref<9x16xf32, #tpu.memory_space<vmem>>, vector<9x16xf32>
    %c0_1 = arith.constant 0 : index
    %c0_2 = arith.constant 0 : index
    %1 = vector.load %arg3[%c0_1, %c0_2] : memref<1x16xf32, #tpu.memory_space<vmem>>, vector<1x16xf32>
    %c0_3 = arith.constant 0 : index
    %c0_4 = arith.constant 0 : index
    %2 = vector.load %arg5[%c0_3, %c0_4] : memref<1x16xf32, #tpu.memory_space<vmem>>, vector<1x16xf32>
    %c0_5 = arith.constant 0 : index
    %c0_6 = arith.constant 0 : index
    %c0_7 = arith.constant 0 : index
    %c0_8 = arith.constant 0 : index
    %3 = vector.load %arg1[%c0_5, %c0_6, %c0_7, %c0_8] : memref<1x10x10x16xf32, #tpu.memory_space<vmem>>, vector<1x10x8x16xf32>
    %4 = vector.shape_cast %3 : vector<1x10x8x16xf32> to vector<10x8x16xf32>
    %c0_9 = arith.constant 0 : index
    %c0_10 = arith.constant 0 : index
    %c1 = arith.constant 1 : index
    %c0_11 = arith.constant 0 : index
    %5 = vector.load %arg1[%c0_9, %c0_10, %c1, %c0_11] : memref<1x10x10x16xf32, #tpu.memory_space<vmem>>, vector<1x10x8x16xf32>
    %6 = vector.shape_cast %5 : vector<1x10x8x16xf32> to vector<10x8x16xf32>
    %c0_12 = arith.constant 0 : index
    %c0_13 = arith.constant 0 : index
    %c2 = arith.constant 2 : index
    %c0_14 = arith.constant 0 : index
    %7 = vector.load %arg1[%c0_12, %c0_13, %c2, %c0_14] : memref<1x10x10x16xf32, #tpu.memory_space<vmem>>, vector<1x10x8x16xf32>
    %8 = vector.shape_cast %7 : vector<1x10x8x16xf32> to vector<10x8x16xf32>
    %cst = arith.constant 0.000000e+00 : f32
    %9 = vector.broadcast %cst : f32 to vector<8x8x16xf32>
    %10 = vector.extract_strided_slice %4 {offsets = [0, 0, 0], sizes = [8, 8, 16], strides = [1, 1, 1]} : vector<10x8x16xf32> to vector<8x8x16xf32>
    %11 = vector.extract_strided_slice %0 {offsets = [0, 0], sizes = [1, 16], strides = [1, 1]} : vector<9x16xf32> to vector<1x16xf32>
    %12 = vector.shape_cast %11 : vector<1x16xf32> to vector<1x1x16xf32>
    %13 = vector.broadcast %12 : vector<1x1x16xf32> to vector<8x8x16xf32>
    %14 = arith.mulf %10, %13 : vector<8x8x16xf32>
    %15 = arith.addf %9, %14 : vector<8x8x16xf32>
    %16 = vector.extract_strided_slice %6 {offsets = [0, 0, 0], sizes = [8, 8, 16], strides = [1, 1, 1]} : vector<10x8x16xf32> to vector<8x8x16xf32>
    %17 = vector.extract_strided_slice %0 {offsets = [1, 0], sizes = [1, 16], strides = [1, 1]} : vector<9x16xf32> to vector<1x16xf32>
    %18 = vector.shape_cast %17 : vector<1x16xf32> to vector<1x1x16xf32>
    %19 = vector.broadcast %18 : vector<1x1x16xf32> to vector<8x8x16xf32>
    %20 = arith.mulf %16, %19 : vector<8x8x16xf32>
    %21 = arith.addf %15, %20 : vector<8x8x16xf32>
    %22 = vector.extract_strided_slice %8 {offsets = [0, 0, 0], sizes = [8, 8, 16], strides = [1, 1, 1]} : vector<10x8x16xf32> to vector<8x8x16xf32>
    %23 = vector.extract_strided_slice %0 {offsets = [2, 0], sizes = [1, 16], strides = [1, 1]} : vector<9x16xf32> to vector<1x16xf32>
    %24 = vector.shape_cast %23 : vector<1x16xf32> to vector<1x1x16xf32>
    %25 = vector.broadcast %24 : vector<1x1x16xf32> to vector<8x8x16xf32>
    %26 = arith.mulf %22, %25 : vector<8x8x16xf32>
    %27 = arith.addf %21, %26 : vector<8x8x16xf32>
    %28 = vector.extract_strided_slice %4 {offsets = [1, 0, 0], sizes = [8, 8, 16], strides = [1, 1, 1]} : vector<10x8x16xf32> to vector<8x8x16xf32>
    %29 = vector.extract_strided_slice %0 {offsets = [3, 0], sizes = [1, 16], strides = [1, 1]} : vector<9x16xf32> to vector<1x16xf32>
    %30 = vector.shape_cast %29 : vector<1x16xf32> to vector<1x1x16xf32>
    %31 = vector.broadcast %30 : vector<1x1x16xf32> to vector<8x8x16xf32>
    %32 = arith.mulf %28, %31 : vector<8x8x16xf32>
    %33 = arith.addf %27, %32 : vector<8x8x16xf32>
    %34 = vector.extract_strided_slice %6 {offsets = [1, 0, 0], sizes = [8, 8, 16], strides = [1, 1, 1]} : vector<10x8x16xf32> to vector<8x8x16xf32>
    %35 = vector.extract_strided_slice %0 {offsets = [4, 0], sizes = [1, 16], strides = [1, 1]} : vector<9x16xf32> to vector<1x16xf32>
    %36 = vector.shape_cast %35 : vector<1x16xf32> to vector<1x1x16xf32>
    %37 = vector.broadcast %36 : vector<1x1x16xf32> to vector<8x8x16xf32>
    %38 = arith.mulf %34, %37 : vector<8x8x16xf32>
    %39 = arith.addf %33, %38 : vector<8x8x16xf32>
    %40 = vector.extract_strided_slice %8 {offsets = [1, 0, 0], sizes = [8, 8, 16], strides = [1, 1, 1]} : vector<10x8x16xf32> to vector<8x8x16xf32>
    %41 = vector.extract_strided_slice %0 {offsets = [5, 0], sizes = [1, 16], strides = [1, 1]} : vector<9x16xf32> to vector<1x16xf32>
    %42 = vector.shape_cast %41 : vector<1x16xf32> to vector<1x1x16xf32>
    %43 = vector.broadcast %42 : vector<1x1x16xf32> to vector<8x8x16xf32>
    %44 = arith.mulf %40, %43 : vector<8x8x16xf32>
    %45 = arith.addf %39, %44 : vector<8x8x16xf32>
    %46 = vector.extract_strided_slice %4 {offsets = [2, 0, 0], sizes = [8, 8, 16], strides = [1, 1, 1]} : vector<10x8x16xf32> to vector<8x8x16xf32>
    %47 = vector.extract_strided_slice %0 {offsets = [6, 0], sizes = [1, 16], strides = [1, 1]} : vector<9x16xf32> to vector<1x16xf32>
    %48 = vector.shape_cast %47 : vector<1x16xf32> to vector<1x1x16xf32>
    %49 = vector.broadcast %48 : vector<1x1x16xf32> to vector<8x8x16xf32>
    %50 = arith.mulf %46, %49 : vector<8x8x16xf32>
    %51 = arith.addf %45, %50 : vector<8x8x16xf32>
    %52 = vector.extract_strided_slice %6 {offsets = [2, 0, 0], sizes = [8, 8, 16], strides = [1, 1, 1]} : vector<10x8x16xf32> to vector<8x8x16xf32>
    %53 = vector.extract_strided_slice %0 {offsets = [7, 0], sizes = [1, 16], strides = [1, 1]} : vector<9x16xf32> to vector<1x16xf32>
    %54 = vector.shape_cast %53 : vector<1x16xf32> to vector<1x1x16xf32>
    %55 = vector.broadcast %54 : vector<1x1x16xf32> to vector<8x8x16xf32>
    %56 = arith.mulf %52, %55 : vector<8x8x16xf32>
    %57 = arith.addf %51, %56 : vector<8x8x16xf32>
    %58 = vector.extract_strided_slice %8 {offsets = [2, 0, 0], sizes = [8, 8, 16], strides = [1, 1, 1]} : vector<10x8x16xf32> to vector<8x8x16xf32>
    %59 = vector.extract_strided_slice %0 {offsets = [8, 0], sizes = [1, 16], strides = [1, 1]} : vector<9x16xf32> to vector<1x16xf32>
    %60 = vector.shape_cast %59 : vector<1x16xf32> to vector<1x1x16xf32>
    %61 = vector.broadcast %60 : vector<1x1x16xf32> to vector<8x8x16xf32>
    %62 = arith.mulf %58, %61 : vector<8x8x16xf32>
    %63 = arith.addf %57, %62 : vector<8x8x16xf32>
    %64 = vector.shape_cast %1 : vector<1x16xf32> to vector<1x1x16xf32>
    %65 = vector.broadcast %64 : vector<1x1x16xf32> to vector<8x8x16xf32>
    %66 = arith.addf %63, %65 : vector<8x8x16xf32>
    %67 = vector.shape_cast %66 : vector<8x8x16xf32> to vector<64x16xf32>
    %68 = arith.truncf %67 : vector<64x16xf32> to vector<64x16xbf16>
    %c0_15 = arith.constant 0 : index
    %c0_16 = arith.constant 0 : index
    %69 = vector.load %arg4[%c0_15, %c0_16] : memref<16x16xf32, #tpu.memory_space<vmem>>, vector<16x16xf32>
    %70 = arith.truncf %69 : vector<16x16xf32> to vector<16x16xbf16>
    %cst_17 = arith.constant dense<0.000000e+00> : vector<64x16xf32>
    %71 = tpu.matmul %68, %70, %cst_17 {dimension_numbers = #tpu.dot_dimension_numbers<[1], [0], [0], [1], [0, 0, 1, 1], [], []>} : vector<64x16xbf16>, vector<16x16xbf16>, vector<64x16xf32> -> vector<64x16xf32>
    %72 = vector.broadcast %2 : vector<1x16xf32> to vector<64x16xf32>
    %73 = arith.addf %71, %72 : vector<64x16xf32>
    %74 = vector.shape_cast %73 : vector<64x16xf32> to vector<8x8x16xf32>
    %c0_18 = arith.constant 0 : index
    %c0_19 = arith.constant 0 : index
    %c0_20 = arith.constant 0 : index
    %c0_21 = arith.constant 0 : index
    %75 = vector.load %arg6[%c0_18, %c0_19, %c0_20, %c0_21] : memref<1x8x8x16xf32, #tpu.memory_space<vmem>>, vector<1x8x8x16xf32>
    %76 = vector.shape_cast %75 : vector<1x8x8x16xf32> to vector<8x8x16xf32>
    %77 = vector.shape_cast %74 : vector<8x8x16xf32> to vector<1x8x8x16xf32>
    tpu.vector_store %arg6[%c0_18, %c0_19, %c0_20, %c0_21], %77 {strides = array<i32>} : memref<1x8x8x16xf32, #tpu.memory_space<vmem>>, vector<1x8x8x16xf32>,
    return
  }
  func.func @transform_0(%arg0: i32) -> (i32, i32, i32, i32) {
    %c0_i32 = arith.constant 0 : i32
    %c0_i32_0 = arith.constant 0 : i32
    %c0_i32_1 = arith.constant 0 : i32
    %c0_i32_2 = arith.constant 0 : i32
    return %arg0, %c0_i32, %c0_i32_0, %c0_i32_1 : i32, i32, i32, i32
  }
  func.func @transform_1(%arg0: i32) -> (i32, i32) {
    %c0_i32 = arith.constant 0 : i32
    %c0_i32_0 = arith.constant 0 : i32
    %c0_i32_1 = arith.constant 0 : i32
    return %c0_i32, %c0_i32_0 : i32, i32
  }
  func.func @transform_2(%arg0: i32) -> (i32, i32) {
    %c0_i32 = arith.constant 0 : i32
    %c0_i32_0 = arith.constant 0 : i32
    %c0_i32_1 = arith.constant 0 : i32
    return %c0_i32, %c0_i32_0 : i32, i32
  }
  func.func @transform_3(%arg0: i32) -> (i32, i32) {
    %c0_i32 = arith.constant 0 : i32
    %c0_i32_0 = arith.constant 0 : i32
    %c0_i32_1 = arith.constant 0 : i32
    return %c0_i32, %c0_i32_0 : i32, i32
  }
  func.func @transform_4(%arg0: i32) -> (i32, i32) {
    %c0_i32 = arith.constant 0 : i32
    %c0_i32_0 = arith.constant 0 : i32
    %c0_i32_1 = arith.constant 0 : i32
    return %c0_i32, %c0_i32_0 : i32, i32
  }
  func.func @transform_5(%arg0: i32) -> (i32, i32, i32, i32) {
    %c0_i32 = arith.constant 0 : i32
    %c0_i32_0 = arith.constant 0 : i32
    %c0_i32_1 = arith.constant 0 : i32
    %c0_i32_2 = arith.constant 0 : i32
    return %arg0, %c0_i32, %c0_i32_0, %c0_i32_1 : i32, i32, i32, i32
  }
}

module attributes {stable_mosaic.version = 11 : i64} {
  func.func @hi_attn_kernel(%arg0: i32, %arg1: memref<4x4x128xf32, #tpu.memory_space<vmem>>, %arg2: memref<4x4x128xf32, #tpu.memory_space<vmem>>, %arg3: memref<4x4x128xf32, #tpu.memory_space<vmem>>, %arg4: memref<4x4x128xf32, #tpu.memory_space<vmem>>) attributes {dimension_semantics = [#tpu.dimension_semantics<parallel>], iteration_bounds = array<i64: 1>, scalar_prefetch = 0 : i64, scratch_operands = 0 : i64, tpu.core_type = #tpu.core_type<tc>, window_params = [{transform_indices = @transform_0, window_bounds = array<i64: 4, 4, 128>}, {transform_indices = @transform_1, window_bounds = array<i64: 4, 4, 128>}, {transform_indices = @transform_2, window_bounds = array<i64: 4, 4, 128>}, {transform_indices = @transform_3, window_bounds = array<i64: 4, 4, 128>}]} {
    %c0 = arith.constant 0 : index
    %c0_0 = arith.constant 0 : index
    %c0_1 = arith.constant 0 : index
    %0 = vector.load %arg1[%c0, %c0_0, %c0_1] : memref<4x4x128xf32, #tpu.memory_space<vmem>>, vector<4x4x128xf32>
    %c0_2 = arith.constant 0 : index
    %c0_3 = arith.constant 0 : index
    %c0_4 = arith.constant 0 : index
    %1 = vector.load %arg2[%c0_2, %c0_3, %c0_4] : memref<4x4x128xf32, #tpu.memory_space<vmem>>, vector<4x4x128xf32>
    %c0_5 = arith.constant 0 : index
    %c0_6 = arith.constant 0 : index
    %c0_7 = arith.constant 0 : index
    %2 = vector.load %arg3[%c0_5, %c0_6, %c0_7] : memref<4x4x128xf32, #tpu.memory_space<vmem>>, vector<4x4x128xf32>
    %3 = vector.shape_cast %0 : vector<4x4x128xf32> to vector<4x1x4x128xf32>
    %4 = vector.shape_cast %1 : vector<4x4x128xf32> to vector<1x4x4x128xf32>
    %5 = vector.broadcast %3 : vector<4x1x4x128xf32> to vector<4x4x4x128xf32>
    %6 = vector.broadcast %4 : vector<1x4x4x128xf32> to vector<4x4x4x128xf32>
    %7 = arith.mulf %5, %6 : vector<4x4x4x128xf32>
    %cst = arith.constant dense<0.000000e+00> : vector<4x4x128xf32>
    %8 = vector.multi_reduction <add>, %7, %cst [2] : vector<4x4x4x128xf32> to vector<4x4x128xf32>
    %9 = vector.shape_cast %8 : vector<4x4x128xf32> to vector<4x4x1x128xf32>
    %cst_8 = arith.constant 5.000000e-01 : f32
    %10 = vector.broadcast %cst_8 : f32 to vector<4x4x1x128xf32>
    %11 = arith.mulf %9, %10 : vector<4x4x1x128xf32>
    %cst_9 = arith.constant dense<0xFF800000> : vector<4x1x128xf32>
    %12 = vector.multi_reduction <maximumf>, %11, %cst_9 [1] : vector<4x4x1x128xf32> to vector<4x1x128xf32>
    %13 = vector.shape_cast %12 : vector<4x1x128xf32> to vector<4x1x1x128xf32>
    %14 = vector.broadcast %13 : vector<4x1x1x128xf32> to vector<4x4x1x128xf32>
    %15 = arith.subf %11, %14 : vector<4x4x1x128xf32>
    %16 = math.exp %15 : vector<4x4x1x128xf32>
    %cst_10 = arith.constant dense<0.000000e+00> : vector<4x1x128xf32>
    %17 = vector.multi_reduction <add>, %16, %cst_10 [1] : vector<4x4x1x128xf32> to vector<4x1x128xf32>
    %18 = vector.shape_cast %17 : vector<4x1x128xf32> to vector<4x1x1x128xf32>
    %19 = tpu.reciprocal %18 {approx = true} : vector<4x1x1x128xf32> -> vector<4x1x1x128xf32>
    %20 = vector.broadcast %19 : vector<4x1x1x128xf32> to vector<4x4x1x128xf32>
    %21 = arith.mulf %16, %20 : vector<4x4x1x128xf32>
    %22 = vector.shape_cast %2 : vector<4x4x128xf32> to vector<1x4x4x128xf32>
    %23 = vector.broadcast %21 : vector<4x4x1x128xf32> to vector<4x4x4x128xf32>
    %24 = vector.broadcast %22 : vector<1x4x4x128xf32> to vector<4x4x4x128xf32>
    %25 = arith.mulf %23, %24 : vector<4x4x4x128xf32>
    %cst_11 = arith.constant dense<0.000000e+00> : vector<4x4x128xf32>
    %26 = vector.multi_reduction <add>, %25, %cst_11 [1] : vector<4x4x4x128xf32> to vector<4x4x128xf32>
    %c0_12 = arith.constant 0 : index
    %c0_13 = arith.constant 0 : index
    %c0_14 = arith.constant 0 : index
    %27 = vector.load %arg4[%c0_12, %c0_13, %c0_14] : memref<4x4x128xf32, #tpu.memory_space<vmem>>, vector<4x4x128xf32>
    tpu.vector_store %arg4[%c0_12, %c0_13, %c0_14], %26 {strides = array<i32>} : memref<4x4x128xf32, #tpu.memory_space<vmem>>, vector<4x4x128xf32>,
    return
  }
  func.func @transform_0(%arg0: i32) -> (i32, i32, i32) {
    %c0_i32 = arith.constant 0 : i32
    %c0_i32_0 = arith.constant 0 : i32
    %c0_i32_1 = arith.constant 0 : i32
    return %c0_i32, %c0_i32_0, %arg0 : i32, i32, i32
  }
  func.func @transform_1(%arg0: i32) -> (i32, i32, i32) {
    %c0_i32 = arith.constant 0 : i32
    %c0_i32_0 = arith.constant 0 : i32
    %c0_i32_1 = arith.constant 0 : i32
    return %c0_i32, %c0_i32_0, %arg0 : i32, i32, i32
  }
  func.func @transform_2(%arg0: i32) -> (i32, i32, i32) {
    %c0_i32 = arith.constant 0 : i32
    %c0_i32_0 = arith.constant 0 : i32
    %c0_i32_1 = arith.constant 0 : i32
    return %c0_i32, %c0_i32_0, %arg0 : i32, i32, i32
  }
  func.func @transform_3(%arg0: i32) -> (i32, i32, i32) {
    %c0_i32 = arith.constant 0 : i32
    %c0_i32_0 = arith.constant 0 : i32
    %c0_i32_1 = arith.constant 0 : i32
    return %c0_i32, %c0_i32_0, %arg0 : i32, i32, i32
  }
}

</mosaic_0001>

<llo_original>
// kernel: fc_hilo1_forward.8
$region0: #{fc_hilo1_forward.8}
  #allocation0 [shape = 'u32[]', space=smem, size = 0x4, offset = 0x4, fixed_abs, tag = 'smem constant byte address 0x4 - core index']
  #allocation1 [shape = 'u32[144,128]{1,0:T(1,128)}', space=vmem, size = 0x12000, scoped, tag = 'internal scratch']
  %s0 = inlined_call_operand.vmem [shape: f32[2,4,2,4,2,32], index: 0, kind: input, shape index: {}]
  %s1 = inlined_call_operand.vmem [shape: f32[2,4,4,32], index: 1, kind: output, shape index: {0}]
  %s2 = inlined_call_operand.vmem [shape: f32[2,4,2,4,2,32], index: 2, kind: output, shape index: {1}]
  %3 = xla_tuple %s1, %s2
  %s4 = sld [smem:[#allocation0]]
  $region45: #{fc_hilo1_forward.8} parent=0
    _
  %s6 = ssub.s32 1, %s4
  %s7 = scalar_select 0, %s6, %s4
  loop: start=0, step=1, limit=4
  $region2: #{fc_hilo1_forward.8} parent=0 // loop_pre_header
    _
  $region3: #{fc_hilo1_forward.8} parent=0 // loop_header
    %s9 = sphi 0, %s13
    %p10 = scmp.ge.s32.totalorder %s9, 4
    %s19 = sphi 0, %s21
    %s22 = sphi 0, %s19
    %s23 = sphi 0, %s22
    %s39 = sphi 0, %s23
    %s45 = sphi 0, %s47
    %s48 = sphi 0, %s45
    %s49 = sphi 0, %s48
    %s65 = sphi 0, %s49
    %s71 = sphi 0, %s73
    %s74 = sphi 0, %s71
    %s75 = sphi 0, %s74
    %s91 = sphi 0, %s75
  $region4: #{fc_hilo1_forward.8} parent=0 // loop_header_branch
    %12 = sbr.rel (%p10) target = $region8
  $region5: #{fc_hilo1_forward.8} parent=0 // loop_body
    %s14 = ssub.s32 %s9, 1
    %s15 = ssub.s32 %s9, 2
    %s16 = sadd.s32 %s9, 1
    %s17 = ssub.s32 %s9, %s16
    %p18 = scmp.eq.s32.totalorder %s17, 0
    %s20 = sadd.s32 %s19, 1
    %s21 = scalar_select %p18, %s19, %s20
    %p24 = pneg %p18
    %p25 = scmp.eq.s32.totalorder %s9, 1
    %p26 = por %p24, %p25
    %p27 = scmp.ne.s32.totalorder %s19, %s22
    %p28 = scmp.eq.s32.totalorder %s9, 0
    %p29 = por %p27, %p28
    %p30 = scmp.ne.s32.totalorder %s19, %s22
    %p31 = scmp.eq.s32.totalorder %s14, 1
    %p32 = por %p30, %p31
    %p33 = scmp.ne.s32.totalorder %s22, %s23
    %p34 = scmp.eq.s32.totalorder %s14, 0
    %p35 = por %p33, %p34
    %p36 = scmp.ne.s32.totalorder %s22, %s23
    %p37 = scmp.eq.s32.totalorder %s15, 1
    %p38 = por %p36, %p37
    %p40 = scmp.ne.s32.totalorder %s23, %s39
    %p41 = scmp.eq.s32.totalorder %s15, 0
    %p42 = por %p40, %p41
    %s43 = ssub.s32 %s9, %s16
    %p44 = scmp.eq.s32.totalorder %s43, 0
    %s46 = sadd.s32 %s45, 1
    %s47 = scalar_select %p44, %s45, %s46
    %p50 = pneg %p44
    %p51 = scmp.eq.s32.totalorder %s9, 1
    %p52 = por %p50, %p51
    %p53 = scmp.ne.s32.totalorder %s45, %s48
    %p54 = scmp.eq.s32.totalorder %s9, 0
    %p55 = por %p53, %p54
    %p56 = scmp.ne.s32.totalorder %s45, %s48
    %p57 = scmp.eq.s32.totalorder %s14, 1
    %p58 = por %p56, %p57
    %p59 = scmp.ne.s32.totalorder %s48, %s49
    %p60 = scmp.eq.s32.totalorder %s14, 0
    %p61 = por %p59, %p60
    %p62 = scmp.ne.s32.totalorder %s48, %s49
    %p63 = scmp.eq.s32.totalorder %s15, 1
    %p64 = por %p62, %p63
    %p66 = scmp.ne.s32.totalorder %s49, %s65
    %p67 = scmp.eq.s32.totalorder %s15, 0
    %p68 = por %p66, %p67
    %s69 = ssub.s32 %s9, %s16
    %p70 = scmp.eq.s32.totalorder %s69, 0
    %s72 = sadd.s32 %s71, 1
    %s73 = scalar_select %p70, %s71, %s72
    %p76 = pneg %p70
    %p77 = scmp.eq.s32.totalorder %s9, 1
    %p78 = por %p76, %p77
    %p79 = scmp.ne.s32.totalorder %s71, %s74
    %p80 = scmp.eq.s32.totalorder %s9, 0
    %p81 = por %p79, %p80
    %p82 = scmp.ne.s32.totalorder %s71, %s74
    %p83 = scmp.eq.s32.totalorder %s14, 1
    %p84 = por %p82, %p83
    %p85 = scmp.ne.s32.totalorder %s74, %s75
    %p86 = scmp.eq.s32.totalorder %s14, 0
    %p87 = por %p85, %p86
    %p88 = scmp.ne.s32.totalorder %s74, %s75
    %p89 = scmp.eq.s32.totalorder %s15, 1
    %p90 = por %p88, %p89
    %p92 = scmp.ne.s32.totalorder %s75, %s91
    %p93 = scmp.eq.s32.totalorder %s15, 0
    %p94 = por %p92, %p93
    %p95 = scmp.le.s32.totalorder 1, %s9
    %p96 = scmp.lt.s32.totalorder %s9, 3
    %p97 = pnand %p95, %p96
    %p98 = pneg %p97
    // Predicated region
    $region9: #{fc_hilo1_forward.8} parent=5 // pred_check
      _
    $region10: #{fc_hilo1_forward.8} parent=5 // pred_check_branch
      %100 = sbr.rel (%p97) target = $region12
    $region11: #{fc_hilo1_forward.8} parent=5 // pred_region
      %s101 = ssub.s32 %s9, 1
    $region12: #{fc_hilo1_forward.8} parent=5 // pred_fallthru
      _
    %p102 = scmp.lt.s32.totalorder %s9, 2
    // Predicated region
    $region13: #{fc_hilo1_forward.8} parent=5 // pred_check
      %p103 = pneg %p102
    $region14: #{fc_hilo1_forward.8} parent=5 // pred_check_branch
      %105 = sbr.rel (%p103) target = $region16
    $region15: #{fc_hilo1_forward.8} parent=5 // pred_region
      // Predicated region
      $region17: #{fc_hilo1_forward.8} parent=15 // pred_check
        %p106 = pneg %p29
      $region18: #{fc_hilo1_forward.8} parent=15 // pred_check_branch
        %108 = sbr.rel (%p106) target = $region20
      $region19: #{fc_hilo1_forward.8} parent=15 // pred_region
        %p109 = scmp.lt.s32.totalorder %s9, 1
        %s110 = scalar_select %p109, %s9, 1
        %s111 = smul.addr %s110, 32
        %s112 = smul.addr %s111, 2
        %s113 = scalar_lea.vmem %s0, %s112
      $region20: #{fc_hilo1_forward.8} parent=15 // pred_fallthru
        _
    $region16: #{fc_hilo1_forward.8} parent=5 // pred_fallthru
      _
    %p114 = scmp.le.s32.totalorder 1, %s9
    %p115 = scmp.lt.s32.totalorder %s9, 3
    %p116 = pnand %p114, %p115
    %p117 = pneg %p116
    // Predicated region
    $region21: #{fc_hilo1_forward.8} parent=5 // pred_check
      _
    $region22: #{fc_hilo1_forward.8} parent=5 // pred_check_branch
      %119 = sbr.rel (%p116) target = $region24
    $region23: #{fc_hilo1_forward.8} parent=5 // pred_region
      %s120 = ssub.s32 %s9, 1
      %p121 = scmp.lt.s32.totalorder %s14, 1
      %s122 = scalar_select %p121, %s14, 1
      %s123 = smul.addr %s122, 32
      %s124 = smul.addr %s123, 2
      %s125 = scalar_lea.vmem %s0, %s124
      %p126 = pneg %p35
      %p127 = pneg %p32
      %p128 = pneg %p61
      %p129 = pneg %p58
      %p130 = scmp.lt.s32.totalorder %s14, 1
      %s131 = scalar_select %p130, %s14, 1
      %s132 = smul.addr %s131, 4
      %s133 = smul.addr %s132, 4
      %s134 = scalar_lea.vmem %s1, %s133
      %p135 = pneg %p87
      %p136 = pneg %p84
      %p137 = scmp.lt.s32.totalorder %s14, 1
      %s138 = scalar_select %p137, %s14, 1
      %s139 = smul.addr %s138, 32
      %s140 = smul.addr %s139, 2
      %s141 = scalar_lea.vmem %s2, %s140
      %p142 = scmp.lt.s32.totalorder %s14, 1
      %s143 = scalar_select %p142, %s14, 1
      %s144 = smul.addr %s143, 32
      %s145 = smul.addr %s144, 2
      %s146 = scalar_lea.vmem %s0, %s145
      %p147 = scmp.lt.s32.totalorder %s14, 1
      %s148 = scalar_select %p147, %s14, 1
      %s149 = smul.addr %s148, 4
      %s150 = smul.addr %s149, 4
      %s151 = scalar_lea.vmem %s1, %s150
      %p152 = scmp.lt.s32.totalorder %s14, 1
      %s153 = scalar_select %p152, %s14, 1
      %s154 = smul.addr %s153, 32
      %s155 = smul.addr %s154, 2
      %s156 = scalar_lea.vmem %s2, %s155
      %v157 = vld [vmem:[%s146] sm:$0x3]
      %v158 = vld [vmem:[%s146 + $0x2] sm:$0x3]
      %v159 = vld [vmem:[%s146 + $0x4] sm:$0x3]
      %v160 = vld [vmem:[%s146 + $0x6] sm:$0x3]
      %v161 = vld [vmem:[%s146 + $0x8] sm:$0x3]
      %v162 = vld [vmem:[%s146 + $0xa] sm:$0x3]
      %v163 = vld [vmem:[%s146 + $0xc] sm:$0x3]
      %v164 = vld [vmem:[%s146 + $0xe] sm:$0x3]
      %v165 = vld [vmem:[%s146 + $0x10] sm:$0x3]
      %v166 = vld [vmem:[%s146 + $0x12] sm:$0x3]
      %v167 = vld [vmem:[%s146 + $0x14] sm:$0x3]
      %v168 = vld [vmem:[%s146 + $0x16] sm:$0x3]
      %v169 = vld [vmem:[%s146 + $0x18] sm:$0x3]
      %v170 = vld [vmem:[%s146 + $0x1a] sm:$0x3]
      %v171 = vld [vmem:[%s146 + $0x1c] sm:$0x3]
      %v172 = vld [vmem:[%s146 + $0x1e] sm:$0x3]
      %v173 = vld [vmem:[%s146 + $0x20] sm:$0x3]
      %v174 = vld [vmem:[%s146 + $0x22] sm:$0x3]
      %v175 = vld [vmem:[%s146 + $0x24] sm:$0x3]
      %v176 = vld [vmem:[%s146 + $0x26] sm:$0x3]
      %v177 = vld [vmem:[%s146 + $0x28] sm:$0x3]
      %v178 = vld [vmem:[%s146 + $0x2a] sm:$0x3]
      %v179 = vld [vmem:[%s146 + $0x2c] sm:$0x3]
      %v180 = vld [vmem:[%s146 + $0x2e] sm:$0x3]
      %v181 = vld [vmem:[%s146 + $0x30] sm:$0x3]
      %v182 = vld [vmem:[%s146 + $0x32] sm:$0x3]
      %v183 = vld [vmem:[%s146 + $0x34] sm:$0x3]
      %v184 = vld [vmem:[%s146 + $0x36] sm:$0x3]
      %v185 = vld [vmem:[%s146 + $0x38] sm:$0x3]
      %v186 = vld [vmem:[%s146 + $0x3a] sm:$0x3]
      %v187 = vld [vmem:[%s146 + $0x3c] sm:$0x3]
      %v188 = vld [vmem:[%s146 + $0x3e] sm:$0x3]
      %v189 = vadd.f32 %v157, %v161
      %v190 = vadd.f32 %v158, %v162
      %v191 = vadd.f32 %v159, %v163
      %v192 = vadd.f32 %v160, %v164
      %v193 = vadd.f32 %v165, %v169
      %v194 = vadd.f32 %v166, %v170
      %v195 = vadd.f32 %v167, %v171
      %v196 = vadd.f32 %v168, %v172
      %v197 = vadd.f32 %v173, %v177
      %v198 = vadd.f32 %v174, %v178
      %v199 = vadd.f32 %v175, %v179
      %v200 = vadd.f32 %v176, %v180
      %v201 = vadd.f32 %v181, %v185
      %v202 = vadd.f32 %v182, %v186
      %v203 = vadd.f32 %v183, %v187
      %v204 = vadd.f32 %v184, %v188
      %vm205 = vcmask 254976
      %v206 = vsel %vm205, %v189, 0.0
      %v207 = vrot.slane %v206, 4
      %v208 = vadd.f32 %v206, %v207
      %v209 = vrot.slane %v208, 2
      %v210 = vadd.f32 %v208, %v209
      %v211 = vrot.slane %v210, 1
      %v212 = vadd.f32 %v210, %v211
      %v213 = vsel %vm205, %v190, 0.0
      %v214 = vrot.slane %v213, 4
      %v215 = vadd.f32 %v213, %v214
      %v216 = vrot.slane %v215, 2
      %v217 = vadd.f32 %v215, %v216
      %v218 = vrot.slane %v217, 1
      %v219 = vadd.f32 %v217, %v218
      %v220 = vsel %vm205, %v191, 0.0
      %v221 = vrot.slane %v220, 4
      %v222 = vadd.f32 %v220, %v221
      %v223 = vrot.slane %v222, 2
      %v224 = vadd.f32 %v222, %v223
      %v225 = vrot.slane %v224, 1
      %v226 = vadd.f32 %v224, %v225
      %v227 = vsel %vm205, %v192, 0.0
      %v228 = vrot.slane %v227, 4
      %v229 = vadd.f32 %v227, %v228
      %v230 = vrot.slane %v229, 2
      %v231 = vadd.f32 %v229, %v230
      %v232 = vrot.slane %v231, 1
      %v233 = vadd.f32 %v231, %v232
      %v234 = vsel %vm205, %v193, 0.0
      %v235 = vrot.slane %v234, 4
      %v236 = vadd.f32 %v234, %v235
      %v237 = vrot.slane %v236, 2
      %v238 = vadd.f32 %v236, %v237
      %v239 = vrot.slane %v238, 1
      %v240 = vadd.f32 %v238, %v239
      %v241 = vsel %vm205, %v194, 0.0
      %v242 = vrot.slane %v241, 4
      %v243 = vadd.f32 %v241, %v242
      %v244 = vrot.slane %v243, 2
      %v245 = vadd.f32 %v243, %v244
      %v246 = vrot.slane %v245, 1
      %v247 = vadd.f32 %v245, %v246
      %v248 = vsel %vm205, %v195, 0.0
      %v249 = vrot.slane %v248, 4
      %v250 = vadd.f32 %v248, %v249
      %v251 = vrot.slane %v250, 2
      %v252 = vadd.f32 %v250, %v251
      %v253 = vrot.slane %v252, 1
      %v254 = vadd.f32 %v252, %v253
      %v255 = vsel %vm205, %v196, 0.0
      %v256 = vrot.slane %v255, 4
      %v257 = vadd.f32 %v255, %v256
      %v258 = vrot.slane %v257, 2
      %v259 = vadd.f32 %v257, %v258
      %v260 = vrot.slane %v259, 1
      %v261 = vadd.f32 %v259, %v260
      %v262 = vsel %vm205, %v197, 0.0
      %v263 = vrot.slane %v262, 4
      %v264 = vadd.f32 %v262, %v263
      %v265 = vrot.slane %v264, 2
      %v266 = vadd.f32 %v264, %v265
      %v267 = vrot.slane %v266, 1
      %v268 = vadd.f32 %v266, %v267
      %v269 = vsel %vm205, %v198, 0.0
      %v270 = vrot.slane %v269, 4
      %v271 = vadd.f32 %v269, %v270
      %v272 = vrot.slane %v271, 2
      %v273 = vadd.f32 %v271, %v272
      %v274 = vrot.slane %v273, 1
      %v275 = vadd.f32 %v273, %v274
      %v276 = vsel %vm205, %v199, 0.0
      %v277 = vrot.slane %v276, 4
      %v278 = vadd.f32 %v276, %v277
      %v279 = vrot.slane %v278, 2
      %v280 = vadd.f32 %v278, %v279
      %v281 = vrot.slane %v280, 1
      %v282 = vadd.f32 %v280, %v281
      %v283 = vsel %vm205, %v200, 0.0
      %v284 = vrot.slane %v283, 4
      %v285 = vadd.f32 %v283, %v284
      %v286 = vrot.slane %v285, 2
      %v287 = vadd.f32 %v285, %v286
      %v288 = vrot.slane %v287, 1
      %v289 = vadd.f32 %v287, %v288
      %v290 = vsel %vm205, %v201, 0.0
      %v291 = vrot.slane %v290, 4
      %v292 = vadd.f32 %v290, %v291
      %v293 = vrot.slane %v292, 2
      %v294 = vadd.f32 %v292, %v293
      %v295 = vrot.slane %v294, 1
      %v296 = vadd.f32 %v294, %v295
      %v297 = vsel %vm205, %v202, 0.0
      %v298 = vrot.slane %v297, 4
      %v299 = vadd.f32 %v297, %v298
      %v300 = vrot.slane %v299, 2
      %v301 = vadd.f32 %v299, %v300
      %v302 = vrot.slane %v301, 1
      %v303 = vadd.f32 %v301, %v302
      %v304 = vsel %vm205, %v203, 0.0
      %v305 = vrot.slane %v304, 4
      %v306 = vadd.f32 %v304, %v305
      %v307 = vrot.slane %v306, 2
      %v308 = vadd.f32 %v306, %v307
      %v309 = vrot.slane %v308, 1
      %v310 = vadd.f32 %v308, %v309
      %v311 = vsel %vm205, %v204, 0.0
      %v312 = vrot.slane %v311, 4
      %v313 = vadd.f32 %v311, %v312
      %v314 = vrot.slane %v313, 2
      %v315 = vadd.f32 %v313, %v314
      %v316 = vrot.slane %v315, 1
      %v317 = vadd.f32 %v315, %v316
      %v318 = vmul.f32 %v212, 0.25
      %v319 = vmul.f32 %v219, 0.25
      %v320 = vmul.f32 %v226, 0.25
      %v321 = vmul.f32 %v233, 0.25
      %v322 = vmul.f32 %v240, 0.25
      %v323 = vmul.f32 %v247, 0.25
      %v324 = vmul.f32 %v254, 0.25
      %v325 = vmul.f32 %v261, 0.25
      %v326 = vmul.f32 %v268, 0.25
      %v327 = vmul.f32 %v275, 0.25
      %v328 = vmul.f32 %v282, 0.25
      %v329 = vmul.f32 %v289, 0.25
      %v330 = vmul.f32 %v296, 0.25
      %v331 = vmul.f32 %v303, 0.25
      %v332 = vmul.f32 %v310, 0.25
      %v333 = vmul.f32 %v317, 0.25
      %vm350 = vcmask 1041409
      %v351 = vsel %vm350, %v319, %v318
      %vm352 = vcmask 1042434
      %v353 = vsel %vm352, %v320, %v351
      %vm354 = vcmask 1043459
      %v355 = vsel %vm354, %v321, %v353
      %v356 = vsel %vm350, %v323, %v322
      %v357 = vsel %vm352, %v324, %v356
      %v358 = vsel %vm354, %v325, %v357
      %v359 = vsel %vm350, %v327, %v326
      %v360 = vsel %vm352, %v328, %v359
      %v361 = vsel %vm354, %v329, %v360
      %v362 = vsel %vm350, %v331, %v330
      %v363 = vsel %vm352, %v332, %v362
      %v364 = vsel %vm354, %v333, %v363
      %vm369 = vcmask 257024
      %370 = vst.msk [vmem:[%s151] sm:$0xf] %vm369, %v355
      %371 = vst.msk [vmem:[%s151 + $0x4] sm:$0xf] %vm369, %v358
      %372 = vst.msk [vmem:[%s151 + $0x8] sm:$0xf] %vm369, %v361
      %373 = vst.msk [vmem:[%s151 + $0xc] sm:$0xf] %vm369, %v364
      %v374 = vsub.f32 %v318, %v157
      %v375 = vsub.f32 %v319, %v158
      %v376 = vsub.f32 %v320, %v159
      %v377 = vsub.f32 %v321, %v160
      %v378 = vsub.f32 %v318, %v161
      %v379 = vsub.f32 %v319, %v162
      %v380 = vsub.f32 %v320, %v163
      %v381 = vsub.f32 %v321, %v164
      %v382 = vsub.f32 %v322, %v165
      %v383 = vsub.f32 %v323, %v166
      %v384 = vsub.f32 %v324, %v167
      %v385 = vsub.f32 %v325, %v168
      %v386 = vsub.f32 %v322, %v169
      %v387 = vsub.f32 %v323, %v170
      %v388 = vsub.f32 %v324, %v171
      %v389 = vsub.f32 %v325, %v172
      %v390 = vsub.f32 %v326, %v173
      %v391 = vsub.f32 %v327, %v174
      %v392 = vsub.f32 %v328, %v175
      %v393 = vsub.f32 %v329, %v176
      %v394 = vsub.f32 %v326, %v177
      %v395 = vsub.f32 %v327, %v178
      %v396 = vsub.f32 %v328, %v179
      %v397 = vsub.f32 %v329, %v180
      %v398 = vsub.f32 %v330, %v181
      %v399 = vsub.f32 %v331, %v182
      %v400 = vsub.f32 %v332, %v183
      %v401 = vsub.f32 %v333, %v184
      %v402 = vsub.f32 %v330, %v185
      %v403 = vsub.f32 %v331, %v186
      %v404 = vsub.f32 %v332, %v187
      %v405 = vsub.f32 %v333, %v188
      %406 = vst.msk [vmem:[%s156] sm:$0x3] %vm205, %v374
      %407 = vst.msk [vmem:[%s156 + $0x2] sm:$0x3] %vm205, %v375
      %408 = vst.msk [vmem:[%s156 + $0x4] sm:$0x3] %vm205, %v376
      %409 = vst.msk [vmem:[%s156 + $0x6] sm:$0x3] %vm205, %v377
      %410 = vst.msk [vmem:[%s156 + $0x8] sm:$0x3] %vm205, %v378
      %411 = vst.msk [vmem:[%s156 + $0xa] sm:$0x3] %vm205, %v379
      %412 = vst.msk [vmem:[%s156 + $0xc] sm:$0x3] %vm205, %v380
      %413 = vst.msk [vmem:[%s156 + $0xe] sm:$0x3] %vm205, %v381
      %414 = vst.msk [vmem:[%s156 + $0x10] sm:$0x3] %vm205, %v382
      %415 = vst.msk [vmem:[%s156 + $0x12] sm:$0x3] %vm205, %v383
      %416 = vst.msk [vmem:[%s156 + $0x14] sm:$0x3] %vm205, %v384
      %417 = vst.msk [vmem:[%s156 + $0x16] sm:$0x3] %vm205, %v385
      %418 = vst.msk [vmem:[%s156 + $0x18] sm:$0x3] %vm205, %v386
      %419 = vst.msk [vmem:[%s156 + $0x1a] sm:$0x3] %vm205, %v387
      %420 = vst.msk [vmem:[%s156 + $0x1c] sm:$0x3] %vm205, %v388
      %421 = vst.msk [vmem:[%s156 + $0x1e] sm:$0x3] %vm205, %v389
      %422 = vst.msk [vmem:[%s156 + $0x20] sm:$0x3] %vm205, %v390
      %423 = vst.msk [vmem:[%s156 + $0x22] sm:$0x3] %vm205, %v391
      %424 = vst.msk [vmem:[%s156 + $0x24] sm:$0x3] %vm205, %v392
      %425 = vst.msk [vmem:[%s156 + $0x26] sm:$0x3] %vm205, %v393
      %426 = vst.msk [vmem:[%s156 + $0x28] sm:$0x3] %vm205, %v394
      %427 = vst.msk [vmem:[%s156 + $0x2a] sm:$0x3] %vm205, %v395
      %428 = vst.msk [vmem:[%s156 + $0x2c] sm:$0x3] %vm205, %v396
      %429 = vst.msk [vmem:[%s156 + $0x2e] sm:$0x3] %vm205, %v397
      %430 = vst.msk [vmem:[%s156 + $0x30] sm:$0x3] %vm205, %v398
      %431 = vst.msk [vmem:[%s156 + $0x32] sm:$0x3] %vm205, %v399
      %432 = vst.msk [vmem:[%s156 + $0x34] sm:$0x3] %vm205, %v400
      %433 = vst.msk [vmem:[%s156 + $0x36] sm:$0x3] %vm205, %v401
      %434 = vst.msk [vmem:[%s156 + $0x38] sm:$0x3] %vm205, %v402
      %435 = vst.msk [vmem:[%s156 + $0x3a] sm:$0x3] %vm205, %v403
      %436 = vst.msk [vmem:[%s156 + $0x3c] sm:$0x3] %vm205, %v404
      %437 = vst.msk [vmem:[%s156 + $0x3e] sm:$0x3] %vm205, %v405
      %p438 = scmp.lt.s32.totalorder %s14, 1
      %s439 = scalar_select %p438, %s14, 1
      %s440 = smul.addr %s439, 4
      %s441 = smul.addr %s440, 4
      %s442 = scalar_lea.vmem %s1, %s441
      %p443 = scmp.lt.s32.totalorder %s14, 1
      %s444 = scalar_select %p443, %s14, 1
      %s445 = smul.addr %s444, 32
      %s446 = smul.addr %s445, 2
      %s447 = scalar_lea.vmem %s2, %s446
      // Predicated region
      $region25: #{fc_hilo1_forward.8} parent=23 // pred_check
        %p448 = pneg %p58
      $region26: #{fc_hilo1_forward.8} parent=23 // pred_check_branch
        %450 = sbr.rel (%p448) target = $region28
      $region27: #{fc_hilo1_forward.8} parent=23 // pred_region
        _
      $region28: #{fc_hilo1_forward.8} parent=23 // pred_fallthru
        _
      // Predicated region
      $region29: #{fc_hilo1_forward.8} parent=23 // pred_check
        %p451 = pneg %p84
      $region30: #{fc_hilo1_forward.8} parent=23 // pred_check_branch
        %453 = sbr.rel (%p451) target = $region32
      $region31: #{fc_hilo1_forward.8} parent=23 // pred_region
        _
      $region32: #{fc_hilo1_forward.8} parent=23 // pred_fallthru
        _
    $region24: #{fc_hilo1_forward.8} parent=5 // pred_fallthru
      _
    %p454 = scmp.le.s32.totalorder 2, %s9
    // Predicated region
    $region33: #{fc_hilo1_forward.8} parent=5 // pred_check
      %p455 = pneg %p454
    $region34: #{fc_hilo1_forward.8} parent=5 // pred_check_branch
      %457 = sbr.rel (%p455) target = $region36
    $region35: #{fc_hilo1_forward.8} parent=5 // pred_region
      %s458 = ssub.s32 %s9, 2
      // Predicated region
      $region37: #{fc_hilo1_forward.8} parent=35 // pred_check
        %p459 = pneg %p64
      $region38: #{fc_hilo1_forward.8} parent=35 // pred_check_branch
        %461 = sbr.rel (%p459) target = $region40
      $region39: #{fc_hilo1_forward.8} parent=35 // pred_region
        %p462 = scmp.lt.s32.totalorder %s15, 1
        %s463 = scalar_select %p462, %s15, 1
        %s464 = smul.addr %s463, 4
        %s465 = smul.addr %s464, 4
        %s466 = scalar_lea.vmem %s1, %s465
      $region40: #{fc_hilo1_forward.8} parent=35 // pred_fallthru
        _
      // Predicated region
      $region41: #{fc_hilo1_forward.8} parent=35 // pred_check
        %p467 = pneg %p90
      $region42: #{fc_hilo1_forward.8} parent=35 // pred_check_branch
        %469 = sbr.rel (%p467) target = $region44
      $region43: #{fc_hilo1_forward.8} parent=35 // pred_region
        %p470 = scmp.lt.s32.totalorder %s15, 1
        %s471 = scalar_select %p470, %s15, 1
        %s472 = smul.addr %s471, 32
        %s473 = smul.addr %s472, 2
        %s474 = scalar_lea.vmem %s2, %s473
      $region44: #{fc_hilo1_forward.8} parent=35 // pred_fallthru
        _
    $region36: #{fc_hilo1_forward.8} parent=5 // pred_fallthru
      _
  $region6: #{fc_hilo1_forward.8} parent=0 // loop_footer
    %s13 = sadd.s32 1, %s9
  $region7: #{fc_hilo1_forward.8} parent=0 // loop_footer_branch
    %8 = sbr.rel target = $region3
  $region8: #{fc_hilo1_forward.8} parent=0 // loop_exit
    _

// kernel: fc_hilo1_forward.10
$region0: #{fc_hilo1_forward.10}
  #allocation0 [shape = 'u32[]', space=smem, size = 0x4, offset = 0x4, fixed_abs, tag = 'smem constant byte address 0x4 - core index']
  #allocation1 [shape = 'u32[144,128]{1,0:T(1,128)}', space=vmem, size = 0x12000, scoped, tag = 'internal scratch']
  %s0 = inlined_call_operand.vmem [shape: f32[2,6,6,32], index: 0, kind: input, shape index: {}]
  %s1 = inlined_call_operand.vmem [shape: f32[9,32], index: 1, kind: input, shape index: {}]
  %s2 = inlined_call_operand.vmem [shape: f32[1,32], index: 2, kind: input, shape index: {}]
  %s3 = inlined_call_operand.vmem [shape: f32[32,32], index: 3, kind: input, shape index: {}]
  %s4 = inlined_call_operand.vmem [shape: f32[1,32], index: 4, kind: input, shape index: {}]
  %s5 = inlined_call_operand.vmem [shape: f32[2,4,4,32], index: 5, kind: output, shape index: {}]
  %s6 = sld [smem:[#allocation0]]
  $region53: #{fc_hilo1_forward.10} parent=0
    _
  %s8 = ssub.s32 1, %s6
  %s9 = scalar_select 0, %s8, %s6
  loop: start=0, step=1, limit=4
  $region2: #{fc_hilo1_forward.10} parent=0 // loop_pre_header
    _
  $region3: #{fc_hilo1_forward.10} parent=0 // loop_header
    %s11 = sphi 0, %s15
    %p12 = scmp.ge.s32.totalorder %s11, 4
    %s21 = sphi 0, %s23
    %s24 = sphi 0, %s21
    %s25 = sphi 0, %s24
    %s41 = sphi 0, %s25
    %s45 = sphi 0, %s45
    %s47 = sphi 0, %s45
    %s48 = sphi 0, %s47
    %s62 = sphi 0, %s48
    %s66 = sphi 0, %s66
    %s68 = sphi 0, %s66
    %s69 = sphi 0, %s68
    %s83 = sphi 0, %s69
    %s87 = sphi 0, %s87
    %s89 = sphi 0, %s87
    %s90 = sphi 0, %s89
    %s104 = sphi 0, %s90
    %s108 = sphi 0, %s108
    %s110 = sphi 0, %s108
    %s111 = sphi 0, %s110
    %s125 = sphi 0, %s111
    %s131 = sphi 0, %s133
    %s134 = sphi 0, %s131
    %s135 = sphi 0, %s134
    %s151 = sphi 0, %s135
  $region4: #{fc_hilo1_forward.10} parent=0 // loop_header_branch
    %14 = sbr.rel (%p12) target = $region8
  $region5: #{fc_hilo1_forward.10} parent=0 // loop_body
    %s16 = ssub.s32 %s11, 1
    %s17 = ssub.s32 %s11, 2
    %s18 = sadd.s32 %s11, 1
    %s19 = ssub.s32 %s11, %s18
    %p20 = scmp.eq.s32.totalorder %s19, 0
    %s22 = sadd.s32 %s21, 1
    %s23 = scalar_select %p20, %s21, %s22
    %p26 = pneg %p20
    %p27 = scmp.eq.s32.totalorder %s11, 1
    %p28 = por %p26, %p27
    %p29 = scmp.ne.s32.totalorder %s21, %s24
    %p30 = scmp.eq.s32.totalorder %s11, 0
    %p31 = por %p29, %p30
    %p32 = scmp.ne.s32.totalorder %s21, %s24
    %p33 = scmp.eq.s32.totalorder %s16, 1
    %p34 = por %p32, %p33
    %p35 = scmp.ne.s32.totalorder %s24, %s25
    %p36 = scmp.eq.s32.totalorder %s16, 0
    %p37 = por %p35, %p36
    %p38 = scmp.ne.s32.totalorder %s24, %s25
    %p39 = scmp.eq.s32.totalorder %s17, 1
    %p40 = por %p38, %p39
    %p42 = scmp.ne.s32.totalorder %s25, %s41
    %p43 = scmp.eq.s32.totalorder %s17, 0
    %p44 = por %p42, %p43
    %s46 = sadd.s32 %s45, 1
    %p49 = scmp.eq.s32.totalorder %s11, 1
    %p50 = scmp.ne.s32.totalorder %s45, %s47
    %p51 = scmp.eq.s32.totalorder %s11, 0
    %p52 = por %p50, %p51
    %p53 = scmp.ne.s32.totalorder %s45, %s47
    %p54 = scmp.eq.s32.totalorder %s16, 1
    %p55 = por %p53, %p54
    %p56 = scmp.ne.s32.totalorder %s47, %s48
    %p57 = scmp.eq.s32.totalorder %s16, 0
    %p58 = por %p56, %p57
    %p59 = scmp.ne.s32.totalorder %s47, %s48
    %p60 = scmp.eq.s32.totalorder %s17, 1
    %p61 = por %p59, %p60
    %p63 = scmp.ne.s32.totalorder %s48, %s62
    %p64 = scmp.eq.s32.totalorder %s17, 0
    %p65 = por %p63, %p64
    %s67 = sadd.s32 %s66, 1
    %p70 = scmp.eq.s32.totalorder %s11, 1
    %p71 = scmp.ne.s32.totalorder %s66, %s68
    %p72 = scmp.eq.s32.totalorder %s11, 0
    %p73 = por %p71, %p72
    %p74 = scmp.ne.s32.totalorder %s66, %s68
    %p75 = scmp.eq.s32.totalorder %s16, 1
    %p76 = por %p74, %p75
    %p77 = scmp.ne.s32.totalorder %s68, %s69
    %p78 = scmp.eq.s32.totalorder %s16, 0
    %p79 = por %p77, %p78
    %p80 = scmp.ne.s32.totalorder %s68, %s69
    %p81 = scmp.eq.s32.totalorder %s17, 1
    %p82 = por %p80, %p81
    %p84 = scmp.ne.s32.totalorder %s69, %s83
    %p85 = scmp.eq.s32.totalorder %s17, 0
    %p86 = por %p84, %p85
    %s88 = sadd.s32 %s87, 1
    %p91 = scmp.eq.s32.totalorder %s11, 1
    %p92 = scmp.ne.s32.totalorder %s87, %s89
    %p93 = scmp.eq.s32.totalorder %s11, 0
    %p94 = por %p92, %p93
    %p95 = scmp.ne.s32.totalorder %s87, %s89
    %p96 = scmp.eq.s32.totalorder %s16, 1
    %p97 = por %p95, %p96
    %p98 = scmp.ne.s32.totalorder %s89, %s90
    %p99 = scmp.eq.s32.totalorder %s16, 0
    %p100 = por %p98, %p99
    %p101 = scmp.ne.s32.totalorder %s89, %s90
    %p102 = scmp.eq.s32.totalorder %s17, 1
    %p103 = por %p101, %p102
    %p105 = scmp.ne.s32.totalorder %s90, %s104
    %p106 = scmp.eq.s32.totalorder %s17, 0
    %p107 = por %p105, %p106
    %s109 = sadd.s32 %s108, 1
    %p112 = scmp.eq.s32.totalorder %s11, 1
    %p113 = scmp.ne.s32.totalorder %s108, %s110
    %p114 = scmp.eq.s32.totalorder %s11, 0
    %p115 = por %p113, %p114
    %p116 = scmp.ne.s32.totalorder %s108, %s110
    %p117 = scmp.eq.s32.totalorder %s16, 1
    %p118 = por %p116, %p117
    %p119 = scmp.ne.s32.totalorder %s110, %s111
    %p120 = scmp.eq.s32.totalorder %s16, 0
    %p121 = por %p119, %p120
    %p122 = scmp.ne.s32.totalorder %s110, %s111
    %p123 = scmp.eq.s32.totalorder %s17, 1
    %p124 = por %p122, %p123
    %p126 = scmp.ne.s32.totalorder %s111, %s125
    %p127 = scmp.eq.s32.totalorder %s17, 0
    %p128 = por %p126, %p127
    %s129 = ssub.s32 %s11, %s18
    %p130 = scmp.eq.s32.totalorder %s129, 0
    %s132 = sadd.s32 %s131, 1
    %s133 = scalar_select %p130, %s131, %s132
    %p136 = pneg %p130
    %p137 = scmp.eq.s32.totalorder %s11, 1
    %p138 = por %p136, %p137
    %p139 = scmp.ne.s32.totalorder %s131, %s134
    %p140 = scmp.eq.s32.totalorder %s11, 0
    %p141 = por %p139, %p140
    %p142 = scmp.ne.s32.totalorder %s131, %s134
    %p143 = scmp.eq.s32.totalorder %s16, 1
    %p144 = por %p142, %p143
    %p145 = scmp.ne.s32.totalorder %s134, %s135
    %p146 = scmp.eq.s32.totalorder %s16, 0
    %p147 = por %p145, %p146
    %p148 = scmp.ne.s32.totalorder %s134, %s135
    %p149 = scmp.eq.s32.totalorder %s17, 1
    %p150 = por %p148, %p149
    %p152 = scmp.ne.s32.totalorder %s135, %s151
    %p153 = scmp.eq.s32.totalorder %s17, 0
    %p154 = por %p152, %p153
    %p155 = scmp.le.s32.totalorder 1, %s11
    %p156 = scmp.lt.s32.totalorder %s11, 3
    %p157 = pnand %p155, %p156
    %p158 = pneg %p157
    // Predicated region
    $region9: #{fc_hilo1_forward.10} parent=5 // pred_check
      _
    $region10: #{fc_hilo1_forward.10} parent=5 // pred_check_branch
      %160 = sbr.rel (%p157) target = $region12
    $region11: #{fc_hilo1_forward.10} parent=5 // pred_region
      %s161 = ssub.s32 %s11, 1
      // Predicated region
      $region13: #{fc_hilo1_forward.10} parent=11 // pred_check
        %p162 = pneg %p58
      $region14: #{fc_hilo1_forward.10} parent=11 // pred_check_branch
        %164 = sbr.rel (%p162) target = $region16
      $region15: #{fc_hilo1_forward.10} parent=11 // pred_region
        _
      $region16: #{fc_hilo1_forward.10} parent=11 // pred_fallthru
        _
      // Predicated region
      $region17: #{fc_hilo1_forward.10} parent=11 // pred_check
        %p165 = pneg %p79
      $region18: #{fc_hilo1_forward.10} parent=11 // pred_check_branch
        %167 = sbr.rel (%p165) target = $region20
      $region19: #{fc_hilo1_forward.10} parent=11 // pred_region
        _
      $region20: #{fc_hilo1_forward.10} parent=11 // pred_fallthru
        _
      // Predicated region
      $region21: #{fc_hilo1_forward.10} parent=11 // pred_check
        %p168 = pneg %p100
      $region22: #{fc_hilo1_forward.10} parent=11 // pred_check_branch
        %170 = sbr.rel (%p168) target = $region24
      $region23: #{fc_hilo1_forward.10} parent=11 // pred_region
        _
      $region24: #{fc_hilo1_forward.10} parent=11 // pred_fallthru
        _
      // Predicated region
      $region25: #{fc_hilo1_forward.10} parent=11 // pred_check
        %p171 = pneg %p121
      $region26: #{fc_hilo1_forward.10} parent=11 // pred_check_branch
        %173 = sbr.rel (%p171) target = $region28
      $region27: #{fc_hilo1_forward.10} parent=11 // pred_region
        _
      $region28: #{fc_hilo1_forward.10} parent=11 // pred_fallthru
        _
    $region12: #{fc_hilo1_forward.10} parent=5 // pred_fallthru
      _
    %p174 = scmp.lt.s32.totalorder %s11, 2
    // Predicated region
    $region29: #{fc_hilo1_forward.10} parent=5 // pred_check
      %p175 = pneg %p174
    $region30: #{fc_hilo1_forward.10} parent=5 // pred_check_branch
      %177 = sbr.rel (%p175) target = $region32
    $region31: #{fc_hilo1_forward.10} parent=5 // pred_region
      // Predicated region
      $region33: #{fc_hilo1_forward.10} parent=31 // pred_check
        %p178 = pneg %p31
      $region34: #{fc_hilo1_forward.10} parent=31 // pred_check_branch
        %180 = sbr.rel (%p178) target = $region36
      $region35: #{fc_hilo1_forward.10} parent=31 // pred_region
        %p181 = scmp.lt.s32.totalorder %s11, 1
        %s182 = scalar_select %p181, %s11, 1
        %s183 = smul.addr %s182, 6
        %s184 = smul.addr %s183, 8
        %s185 = scalar_lea.vmem %s0, %s184
      $region36: #{fc_hilo1_forward.10} parent=31 // pred_fallthru
        _
    $region32: #{fc_hilo1_forward.10} parent=5 // pred_fallthru
      _
    %p186 = scmp.le.s32.totalorder 1, %s11
    %p187 = scmp.lt.s32.totalorder %s11, 3
    %p188 = pnand %p186, %p187
    %p189 = pneg %p188
    // Predicated region
    $region37: #{fc_hilo1_forward.10} parent=5 // pred_check
      _
    $region38: #{fc_hilo1_forward.10} parent=5 // pred_check_branch
      %191 = sbr.rel (%p188) target = $region40
    $region39: #{fc_hilo1_forward.10} parent=5 // pred_region
      %s192 = ssub.s32 %s11, 1
      %p193 = scmp.lt.s32.totalorder %s16, 1
      %s194 = scalar_select %p193, %s16, 1
      %s195 = smul.addr %s194, 6
      %s196 = smul.addr %s195, 8
      %s197 = scalar_lea.vmem %s0, %s196
      %p198 = pneg %p37
      %p199 = pneg %p34
      %p200 = pneg %p58
      %p201 = pneg %p55
      %p202 = pneg %p79
      %p203 = pneg %p76
      %p204 = pneg %p100
      %p205 = pneg %p97
      %p206 = pneg %p121
      %p207 = pneg %p118
      %p208 = pneg %p147
      %p209 = pneg %p144
      %p210 = scmp.lt.s32.totalorder %s16, 1
      %s211 = scalar_select %p210, %s16, 1
      %s212 = smul.addr %s211, 4
      %s213 = smul.addr %s212, 4
      %s214 = scalar_lea.vmem %s5, %s213
      %p215 = scmp.lt.s32.totalorder %s16, 1
      %s216 = scalar_select %p215, %s16, 1
      %s217 = smul.addr %s216, 6
      %s218 = smul.addr %s217, 8
      %s219 = scalar_lea.vmem %s0, %s218
      %p220 = scmp.lt.s32.totalorder %s16, 1
      %s221 = scalar_select %p220, %s16, 1
      %s222 = smul.addr %s221, 4
      %s223 = smul.addr %s222, 4
      %s224 = scalar_lea.vmem %s5, %s223
      %v226 = vld [vmem:[%s1] sm:$0xff]
      %v227 = vld [vmem:[%s1 + $0x8] sm:$0x1]
      %v228 = vld [vmem:[%s2] sm:$0x1]
      %v229 = vld [vmem:[%s4] sm:$0x1]
      %v230 = vld [vmem:[%s219] sm:$0xf]
      %v231 = vld [vmem:[%s219 + $0x8] sm:$0xf]
      %v232 = vld [vmem:[%s219 + $0x10] sm:$0xf]
      %v233 = vld [vmem:[%s219 + $0x18] sm:$0xf]
      %v234 = vld [vmem:[%s219 + $0x20] sm:$0xf]
      %v235 = vld [vmem:[%s219 + $0x28] sm:$0xf]
      %v236 = vld [vmem:[%s219 + $0x1] sm:$0xf]
      %v237 = vld [vmem:[%s219 + $0x9] sm:$0xf]
      %v238 = vld [vmem:[%s219 + $0x11] sm:$0xf]
      %v239 = vld [vmem:[%s219 + $0x19] sm:$0xf]
      %v240 = vld [vmem:[%s219 + $0x21] sm:$0xf]
      %v241 = vld [vmem:[%s219 + $0x29] sm:$0xf]
      %v242 = vld [vmem:[%s219 + $0x2] sm:$0xf]
      %v243 = vld [vmem:[%s219 + $0xa] sm:$0xf]
      %v244 = vld [vmem:[%s219 + $0x12] sm:$0xf]
      %v245 = vld [vmem:[%s219 + $0x1a] sm:$0xf]
      %v246 = vld [vmem:[%s219 + $0x22] sm:$0xf]
      %v247 = vld [vmem:[%s219 + $0x2a] sm:$0xf]
      %v248 = vlaneseq
      %v249 = vshrl.u32 %v248, 7
      %v250 = vsub.s32 0, %v249
      %v251 = vrot.slane %v226, %v250
      %v252 = vmul.f32 %v230, %v251
      %v253 = vmul.f32 %v231, %v251
      %v254 = vmul.f32 %v232, %v251
      %v255 = vmul.f32 %v233, %v251
      %v256 = vadd.f32 %v252, 0.0
      %v257 = vadd.f32 %v253, 0.0
      %v258 = vadd.f32 %v254, 0.0
      %v259 = vadd.f32 %v255, 0.0
      %v260 = vlaneseq
      %v261 = vshrl.u32 %v260, 7
      %v262 = vsub.s32 1, %v261
      %v263 = vrot.slane %v226, %v262
      %v264 = vmul.f32 %v236, %v263
      %v265 = vmul.f32 %v237, %v263
      %v266 = vmul.f32 %v238, %v263
      %v267 = vmul.f32 %v239, %v263
      %v268 = vadd.f32 %v256, %v264
      %v269 = vadd.f32 %v257, %v265
      %v270 = vadd.f32 %v258, %v266
      %v271 = vadd.f32 %v259, %v267
      %v272 = vlaneseq
      %v273 = vshrl.u32 %v272, 7
      %v274 = vsub.s32 2, %v273
      %v275 = vrot.slane %v226, %v274
      %v276 = vmul.f32 %v242, %v275
      %v277 = vmul.f32 %v243, %v275
      %v278 = vmul.f32 %v244, %v275
      %v279 = vmul.f32 %v245, %v275
      %v280 = vadd.f32 %v268, %v276
      %v281 = vadd.f32 %v269, %v277
      %v282 = vadd.f32 %v270, %v278
      %v283 = vadd.f32 %v271, %v279
      %v284 = vlaneseq
      %v285 = vshrl.u32 %v284, 7
      %v286 = vsub.s32 3, %v285
      %v287 = vrot.slane %v226, %v286
      %v288 = vmul.f32 %v231, %v287
      %v289 = vmul.f32 %v232, %v287
      %v290 = vmul.f32 %v233, %v287
      %v291 = vmul.f32 %v234, %v287
      %v292 = vadd.f32 %v280, %v288
      %v293 = vadd.f32 %v281, %v289
      %v294 = vadd.f32 %v282, %v290
      %v295 = vadd.f32 %v283, %v291
      %v296 = vlaneseq
      %v297 = vshrl.u32 %v296, 7
      %v298 = vsub.s32 4, %v297
      %v299 = vrot.slane %v226, %v298
      %v300 = vmul.f32 %v237, %v299
      %v301 = vmul.f32 %v238, %v299
      %v302 = vmul.f32 %v239, %v299
      %v303 = vmul.f32 %v240, %v299
      %v304 = vadd.f32 %v292, %v300
      %v305 = vadd.f32 %v293, %v301
      %v306 = vadd.f32 %v294, %v302
      %v307 = vadd.f32 %v295, %v303
      %v308 = vlaneseq
      %v309 = vshrl.u32 %v308, 7
      %v310 = vsub.s32 5, %v309
      %v311 = vrot.slane %v226, %v310
      %v312 = vmul.f32 %v243, %v311
      %v313 = vmul.f32 %v244, %v311
      %v314 = vmul.f32 %v245, %v311
      %v315 = vmul.f32 %v246, %v311
      %v316 = vadd.f32 %v304, %v312
      %v317 = vadd.f32 %v305, %v313
      %v318 = vadd.f32 %v306, %v314
      %v319 = vadd.f32 %v307, %v315
      %v320 = vlaneseq
      %v321 = vshrl.u32 %v320, 7
      %v322 = vsub.s32 6, %v321
      %v323 = vrot.slane %v226, %v322
      %v324 = vmul.f32 %v232, %v323
      %v325 = vmul.f32 %v233, %v323
      %v326 = vmul.f32 %v234, %v323
      %v327 = vmul.f32 %v235, %v323
      %v328 = vadd.f32 %v316, %v324
      %v329 = vadd.f32 %v317, %v325
      %v330 = vadd.f32 %v318, %v326
      %v331 = vadd.f32 %v319, %v327
      %v332 = vlaneseq
      %v333 = vshrl.u32 %v332, 7
      %v334 = vsub.s32 7, %v333
      %v335 = vrot.slane %v226, %v334
      %v336 = vmul.f32 %v238, %v335
      %v337 = vmul.f32 %v239, %v335
      %v338 = vmul.f32 %v240, %v335
      %v339 = vmul.f32 %v241, %v335
      %v340 = vadd.f32 %v328, %v336
      %v341 = vadd.f32 %v329, %v337
      %v342 = vadd.f32 %v330, %v338
      %v343 = vadd.f32 %v331, %v339
      %v344 = vlaneseq
      %v345 = vshrl.u32 %v344, 7
      %v346 = vsub.s32 0, %v345
      %v347 = vrot.slane %v227, %v346
      %v348 = vmul.f32 %v244, %v347
      %v349 = vmul.f32 %v245, %v347
      %v350 = vmul.f32 %v246, %v347
      %v351 = vmul.f32 %v247, %v347
      %v352 = vadd.f32 %v340, %v348
      %v353 = vadd.f32 %v341, %v349
      %v354 = vadd.f32 %v342, %v350
      %v355 = vadd.f32 %v343, %v351
      %v357 = vlaneseq
      %v358 = vshrl.u32 %v357, 7
      %v359 = vsub.s32 0, %v358
      %v360 = vrot.slane %v228, %v359
      %v362 = vadd.f32 %v352, %v360
      %v363 = vadd.f32 %v353, %v360
      %v364 = vadd.f32 %v354, %v360
      %v365 = vadd.f32 %v355, %v360
      %v370 = vcombine.low %v362, %v363
      %v371 = vcombine.low %v364, %v365
      %v374 = vpack.c.bf16 %v371, %v370
      %v375 = vld [vmem:[%s3] sm:$0xff]
      %v376 = vld [vmem:[%s3 + $0x8] sm:$0xff]
      %v377 = vld [vmem:[%s3 + $0x10] sm:$0xff]
      %v378 = vld [vmem:[%s3 + $0x18] sm:$0xff]
      %v379 = vpack.c.bf16 %v376, %v375
      %v380 = vpack.c.bf16 %v378, %v377
      %v382 = vlaneseq
      %v383 = vshrl.u32 %v382, 7
      %v384 = vsub.s32 0, %v383
      %v385 = vrot.slane %v229, %v384
      %vm387 = vcmask 261120
      %v389 = vsel %vm387, %v374, 0
      %391 = vmatprep.subr.bf16.mxu0 0
      %392 = vmatpush1.bf16.msra.mxu0 %v379
      %393 = vmatprep.subr.bf16.mxu0 0
      %394 = vmatpush1.bf16.msra.mxu0 %v380
      %395 = vmatprep.subr.bf16.mxu0 0
      %396 = vmatpush1.bf16.msra.mxu0 0
      %397 = vmatprep.subr.bf16.mxu0 0
      %398 = vmatpush1.bf16.msra.mxu0 0
      %399 = vmatprep.subr.bf16.mxu0 0
      %400 = vmatpush1.bf16.msra.mxu0 0
      %401 = vmatprep.subr.bf16.mxu0 0
      %402 = vmatpush1.bf16.msra.mxu0 0
      %403 = vmatprep.subr.bf16.mxu0 0
      %404 = vmatpush1.bf16.msra.mxu0 0
      %405 = vmatprep.subr.bf16.mxu0 0
      %406 = vmatpush1.bf16.msra.mxu0 0
      %407 = vmatprep.subr.bf16.mxu0 0
      %408 = vmatpush1.bf16.msra.mxu0 0
      %409 = vmatprep.subr.bf16.mxu0 0
      %410 = vmatpush1.bf16.msra.mxu0 0
      %411 = vmatprep.subr.bf16.mxu0 0
      %412 = vmatpush1.bf16.msra.mxu0 0
      %413 = vmatprep.subr.bf16.mxu0 0
      %414 = vmatpush1.bf16.msra.mxu0 0
      %415 = vmatprep.subr.bf16.mxu0 0
      %416 = vmatpush1.bf16.msra.mxu0 0
      %417 = vmatprep.subr.bf16.mxu0 0
      %418 = vmatpush1.bf16.msra.mxu0 0
      %419 = vmatprep.subr.bf16.mxu0 0
      %420 = vmatpush1.bf16.msra.mxu0 0
      %421 = vmatprep.subr.bf16.mxu0 0
      %422 = vmatpush1.bf16.msra.mxu0 0
      %423 = vmatprep.mubr.bf16.mxu0 0
      %424 = vmatmul.mubr.bf16.gmra.mrb[0].mxu0 %v389
      %v425 = vpop.f32.mrb[0].mxu0
      %v426 = vadd.f32 %v385, %v425
      %v427 = vpop.f32.mrb[0].mxu0
      %v428 = vpop.f32.mrb[0].mxu0
      %v429 = vadd.f32 %v385, %v428
      %v430 = vpop.f32.mrb[0].mxu0
      %431 = vdwg.mxu0
      %v434 = vcombine.high %v426, %v426
      %v435 = vcombine.high %v429, %v429
      %vm438 = vcmask 257024
      %439 = vst.msk [vmem:[%s224] sm:$0xf] %vm438, %v426
      %440 = vst.msk [vmem:[%s224 + $0x4] sm:$0xf] %vm438, %v434
      %441 = vst.msk [vmem:[%s224 + $0x8] sm:$0xf] %vm438, %v429
      %442 = vst.msk [vmem:[%s224 + $0xc] sm:$0xf] %vm438, %v435
      %p443 = scmp.lt.s32.totalorder %s16, 1
      %s444 = scalar_select %p443, %s16, 1
      %s445 = smul.addr %s444, 4
      %s446 = smul.addr %s445, 4
      %s447 = scalar_lea.vmem %s5, %s446
      // Predicated region
      $region41: #{fc_hilo1_forward.10} parent=39 // pred_check
        %p448 = pneg %p144
      $region42: #{fc_hilo1_forward.10} parent=39 // pred_check_branch
        %450 = sbr.rel (%p448) target = $region44
      $region43: #{fc_hilo1_forward.10} parent=39 // pred_region
        _
      $region44: #{fc_hilo1_forward.10} parent=39 // pred_fallthru
        _
    $region40: #{fc_hilo1_forward.10} parent=5 // pred_fallthru
      _
    %p451 = scmp.le.s32.totalorder 2, %s11
    // Predicated region
    $region45: #{fc_hilo1_forward.10} parent=5 // pred_check
      %p452 = pneg %p451
    $region46: #{fc_hilo1_forward.10} parent=5 // pred_check_branch
      %454 = sbr.rel (%p452) target = $region48
    $region47: #{fc_hilo1_forward.10} parent=5 // pred_region
      %s455 = ssub.s32 %s11, 2
      // Predicated region
      $region49: #{fc_hilo1_forward.10} parent=47 // pred_check
        %p456 = pneg %p150
      $region50: #{fc_hilo1_forward.10} parent=47 // pred_check_branch
        %458 = sbr.rel (%p456) target = $region52
      $region51: #{fc_hilo1_forward.10} parent=47 // pred_region
        %p459 = scmp.lt.s32.totalorder %s17, 1
        %s460 = scalar_select %p459, %s17, 1
        %s461 = smul.addr %s460, 4
        %s462 = smul.addr %s461, 4
        %s463 = scalar_lea.vmem %s5, %s462
      $region52: #{fc_hilo1_forward.10} parent=47 // pred_fallthru
        _
    $region48: #{fc_hilo1_forward.10} parent=5 // pred_fallthru
      _
  $region6: #{fc_hilo1_forward.10} parent=0 // loop_footer
    %s15 = sadd.s32 1, %s11
  $region7: #{fc_hilo1_forward.10} parent=0 // loop_footer_branch
    %10 = sbr.rel target = $region3
  $region8: #{fc_hilo1_forward.10} parent=0 // loop_exit
    _

// kernel: fc_hilo1_forward.9
$region0: #{fc_hilo1_forward.9}
  #allocation0 [shape = 'u32[]', space=smem, size = 0x4, offset = 0x4, fixed_abs, tag = 'smem constant byte address 0x4 - core index']
  #allocation1 [shape = 'u32[144,128]{1,0:T(1,128)}', space=vmem, size = 0x12000, scoped, tag = 'internal scratch']
  %s0 = inlined_call_operand.vmem [shape: f32[2,10,10,32], index: 0, kind: input, shape index: {}]
  %s1 = inlined_call_operand.vmem [shape: f32[9,32], index: 1, kind: input, shape index: {}]
  %s2 = inlined_call_operand.vmem [shape: f32[1,32], index: 2, kind: input, shape index: {}]
  %s3 = inlined_call_operand.vmem [shape: f32[32,16], index: 3, kind: input, shape index: {}]
  %s4 = inlined_call_operand.vmem [shape: f32[1,16], index: 4, kind: input, shape index: {}]
  %s5 = inlined_call_operand.vmem [shape: f32[2,8,8,16], index: 5, kind: output, shape index: {}]
  %s6 = sld [smem:[#allocation0]]
  $region53: #{fc_hilo1_forward.9} parent=0
    _
  %s8 = ssub.s32 1, %s6
  %s9 = scalar_select 0, %s8, %s6
  loop: start=0, step=1, limit=4
  $region2: #{fc_hilo1_forward.9} parent=0 // loop_pre_header
    _
  $region3: #{fc_hilo1_forward.9} parent=0 // loop_header
    %s11 = sphi 0, %s15
    %p12 = scmp.ge.s32.totalorder %s11, 4
    %s21 = sphi 0, %s23
    %s24 = sphi 0, %s21
    %s25 = sphi 0, %s24
    %s41 = sphi 0, %s25
    %s45 = sphi 0, %s45
    %s47 = sphi 0, %s45
    %s48 = sphi 0, %s47
    %s62 = sphi 0, %s48
    %s66 = sphi 0, %s66
    %s68 = sphi 0, %s66
    %s69 = sphi 0, %s68
    %s83 = sphi 0, %s69
    %s87 = sphi 0, %s87
    %s89 = sphi 0, %s87
    %s90 = sphi 0, %s89
    %s104 = sphi 0, %s90
    %s108 = sphi 0, %s108
    %s110 = sphi 0, %s108
    %s111 = sphi 0, %s110
    %s125 = sphi 0, %s111
    %s131 = sphi 0, %s133
    %s134 = sphi 0, %s131
    %s135 = sphi 0, %s134
    %s151 = sphi 0, %s135
  $region4: #{fc_hilo1_forward.9} parent=0 // loop_header_branch
    %14 = sbr.rel (%p12) target = $region8
  $region5: #{fc_hilo1_forward.9} parent=0 // loop_body
    %s16 = ssub.s32 %s11, 1
    %s17 = ssub.s32 %s11, 2
    %s18 = sadd.s32 %s11, 1
    %s19 = ssub.s32 %s11, %s18
    %p20 = scmp.eq.s32.totalorder %s19, 0
    %s22 = sadd.s32 %s21, 1
    %s23 = scalar_select %p20, %s21, %s22
    %p26 = pneg %p20
    %p27 = scmp.eq.s32.totalorder %s11, 1
    %p28 = por %p26, %p27
    %p29 = scmp.ne.s32.totalorder %s21, %s24
    %p30 = scmp.eq.s32.totalorder %s11, 0
    %p31 = por %p29, %p30
    %p32 = scmp.ne.s32.totalorder %s21, %s24
    %p33 = scmp.eq.s32.totalorder %s16, 1
    %p34 = por %p32, %p33
    %p35 = scmp.ne.s32.totalorder %s24, %s25
    %p36 = scmp.eq.s32.totalorder %s16, 0
    %p37 = por %p35, %p36
    %p38 = scmp.ne.s32.totalorder %s24, %s25
    %p39 = scmp.eq.s32.totalorder %s17, 1
    %p40 = por %p38, %p39
    %p42 = scmp.ne.s32.totalorder %s25, %s41
    %p43 = scmp.eq.s32.totalorder %s17, 0
    %p44 = por %p42, %p43
    %s46 = sadd.s32 %s45, 1
    %p49 = scmp.eq.s32.totalorder %s11, 1
    %p50 = scmp.ne.s32.totalorder %s45, %s47
    %p51 = scmp.eq.s32.totalorder %s11, 0
    %p52 = por %p50, %p51
    %p53 = scmp.ne.s32.totalorder %s45, %s47
    %p54 = scmp.eq.s32.totalorder %s16, 1
    %p55 = por %p53, %p54
    %p56 = scmp.ne.s32.totalorder %s47, %s48
    %p57 = scmp.eq.s32.totalorder %s16, 0
    %p58 = por %p56, %p57
    %p59 = scmp.ne.s32.totalorder %s47, %s48
    %p60 = scmp.eq.s32.totalorder %s17, 1
    %p61 = por %p59, %p60
    %p63 = scmp.ne.s32.totalorder %s48, %s62
    %p64 = scmp.eq.s32.totalorder %s17, 0
    %p65 = por %p63, %p64
    %s67 = sadd.s32 %s66, 1
    %p70 = scmp.eq.s32.totalorder %s11, 1
    %p71 = scmp.ne.s32.totalorder %s66, %s68
    %p72 = scmp.eq.s32.totalorder %s11, 0
    %p73 = por %p71, %p72
    %p74 = scmp.ne.s32.totalorder %s66, %s68
    %p75 = scmp.eq.s32.totalorder %s16, 1
    %p76 = por %p74, %p75
    %p77 = scmp.ne.s32.totalorder %s68, %s69
    %p78 = scmp.eq.s32.totalorder %s16, 0
    %p79 = por %p77, %p78
    %p80 = scmp.ne.s32.totalorder %s68, %s69
    %p81 = scmp.eq.s32.totalorder %s17, 1
    %p82 = por %p80, %p81
    %p84 = scmp.ne.s32.totalorder %s69, %s83
    %p85 = scmp.eq.s32.totalorder %s17, 0
    %p86 = por %p84, %p85
    %s88 = sadd.s32 %s87, 1
    %p91 = scmp.eq.s32.totalorder %s11, 1
    %p92 = scmp.ne.s32.totalorder %s87, %s89
    %p93 = scmp.eq.s32.totalorder %s11, 0
    %p94 = por %p92, %p93
    %p95 = scmp.ne.s32.totalorder %s87, %s89
    %p96 = scmp.eq.s32.totalorder %s16, 1
    %p97 = por %p95, %p96
    %p98 = scmp.ne.s32.totalorder %s89, %s90
    %p99 = scmp.eq.s32.totalorder %s16, 0
    %p100 = por %p98, %p99
    %p101 = scmp.ne.s32.totalorder %s89, %s90
    %p102 = scmp.eq.s32.totalorder %s17, 1
    %p103 = por %p101, %p102
    %p105 = scmp.ne.s32.totalorder %s90, %s104
    %p106 = scmp.eq.s32.totalorder %s17, 0
    %p107 = por %p105, %p106
    %s109 = sadd.s32 %s108, 1
    %p112 = scmp.eq.s32.totalorder %s11, 1
    %p113 = scmp.ne.s32.totalorder %s108, %s110
    %p114 = scmp.eq.s32.totalorder %s11, 0
    %p115 = por %p113, %p114
    %p116 = scmp.ne.s32.totalorder %s108, %s110
    %p117 = scmp.eq.s32.totalorder %s16, 1
    %p118 = por %p116, %p117
    %p119 = scmp.ne.s32.totalorder %s110, %s111
    %p120 = scmp.eq.s32.totalorder %s16, 0
    %p121 = por %p119, %p120
    %p122 = scmp.ne.s32.totalorder %s110, %s111
    %p123 = scmp.eq.s32.totalorder %s17, 1
    %p124 = por %p122, %p123
    %p126 = scmp.ne.s32.totalorder %s111, %s125
    %p127 = scmp.eq.s32.totalorder %s17, 0
    %p128 = por %p126, %p127
    %s129 = ssub.s32 %s11, %s18
    %p130 = scmp.eq.s32.totalorder %s129, 0
    %s132 = sadd.s32 %s131, 1
    %s133 = scalar_select %p130, %s131, %s132
    %p136 = pneg %p130
    %p137 = scmp.eq.s32.totalorder %s11, 1
    %p138 = por %p136, %p137
    %p139 = scmp.ne.s32.totalorder %s131, %s134
    %p140 = scmp.eq.s32.totalorder %s11, 0
    %p141 = por %p139, %p140
    %p142 = scmp.ne.s32.totalorder %s131, %s134
    %p143 = scmp.eq.s32.totalorder %s16, 1
    %p144 = por %p142, %p143
    %p145 = scmp.ne.s32.totalorder %s134, %s135
    %p146 = scmp.eq.s32.totalorder %s16, 0
    %p147 = por %p145, %p146
    %p148 = scmp.ne.s32.totalorder %s134, %s135
    %p149 = scmp.eq.s32.totalorder %s17, 1
    %p150 = por %p148, %p149
    %p152 = scmp.ne.s32.totalorder %s135, %s151
    %p153 = scmp.eq.s32.totalorder %s17, 0
    %p154 = por %p152, %p153
    %p155 = scmp.le.s32.totalorder 1, %s11
    %p156 = scmp.lt.s32.totalorder %s11, 3
    %p157 = pnand %p155, %p156
    %p158 = pneg %p157
    // Predicated region
    $region9: #{fc_hilo1_forward.9} parent=5 // pred_check
      _
    $region10: #{fc_hilo1_forward.9} parent=5 // pred_check_branch
      %160 = sbr.rel (%p157) target = $region12
    $region11: #{fc_hilo1_forward.9} parent=5 // pred_region
      %s161 = ssub.s32 %s11, 1
      // Predicated region
      $region13: #{fc_hilo1_forward.9} parent=11 // pred_check
        %p162 = pneg %p58
      $region14: #{fc_hilo1_forward.9} parent=11 // pred_check_branch
        %164 = sbr.rel (%p162) target = $region16
      $region15: #{fc_hilo1_forward.9} parent=11 // pred_region
        _
      $region16: #{fc_hilo1_forward.9} parent=11 // pred_fallthru
        _
      // Predicated region
      $region17: #{fc_hilo1_forward.9} parent=11 // pred_check
        %p165 = pneg %p79
      $region18: #{fc_hilo1_forward.9} parent=11 // pred_check_branch
        %167 = sbr.rel (%p165) target = $region20
      $region19: #{fc_hilo1_forward.9} parent=11 // pred_region
        _
      $region20: #{fc_hilo1_forward.9} parent=11 // pred_fallthru
        _
      // Predicated region
      $region21: #{fc_hilo1_forward.9} parent=11 // pred_check
        %p168 = pneg %p100
      $region22: #{fc_hilo1_forward.9} parent=11 // pred_check_branch
        %170 = sbr.rel (%p168) target = $region24
      $region23: #{fc_hilo1_forward.9} parent=11 // pred_region
        _
      $region24: #{fc_hilo1_forward.9} parent=11 // pred_fallthru
        _
      // Predicated region
      $region25: #{fc_hilo1_forward.9} parent=11 // pred_check
        %p171 = pneg %p121
      $region26: #{fc_hilo1_forward.9} parent=11 // pred_check_branch
        %173 = sbr.rel (%p171) target = $region28
      $region27: #{fc_hilo1_forward.9} parent=11 // pred_region
        _
      $region28: #{fc_hilo1_forward.9} parent=11 // pred_fallthru
        _
    $region12: #{fc_hilo1_forward.9} parent=5 // pred_fallthru
      _
    %p174 = scmp.lt.s32.totalorder %s11, 2
    // Predicated region
    $region29: #{fc_hilo1_forward.9} parent=5 // pred_check
      %p175 = pneg %p174
    $region30: #{fc_hilo1_forward.9} parent=5 // pred_check_branch
      %177 = sbr.rel (%p175) target = $region32
    $region31: #{fc_hilo1_forward.9} parent=5 // pred_region
      // Predicated region
      $region33: #{fc_hilo1_forward.9} parent=31 // pred_check
        %p178 = pneg %p31
      $region34: #{fc_hilo1_forward.9} parent=31 // pred_check_branch
        %180 = sbr.rel (%p178) target = $region36
      $region35: #{fc_hilo1_forward.9} parent=31 // pred_region
        %p181 = scmp.lt.s32.totalorder %s11, 1
        %s182 = scalar_select %p181, %s11, 1
        %s183 = smul.addr %s182, 20
        %s184 = smul.addr %s183, 8
        %s185 = scalar_lea.vmem %s0, %s184
      $region36: #{fc_hilo1_forward.9} parent=31 // pred_fallthru
        _
    $region32: #{fc_hilo1_forward.9} parent=5 // pred_fallthru
      _
    %p186 = scmp.le.s32.totalorder 1, %s11
    %p187 = scmp.lt.s32.totalorder %s11, 3
    %p188 = pnand %p186, %p187
    %p189 = pneg %p188
    // Predicated region
    $region37: #{fc_hilo1_forward.9} parent=5 // pred_check
      _
    $region38: #{fc_hilo1_forward.9} parent=5 // pred_check_branch
      %191 = sbr.rel (%p188) target = $region40
    $region39: #{fc_hilo1_forward.9} parent=5 // pred_region
      %s192 = ssub.s32 %s11, 1
      %p193 = scmp.lt.s32.totalorder %s16, 1
      %s194 = scalar_select %p193, %s16, 1
      %s195 = smul.addr %s194, 20
      %s196 = smul.addr %s195, 8
      %s197 = scalar_lea.vmem %s0, %s196
      %p198 = pneg %p37
      %p199 = pneg %p34
      %p200 = pneg %p58
      %p201 = pneg %p55
      %p202 = pneg %p79
      %p203 = pneg %p76
      %p204 = pneg %p100
      %p205 = pneg %p97
      %p206 = pneg %p121
      %p207 = pneg %p118
      %p208 = pneg %p147
      %p209 = pneg %p144
      %p210 = scmp.lt.s32.totalorder %s16, 1
      %s211 = scalar_select %p210, %s16, 1
      %s212 = smul.addr %s211, 8
      %s213 = smul.addr %s212, 8
      %s214 = scalar_lea.vmem %s5, %s213
      %p215 = scmp.lt.s32.totalorder %s16, 1
      %s216 = scalar_select %p215, %s16, 1
      %s217 = smul.addr %s216, 20
      %s218 = smul.addr %s217, 8
      %s219 = scalar_lea.vmem %s0, %s218
      %p220 = scmp.lt.s32.totalorder %s16, 1
      %s221 = scalar_select %p220, %s16, 1
      %s222 = smul.addr %s221, 8
      %s223 = smul.addr %s222, 8
      %s224 = scalar_lea.vmem %s5, %s223
      %v226 = vld [vmem:[%s1] sm:$0xff]
      %v227 = vld [vmem:[%s1 + $0x8] sm:$0x1]
      %v228 = vld [vmem:[%s2] sm:$0x1]
      %v229 = vld [vmem:[%s4] sm:$0x1]
      %v230 = vld [vmem:[%s219] sm:$0xff]
      %v231 = vld [vmem:[%s219 + $0x10] sm:$0xff]
      %v232 = vld [vmem:[%s219 + $0x20] sm:$0xff]
      %v233 = vld [vmem:[%s219 + $0x30] sm:$0xff]
      %v234 = vld [vmem:[%s219 + $0x40] sm:$0xff]
      %v235 = vld [vmem:[%s219 + $0x50] sm:$0xff]
      %v236 = vld [vmem:[%s219 + $0x60] sm:$0xff]
      %v237 = vld [vmem:[%s219 + $0x70] sm:$0xff]
      %v238 = vld [vmem:[%s219 + $0x80] sm:$0xff]
      %v239 = vld [vmem:[%s219 + $0x90] sm:$0xff]
      %v240 = vld [vmem:[%s219 + $0x1] sm:$0xff]
      %v241 = vld [vmem:[%s219 + $0x11] sm:$0xff]
      %v242 = vld [vmem:[%s219 + $0x21] sm:$0xff]
      %v243 = vld [vmem:[%s219 + $0x31] sm:$0xff]
      %v244 = vld [vmem:[%s219 + $0x41] sm:$0xff]
      %v245 = vld [vmem:[%s219 + $0x51] sm:$0xff]
      %v246 = vld [vmem:[%s219 + $0x61] sm:$0xff]
      %v247 = vld [vmem:[%s219 + $0x71] sm:$0xff]
      %v248 = vld [vmem:[%s219 + $0x81] sm:$0xff]
      %v249 = vld [vmem:[%s219 + $0x91] sm:$0xff]
      %v250 = vld [vmem:[%s219 + $0x2] sm:$0xff]
      %v251 = vld [vmem:[%s219 + $0x12] sm:$0xff]
      %v252 = vld [vmem:[%s219 + $0x22] sm:$0xff]
      %v253 = vld [vmem:[%s219 + $0x32] sm:$0xff]
      %v254 = vld [vmem:[%s219 + $0x42] sm:$0xff]
      %v255 = vld [vmem:[%s219 + $0x52] sm:$0xff]
      %v256 = vld [vmem:[%s219 + $0x62] sm:$0xff]
      %v257 = vld [vmem:[%s219 + $0x72] sm:$0xff]
      %v258 = vld [vmem:[%s219 + $0x82] sm:$0xff]
      %v259 = vld [vmem:[%s219 + $0x92] sm:$0xff]
      %v260 = vlaneseq
      %v261 = vshrl.u32 %v260, 7
      %v262 = vsub.s32 0, %v261
      %v263 = vrot.slane %v226, %v262
      %v264 = vmul.f32 %v230, %v263
      %v265 = vmul.f32 %v231, %v263
      %v266 = vmul.f32 %v232, %v263
      %v267 = vmul.f32 %v233, %v263
      %v268 = vmul.f32 %v234, %v263
      %v269 = vmul.f32 %v235, %v263
      %v270 = vmul.f32 %v236, %v263
      %v271 = vmul.f32 %v237, %v263
      %v272 = vadd.f32 %v264, 0.0
      %v273 = vadd.f32 %v265, 0.0
      %v274 = vadd.f32 %v266, 0.0
      %v275 = vadd.f32 %v267, 0.0
      %v276 = vadd.f32 %v268, 0.0
      %v277 = vadd.f32 %v269, 0.0
      %v278 = vadd.f32 %v270, 0.0
      %v279 = vadd.f32 %v271, 0.0
      %v280 = vlaneseq
      %v281 = vshrl.u32 %v280, 7
      %v282 = vsub.s32 1, %v281
      %v283 = vrot.slane %v226, %v282
      %v284 = vmul.f32 %v240, %v283
      %v285 = vmul.f32 %v241, %v283
      %v286 = vmul.f32 %v242, %v283
      %v287 = vmul.f32 %v243, %v283
      %v288 = vmul.f32 %v244, %v283
      %v289 = vmul.f32 %v245, %v283
      %v290 = vmul.f32 %v246, %v283
      %v291 = vmul.f32 %v247, %v283
      %v292 = vadd.f32 %v272, %v284
      %v293 = vadd.f32 %v273, %v285
      %v294 = vadd.f32 %v274, %v286
      %v295 = vadd.f32 %v275, %v287
      %v296 = vadd.f32 %v276, %v288
      %v297 = vadd.f32 %v277, %v289
      %v298 = vadd.f32 %v278, %v290
      %v299 = vadd.f32 %v279, %v291
      %v300 = vlaneseq
      %v301 = vshrl.u32 %v300, 7
      %v302 = vsub.s32 2, %v301
      %v303 = vrot.slane %v226, %v302
      %v304 = vmul.f32 %v250, %v303
      %v305 = vmul.f32 %v251, %v303
      %v306 = vmul.f32 %v252, %v303
      %v307 = vmul.f32 %v253, %v303
      %v308 = vmul.f32 %v254, %v303
      %v309 = vmul.f32 %v255, %v303
      %v310 = vmul.f32 %v256, %v303
      %v311 = vmul.f32 %v257, %v303
      %v312 = vadd.f32 %v292, %v304
      %v313 = vadd.f32 %v293, %v305
      %v314 = vadd.f32 %v294, %v306
      %v315 = vadd.f32 %v295, %v307
      %v316 = vadd.f32 %v296, %v308
      %v317 = vadd.f32 %v297, %v309
      %v318 = vadd.f32 %v298, %v310
      %v319 = vadd.f32 %v299, %v311
      %v320 = vlaneseq
      %v321 = vshrl.u32 %v320, 7
      %v322 = vsub.s32 3, %v321
      %v323 = vrot.slane %v226, %v322
      %v324 = vmul.f32 %v231, %v323
      %v325 = vmul.f32 %v232, %v323
      %v326 = vmul.f32 %v233, %v323
      %v327 = vmul.f32 %v234, %v323
      %v328 = vmul.f32 %v235, %v323
      %v329 = vmul.f32 %v236, %v323
      %v330 = vmul.f32 %v237, %v323
      %v331 = vmul.f32 %v238, %v323
      %v332 = vadd.f32 %v312, %v324
      %v333 = vadd.f32 %v313, %v325
      %v334 = vadd.f32 %v314, %v326
      %v335 = vadd.f32 %v315, %v327
      %v336 = vadd.f32 %v316, %v328
      %v337 = vadd.f32 %v317, %v329
      %v338 = vadd.f32 %v318, %v330
      %v339 = vadd.f32 %v319, %v331
      %v340 = vlaneseq
      %v341 = vshrl.u32 %v340, 7
      %v342 = vsub.s32 4, %v341
      %v343 = vrot.slane %v226, %v342
      %v344 = vmul.f32 %v241, %v343
      %v345 = vmul.f32 %v242, %v343
      %v346 = vmul.f32 %v243, %v343
      %v347 = vmul.f32 %v244, %v343
      %v348 = vmul.f32 %v245, %v343
      %v349 = vmul.f32 %v246, %v343
      %v350 = vmul.f32 %v247, %v343
      %v351 = vmul.f32 %v248, %v343
      %v352 = vadd.f32 %v332, %v344
      %v353 = vadd.f32 %v333, %v345
      %v354 = vadd.f32 %v334, %v346
      %v355 = vadd.f32 %v335, %v347
      %v356 = vadd.f32 %v336, %v348
      %v357 = vadd.f32 %v337, %v349
      %v358 = vadd.f32 %v338, %v350
      %v359 = vadd.f32 %v339, %v351
      %v360 = vlaneseq
      %v361 = vshrl.u32 %v360, 7
      %v362 = vsub.s32 5, %v361
      %v363 = vrot.slane %v226, %v362
      %v364 = vmul.f32 %v251, %v363
      %v365 = vmul.f32 %v252, %v363
      %v366 = vmul.f32 %v253, %v363
      %v367 = vmul.f32 %v254, %v363
      %v368 = vmul.f32 %v255, %v363
      %v369 = vmul.f32 %v256, %v363
      %v370 = vmul.f32 %v257, %v363
      %v371 = vmul.f32 %v258, %v363
      %v372 = vadd.f32 %v352, %v364
      %v373 = vadd.f32 %v353, %v365
      %v374 = vadd.f32 %v354, %v366
      %v375 = vadd.f32 %v355, %v367
      %v376 = vadd.f32 %v356, %v368
      %v377 = vadd.f32 %v357, %v369
      %v378 = vadd.f32 %v358, %v370
      %v379 = vadd.f32 %v359, %v371
      %v380 = vlaneseq
      %v381 = vshrl.u32 %v380, 7
      %v382 = vsub.s32 6, %v381
      %v383 = vrot.slane %v226, %v382
      %v384 = vmul.f32 %v232, %v383
      %v385 = vmul.f32 %v233, %v383
      %v386 = vmul.f32 %v234, %v383
      %v387 = vmul.f32 %v235, %v383
      %v388 = vmul.f32 %v236, %v383
      %v389 = vmul.f32 %v237, %v383
      %v390 = vmul.f32 %v238, %v383
      %v391 = vmul.f32 %v239, %v383
      %v392 = vadd.f32 %v372, %v384
      %v393 = vadd.f32 %v373, %v385
      %v394 = vadd.f32 %v374, %v386
      %v395 = vadd.f32 %v375, %v387
      %v396 = vadd.f32 %v376, %v388
      %v397 = vadd.f32 %v377, %v389
      %v398 = vadd.f32 %v378, %v390
      %v399 = vadd.f32 %v379, %v391
      %v400 = vlaneseq
      %v401 = vshrl.u32 %v400, 7
      %v402 = vsub.s32 7, %v401
      %v403 = vrot.slane %v226, %v402
      %v404 = vmul.f32 %v242, %v403
      %v405 = vmul.f32 %v243, %v403
      %v406 = vmul.f32 %v244, %v403
      %v407 = vmul.f32 %v245, %v403
      %v408 = vmul.f32 %v246, %v403
      %v409 = vmul.f32 %v247, %v403
      %v410 = vmul.f32 %v248, %v403
      %v411 = vmul.f32 %v249, %v403
      %v412 = vadd.f32 %v392, %v404
      %v413 = vadd.f32 %v393, %v405
      %v414 = vadd.f32 %v394, %v406
      %v415 = vadd.f32 %v395, %v407
      %v416 = vadd.f32 %v396, %v408
      %v417 = vadd.f32 %v397, %v409
      %v418 = vadd.f32 %v398, %v410
      %v419 = vadd.f32 %v399, %v411
      %v420 = vlaneseq
      %v421 = vshrl.u32 %v420, 7
      %v422 = vsub.s32 0, %v421
      %v423 = vrot.slane %v227, %v422
      %v424 = vmul.f32 %v252, %v423
      %v425 = vmul.f32 %v253, %v423
      %v426 = vmul.f32 %v254, %v423
      %v427 = vmul.f32 %v255, %v423
      %v428 = vmul.f32 %v256, %v423
      %v429 = vmul.f32 %v257, %v423
      %v430 = vmul.f32 %v258, %v423
      %v431 = vmul.f32 %v259, %v423
      %v432 = vadd.f32 %v412, %v424
      %v433 = vadd.f32 %v413, %v425
      %v434 = vadd.f32 %v414, %v426
      %v435 = vadd.f32 %v415, %v427
      %v436 = vadd.f32 %v416, %v428
      %v437 = vadd.f32 %v417, %v429
      %v438 = vadd.f32 %v418, %v430
      %v439 = vadd.f32 %v419, %v431
      %v441 = vlaneseq
      %v442 = vshrl.u32 %v441, 7
      %v443 = vsub.s32 0, %v442
      %v444 = vrot.slane %v228, %v443
      %v446 = vadd.f32 %v432, %v444
      %v447 = vadd.f32 %v433, %v444
      %v448 = vadd.f32 %v434, %v444
      %v449 = vadd.f32 %v435, %v444
      %v450 = vadd.f32 %v436, %v444
      %v451 = vadd.f32 %v437, %v444
      %v452 = vadd.f32 %v438, %v444
      %v453 = vadd.f32 %v439, %v444
      %v454 = vpack.c.bf16 %v447, %v446
      %v455 = vpack.c.bf16 %v449, %v448
      %v456 = vpack.c.bf16 %v451, %v450
      %v457 = vpack.c.bf16 %v453, %v452
      %v458 = vld [vmem:[%s3] sm:$0xff]
      %v459 = vld [vmem:[%s3 + $0x8] sm:$0xff]
      %v460 = vld [vmem:[%s3 + $0x10] sm:$0xff]
      %v461 = vld [vmem:[%s3 + $0x18] sm:$0xff]
      %v462 = vpack.c.bf16 %v459, %v458
      %v463 = vpack.c.bf16 %v461, %v460
      %v465 = vlaneseq
      %v466 = vshrl.u32 %v465, 7
      %v467 = vsub.s32 0, %v466
      %v468 = vrot.slane %v229, %v467
      %vm470 = vcmask 261120
      %v472 = vsel %vm470, %v454, 0
      %v475 = vsel %vm470, %v455, 0
      %v478 = vsel %vm470, %v456, 0
      %v481 = vsel %vm470, %v457, 0
      %483 = vmatprep.subr.bf16.mxu0 0
      %484 = vmatpush1.bf16.msra.mxu0 %v462
      %485 = vmatprep.subr.bf16.mxu0 0
      %486 = vmatpush1.bf16.msra.mxu0 %v463
      %487 = vmatprep.subr.bf16.mxu0 0
      %488 = vmatpush1.bf16.msra.mxu0 0
      %489 = vmatprep.subr.bf16.mxu0 0
      %490 = vmatpush1.bf16.msra.mxu0 0
      %491 = vmatprep.subr.bf16.mxu0 0
      %492 = vmatpush1.bf16.msra.mxu0 0
      %493 = vmatprep.subr.bf16.mxu0 0
      %494 = vmatpush1.bf16.msra.mxu0 0
      %495 = vmatprep.subr.bf16.mxu0 0
      %496 = vmatpush1.bf16.msra.mxu0 0
      %497 = vmatprep.subr.bf16.mxu0 0
      %498 = vmatpush1.bf16.msra.mxu0 0
      %499 = vmatprep.subr.bf16.mxu0 0
      %500 = vmatpush1.bf16.msra.mxu0 0
      %501 = vmatprep.subr.bf16.mxu0 0
      %502 = vmatpush1.bf16.msra.mxu0 0
      %503 = vmatprep.subr.bf16.mxu0 0
      %504 = vmatpush1.bf16.msra.mxu0 0
      %505 = vmatprep.subr.bf16.mxu0 0
      %506 = vmatpush1.bf16.msra.mxu0 0
      %507 = vmatprep.subr.bf16.mxu0 0
      %508 = vmatpush1.bf16.msra.mxu0 0
      %509 = vmatprep.subr.bf16.mxu0 0
      %510 = vmatpush1.bf16.msra.mxu0 0
      %511 = vmatprep.subr.bf16.mxu0 0
      %512 = vmatpush1.bf16.msra.mxu0 0
      %513 = vmatprep.subr.bf16.mxu0 0
      %514 = vmatpush1.bf16.msra.mxu0 0
      %515 = vmatprep.mubr.bf16.mxu0 0
      %516 = vmatmul.mubr.bf16.gmra.mrb[0].mxu0 %v472
      %v517 = vpop.f32.mrb[0].mxu0
      %v518 = vadd.f32 %v468, %v517
      %v519 = vpop.f32.mrb[0].mxu0
      %v520 = vpop.f32.mrb[0].mxu0
      %v521 = vadd.f32 %v468, %v520
      %v522 = vpop.f32.mrb[0].mxu0
      %523 = vmatprep.mubr.bf16.mxu0 0
      %524 = vmatmul.mubr.bf16.gmra.mrb[0].mxu0 %v475
      %v525 = vpop.f32.mrb[0].mxu0
      %v526 = vadd.f32 %v468, %v525
      %v527 = vpop.f32.mrb[0].mxu0
      %v528 = vpop.f32.mrb[0].mxu0
      %v529 = vadd.f32 %v468, %v528
      %v530 = vpop.f32.mrb[0].mxu0
      %531 = vmatprep.mubr.bf16.mxu0 0
      %532 = vmatmul.mubr.bf16.gmra.mrb[0].mxu0 %v478
      %v533 = vpop.f32.mrb[0].mxu0
      %v534 = vadd.f32 %v468, %v533
      %v535 = vpop.f32.mrb[0].mxu0
      %v536 = vpop.f32.mrb[0].mxu0
      %v537 = vadd.f32 %v468, %v536
      %v538 = vpop.f32.mrb[0].mxu0
      %539 = vmatprep.mubr.bf16.mxu0 0
      %540 = vmatmul.mubr.bf16.gmra.mrb[0].mxu0 %v481
      %v541 = vpop.f32.mrb[0].mxu0
      %v542 = vadd.f32 %v468, %v541
      %v543 = vpop.f32.mrb[0].mxu0
      %v544 = vpop.f32.mrb[0].mxu0
      %v545 = vadd.f32 %v468, %v544
      %v546 = vpop.f32.mrb[0].mxu0
      %547 = vdwg.mxu0
      %vm548 = vcmask 130048
      %549 = vst.msk [vmem:[%s224] sm:$0xff] %vm548, %v518
      %550 = vst.msk [vmem:[%s224 + $0x8] sm:$0xff] %vm548, %v521
      %551 = vst.msk [vmem:[%s224 + $0x10] sm:$0xff] %vm548, %v526
      %552 = vst.msk [vmem:[%s224 + $0x18] sm:$0xff] %vm548, %v529
      %553 = vst.msk [vmem:[%s224 + $0x20] sm:$0xff] %vm548, %v534
      %554 = vst.msk [vmem:[%s224 + $0x28] sm:$0xff] %vm548, %v537
      %555 = vst.msk [vmem:[%s224 + $0x30] sm:$0xff] %vm548, %v542
      %556 = vst.msk [vmem:[%s224 + $0x38] sm:$0xff] %vm548, %v545
      %p557 = scmp.lt.s32.totalorder %s16, 1
      %s558 = scalar_select %p557, %s16, 1
      %s559 = smul.addr %s558, 8
      %s560 = smul.addr %s559, 8
      %s561 = scalar_lea.vmem %s5, %s560
      // Predicated region
      $region41: #{fc_hilo1_forward.9} parent=39 // pred_check
        %p562 = pneg %p144
      $region42: #{fc_hilo1_forward.9} parent=39 // pred_check_branch
        %564 = sbr.rel (%p562) target = $region44
      $region43: #{fc_hilo1_forward.9} parent=39 // pred_region
        _
      $region44: #{fc_hilo1_forward.9} parent=39 // pred_fallthru
        _
    $region40: #{fc_hilo1_forward.9} parent=5 // pred_fallthru
      _
    %p565 = scmp.le.s32.totalorder 2, %s11
    // Predicated region
    $region45: #{fc_hilo1_forward.9} parent=5 // pred_check
      %p566 = pneg %p565
    $region46: #{fc_hilo1_forward.9} parent=5 // pred_check_branch
      %568 = sbr.rel (%p566) target = $region48
    $region47: #{fc_hilo1_forward.9} parent=5 // pred_region
      %s569 = ssub.s32 %s11, 2
      // Predicated region
      $region49: #{fc_hilo1_forward.9} parent=47 // pred_check
        %p570 = pneg %p150
      $region50: #{fc_hilo1_forward.9} parent=47 // pred_check_branch
        %572 = sbr.rel (%p570) target = $region52
      $region51: #{fc_hilo1_forward.9} parent=47 // pred_region
        %p573 = scmp.lt.s32.totalorder %s17, 1
        %s574 = scalar_select %p573, %s17, 1
        %s575 = smul.addr %s574, 8
        %s576 = smul.addr %s575, 8
        %s577 = scalar_lea.vmem %s5, %s576
      $region52: #{fc_hilo1_forward.9} parent=47 // pred_fallthru
        _
    $region48: #{fc_hilo1_forward.9} parent=5 // pred_fallthru
      _
  $region6: #{fc_hilo1_forward.9} parent=0 // loop_footer
    %s15 = sadd.s32 1, %s11
  $region7: #{fc_hilo1_forward.9} parent=0 // loop_footer_branch
    %10 = sbr.rel target = $region3
  $region8: #{fc_hilo1_forward.9} parent=0 // loop_exit
    _

// kernel: fc_hilo1_forward.13
$region0: #{fc_hilo1_forward.13}
  #allocation0 [shape = 'u32[]', space=smem, size = 0x4, offset = 0x4, fixed_abs, tag = 'smem constant byte address 0x4 - core index']
  #allocation1 [shape = 'u32[144,128]{1,0:T(1,128)}', space=vmem, size = 0x12000, scoped, tag = 'internal scratch']
  %s0 = inlined_call_operand.vmem [shape: f32[2,10,10,32], index: 0, kind: input, shape index: {}]
  %s1 = inlined_call_operand.vmem [shape: f32[9,32], index: 1, kind: input, shape index: {}]
  %s2 = inlined_call_operand.vmem [shape: f32[1,32], index: 2, kind: input, shape index: {}]
  %s3 = inlined_call_operand.vmem [shape: f32[32,48], index: 3, kind: input, shape index: {}]
  %s4 = inlined_call_operand.vmem [shape: f32[1,48], index: 4, kind: input, shape index: {}]
  %s5 = inlined_call_operand.vmem [shape: f32[2,8,8,48], index: 5, kind: output, shape index: {}]
  %s6 = sld [smem:[#allocation0]]
  $region53: #{fc_hilo1_forward.13} parent=0
    _
  %s8 = ssub.s32 1, %s6
  %s9 = scalar_select 0, %s8, %s6
  loop: start=0, step=1, limit=4
  $region2: #{fc_hilo1_forward.13} parent=0 // loop_pre_header
    _
  $region3: #{fc_hilo1_forward.13} parent=0 // loop_header
    %s11 = sphi 0, %s15
    %p12 = scmp.ge.s32.totalorder %s11, 4
    %s21 = sphi 0, %s23
    %s24 = sphi 0, %s21
    %s25 = sphi 0, %s24
    %s41 = sphi 0, %s25
    %s45 = sphi 0, %s45
    %s47 = sphi 0, %s45
    %s48 = sphi 0, %s47
    %s62 = sphi 0, %s48
    %s66 = sphi 0, %s66
    %s68 = sphi 0, %s66
    %s69 = sphi 0, %s68
    %s83 = sphi 0, %s69
    %s87 = sphi 0, %s87
    %s89 = sphi 0, %s87
    %s90 = sphi 0, %s89
    %s104 = sphi 0, %s90
    %s108 = sphi 0, %s108
    %s110 = sphi 0, %s108
    %s111 = sphi 0, %s110
    %s125 = sphi 0, %s111
    %s131 = sphi 0, %s133
    %s134 = sphi 0, %s131
    %s135 = sphi 0, %s134
    %s151 = sphi 0, %s135
  $region4: #{fc_hilo1_forward.13} parent=0 // loop_header_branch
    %14 = sbr.rel (%p12) target = $region8
  $region5: #{fc_hilo1_forward.13} parent=0 // loop_body
    %s16 = ssub.s32 %s11, 1
    %s17 = ssub.s32 %s11, 2
    %s18 = sadd.s32 %s11, 1
    %s19 = ssub.s32 %s11, %s18
    %p20 = scmp.eq.s32.totalorder %s19, 0
    %s22 = sadd.s32 %s21, 1
    %s23 = scalar_select %p20, %s21, %s22
    %p26 = pneg %p20
    %p27 = scmp.eq.s32.totalorder %s11, 1
    %p28 = por %p26, %p27
    %p29 = scmp.ne.s32.totalorder %s21, %s24
    %p30 = scmp.eq.s32.totalorder %s11, 0
    %p31 = por %p29, %p30
    %p32 = scmp.ne.s32.totalorder %s21, %s24
    %p33 = scmp.eq.s32.totalorder %s16, 1
    %p34 = por %p32, %p33
    %p35 = scmp.ne.s32.totalorder %s24, %s25
    %p36 = scmp.eq.s32.totalorder %s16, 0
    %p37 = por %p35, %p36
    %p38 = scmp.ne.s32.totalorder %s24, %s25
    %p39 = scmp.eq.s32.totalorder %s17, 1
    %p40 = por %p38, %p39
    %p42 = scmp.ne.s32.totalorder %s25, %s41
    %p43 = scmp.eq.s32.totalorder %s17, 0
    %p44 = por %p42, %p43
    %s46 = sadd.s32 %s45, 1
    %p49 = scmp.eq.s32.totalorder %s11, 1
    %p50 = scmp.ne.s32.totalorder %s45, %s47
    %p51 = scmp.eq.s32.totalorder %s11, 0
    %p52 = por %p50, %p51
    %p53 = scmp.ne.s32.totalorder %s45, %s47
    %p54 = scmp.eq.s32.totalorder %s16, 1
    %p55 = por %p53, %p54
    %p56 = scmp.ne.s32.totalorder %s47, %s48
    %p57 = scmp.eq.s32.totalorder %s16, 0
    %p58 = por %p56, %p57
    %p59 = scmp.ne.s32.totalorder %s47, %s48
    %p60 = scmp.eq.s32.totalorder %s17, 1
    %p61 = por %p59, %p60
    %p63 = scmp.ne.s32.totalorder %s48, %s62
    %p64 = scmp.eq.s32.totalorder %s17, 0
    %p65 = por %p63, %p64
    %s67 = sadd.s32 %s66, 1
    %p70 = scmp.eq.s32.totalorder %s11, 1
    %p71 = scmp.ne.s32.totalorder %s66, %s68
    %p72 = scmp.eq.s32.totalorder %s11, 0
    %p73 = por %p71, %p72
    %p74 = scmp.ne.s32.totalorder %s66, %s68
    %p75 = scmp.eq.s32.totalorder %s16, 1
    %p76 = por %p74, %p75
    %p77 = scmp.ne.s32.totalorder %s68, %s69
    %p78 = scmp.eq.s32.totalorder %s16, 0
    %p79 = por %p77, %p78
    %p80 = scmp.ne.s32.totalorder %s68, %s69
    %p81 = scmp.eq.s32.totalorder %s17, 1
    %p82 = por %p80, %p81
    %p84 = scmp.ne.s32.totalorder %s69, %s83
    %p85 = scmp.eq.s32.totalorder %s17, 0
    %p86 = por %p84, %p85
    %s88 = sadd.s32 %s87, 1
    %p91 = scmp.eq.s32.totalorder %s11, 1
    %p92 = scmp.ne.s32.totalorder %s87, %s89
    %p93 = scmp.eq.s32.totalorder %s11, 0
    %p94 = por %p92, %p93
    %p95 = scmp.ne.s32.totalorder %s87, %s89
    %p96 = scmp.eq.s32.totalorder %s16, 1
    %p97 = por %p95, %p96
    %p98 = scmp.ne.s32.totalorder %s89, %s90
    %p99 = scmp.eq.s32.totalorder %s16, 0
    %p100 = por %p98, %p99
    %p101 = scmp.ne.s32.totalorder %s89, %s90
    %p102 = scmp.eq.s32.totalorder %s17, 1
    %p103 = por %p101, %p102
    %p105 = scmp.ne.s32.totalorder %s90, %s104
    %p106 = scmp.eq.s32.totalorder %s17, 0
    %p107 = por %p105, %p106
    %s109 = sadd.s32 %s108, 1
    %p112 = scmp.eq.s32.totalorder %s11, 1
    %p113 = scmp.ne.s32.totalorder %s108, %s110
    %p114 = scmp.eq.s32.totalorder %s11, 0
    %p115 = por %p113, %p114
    %p116 = scmp.ne.s32.totalorder %s108, %s110
    %p117 = scmp.eq.s32.totalorder %s16, 1
    %p118 = por %p116, %p117
    %p119 = scmp.ne.s32.totalorder %s110, %s111
    %p120 = scmp.eq.s32.totalorder %s16, 0
    %p121 = por %p119, %p120
    %p122 = scmp.ne.s32.totalorder %s110, %s111
    %p123 = scmp.eq.s32.totalorder %s17, 1
    %p124 = por %p122, %p123
    %p126 = scmp.ne.s32.totalorder %s111, %s125
    %p127 = scmp.eq.s32.totalorder %s17, 0
    %p128 = por %p126, %p127
    %s129 = ssub.s32 %s11, %s18
    %p130 = scmp.eq.s32.totalorder %s129, 0
    %s132 = sadd.s32 %s131, 1
    %s133 = scalar_select %p130, %s131, %s132
    %p136 = pneg %p130
    %p137 = scmp.eq.s32.totalorder %s11, 1
    %p138 = por %p136, %p137
    %p139 = scmp.ne.s32.totalorder %s131, %s134
    %p140 = scmp.eq.s32.totalorder %s11, 0
    %p141 = por %p139, %p140
    %p142 = scmp.ne.s32.totalorder %s131, %s134
    %p143 = scmp.eq.s32.totalorder %s16, 1
    %p144 = por %p142, %p143
    %p145 = scmp.ne.s32.totalorder %s134, %s135
    %p146 = scmp.eq.s32.totalorder %s16, 0
    %p147 = por %p145, %p146
    %p148 = scmp.ne.s32.totalorder %s134, %s135
    %p149 = scmp.eq.s32.totalorder %s17, 1
    %p150 = por %p148, %p149
    %p152 = scmp.ne.s32.totalorder %s135, %s151
    %p153 = scmp.eq.s32.totalorder %s17, 0
    %p154 = por %p152, %p153
    %p155 = scmp.le.s32.totalorder 1, %s11
    %p156 = scmp.lt.s32.totalorder %s11, 3
    %p157 = pnand %p155, %p156
    %p158 = pneg %p157
    // Predicated region
    $region9: #{fc_hilo1_forward.13} parent=5 // pred_check
      _
    $region10: #{fc_hilo1_forward.13} parent=5 // pred_check_branch
      %160 = sbr.rel (%p157) target = $region12
    $region11: #{fc_hilo1_forward.13} parent=5 // pred_region
      %s161 = ssub.s32 %s11, 1
      // Predicated region
      $region13: #{fc_hilo1_forward.13} parent=11 // pred_check
        %p162 = pneg %p58
      $region14: #{fc_hilo1_forward.13} parent=11 // pred_check_branch
        %164 = sbr.rel (%p162) target = $region16
      $region15: #{fc_hilo1_forward.13} parent=11 // pred_region
        _
      $region16: #{fc_hilo1_forward.13} parent=11 // pred_fallthru
        _
      // Predicated region
      $region17: #{fc_hilo1_forward.13} parent=11 // pred_check
        %p165 = pneg %p79
      $region18: #{fc_hilo1_forward.13} parent=11 // pred_check_branch
        %167 = sbr.rel (%p165) target = $region20
      $region19: #{fc_hilo1_forward.13} parent=11 // pred_region
        _
      $region20: #{fc_hilo1_forward.13} parent=11 // pred_fallthru
        _
      // Predicated region
      $region21: #{fc_hilo1_forward.13} parent=11 // pred_check
        %p168 = pneg %p100
      $region22: #{fc_hilo1_forward.13} parent=11 // pred_check_branch
        %170 = sbr.rel (%p168) target = $region24
      $region23: #{fc_hilo1_forward.13} parent=11 // pred_region
        _
      $region24: #{fc_hilo1_forward.13} parent=11 // pred_fallthru
        _
      // Predicated region
      $region25: #{fc_hilo1_forward.13} parent=11 // pred_check
        %p171 = pneg %p121
      $region26: #{fc_hilo1_forward.13} parent=11 // pred_check_branch
        %173 = sbr.rel (%p171) target = $region28
      $region27: #{fc_hilo1_forward.13} parent=11 // pred_region
        _
      $region28: #{fc_hilo1_forward.13} parent=11 // pred_fallthru
        _
    $region12: #{fc_hilo1_forward.13} parent=5 // pred_fallthru
      _
    %p174 = scmp.lt.s32.totalorder %s11, 2
    // Predicated region
    $region29: #{fc_hilo1_forward.13} parent=5 // pred_check
      %p175 = pneg %p174
    $region30: #{fc_hilo1_forward.13} parent=5 // pred_check_branch
      %177 = sbr.rel (%p175) target = $region32
    $region31: #{fc_hilo1_forward.13} parent=5 // pred_region
      // Predicated region
      $region33: #{fc_hilo1_forward.13} parent=31 // pred_check
        %p178 = pneg %p31
      $region34: #{fc_hilo1_forward.13} parent=31 // pred_check_branch
        %180 = sbr.rel (%p178) target = $region36
      $region35: #{fc_hilo1_forward.13} parent=31 // pred_region
        %p181 = scmp.lt.s32.totalorder %s11, 1
        %s182 = scalar_select %p181, %s11, 1
        %s183 = smul.addr %s182, 20
        %s184 = smul.addr %s183, 8
        %s185 = scalar_lea.vmem %s0, %s184
      $region36: #{fc_hilo1_forward.13} parent=31 // pred_fallthru
        _
    $region32: #{fc_hilo1_forward.13} parent=5 // pred_fallthru
      _
    %p186 = scmp.le.s32.totalorder 1, %s11
    %p187 = scmp.lt.s32.totalorder %s11, 3
    %p188 = pnand %p186, %p187
    %p189 = pneg %p188
    // Predicated region
    $region37: #{fc_hilo1_forward.13} parent=5 // pred_check
      _
    $region38: #{fc_hilo1_forward.13} parent=5 // pred_check_branch
      %191 = sbr.rel (%p188) target = $region40
    $region39: #{fc_hilo1_forward.13} parent=5 // pred_region
      %s192 = ssub.s32 %s11, 1
      %p193 = scmp.lt.s32.totalorder %s16, 1
      %s194 = scalar_select %p193, %s16, 1
      %s195 = smul.addr %s194, 20
      %s196 = smul.addr %s195, 8
      %s197 = scalar_lea.vmem %s0, %s196
      %p198 = pneg %p37
      %p199 = pneg %p34
      %p200 = pneg %p58
      %p201 = pneg %p55
      %p202 = pneg %p79
      %p203 = pneg %p76
      %p204 = pneg %p100
      %p205 = pneg %p97
      %p206 = pneg %p121
      %p207 = pneg %p118
      %p208 = pneg %p147
      %p209 = pneg %p144
      %p210 = scmp.lt.s32.totalorder %s16, 1
      %s211 = scalar_select %p210, %s16, 1
      %s212 = smul.addr %s211, 8
      %s213 = smul.addr %s212, 8
      %s214 = scalar_lea.vmem %s5, %s213
      %p215 = scmp.lt.s32.totalorder %s16, 1
      %s216 = scalar_select %p215, %s16, 1
      %s217 = smul.addr %s216, 20
      %s218 = smul.addr %s217, 8
      %s219 = scalar_lea.vmem %s0, %s218
      %p220 = scmp.lt.s32.totalorder %s16, 1
      %s221 = scalar_select %p220, %s16, 1
      %s222 = smul.addr %s221, 8
      %s223 = smul.addr %s222, 8
      %s224 = scalar_lea.vmem %s5, %s223
      %v226 = vld [vmem:[%s1] sm:$0xff]
      %v227 = vld [vmem:[%s1 + $0x8] sm:$0x1]
      %v228 = vld [vmem:[%s2] sm:$0x1]
      %v229 = vld [vmem:[%s4] sm:$0x1]
      %v230 = vld [vmem:[%s219] sm:$0xff]
      %v231 = vld [vmem:[%s219 + $0x10] sm:$0xff]
      %v232 = vld [vmem:[%s219 + $0x20] sm:$0xff]
      %v233 = vld [vmem:[%s219 + $0x30] sm:$0xff]
      %v234 = vld [vmem:[%s219 + $0x40] sm:$0xff]
      %v235 = vld [vmem:[%s219 + $0x50] sm:$0xff]
      %v236 = vld [vmem:[%s219 + $0x60] sm:$0xff]
      %v237 = vld [vmem:[%s219 + $0x70] sm:$0xff]
      %v238 = vld [vmem:[%s219 + $0x80] sm:$0xff]
      %v239 = vld [vmem:[%s219 + $0x90] sm:$0xff]
      %v240 = vld [vmem:[%s219 + $0x1] sm:$0xff]
      %v241 = vld [vmem:[%s219 + $0x11] sm:$0xff]
      %v242 = vld [vmem:[%s219 + $0x21] sm:$0xff]
      %v243 = vld [vmem:[%s219 + $0x31] sm:$0xff]
      %v244 = vld [vmem:[%s219 + $0x41] sm:$0xff]
      %v245 = vld [vmem:[%s219 + $0x51] sm:$0xff]
      %v246 = vld [vmem:[%s219 + $0x61] sm:$0xff]
      %v247 = vld [vmem:[%s219 + $0x71] sm:$0xff]
      %v248 = vld [vmem:[%s219 + $0x81] sm:$0xff]
      %v249 = vld [vmem:[%s219 + $0x91] sm:$0xff]
      %v250 = vld [vmem:[%s219 + $0x2] sm:$0xff]
      %v251 = vld [vmem:[%s219 + $0x12] sm:$0xff]
      %v252 = vld [vmem:[%s219 + $0x22] sm:$0xff]
      %v253 = vld [vmem:[%s219 + $0x32] sm:$0xff]
      %v254 = vld [vmem:[%s219 + $0x42] sm:$0xff]
      %v255 = vld [vmem:[%s219 + $0x52] sm:$0xff]
      %v256 = vld [vmem:[%s219 + $0x62] sm:$0xff]
      %v257 = vld [vmem:[%s219 + $0x72] sm:$0xff]
      %v258 = vld [vmem:[%s219 + $0x82] sm:$0xff]
      %v259 = vld [vmem:[%s219 + $0x92] sm:$0xff]
      %v260 = vlaneseq
      %v261 = vshrl.u32 %v260, 7
      %v262 = vsub.s32 0, %v261
      %v263 = vrot.slane %v226, %v262
      %v264 = vmul.f32 %v230, %v263
      %v265 = vmul.f32 %v231, %v263
      %v266 = vmul.f32 %v232, %v263
      %v267 = vmul.f32 %v233, %v263
      %v268 = vmul.f32 %v234, %v263
      %v269 = vmul.f32 %v235, %v263
      %v270 = vmul.f32 %v236, %v263
      %v271 = vmul.f32 %v237, %v263
      %v272 = vadd.f32 %v264, 0.0
      %v273 = vadd.f32 %v265, 0.0
      %v274 = vadd.f32 %v266, 0.0
      %v275 = vadd.f32 %v267, 0.0
      %v276 = vadd.f32 %v268, 0.0
      %v277 = vadd.f32 %v269, 0.0
      %v278 = vadd.f32 %v270, 0.0
      %v279 = vadd.f32 %v271, 0.0
      %v280 = vlaneseq
      %v281 = vshrl.u32 %v280, 7
      %v282 = vsub.s32 1, %v281
      %v283 = vrot.slane %v226, %v282
      %v284 = vmul.f32 %v240, %v283
      %v285 = vmul.f32 %v241, %v283
      %v286 = vmul.f32 %v242, %v283
      %v287 = vmul.f32 %v243, %v283
      %v288 = vmul.f32 %v244, %v283
      %v289 = vmul.f32 %v245, %v283
      %v290 = vmul.f32 %v246, %v283
      %v291 = vmul.f32 %v247, %v283
      %v292 = vadd.f32 %v272, %v284
      %v293 = vadd.f32 %v273, %v285
      %v294 = vadd.f32 %v274, %v286
      %v295 = vadd.f32 %v275, %v287
      %v296 = vadd.f32 %v276, %v288
      %v297 = vadd.f32 %v277, %v289
      %v298 = vadd.f32 %v278, %v290
      %v299 = vadd.f32 %v279, %v291
      %v300 = vlaneseq
      %v301 = vshrl.u32 %v300, 7
      %v302 = vsub.s32 2, %v301
      %v303 = vrot.slane %v226, %v302
      %v304 = vmul.f32 %v250, %v303
      %v305 = vmul.f32 %v251, %v303
      %v306 = vmul.f32 %v252, %v303
      %v307 = vmul.f32 %v253, %v303
      %v308 = vmul.f32 %v254, %v303
      %v309 = vmul.f32 %v255, %v303
      %v310 = vmul.f32 %v256, %v303
      %v311 = vmul.f32 %v257, %v303
      %v312 = vadd.f32 %v292, %v304
      %v313 = vadd.f32 %v293, %v305
      %v314 = vadd.f32 %v294, %v306
      %v315 = vadd.f32 %v295, %v307
      %v316 = vadd.f32 %v296, %v308
      %v317 = vadd.f32 %v297, %v309
      %v318 = vadd.f32 %v298, %v310
      %v319 = vadd.f32 %v299, %v311
      %v320 = vlaneseq
      %v321 = vshrl.u32 %v320, 7
      %v322 = vsub.s32 3, %v321
      %v323 = vrot.slane %v226, %v322
      %v324 = vmul.f32 %v231, %v323
      %v325 = vmul.f32 %v232, %v323
      %v326 = vmul.f32 %v233, %v323
      %v327 = vmul.f32 %v234, %v323
      %v328 = vmul.f32 %v235, %v323
      %v329 = vmul.f32 %v236, %v323
      %v330 = vmul.f32 %v237, %v323
      %v331 = vmul.f32 %v238, %v323
      %v332 = vadd.f32 %v312, %v324
      %v333 = vadd.f32 %v313, %v325
      %v334 = vadd.f32 %v314, %v326
      %v335 = vadd.f32 %v315, %v327
      %v336 = vadd.f32 %v316, %v328
      %v337 = vadd.f32 %v317, %v329
      %v338 = vadd.f32 %v318, %v330
      %v339 = vadd.f32 %v319, %v331
      %v340 = vlaneseq
      %v341 = vshrl.u32 %v340, 7
      %v342 = vsub.s32 4, %v341
      %v343 = vrot.slane %v226, %v342
      %v344 = vmul.f32 %v241, %v343
      %v345 = vmul.f32 %v242, %v343
      %v346 = vmul.f32 %v243, %v343
      %v347 = vmul.f32 %v244, %v343
      %v348 = vmul.f32 %v245, %v343
      %v349 = vmul.f32 %v246, %v343
      %v350 = vmul.f32 %v247, %v343
      %v351 = vmul.f32 %v248, %v343
      %v352 = vadd.f32 %v332, %v344
      %v353 = vadd.f32 %v333, %v345
      %v354 = vadd.f32 %v334, %v346
      %v355 = vadd.f32 %v335, %v347
      %v356 = vadd.f32 %v336, %v348
      %v357 = vadd.f32 %v337, %v349
      %v358 = vadd.f32 %v338, %v350
      %v359 = vadd.f32 %v339, %v351
      %v360 = vlaneseq
      %v361 = vshrl.u32 %v360, 7
      %v362 = vsub.s32 5, %v361
      %v363 = vrot.slane %v226, %v362
      %v364 = vmul.f32 %v251, %v363
      %v365 = vmul.f32 %v252, %v363
      %v366 = vmul.f32 %v253, %v363
      %v367 = vmul.f32 %v254, %v363
      %v368 = vmul.f32 %v255, %v363
      %v369 = vmul.f32 %v256, %v363
      %v370 = vmul.f32 %v257, %v363
      %v371 = vmul.f32 %v258, %v363
      %v372 = vadd.f32 %v352, %v364
      %v373 = vadd.f32 %v353, %v365
      %v374 = vadd.f32 %v354, %v366
      %v375 = vadd.f32 %v355, %v367
      %v376 = vadd.f32 %v356, %v368
      %v377 = vadd.f32 %v357, %v369
      %v378 = vadd.f32 %v358, %v370
      %v379 = vadd.f32 %v359, %v371
      %v380 = vlaneseq
      %v381 = vshrl.u32 %v380, 7
      %v382 = vsub.s32 6, %v381
      %v383 = vrot.slane %v226, %v382
      %v384 = vmul.f32 %v232, %v383
      %v385 = vmul.f32 %v233, %v383
      %v386 = vmul.f32 %v234, %v383
      %v387 = vmul.f32 %v235, %v383
      %v388 = vmul.f32 %v236, %v383
      %v389 = vmul.f32 %v237, %v383
      %v390 = vmul.f32 %v238, %v383
      %v391 = vmul.f32 %v239, %v383
      %v392 = vadd.f32 %v372, %v384
      %v393 = vadd.f32 %v373, %v385
      %v394 = vadd.f32 %v374, %v386
      %v395 = vadd.f32 %v375, %v387
      %v396 = vadd.f32 %v376, %v388
      %v397 = vadd.f32 %v377, %v389
      %v398 = vadd.f32 %v378, %v390
      %v399 = vadd.f32 %v379, %v391
      %v400 = vlaneseq
      %v401 = vshrl.u32 %v400, 7
      %v402 = vsub.s32 7, %v401
      %v403 = vrot.slane %v226, %v402
      %v404 = vmul.f32 %v242, %v403
      %v405 = vmul.f32 %v243, %v403
      %v406 = vmul.f32 %v244, %v403
      %v407 = vmul.f32 %v245, %v403
      %v408 = vmul.f32 %v246, %v403
      %v409 = vmul.f32 %v247, %v403
      %v410 = vmul.f32 %v248, %v403
      %v411 = vmul.f32 %v249, %v403
      %v412 = vadd.f32 %v392, %v404
      %v413 = vadd.f32 %v393, %v405
      %v414 = vadd.f32 %v394, %v406
      %v415 = vadd.f32 %v395, %v407
      %v416 = vadd.f32 %v396, %v408
      %v417 = vadd.f32 %v397, %v409
      %v418 = vadd.f32 %v398, %v410
      %v419 = vadd.f32 %v399, %v411
      %v420 = vlaneseq
      %v421 = vshrl.u32 %v420, 7
      %v422 = vsub.s32 0, %v421
      %v423 = vrot.slane %v227, %v422
      %v424 = vmul.f32 %v252, %v423
      %v425 = vmul.f32 %v253, %v423
      %v426 = vmul.f32 %v254, %v423
      %v427 = vmul.f32 %v255, %v423
      %v428 = vmul.f32 %v256, %v423
      %v429 = vmul.f32 %v257, %v423
      %v430 = vmul.f32 %v258, %v423
      %v431 = vmul.f32 %v259, %v423
      %v432 = vadd.f32 %v412, %v424
      %v433 = vadd.f32 %v413, %v425
      %v434 = vadd.f32 %v414, %v426
      %v435 = vadd.f32 %v415, %v427
      %v436 = vadd.f32 %v416, %v428
      %v437 = vadd.f32 %v417, %v429
      %v438 = vadd.f32 %v418, %v430
      %v439 = vadd.f32 %v419, %v431
      %v441 = vlaneseq
      %v442 = vshrl.u32 %v441, 7
      %v443 = vsub.s32 0, %v442
      %v444 = vrot.slane %v228, %v443
      %v446 = vadd.f32 %v432, %v444
      %v447 = vadd.f32 %v433, %v444
      %v448 = vadd.f32 %v434, %v444
      %v449 = vadd.f32 %v435, %v444
      %v450 = vadd.f32 %v436, %v444
      %v451 = vadd.f32 %v437, %v444
      %v452 = vadd.f32 %v438, %v444
      %v453 = vadd.f32 %v439, %v444
      %v454 = vpack.c.bf16 %v447, %v446
      %v455 = vpack.c.bf16 %v449, %v448
      %v456 = vpack.c.bf16 %v451, %v450
      %v457 = vpack.c.bf16 %v453, %v452
      %v458 = vld [vmem:[%s3] sm:$0xff]
      %v459 = vld [vmem:[%s3 + $0x8] sm:$0xff]
      %v460 = vld [vmem:[%s3 + $0x10] sm:$0xff]
      %v461 = vld [vmem:[%s3 + $0x18] sm:$0xff]
      %v462 = vpack.c.bf16 %v459, %v458
      %v463 = vpack.c.bf16 %v461, %v460
      %v465 = vlaneseq
      %v466 = vshrl.u32 %v465, 7
      %v467 = vsub.s32 0, %v466
      %v468 = vrot.slane %v229, %v467
      %vm470 = vcmask 261120
      %v472 = vsel %vm470, %v454, 0
      %v475 = vsel %vm470, %v455, 0
      %v478 = vsel %vm470, %v456, 0
      %v481 = vsel %vm470, %v457, 0
      %483 = vmatprep.subr.bf16.mxu0 0
      %484 = vmatpush1.bf16.msra.mxu0 %v462
      %485 = vmatprep.subr.bf16.mxu0 0
      %486 = vmatpush1.bf16.msra.mxu0 %v463
      %487 = vmatprep.subr.bf16.mxu0 0
      %488 = vmatpush1.bf16.msra.mxu0 0
      %489 = vmatprep.subr.bf16.mxu0 0
      %490 = vmatpush1.bf16.msra.mxu0 0
      %491 = vmatprep.subr.bf16.mxu0 0
      %492 = vmatpush1.bf16.msra.mxu0 0
      %493 = vmatprep.subr.bf16.mxu0 0
      %494 = vmatpush1.bf16.msra.mxu0 0
      %495 = vmatprep.subr.bf16.mxu0 0
      %496 = vmatpush1.bf16.msra.mxu0 0
      %497 = vmatprep.subr.bf16.mxu0 0
      %498 = vmatpush1.bf16.msra.mxu0 0
      %499 = vmatprep.subr.bf16.mxu0 0
      %500 = vmatpush1.bf16.msra.mxu0 0
      %501 = vmatprep.subr.bf16.mxu0 0
      %502 = vmatpush1.bf16.msra.mxu0 0
      %503 = vmatprep.subr.bf16.mxu0 0
      %504 = vmatpush1.bf16.msra.mxu0 0
      %505 = vmatprep.subr.bf16.mxu0 0
      %506 = vmatpush1.bf16.msra.mxu0 0
      %507 = vmatprep.subr.bf16.mxu0 0
      %508 = vmatpush1.bf16.msra.mxu0 0
      %509 = vmatprep.subr.bf16.mxu0 0
      %510 = vmatpush1.bf16.msra.mxu0 0
      %511 = vmatprep.subr.bf16.mxu0 0
      %512 = vmatpush1.bf16.msra.mxu0 0
      %513 = vmatprep.subr.bf16.mxu0 0
      %514 = vmatpush1.bf16.msra.mxu0 0
      %515 = vmatprep.mubr.bf16.mxu0 0
      %516 = vmatmul.mubr.bf16.gmra.mrb[0].mxu0 %v472
      %v517 = vpop.f32.mrb[0].mxu0
      %v518 = vadd.f32 %v468, %v517
      %v519 = vpop.f32.mrb[0].mxu0
      %v520 = vpop.f32.mrb[0].mxu0
      %v521 = vadd.f32 %v468, %v520
      %v522 = vpop.f32.mrb[0].mxu0
      %523 = vmatprep.mubr.bf16.mxu0 0
      %524 = vmatmul.mubr.bf16.gmra.mrb[0].mxu0 %v475
      %v525 = vpop.f32.mrb[0].mxu0
      %v526 = vadd.f32 %v468, %v525
      %v527 = vpop.f32.mrb[0].mxu0
      %v528 = vpop.f32.mrb[0].mxu0
      %v529 = vadd.f32 %v468, %v528
      %v530 = vpop.f32.mrb[0].mxu0
      %531 = vmatprep.mubr.bf16.mxu0 0
      %532 = vmatmul.mubr.bf16.gmra.mrb[0].mxu0 %v478
      %v533 = vpop.f32.mrb[0].mxu0
      %v534 = vadd.f32 %v468, %v533
      %v535 = vpop.f32.mrb[0].mxu0
      %v536 = vpop.f32.mrb[0].mxu0
      %v537 = vadd.f32 %v468, %v536
      %v538 = vpop.f32.mrb[0].mxu0
      %539 = vmatprep.mubr.bf16.mxu0 0
      %540 = vmatmul.mubr.bf16.gmra.mrb[0].mxu0 %v481
      %v541 = vpop.f32.mrb[0].mxu0
      %v542 = vadd.f32 %v468, %v541
      %v543 = vpop.f32.mrb[0].mxu0
      %v544 = vpop.f32.mrb[0].mxu0
      %v545 = vadd.f32 %v468, %v544
      %v546 = vpop.f32.mrb[0].mxu0
      %547 = vdwg.mxu0
      %vm548 = vcmask 392192
      %549 = vst.msk [vmem:[%s224] sm:$0xff] %vm548, %v518
      %550 = vst.msk [vmem:[%s224 + $0x8] sm:$0xff] %vm548, %v521
      %551 = vst.msk [vmem:[%s224 + $0x10] sm:$0xff] %vm548, %v526
      %552 = vst.msk [vmem:[%s224 + $0x18] sm:$0xff] %vm548, %v529
      %553 = vst.msk [vmem:[%s224 + $0x20] sm:$0xff] %vm548, %v534
      %554 = vst.msk [vmem:[%s224 + $0x28] sm:$0xff] %vm548, %v537
      %555 = vst.msk [vmem:[%s224 + $0x30] sm:$0xff] %vm548, %v542
      %556 = vst.msk [vmem:[%s224 + $0x38] sm:$0xff] %vm548, %v545
      %p557 = scmp.lt.s32.totalorder %s16, 1
      %s558 = scalar_select %p557, %s16, 1
      %s559 = smul.addr %s558, 8
      %s560 = smul.addr %s559, 8
      %s561 = scalar_lea.vmem %s5, %s560
      // Predicated region
      $region41: #{fc_hilo1_forward.13} parent=39 // pred_check
        %p562 = pneg %p144
      $region42: #{fc_hilo1_forward.13} parent=39 // pred_check_branch
        %564 = sbr.rel (%p562) target = $region44
      $region43: #{fc_hilo1_forward.13} parent=39 // pred_region
        _
      $region44: #{fc_hilo1_forward.13} parent=39 // pred_fallthru
        _
    $region40: #{fc_hilo1_forward.13} parent=5 // pred_fallthru
      _
    %p565 = scmp.le.s32.totalorder 2, %s11
    // Predicated region
    $region45: #{fc_hilo1_forward.13} parent=5 // pred_check
      %p566 = pneg %p565
    $region46: #{fc_hilo1_forward.13} parent=5 // pred_check_branch
      %568 = sbr.rel (%p566) target = $region48
    $region47: #{fc_hilo1_forward.13} parent=5 // pred_region
      %s569 = ssub.s32 %s11, 2
      // Predicated region
      $region49: #{fc_hilo1_forward.13} parent=47 // pred_check
        %p570 = pneg %p150
      $region50: #{fc_hilo1_forward.13} parent=47 // pred_check_branch
        %572 = sbr.rel (%p570) target = $region52
      $region51: #{fc_hilo1_forward.13} parent=47 // pred_region
        %p573 = scmp.lt.s32.totalorder %s17, 1
        %s574 = scalar_select %p573, %s17, 1
        %s575 = smul.addr %s574, 8
        %s576 = smul.addr %s575, 8
        %s577 = scalar_lea.vmem %s5, %s576
      $region52: #{fc_hilo1_forward.13} parent=47 // pred_fallthru
        _
    $region48: #{fc_hilo1_forward.13} parent=5 // pred_fallthru
      _
  $region6: #{fc_hilo1_forward.13} parent=0 // loop_footer
    %s15 = sadd.s32 1, %s11
  $region7: #{fc_hilo1_forward.13} parent=0 // loop_footer_branch
    %10 = sbr.rel target = $region3
  $region8: #{fc_hilo1_forward.13} parent=0 // loop_exit
    _

// kernel: fc_hilo1_forward.11
$region0: #{fc_hilo1_forward.11}
  #allocation0 [shape = 'u32[]', space=smem, size = 0x4, offset = 0x4, fixed_abs, tag = 'smem constant byte address 0x4 - core index']
  #allocation1 [shape = 'u32[144,128]{1,0:T(1,128)}', space=vmem, size = 0x12000, scoped, tag = 'internal scratch']
  %s0 = inlined_call_operand.vmem [shape: f32[2,64,16], index: 0, kind: input, shape index: {}]
  %s1 = inlined_call_operand.vmem [shape: f32[2,16,32], index: 1, kind: input, shape index: {}]
  %s2 = inlined_call_operand.vmem [shape: f32[2,64,16], index: 2, kind: output, shape index: {}]
  %s3 = sld [smem:[#allocation0]]
  $region41: #{fc_hilo1_forward.11} parent=0
    _
  %s5 = ssub.s32 1, %s3
  %s6 = scalar_select 0, %s5, %s3
  loop: start=0, step=1, limit=4
  $region2: #{fc_hilo1_forward.11} parent=0 // loop_pre_header
    _
  $region3: #{fc_hilo1_forward.11} parent=0 // loop_header
    %s8 = sphi 0, %s12
    %p9 = scmp.ge.s32.totalorder %s8, 4
    %s15 = sphi 0, %s27
    %s16 = sphi 0, %s23
    %s17 = sphi 0, %s15
    %s18 = sphi 0, %s16
    %s19 = sphi 0, %s17
    %s20 = sphi 0, %s18
    %s32 = sphi 0, %s34
    %s35 = sphi 0, %s32
    %s36 = sphi 0, %s35
    %s52 = sphi 0, %s36
    %s58 = sphi 0, %s60
    %s61 = sphi 0, %s58
    %s62 = sphi 0, %s61
    %s78 = sphi 0, %s62
    %s86 = sphi 0, %s88
    %s89 = sphi 0, %s86
    %s90 = sphi 0, %s89
    %s106 = sphi 0, %s90
  $region4: #{fc_hilo1_forward.11} parent=0 // loop_header_branch
    %11 = sbr.rel (%p9) target = $region8
  $region5: #{fc_hilo1_forward.11} parent=0 // loop_body
    %s13 = ssub.s32 %s8, 1
    %s14 = ssub.s32 %s8, 2
    %s21 = sadd.s32 1, %s16
    %p22 = scmp.ge.s32.totalorder %s21, 1
    %s23 = scalar_select %p22, 0, %s21
    %s24 = sadd.s32 1, %s15
    %s25 = scalar_select %p22, %s24, %s15
    %p26 = scmp.ge.s32.totalorder %s25, 2
    %s27 = scalar_select %p26, 0, %s25
    %s28 = ssub.s32 %s15, %s27
    %s29 = ssub.s32 %s16, %s23
    %s30 = sor.u32 %s28, %s29
    %p31 = scmp.eq.s32.totalorder %s30, 0
    %s33 = sadd.s32 %s32, 1
    %s34 = scalar_select %p31, %s32, %s33
    %p37 = pneg %p31
    %p38 = scmp.eq.s32.totalorder %s8, 1
    %p39 = por %p37, %p38
    %p40 = scmp.ne.s32.totalorder %s32, %s35
    %p41 = scmp.eq.s32.totalorder %s8, 0
    %p42 = por %p40, %p41
    %p43 = scmp.ne.s32.totalorder %s32, %s35
    %p44 = scmp.eq.s32.totalorder %s13, 1
    %p45 = por %p43, %p44
    %p46 = scmp.ne.s32.totalorder %s35, %s36
    %p47 = scmp.eq.s32.totalorder %s13, 0
    %p48 = por %p46, %p47
    %p49 = scmp.ne.s32.totalorder %s35, %s36
    %p50 = scmp.eq.s32.totalorder %s14, 1
    %p51 = por %p49, %p50
    %p53 = scmp.ne.s32.totalorder %s36, %s52
    %p54 = scmp.eq.s32.totalorder %s14, 0
    %p55 = por %p53, %p54
    %s56 = ssub.s32 %s15, %s27
    %p57 = scmp.eq.s32.totalorder %s56, 0
    %s59 = sadd.s32 %s58, 1
    %s60 = scalar_select %p57, %s58, %s59
    %p63 = pneg %p57
    %p64 = scmp.eq.s32.totalorder %s8, 1
    %p65 = por %p63, %p64
    %p66 = scmp.ne.s32.totalorder %s58, %s61
    %p67 = scmp.eq.s32.totalorder %s8, 0
    %p68 = por %p66, %p67
    %p69 = scmp.ne.s32.totalorder %s58, %s61
    %p70 = scmp.eq.s32.totalorder %s13, 1
    %p71 = por %p69, %p70
    %p72 = scmp.ne.s32.totalorder %s61, %s62
    %p73 = scmp.eq.s32.totalorder %s13, 0
    %p74 = por %p72, %p73
    %p75 = scmp.ne.s32.totalorder %s61, %s62
    %p76 = scmp.eq.s32.totalorder %s14, 1
    %p77 = por %p75, %p76
    %p79 = scmp.ne.s32.totalorder %s62, %s78
    %p80 = scmp.eq.s32.totalorder %s14, 0
    %p81 = por %p79, %p80
    %s82 = ssub.s32 %s15, %s27
    %s83 = ssub.s32 %s16, %s23
    %s84 = sor.u32 %s82, %s83
    %p85 = scmp.eq.s32.totalorder %s84, 0
    %s87 = sadd.s32 %s86, 1
    %s88 = scalar_select %p85, %s86, %s87
    %p91 = pneg %p85
    %p92 = scmp.eq.s32.totalorder %s8, 1
    %p93 = por %p91, %p92
    %p94 = scmp.ne.s32.totalorder %s86, %s89
    %p95 = scmp.eq.s32.totalorder %s8, 0
    %p96 = por %p94, %p95
    %p97 = scmp.ne.s32.totalorder %s86, %s89
    %p98 = scmp.eq.s32.totalorder %s13, 1
    %p99 = por %p97, %p98
    %p100 = scmp.ne.s32.totalorder %s89, %s90
    %p101 = scmp.eq.s32.totalorder %s13, 0
    %p102 = por %p100, %p101
    %p103 = scmp.ne.s32.totalorder %s89, %s90
    %p104 = scmp.eq.s32.totalorder %s14, 1
    %p105 = por %p103, %p104
    %p107 = scmp.ne.s32.totalorder %s90, %s106
    %p108 = scmp.eq.s32.totalorder %s14, 0
    %p109 = por %p107, %p108
    %p110 = scmp.le.s32.totalorder 1, %s8
    %p111 = scmp.lt.s32.totalorder %s8, 3
    %p112 = pnand %p110, %p111
    %p113 = pneg %p112
    // Predicated region
    $region9: #{fc_hilo1_forward.11} parent=5 // pred_check
      _
    $region10: #{fc_hilo1_forward.11} parent=5 // pred_check_branch
      %115 = sbr.rel (%p112) target = $region12
    $region11: #{fc_hilo1_forward.11} parent=5 // pred_region
      %s116 = ssub.s32 %s8, 1
    $region12: #{fc_hilo1_forward.11} parent=5 // pred_fallthru
      _
    %p117 = scmp.lt.s32.totalorder %s8, 2
    // Predicated region
    $region13: #{fc_hilo1_forward.11} parent=5 // pred_check
      %p118 = pneg %p117
    $region14: #{fc_hilo1_forward.11} parent=5 // pred_check_branch
      %120 = sbr.rel (%p118) target = $region16
    $region15: #{fc_hilo1_forward.11} parent=5 // pred_region
      // Predicated region
      $region17: #{fc_hilo1_forward.11} parent=15 // pred_check
        %p121 = pneg %p42
      $region18: #{fc_hilo1_forward.11} parent=15 // pred_check_branch
        %123 = sbr.rel (%p121) target = $region20
      $region19: #{fc_hilo1_forward.11} parent=15 // pred_region
        %s124 = smul.u32 8, %s16
        %p125 = scmp.lt.s32.totalorder %s15, 1
        %s126 = scalar_select %p125, %s15, 1
        %p127 = scmp.lt.s32.totalorder %s124, 7
        %s128 = scalar_select %p127, %s124, 7
        %s129 = smul.addr %s126, 8
        %s130 = sadd.s32 %s128, %s129
        %s131 = smul.addr %s130, 8
        %s132 = scalar_lea.vmem %s0, %s131
        %s133 = smul.u32 8, %s16
      $region20: #{fc_hilo1_forward.11} parent=15 // pred_fallthru
        _
      // Predicated region
      $region21: #{fc_hilo1_forward.11} parent=15 // pred_check
        %p134 = pneg %p68
      $region22: #{fc_hilo1_forward.11} parent=15 // pred_check_branch
        %136 = sbr.rel (%p134) target = $region24
      $region23: #{fc_hilo1_forward.11} parent=15 // pred_region
        %p137 = scmp.lt.s32.totalorder %s15, 1
        %s138 = scalar_select %p137, %s15, 1
        %s139 = smul.addr %s138, 2
        %s140 = smul.addr %s139, 8
        %s141 = scalar_lea.vmem %s1, %s140
      $region24: #{fc_hilo1_forward.11} parent=15 // pred_fallthru
        _
    $region16: #{fc_hilo1_forward.11} parent=5 // pred_fallthru
      _
    %p142 = scmp.le.s32.totalorder 1, %s8
    %p143 = scmp.lt.s32.totalorder %s8, 3
    %p144 = pnand %p142, %p143
    %p145 = pneg %p144
    // Predicated region
    $region25: #{fc_hilo1_forward.11} parent=5 // pred_check
      _
    $region26: #{fc_hilo1_forward.11} parent=5 // pred_check_branch
      %147 = sbr.rel (%p144) target = $region28
    $region27: #{fc_hilo1_forward.11} parent=5 // pred_region
      %s148 = ssub.s32 %s8, 1
      %s149 = smul.u32 8, %s18
      %p150 = scmp.lt.s32.totalorder %s17, 1
      %s151 = scalar_select %p150, %s17, 1
      %p152 = scmp.lt.s32.totalorder %s149, 7
      %s153 = scalar_select %p152, %s149, 7
      %s154 = smul.addr %s151, 8
      %s155 = sadd.s32 %s153, %s154
      %s156 = smul.addr %s155, 8
      %s157 = scalar_lea.vmem %s0, %s156
      %p158 = pneg %p48
      %p159 = pneg %p45
      %p160 = scmp.lt.s32.totalorder %s17, 1
      %s161 = scalar_select %p160, %s17, 1
      %s162 = smul.addr %s161, 2
      %s163 = smul.addr %s162, 8
      %s164 = scalar_lea.vmem %s1, %s163
      %p165 = pneg %p74
      %p166 = pneg %p71
      %p167 = pneg %p102
      %p168 = pneg %p99
      %s169 = smul.u32 8, %s18
      %p170 = scmp.lt.s32.totalorder %s17, 1
      %s171 = scalar_select %p170, %s17, 1
      %p172 = scmp.lt.s32.totalorder %s169, 7
      %s173 = scalar_select %p172, %s169, 7
      %s174 = smul.addr %s171, 8
      %s175 = sadd.s32 %s173, %s174
      %s176 = smul.addr %s175, 8
      %s177 = scalar_lea.vmem %s2, %s176
      %s178 = smul.u32 8, %s18
      %p179 = scmp.lt.s32.totalorder %s17, 1
      %s180 = scalar_select %p179, %s17, 1
      %p181 = scmp.lt.s32.totalorder %s178, 7
      %s182 = scalar_select %p181, %s178, 7
      %s183 = smul.addr %s180, 8
      %s184 = sadd.s32 %s182, %s183
      %s185 = smul.addr %s184, 8
      %s186 = scalar_lea.vmem %s0, %s185
      %s187 = smul.u32 8, %s18
      %p188 = scmp.lt.s32.totalorder %s17, 1
      %s189 = scalar_select %p188, %s17, 1
      %s190 = smul.addr %s189, 2
      %s191 = smul.addr %s190, 8
      %s192 = scalar_lea.vmem %s1, %s191
      %s193 = smul.u32 8, %s18
      %p194 = scmp.lt.s32.totalorder %s17, 1
      %s195 = scalar_select %p194, %s17, 1
      %p196 = scmp.lt.s32.totalorder %s193, 7
      %s197 = scalar_select %p196, %s193, 7
      %s198 = smul.addr %s195, 8
      %s199 = sadd.s32 %s197, %s198
      %s200 = smul.addr %s199, 8
      %s201 = scalar_lea.vmem %s2, %s200
      %s202 = smul.u32 8, %s18
      %v204 = vld [vmem:[%s186] sm:$0xff]
      %v205 = vld [vmem:[%s186 + $0x8] sm:$0xff]
      %v206 = vld [vmem:[%s186 + $0x10] sm:$0xff]
      %v207 = vld [vmem:[%s186 + $0x18] sm:$0xff]
      %v208 = vld [vmem:[%s186 + $0x20] sm:$0xff]
      %v209 = vld [vmem:[%s186 + $0x28] sm:$0xff]
      %v210 = vld [vmem:[%s186 + $0x30] sm:$0xff]
      %v211 = vld [vmem:[%s186 + $0x38] sm:$0xff]
      %v212 = vpack.c.bf16 %v205, %v204
      %v213 = vpack.c.bf16 %v207, %v206
      %v214 = vpack.c.bf16 %v209, %v208
      %v215 = vpack.c.bf16 %v211, %v210
      %v216 = vld [vmem:[%s192] sm:$0xff]
      %v217 = vld [vmem:[%s192 + $0x8] sm:$0xff]
      %v218 = vpack.c.bf16 %v217, %v216
      %vm219 = vcmask 31744
      %v221 = vsel %vm219, %v212, 0
      %v224 = vsel %vm219, %v213, 0
      %v227 = vsel %vm219, %v214, 0
      %v230 = vsel %vm219, %v215, 0
      %v233 = vsel %vm219, %v218, 0
      %235 = vmatprep.subr.bf16.mxu0 0
      %236 = vmatpush1.bf16.xpose.msra.mxu0 %v233
      %237 = vmatprep.subr.bf16.mxu0 0
      %238 = vmatpush1.bf16.xpose.msra.mxu0 0
      %239 = vmatprep.subr.bf16.mxu0 0
      %240 = vmatpush1.bf16.xpose.msra.mxu0 0
      %241 = vmatprep.subr.bf16.mxu0 0
      %242 = vmatpush1.bf16.xpose.msra.mxu0 0
      %243 = vmatprep.subr.bf16.mxu0 0
      %244 = vmatpush1.bf16.xpose.msra.mxu0 0
      %245 = vmatprep.subr.bf16.mxu0 0
      %246 = vmatpush1.bf16.xpose.msra.mxu0 0
      %247 = vmatprep.subr.bf16.mxu0 0
      %248 = vmatpush1.bf16.xpose.msra.mxu0 0
      %249 = vmatprep.subr.bf16.mxu0 0
      %250 = vmatpush1.bf16.xpose.msra.mxu0 0
      %251 = vmatprep.subr.bf16.mxu0 0
      %252 = vmatpush1.bf16.xpose.msra.mxu0 0
      %253 = vmatprep.subr.bf16.mxu0 0
      %254 = vmatpush1.bf16.xpose.msra.mxu0 0
      %255 = vmatprep.subr.bf16.mxu0 0
      %256 = vmatpush1.bf16.xpose.msra.mxu0 0
      %257 = vmatprep.subr.bf16.mxu0 0
      %258 = vmatpush1.bf16.xpose.msra.mxu0 0
      %259 = vmatprep.subr.bf16.mxu0 0
      %260 = vmatpush1.bf16.xpose.msra.mxu0 0
      %261 = vmatprep.subr.bf16.mxu0 0
      %262 = vmatpush1.bf16.xpose.msra.mxu0 0
      %263 = vmatprep.subr.bf16.mxu0 0
      %264 = vmatpush1.bf16.xpose.msra.mxu0 0
      %265 = vmatprep.subr.bf16.mxu0 0
      %266 = vmatpush1.bf16.xpose.msra.mxu0 0
      %267 = vmatprep.mubr.bf16.mxu0 0
      %268 = vmatmul.mubr.bf16.gmra.mrb[0].mxu0 %v221
      %v269 = vpop.f32.mrb[0].mxu0
      %v270 = vadd.f32 0.0, %v269
      %v271 = vpop.f32.mrb[0].mxu0
      %v272 = vpop.f32.mrb[0].mxu0
      %v273 = vadd.f32 0.0, %v272
      %v274 = vpop.f32.mrb[0].mxu0
      %275 = vmatprep.mubr.bf16.mxu0 0
      %276 = vmatmul.mubr.bf16.gmra.mrb[0].mxu0 %v224
      %v277 = vpop.f32.mrb[0].mxu0
      %v278 = vadd.f32 0.0, %v277
      %v279 = vpop.f32.mrb[0].mxu0
      %v280 = vpop.f32.mrb[0].mxu0
      %v281 = vadd.f32 0.0, %v280
      %v282 = vpop.f32.mrb[0].mxu0
      %283 = vmatprep.mubr.bf16.mxu0 0
      %284 = vmatmul.mubr.bf16.gmra.mrb[0].mxu0 %v227
      %v285 = vpop.f32.mrb[0].mxu0
      %v286 = vadd.f32 0.0, %v285
      %v287 = vpop.f32.mrb[0].mxu0
      %v288 = vpop.f32.mrb[0].mxu0
      %v289 = vadd.f32 0.0, %v288
      %v290 = vpop.f32.mrb[0].mxu0
      %291 = vmatprep.mubr.bf16.mxu0 0
      %292 = vmatmul.mubr.bf16.gmra.mrb[0].mxu0 %v230
      %v293 = vpop.f32.mrb[0].mxu0
      %v294 = vadd.f32 0.0, %v293
      %v295 = vpop.f32.mrb[0].mxu0
      %v296 = vpop.f32.mrb[0].mxu0
      %v297 = vadd.f32 0.0, %v296
      %v298 = vpop.f32.mrb[0].mxu0
      %299 = vdwg.mxu0
      %v300 = vmul.f32 %v270, 0.5
      %v301 = vmul.f32 %v273, 0.5
      %v302 = vmul.f32 %v278, 0.5
      %v303 = vmul.f32 %v281, 0.5
      %v304 = vmul.f32 %v286, 0.5
      %v305 = vmul.f32 %v289, 0.5
      %v306 = vmul.f32 %v294, 0.5
      %v307 = vmul.f32 %v297, 0.5
      %vm308 = vcmask 130048
      %v309 = vsel %vm308, %v300, -inf
      %310 = vmax.xlane.f32.xlu0 %v309
      %v311 = vpop.xlane.xlu0 %310
      %v312 = vsel %vm308, %v301, -inf
      %313 = vmax.xlane.f32.xlu0 %v312
      %v314 = vpop.xlane.xlu0 %313
      %v315 = vsel %vm308, %v302, -inf
      %316 = vmax.xlane.f32.xlu0 %v315
      %v317 = vpop.xlane.xlu0 %316
      %v318 = vsel %vm308, %v303, -inf
      %319 = vmax.xlane.f32.xlu0 %v318
      %v320 = vpop.xlane.xlu0 %319
      %v321 = vsel %vm308, %v304, -inf
      %322 = vmax.xlane.f32.xlu0 %v321
      %v323 = vpop.xlane.xlu0 %322
      %v324 = vsel %vm308, %v305, -inf
      %325 = vmax.xlane.f32.xlu0 %v324
      %v326 = vpop.xlane.xlu0 %325
      %v327 = vsel %vm308, %v306, -inf
      %328 = vmax.xlane.f32.xlu0 %v327
      %v329 = vpop.xlane.xlu0 %328
      %v330 = vsel %vm308, %v307, -inf
      %331 = vmax.xlane.f32.xlu0 %v330
      %v332 = vpop.xlane.xlu0 %331
      %v333 = vsub.f32 %v300, %v311
      %v334 = vsub.f32 %v301, %v314
      %v335 = vsub.f32 %v302, %v317
      %v336 = vsub.f32 %v303, %v320
      %v337 = vsub.f32 %v304, %v323
      %v338 = vsub.f32 %v305, %v326
      %v339 = vsub.f32 %v306, %v329
      %v340 = vsub.f32 %v307, %v332
      %v341 = vmul.f32 %v333, 1.442695
      %v342 = vpow.pop %v341
      %v343 = vmul.f32 %v334, 1.442695
      %v344 = vpow.pop %v343
      %v345 = vmul.f32 %v335, 1.442695
      %v346 = vpow.pop %v345
      %v347 = vmul.f32 %v336, 1.442695
      %v348 = vpow.pop %v347
      %v349 = vmul.f32 %v337, 1.442695
      %v350 = vpow.pop %v349
      %v351 = vmul.f32 %v338, 1.442695
      %v352 = vpow.pop %v351
      %v353 = vmul.f32 %v339, 1.442695
      %v354 = vpow.pop %v353
      %v355 = vmul.f32 %v340, 1.442695
      %v356 = vpow.pop %v355
      %v357 = vsel %vm308, %v342, 0.0
      %358 = vadd.xlane.f32.xlu0 %v357
      %v359 = vpop.xlane.xlu0 %358
      %v360 = vsel %vm308, %v344, 0.0
      %361 = vadd.xlane.f32.xlu0 %v360
      %v362 = vpop.xlane.xlu0 %361
      %v363 = vsel %vm308, %v346, 0.0
      %364 = vadd.xlane.f32.xlu0 %v363
      %v365 = vpop.xlane.xlu0 %364
      %v366 = vsel %vm308, %v348, 0.0
      %367 = vadd.xlane.f32.xlu0 %v366
      %v368 = vpop.xlane.xlu0 %367
      %v369 = vsel %vm308, %v350, 0.0
      %370 = vadd.xlane.f32.xlu0 %v369
      %v371 = vpop.xlane.xlu0 %370
      %v372 = vsel %vm308, %v352, 0.0
      %373 = vadd.xlane.f32.xlu0 %v372
      %v374 = vpop.xlane.xlu0 %373
      %v375 = vsel %vm308, %v354, 0.0
      %376 = vadd.xlane.f32.xlu0 %v375
      %v377 = vpop.xlane.xlu0 %376
      %v378 = vsel %vm308, %v356, 0.0
      %379 = vadd.xlane.f32.xlu0 %v378
      %v380 = vpop.xlane.xlu0 %379
      %v381 = vrcp.pop %v359
      %v382 = vrcp.pop %v362
      %v383 = vrcp.pop %v365
      %v384 = vrcp.pop %v368
      %v385 = vrcp.pop %v371
      %v386 = vrcp.pop %v374
      %v387 = vrcp.pop %v377
      %v388 = vrcp.pop %v380
      %v389 = vmul.f32 %v342, %v381
      %v390 = vmul.f32 %v344, %v382
      %v391 = vmul.f32 %v346, %v383
      %v392 = vmul.f32 %v348, %v384
      %v393 = vmul.f32 %v350, %v385
      %v394 = vmul.f32 %v352, %v386
      %v395 = vmul.f32 %v354, %v387
      %v396 = vmul.f32 %v356, %v388
      %v397 = vpack.c.bf16 %v390, %v389
      %v398 = vpack.c.bf16 %v392, %v391
      %v399 = vpack.c.bf16 %v394, %v393
      %v400 = vpack.c.bf16 %v396, %v395
      %402 = vrot.lane.b32.xlu0 %v218, 112
      %v403 = vpop.permute.xlu0 %402
      %v406 = vsel %vm308, %v397, 0
      %v409 = vsel %vm308, %v398, 0
      %v412 = vsel %vm308, %v399, 0
      %v415 = vsel %vm308, %v400, 0
      %417 = vmatprep.subr.bf16.mxu0 0
      %418 = vmatpush1.bf16.msra.mxu0 %v403
      %419 = vmatprep.subr.bf16.mxu0 0
      %420 = vmatpush1.bf16.msra.mxu0 0
      %421 = vmatprep.subr.bf16.mxu0 0
      %422 = vmatpush1.bf16.msra.mxu0 0
      %423 = vmatprep.subr.bf16.mxu0 0
      %424 = vmatpush1.bf16.msra.mxu0 0
      %425 = vmatprep.subr.bf16.mxu0 0
      %426 = vmatpush1.bf16.msra.mxu0 0
      %427 = vmatprep.subr.bf16.mxu0 0
      %428 = vmatpush1.bf16.msra.mxu0 0
      %429 = vmatprep.subr.bf16.mxu0 0
      %430 = vmatpush1.bf16.msra.mxu0 0
      %431 = vmatprep.subr.bf16.mxu0 0
      %432 = vmatpush1.bf16.msra.mxu0 0
      %433 = vmatprep.subr.bf16.mxu0 0
      %434 = vmatpush1.bf16.msra.mxu0 0
      %435 = vmatprep.subr.bf16.mxu0 0
      %436 = vmatpush1.bf16.msra.mxu0 0
      %437 = vmatprep.subr.bf16.mxu0 0
      %438 = vmatpush1.bf16.msra.mxu0 0
      %439 = vmatprep.subr.bf16.mxu0 0
      %440 = vmatpush1.bf16.msra.mxu0 0
      %441 = vmatprep.subr.bf16.mxu0 0
      %442 = vmatpush1.bf16.msra.mxu0 0
      %443 = vmatprep.subr.bf16.mxu0 0
      %444 = vmatpush1.bf16.msra.mxu0 0
      %445 = vmatprep.subr.bf16.mxu0 0
      %446 = vmatpush1.bf16.msra.mxu0 0
      %447 = vmatprep.subr.bf16.mxu0 0
      %448 = vmatpush1.bf16.msra.mxu0 0
      %449 = vmatprep.mubr.bf16.mxu0 0
      %450 = vmatmul.mubr.bf16.gmra.mrb[0].mxu0 %v406
      %v451 = vpop.f32.mrb[0].mxu0
      %v452 = vadd.f32 0.0, %v451
      %v453 = vpop.f32.mrb[0].mxu0
      %v454 = vpop.f32.mrb[0].mxu0
      %v455 = vadd.f32 0.0, %v454
      %v456 = vpop.f32.mrb[0].mxu0
      %457 = vmatprep.mubr.bf16.mxu0 0
      %458 = vmatmul.mubr.bf16.gmra.mrb[0].mxu0 %v409
      %v459 = vpop.f32.mrb[0].mxu0
      %v460 = vadd.f32 0.0, %v459
      %v461 = vpop.f32.mrb[0].mxu0
      %v462 = vpop.f32.mrb[0].mxu0
      %v463 = vadd.f32 0.0, %v462
      %v464 = vpop.f32.mrb[0].mxu0
      %465 = vmatprep.mubr.bf16.mxu0 0
      %466 = vmatmul.mubr.bf16.gmra.mrb[0].mxu0 %v412
      %v467 = vpop.f32.mrb[0].mxu0
      %v468 = vadd.f32 0.0, %v467
      %v469 = vpop.f32.mrb[0].mxu0
      %v470 = vpop.f32.mrb[0].mxu0
      %v471 = vadd.f32 0.0, %v470
      %v472 = vpop.f32.mrb[0].mxu0
      %473 = vmatprep.mubr.bf16.mxu0 0
      %474 = vmatmul.mubr.bf16.gmra.mrb[0].mxu0 %v415
      %v475 = vpop.f32.mrb[0].mxu0
      %v476 = vadd.f32 0.0, %v475
      %v477 = vpop.f32.mrb[0].mxu0
      %v478 = vpop.f32.mrb[0].mxu0
      %v479 = vadd.f32 0.0, %v478
      %v480 = vpop.f32.mrb[0].mxu0
      %481 = vdwg.mxu0
      %486 = vrot.lane.b32.xlu0 %v212, 124
      %v487 = vpop.permute.xlu0 %486
      %488 = vrot.lane.b32.xlu0 %v213, 124
      %v489 = vpop.permute.xlu0 %488
      %490 = vrot.lane.b32.xlu0 %v214, 124
      %v491 = vpop.permute.xlu0 %490
      %492 = vrot.lane.b32.xlu0 %v215, 124
      %v493 = vpop.permute.xlu0 %492
      %494 = vrot.lane.b32.xlu0 %v218, 124
      %v495 = vpop.permute.xlu0 %494
      %v497 = vsel %vm219, %v487, 0
      %v500 = vsel %vm219, %v489, 0
      %v503 = vsel %vm219, %v491, 0
      %v506 = vsel %vm219, %v493, 0
      %v509 = vsel %vm219, %v495, 0
      %511 = vmatprep.subr.bf16.mxu0 0
      %512 = vmatpush1.bf16.xpose.msra.mxu0 %v509
      %513 = vmatprep.subr.bf16.mxu0 0
      %514 = vmatpush1.bf16.xpose.msra.mxu0 0
      %515 = vmatprep.subr.bf16.mxu0 0
      %516 = vmatpush1.bf16.xpose.msra.mxu0 0
      %517 = vmatprep.subr.bf16.mxu0 0
      %518 = vmatpush1.bf16.xpose.msra.mxu0 0
      %519 = vmatprep.subr.bf16.mxu0 0
      %520 = vmatpush1.bf16.xpose.msra.mxu0 0
      %521 = vmatprep.subr.bf16.mxu0 0
      %522 = vmatpush1.bf16.xpose.msra.mxu0 0
      %523 = vmatprep.subr.bf16.mxu0 0
      %524 = vmatpush1.bf16.xpose.msra.mxu0 0
      %525 = vmatprep.subr.bf16.mxu0 0
      %526 = vmatpush1.bf16.xpose.msra.mxu0 0
      %527 = vmatprep.subr.bf16.mxu0 0
      %528 = vmatpush1.bf16.xpose.msra.mxu0 0
      %529 = vmatprep.subr.bf16.mxu0 0
      %530 = vmatpush1.bf16.xpose.msra.mxu0 0
      %531 = vmatprep.subr.bf16.mxu0 0
      %532 = vmatpush1.bf16.xpose.msra.mxu0 0
      %533 = vmatprep.subr.bf16.mxu0 0
      %534 = vmatpush1.bf16.xpose.msra.mxu0 0
      %535 = vmatprep.subr.bf16.mxu0 0
      %536 = vmatpush1.bf16.xpose.msra.mxu0 0
      %537 = vmatprep.subr.bf16.mxu0 0
      %538 = vmatpush1.bf16.xpose.msra.mxu0 0
      %539 = vmatprep.subr.bf16.mxu0 0
      %540 = vmatpush1.bf16.xpose.msra.mxu0 0
      %541 = vmatprep.subr.bf16.mxu0 0
      %542 = vmatpush1.bf16.xpose.msra.mxu0 0
      %543 = vmatprep.mubr.bf16.mxu0 0
      %544 = vmatmul.mubr.bf16.gmra.mrb[0].mxu0 %v497
      %v545 = vpop.f32.mrb[0].mxu0
      %v546 = vadd.f32 0.0, %v545
      %v547 = vpop.f32.mrb[0].mxu0
      %v548 = vpop.f32.mrb[0].mxu0
      %v549 = vadd.f32 0.0, %v548
      %v550 = vpop.f32.mrb[0].mxu0
      %551 = vmatprep.mubr.bf16.mxu0 0
      %552 = vmatmul.mubr.bf16.gmra.mrb[0].mxu0 %v500
      %v553 = vpop.f32.mrb[0].mxu0
      %v554 = vadd.f32 0.0, %v553
      %v555 = vpop.f32.mrb[0].mxu0
      %v556 = vpop.f32.mrb[0].mxu0
      %v557 = vadd.f32 0.0, %v556
      %v558 = vpop.f32.mrb[0].mxu0
      %559 = vmatprep.mubr.bf16.mxu0 0
      %560 = vmatmul.mubr.bf16.gmra.mrb[0].mxu0 %v503
      %v561 = vpop.f32.mrb[0].mxu0
      %v562 = vadd.f32 0.0, %v561
      %v563 = vpop.f32.mrb[0].mxu0
      %v564 = vpop.f32.mrb[0].mxu0
      %v565 = vadd.f32 0.0, %v564
      %v566 = vpop.f32.mrb[0].mxu0
      %567 = vmatprep.mubr.bf16.mxu0 0
      %568 = vmatmul.mubr.bf16.gmra.mrb[0].mxu0 %v506
      %v569 = vpop.f32.mrb[0].mxu0
      %v570 = vadd.f32 0.0, %v569
      %v571 = vpop.f32.mrb[0].mxu0
      %v572 = vpop.f32.mrb[0].mxu0
      %v573 = vadd.f32 0.0, %v572
      %v574 = vpop.f32.mrb[0].mxu0
      %575 = vdwg.mxu0
      %v576 = vmul.f32 %v546, 0.5
      %v577 = vmul.f32 %v549, 0.5
      %v578 = vmul.f32 %v554, 0.5
      %v579 = vmul.f32 %v557, 0.5
      %v580 = vmul.f32 %v562, 0.5
      %v581 = vmul.f32 %v565, 0.5
      %v582 = vmul.f32 %v570, 0.5
      %v583 = vmul.f32 %v573, 0.5
      %v584 = vsel %vm308, %v576, -inf
      %585 = vmax.xlane.f32.xlu0 %v584
      %v586 = vpop.xlane.xlu0 %585
      %v587 = vsel %vm308, %v577, -inf
      %588 = vmax.xlane.f32.xlu0 %v587
      %v589 = vpop.xlane.xlu0 %588
      %v590 = vsel %vm308, %v578, -inf
      %591 = vmax.xlane.f32.xlu0 %v590
      %v592 = vpop.xlane.xlu0 %591
      %v593 = vsel %vm308, %v579, -inf
      %594 = vmax.xlane.f32.xlu0 %v593
      %v595 = vpop.xlane.xlu0 %594
      %v596 = vsel %vm308, %v580, -inf
      %597 = vmax.xlane.f32.xlu0 %v596
      %v598 = vpop.xlane.xlu0 %597
      %v599 = vsel %vm308, %v581, -inf
      %600 = vmax.xlane.f32.xlu0 %v599
      %v601 = vpop.xlane.xlu0 %600
      %v602 = vsel %vm308, %v582, -inf
      %603 = vmax.xlane.f32.xlu0 %v602
      %v604 = vpop.xlane.xlu0 %603
      %v605 = vsel %vm308, %v583, -inf
      %606 = vmax.xlane.f32.xlu0 %v605
      %v607 = vpop.xlane.xlu0 %606
      %v608 = vsub.f32 %v576, %v586
      %v609 = vsub.f32 %v577, %v589
      %v610 = vsub.f32 %v578, %v592
      %v611 = vsub.f32 %v579, %v595
      %v612 = vsub.f32 %v580, %v598
      %v613 = vsub.f32 %v581, %v601
      %v614 = vsub.f32 %v582, %v604
      %v615 = vsub.f32 %v583, %v607
      %v616 = vmul.f32 %v608, 1.442695
      %v617 = vpow.pop %v616
      %v618 = vmul.f32 %v609, 1.442695
      %v619 = vpow.pop %v618
      %v620 = vmul.f32 %v610, 1.442695
      %v621 = vpow.pop %v620
      %v622 = vmul.f32 %v611, 1.442695
      %v623 = vpow.pop %v622
      %v624 = vmul.f32 %v612, 1.442695
      %v625 = vpow.pop %v624
      %v626 = vmul.f32 %v613, 1.442695
      %v627 = vpow.pop %v626
      %v628 = vmul.f32 %v614, 1.442695
      %v629 = vpow.pop %v628
      %v630 = vmul.f32 %v615, 1.442695
      %v631 = vpow.pop %v630
      %v632 = vsel %vm308, %v617, 0.0
      %633 = vadd.xlane.f32.xlu0 %v632
      %v634 = vpop.xlane.xlu0 %633
      %v635 = vsel %vm308, %v619, 0.0
      %636 = vadd.xlane.f32.xlu0 %v635
      %v637 = vpop.xlane.xlu0 %636
      %v638 = vsel %vm308, %v621, 0.0
      %639 = vadd.xlane.f32.xlu0 %v638
      %v640 = vpop.xlane.xlu0 %639
      %v641 = vsel %vm308, %v623, 0.0
      %642 = vadd.xlane.f32.xlu0 %v641
      %v643 = vpop.xlane.xlu0 %642
      %v644 = vsel %vm308, %v625, 0.0
      %645 = vadd.xlane.f32.xlu0 %v644
      %v646 = vpop.xlane.xlu0 %645
      %v647 = vsel %vm308, %v627, 0.0
      %648 = vadd.xlane.f32.xlu0 %v647
      %v649 = vpop.xlane.xlu0 %648
      %v650 = vsel %vm308, %v629, 0.0
      %651 = vadd.xlane.f32.xlu0 %v650
      %v652 = vpop.xlane.xlu0 %651
      %v653 = vsel %vm308, %v631, 0.0
      %654 = vadd.xlane.f32.xlu0 %v653
      %v655 = vpop.xlane.xlu0 %654
      %v656 = vrcp.pop %v634
      %v657 = vrcp.pop %v637
      %v658 = vrcp.pop %v640
      %v659 = vrcp.pop %v643
      %v660 = vrcp.pop %v646
      %v661 = vrcp.pop %v649
      %v662 = vrcp.pop %v652
      %v663 = vrcp.pop %v655
      %v664 = vmul.f32 %v617, %v656
      %v665 = vmul.f32 %v619, %v657
      %v666 = vmul.f32 %v621, %v658
      %v667 = vmul.f32 %v623, %v659
      %v668 = vmul.f32 %v625, %v660
      %v669 = vmul.f32 %v627, %v661
      %v670 = vmul.f32 %v629, %v662
      %v671 = vmul.f32 %v631, %v663
      %v672 = vpack.c.bf16 %v665, %v664
      %v673 = vpack.c.bf16 %v667, %v666
      %v674 = vpack.c.bf16 %v669, %v668
      %v675 = vpack.c.bf16 %v671, %v670
      %676 = vrot.lane.b32.xlu0 %v218, 108
      %v677 = vpop.permute.xlu0 %676
      %v680 = vsel %vm308, %v672, 0
      %v683 = vsel %vm308, %v673, 0
      %v686 = vsel %vm308, %v674, 0
      %v689 = vsel %vm308, %v675, 0
      %691 = vmatprep.subr.bf16.mxu0 0
      %692 = vmatpush1.bf16.msra.mxu0 %v677
      %693 = vmatprep.subr.bf16.mxu0 0
      %694 = vmatpush1.bf16.msra.mxu0 0
      %695 = vmatprep.subr.bf16.mxu0 0
      %696 = vmatpush1.bf16.msra.mxu0 0
      %697 = vmatprep.subr.bf16.mxu0 0
      %698 = vmatpush1.bf16.msra.mxu0 0
      %699 = vmatprep.subr.bf16.mxu0 0
      %700 = vmatpush1.bf16.msra.mxu0 0
      %701 = vmatprep.subr.bf16.mxu0 0
      %702 = vmatpush1.bf16.msra.mxu0 0
      %703 = vmatprep.subr.bf16.mxu0 0
      %704 = vmatpush1.bf16.msra.mxu0 0
      %705 = vmatprep.subr.bf16.mxu0 0
      %706 = vmatpush1.bf16.msra.mxu0 0
      %707 = vmatprep.subr.bf16.mxu0 0
      %708 = vmatpush1.bf16.msra.mxu0 0
      %709 = vmatprep.subr.bf16.mxu0 0
      %710 = vmatpush1.bf16.msra.mxu0 0
      %711 = vmatprep.subr.bf16.mxu0 0
      %712 = vmatpush1.bf16.msra.mxu0 0
      %713 = vmatprep.subr.bf16.mxu0 0
      %714 = vmatpush1.bf16.msra.mxu0 0
      %715 = vmatprep.subr.bf16.mxu0 0
      %716 = vmatpush1.bf16.msra.mxu0 0
      %717 = vmatprep.subr.bf16.mxu0 0
      %718 = vmatpush1.bf16.msra.mxu0 0
      %719 = vmatprep.subr.bf16.mxu0 0
      %720 = vmatpush1.bf16.msra.mxu0 0
      %721 = vmatprep.subr.bf16.mxu0 0
      %722 = vmatpush1.bf16.msra.mxu0 0
      %723 = vmatprep.mubr.bf16.mxu0 0
      %724 = vmatmul.mubr.bf16.gmra.mrb[0].mxu0 %v680
      %v725 = vpop.f32.mrb[0].mxu0
      %v726 = vadd.f32 0.0, %v725
      %v727 = vpop.f32.mrb[0].mxu0
      %v728 = vpop.f32.mrb[0].mxu0
      %v729 = vadd.f32 0.0, %v728
      %v730 = vpop.f32.mrb[0].mxu0
      %731 = vmatprep.mubr.bf16.mxu0 0
      %732 = vmatmul.mubr.bf16.gmra.mrb[0].mxu0 %v683
      %v733 = vpop.f32.mrb[0].mxu0
      %v734 = vadd.f32 0.0, %v733
      %v735 = vpop.f32.mrb[0].mxu0
      %v736 = vpop.f32.mrb[0].mxu0
      %v737 = vadd.f32 0.0, %v736
      %v738 = vpop.f32.mrb[0].mxu0
      %739 = vmatprep.mubr.bf16.mxu0 0
      %740 = vmatmul.mubr.bf16.gmra.mrb[0].mxu0 %v686
      %v741 = vpop.f32.mrb[0].mxu0
      %v742 = vadd.f32 0.0, %v741
      %v743 = vpop.f32.mrb[0].mxu0
      %v744 = vpop.f32.mrb[0].mxu0
      %v745 = vadd.f32 0.0, %v744
      %v746 = vpop.f32.mrb[0].mxu0
      %747 = vmatprep.mubr.bf16.mxu0 0
      %748 = vmatmul.mubr.bf16.gmra.mrb[0].mxu0 %v689
      %v749 = vpop.f32.mrb[0].mxu0
      %v750 = vadd.f32 0.0, %v749
      %v751 = vpop.f32.mrb[0].mxu0
      %v752 = vpop.f32.mrb[0].mxu0
      %v753 = vadd.f32 0.0, %v752
      %v754 = vpop.f32.mrb[0].mxu0
      %755 = vdwg.mxu0
      %756 = vrot.lane.b32.xlu0 %v212, 120
      %v757 = vpop.permute.xlu0 %756
      %758 = vrot.lane.b32.xlu0 %v213, 120
      %v759 = vpop.permute.xlu0 %758
      %760 = vrot.lane.b32.xlu0 %v214, 120
      %v761 = vpop.permute.xlu0 %760
      %762 = vrot.lane.b32.xlu0 %v215, 120
      %v763 = vpop.permute.xlu0 %762
      %764 = vrot.lane.b32.xlu0 %v218, 120
      %v765 = vpop.permute.xlu0 %764
      %v767 = vsel %vm219, %v757, 0
      %v770 = vsel %vm219, %v759, 0
      %v773 = vsel %vm219, %v761, 0
      %v776 = vsel %vm219, %v763, 0
      %v779 = vsel %vm219, %v765, 0
      %781 = vmatprep.subr.bf16.mxu0 0
      %782 = vmatpush1.bf16.xpose.msra.mxu0 %v779
      %783 = vmatprep.subr.bf16.mxu0 0
      %784 = vmatpush1.bf16.xpose.msra.mxu0 0
      %785 = vmatprep.subr.bf16.mxu0 0
      %786 = vmatpush1.bf16.xpose.msra.mxu0 0
      %787 = vmatprep.subr.bf16.mxu0 0
      %788 = vmatpush1.bf16.xpose.msra.mxu0 0
      %789 = vmatprep.subr.bf16.mxu0 0
      %790 = vmatpush1.bf16.xpose.msra.mxu0 0
      %791 = vmatprep.subr.bf16.mxu0 0
      %792 = vmatpush1.bf16.xpose.msra.mxu0 0
      %793 = vmatprep.subr.bf16.mxu0 0
      %794 = vmatpush1.bf16.xpose.msra.mxu0 0
      %795 = vmatprep.subr.bf16.mxu0 0
      %796 = vmatpush1.bf16.xpose.msra.mxu0 0
      %797 = vmatprep.subr.bf16.mxu0 0
      %798 = vmatpush1.bf16.xpose.msra.mxu0 0
      %799 = vmatprep.subr.bf16.mxu0 0
      %800 = vmatpush1.bf16.xpose.msra.mxu0 0
      %801 = vmatprep.subr.bf16.mxu0 0
      %802 = vmatpush1.bf16.xpose.msra.mxu0 0
      %803 = vmatprep.subr.bf16.mxu0 0
      %804 = vmatpush1.bf16.xpose.msra.mxu0 0
      %805 = vmatprep.subr.bf16.mxu0 0
      %806 = vmatpush1.bf16.xpose.msra.mxu0 0
      %807 = vmatprep.subr.bf16.mxu0 0
      %808 = vmatpush1.bf16.xpose.msra.mxu0 0
      %809 = vmatprep.subr.bf16.mxu0 0
      %810 = vmatpush1.bf16.xpose.msra.mxu0 0
      %811 = vmatprep.subr.bf16.mxu0 0
      %812 = vmatpush1.bf16.xpose.msra.mxu0 0
      %813 = vmatprep.mubr.bf16.mxu0 0
      %814 = vmatmul.mubr.bf16.gmra.mrb[0].mxu0 %v767
      %v815 = vpop.f32.mrb[0].mxu0
      %v816 = vadd.f32 0.0, %v815
      %v817 = vpop.f32.mrb[0].mxu0
      %v818 = vpop.f32.mrb[0].mxu0
      %v819 = vadd.f32 0.0, %v818
      %v820 = vpop.f32.mrb[0].mxu0
      %821 = vmatprep.mubr.bf16.mxu0 0
      %822 = vmatmul.mubr.bf16.gmra.mrb[0].mxu0 %v770
      %v823 = vpop.f32.mrb[0].mxu0
      %v824 = vadd.f32 0.0, %v823
      %v825 = vpop.f32.mrb[0].mxu0
      %v826 = vpop.f32.mrb[0].mxu0
      %v827 = vadd.f32 0.0, %v826
      %v828 = vpop.f32.mrb[0].mxu0
      %829 = vmatprep.mubr.bf16.mxu0 0
      %830 = vmatmul.mubr.bf16.gmra.mrb[0].mxu0 %v773
      %v831 = vpop.f32.mrb[0].mxu0
      %v832 = vadd.f32 0.0, %v831
      %v833 = vpop.f32.mrb[0].mxu0
      %v834 = vpop.f32.mrb[0].mxu0
      %v835 = vadd.f32 0.0, %v834
      %v836 = vpop.f32.mrb[0].mxu0
      %837 = vmatprep.mubr.bf16.mxu0 0
      %838 = vmatmul.mubr.bf16.gmra.mrb[0].mxu0 %v776
      %v839 = vpop.f32.mrb[0].mxu0
      %v840 = vadd.f32 0.0, %v839
      %v841 = vpop.f32.mrb[0].mxu0
      %v842 = vpop.f32.mrb[0].mxu0
      %v843 = vadd.f32 0.0, %v842
      %v844 = vpop.f32.mrb[0].mxu0
      %845 = vdwg.mxu0
      %v846 = vmul.f32 %v816, 0.5
      %v847 = vmul.f32 %v819, 0.5
      %v848 = vmul.f32 %v824, 0.5
      %v849 = vmul.f32 %v827, 0.5
      %v850 = vmul.f32 %v832, 0.5
      %v851 = vmul.f32 %v835, 0.5
      %v852 = vmul.f32 %v840, 0.5
      %v853 = vmul.f32 %v843, 0.5
      %v854 = vsel %vm308, %v846, -inf
      %855 = vmax.xlane.f32.xlu0 %v854
      %v856 = vpop.xlane.xlu0 %855
      %v857 = vsel %vm308, %v847, -inf
      %858 = vmax.xlane.f32.xlu0 %v857
      %v859 = vpop.xlane.xlu0 %858
      %v860 = vsel %vm308, %v848, -inf
      %861 = vmax.xlane.f32.xlu0 %v860
      %v862 = vpop.xlane.xlu0 %861
      %v863 = vsel %vm308, %v849, -inf
      %864 = vmax.xlane.f32.xlu0 %v863
      %v865 = vpop.xlane.xlu0 %864
      %v866 = vsel %vm308, %v850, -inf
      %867 = vmax.xlane.f32.xlu0 %v866
      %v868 = vpop.xlane.xlu0 %867
      %v869 = vsel %vm308, %v851, -inf
      %870 = vmax.xlane.f32.xlu0 %v869
      %v871 = vpop.xlane.xlu0 %870
      %v872 = vsel %vm308, %v852, -inf
      %873 = vmax.xlane.f32.xlu0 %v872
      %v874 = vpop.xlane.xlu0 %873
      %v875 = vsel %vm308, %v853, -inf
      %876 = vmax.xlane.f32.xlu0 %v875
      %v877 = vpop.xlane.xlu0 %876
      %v878 = vsub.f32 %v846, %v856
      %v879 = vsub.f32 %v847, %v859
      %v880 = vsub.f32 %v848, %v862
      %v881 = vsub.f32 %v849, %v865
      %v882 = vsub.f32 %v850, %v868
      %v883 = vsub.f32 %v851, %v871
      %v884 = vsub.f32 %v852, %v874
      %v885 = vsub.f32 %v853, %v877
      %v886 = vmul.f32 %v878, 1.442695
      %v887 = vpow.pop %v886
      %v888 = vmul.f32 %v879, 1.442695
      %v889 = vpow.pop %v888
      %v890 = vmul.f32 %v880, 1.442695
      %v891 = vpow.pop %v890
      %v892 = vmul.f32 %v881, 1.442695
      %v893 = vpow.pop %v892
      %v894 = vmul.f32 %v882, 1.442695
      %v895 = vpow.pop %v894
      %v896 = vmul.f32 %v883, 1.442695
      %v897 = vpow.pop %v896
      %v898 = vmul.f32 %v884, 1.442695
      %v899 = vpow.pop %v898
      %v900 = vmul.f32 %v885, 1.442695
      %v901 = vpow.pop %v900
      %v902 = vsel %vm308, %v887, 0.0
      %903 = vadd.xlane.f32.xlu0 %v902
      %v904 = vpop.xlane.xlu0 %903
      %v905 = vsel %vm308, %v889, 0.0
      %906 = vadd.xlane.f32.xlu0 %v905
      %v907 = vpop.xlane.xlu0 %906
      %v908 = vsel %vm308, %v891, 0.0
      %909 = vadd.xlane.f32.xlu0 %v908
      %v910 = vpop.xlane.xlu0 %909
      %v911 = vsel %vm308, %v893, 0.0
      %912 = vadd.xlane.f32.xlu0 %v911
      %v913 = vpop.xlane.xlu0 %912
      %v914 = vsel %vm308, %v895, 0.0
      %915 = vadd.xlane.f32.xlu0 %v914
      %v916 = vpop.xlane.xlu0 %915
      %v917 = vsel %vm308, %v897, 0.0
      %918 = vadd.xlane.f32.xlu0 %v917
      %v919 = vpop.xlane.xlu0 %918
      %v920 = vsel %vm308, %v899, 0.0
      %921 = vadd.xlane.f32.xlu0 %v920
      %v922 = vpop.xlane.xlu0 %921
      %v923 = vsel %vm308, %v901, 0.0
      %924 = vadd.xlane.f32.xlu0 %v923
      %v925 = vpop.xlane.xlu0 %924
      %v926 = vrcp.pop %v904
      %v927 = vrcp.pop %v907
      %v928 = vrcp.pop %v910
      %v929 = vrcp.pop %v913
      %v930 = vrcp.pop %v916
      %v931 = vrcp.pop %v919
      %v932 = vrcp.pop %v922
      %v933 = vrcp.pop %v925
      %v934 = vmul.f32 %v887, %v926
      %v935 = vmul.f32 %v889, %v927
      %v936 = vmul.f32 %v891, %v928
      %v937 = vmul.f32 %v893, %v929
      %v938 = vmul.f32 %v895, %v930
      %v939 = vmul.f32 %v897, %v931
      %v940 = vmul.f32 %v899, %v932
      %v941 = vmul.f32 %v901, %v933
      %v942 = vpack.c.bf16 %v935, %v934
      %v943 = vpack.c.bf16 %v937, %v936
      %v944 = vpack.c.bf16 %v939, %v938
      %v945 = vpack.c.bf16 %v941, %v940
      %946 = vrot.lane.b32.xlu0 %v218, 104
      %v947 = vpop.permute.xlu0 %946
      %v950 = vsel %vm308, %v942, 0
      %v953 = vsel %vm308, %v943, 0
      %v956 = vsel %vm308, %v944, 0
      %v959 = vsel %vm308, %v945, 0
      %961 = vmatprep.subr.bf16.mxu0 0
      %962 = vmatpush1.bf16.msra.mxu0 %v947
      %963 = vmatprep.subr.bf16.mxu0 0
      %964 = vmatpush1.bf16.msra.mxu0 0
      %965 = vmatprep.subr.bf16.mxu0 0
      %966 = vmatpush1.bf16.msra.mxu0 0
      %967 = vmatprep.subr.bf16.mxu0 0
      %968 = vmatpush1.bf16.msra.mxu0 0
      %969 = vmatprep.subr.bf16.mxu0 0
      %970 = vmatpush1.bf16.msra.mxu0 0
      %971 = vmatprep.subr.bf16.mxu0 0
      %972 = vmatpush1.bf16.msra.mxu0 0
      %973 = vmatprep.subr.bf16.mxu0 0
      %974 = vmatpush1.bf16.msra.mxu0 0
      %975 = vmatprep.subr.bf16.mxu0 0
      %976 = vmatpush1.bf16.msra.mxu0 0
      %977 = vmatprep.subr.bf16.mxu0 0
      %978 = vmatpush1.bf16.msra.mxu0 0
      %979 = vmatprep.subr.bf16.mxu0 0
      %980 = vmatpush1.bf16.msra.mxu0 0
      %981 = vmatprep.subr.bf16.mxu0 0
      %982 = vmatpush1.bf16.msra.mxu0 0
      %983 = vmatprep.subr.bf16.mxu0 0
      %984 = vmatpush1.bf16.msra.mxu0 0
      %985 = vmatprep.subr.bf16.mxu0 0
      %986 = vmatpush1.bf16.msra.mxu0 0
      %987 = vmatprep.subr.bf16.mxu0 0
      %988 = vmatpush1.bf16.msra.mxu0 0
      %989 = vmatprep.subr.bf16.mxu0 0
      %990 = vmatpush1.bf16.msra.mxu0 0
      %991 = vmatprep.subr.bf16.mxu0 0
      %992 = vmatpush1.bf16.msra.mxu0 0
      %993 = vmatprep.mubr.bf16.mxu0 0
      %994 = vmatmul.mubr.bf16.gmra.mrb[0].mxu0 %v950
      %v995 = vpop.f32.mrb[0].mxu0
      %v996 = vadd.f32 0.0, %v995
      %v997 = vpop.f32.mrb[0].mxu0
      %v998 = vpop.f32.mrb[0].mxu0
      %v999 = vadd.f32 0.0, %v998
      %v1000 = vpop.f32.mrb[0].mxu0
      %1001 = vmatprep.mubr.bf16.mxu0 0
      %1002 = vmatmul.mubr.bf16.gmra.mrb[0].mxu0 %v953
      %v1003 = vpop.f32.mrb[0].mxu0
      %v1004 = vadd.f32 0.0, %v1003
      %v1005 = vpop.f32.mrb[0].mxu0
      %v1006 = vpop.f32.mrb[0].mxu0
      %v1007 = vadd.f32 0.0, %v1006
      %v1008 = vpop.f32.mrb[0].mxu0
      %1009 = vmatprep.mubr.bf16.mxu0 0
      %1010 = vmatmul.mubr.bf16.gmra.mrb[0].mxu0 %v956
      %v1011 = vpop.f32.mrb[0].mxu0
      %v1012 = vadd.f32 0.0, %v1011
      %v1013 = vpop.f32.mrb[0].mxu0
      %v1014 = vpop.f32.mrb[0].mxu0
      %v1015 = vadd.f32 0.0, %v1014
      %v1016 = vpop.f32.mrb[0].mxu0
      %1017 = vmatprep.mubr.bf16.mxu0 0
      %1018 = vmatmul.mubr.bf16.gmra.mrb[0].mxu0 %v959
      %v1019 = vpop.f32.mrb[0].mxu0
      %v1020 = vadd.f32 0.0, %v1019
      %v1021 = vpop.f32.mrb[0].mxu0
      %v1022 = vpop.f32.mrb[0].mxu0
      %v1023 = vadd.f32 0.0, %v1022
      %v1024 = vpop.f32.mrb[0].mxu0
      %1025 = vdwg.mxu0
      %1026 = vrot.lane.b32.xlu0 %v212, 116
      %v1027 = vpop.permute.xlu0 %1026
      %1028 = vrot.lane.b32.xlu0 %v213, 116
      %v1029 = vpop.permute.xlu0 %1028
      %1030 = vrot.lane.b32.xlu0 %v214, 116
      %v1031 = vpop.permute.xlu0 %1030
      %1032 = vrot.lane.b32.xlu0 %v215, 116
      %v1033 = vpop.permute.xlu0 %1032
      %1034 = vrot.lane.b32.xlu0 %v218, 116
      %v1035 = vpop.permute.xlu0 %1034
      %v1037 = vsel %vm219, %v1027, 0
      %v1040 = vsel %vm219, %v1029, 0
      %v1043 = vsel %vm219, %v1031, 0
      %v1046 = vsel %vm219, %v1033, 0
      %v1049 = vsel %vm219, %v1035, 0
      %1051 = vmatprep.subr.bf16.mxu0 0
      %1052 = vmatpush1.bf16.xpose.msra.mxu0 %v1049
      %1053 = vmatprep.subr.bf16.mxu0 0
      %1054 = vmatpush1.bf16.xpose.msra.mxu0 0
      %1055 = vmatprep.subr.bf16.mxu0 0
      %1056 = vmatpush1.bf16.xpose.msra.mxu0 0
      %1057 = vmatprep.subr.bf16.mxu0 0
      %1058 = vmatpush1.bf16.xpose.msra.mxu0 0
      %1059 = vmatprep.subr.bf16.mxu0 0
      %1060 = vmatpush1.bf16.xpose.msra.mxu0 0
      %1061 = vmatprep.subr.bf16.mxu0 0
      %1062 = vmatpush1.bf16.xpose.msra.mxu0 0
      %1063 = vmatprep.subr.bf16.mxu0 0
      %1064 = vmatpush1.bf16.xpose.msra.mxu0 0
      %1065 = vmatprep.subr.bf16.mxu0 0
      %1066 = vmatpush1.bf16.xpose.msra.mxu0 0
      %1067 = vmatprep.subr.bf16.mxu0 0
      %1068 = vmatpush1.bf16.xpose.msra.mxu0 0
      %1069 = vmatprep.subr.bf16.mxu0 0
      %1070 = vmatpush1.bf16.xpose.msra.mxu0 0
      %1071 = vmatprep.subr.bf16.mxu0 0
      %1072 = vmatpush1.bf16.xpose.msra.mxu0 0
      %1073 = vmatprep.subr.bf16.mxu0 0
      %1074 = vmatpush1.bf16.xpose.msra.mxu0 0
      %1075 = vmatprep.subr.bf16.mxu0 0
      %1076 = vmatpush1.bf16.xpose.msra.mxu0 0
      %1077 = vmatprep.subr.bf16.mxu0 0
      %1078 = vmatpush1.bf16.xpose.msra.mxu0 0
      %1079 = vmatprep.subr.bf16.mxu0 0
      %1080 = vmatpush1.bf16.xpose.msra.mxu0 0
      %1081 = vmatprep.subr.bf16.mxu0 0
      %1082 = vmatpush1.bf16.xpose.msra.mxu0 0
      %1083 = vmatprep.mubr.bf16.mxu0 0
      %1084 = vmatmul.mubr.bf16.gmra.mrb[0].mxu0 %v1037
      %v1085 = vpop.f32.mrb[0].mxu0
      %v1086 = vadd.f32 0.0, %v1085
      %v1087 = vpop.f32.mrb[0].mxu0
      %v1088 = vpop.f32.mrb[0].mxu0
      %v1089 = vadd.f32 0.0, %v1088
      %v1090 = vpop.f32.mrb[0].mxu0
      %1091 = vmatprep.mubr.bf16.mxu0 0
      %1092 = vmatmul.mubr.bf16.gmra.mrb[0].mxu0 %v1040
      %v1093 = vpop.f32.mrb[0].mxu0
      %v1094 = vadd.f32 0.0, %v1093
      %v1095 = vpop.f32.mrb[0].mxu0
      %v1096 = vpop.f32.mrb[0].mxu0
      %v1097 = vadd.f32 0.0, %v1096
      %v1098 = vpop.f32.mrb[0].mxu0
      %1099 = vmatprep.mubr.bf16.mxu0 0
      %1100 = vmatmul.mubr.bf16.gmra.mrb[0].mxu0 %v1043
      %v1101 = vpop.f32.mrb[0].mxu0
      %v1102 = vadd.f32 0.0, %v1101
      %v1103 = vpop.f32.mrb[0].mxu0
      %v1104 = vpop.f32.mrb[0].mxu0
      %v1105 = vadd.f32 0.0, %v1104
      %v1106 = vpop.f32.mrb[0].mxu0
      %1107 = vmatprep.mubr.bf16.mxu0 0
      %1108 = vmatmul.mubr.bf16.gmra.mrb[0].mxu0 %v1046
      %v1109 = vpop.f32.mrb[0].mxu0
      %v1110 = vadd.f32 0.0, %v1109
      %v1111 = vpop.f32.mrb[0].mxu0
      %v1112 = vpop.f32.mrb[0].mxu0
      %v1113 = vadd.f32 0.0, %v1112
      %v1114 = vpop.f32.mrb[0].mxu0
      %1115 = vdwg.mxu0
      %v1116 = vmul.f32 %v1086, 0.5
      %v1117 = vmul.f32 %v1089, 0.5
      %v1118 = vmul.f32 %v1094, 0.5
      %v1119 = vmul.f32 %v1097, 0.5
      %v1120 = vmul.f32 %v1102, 0.5
      %v1121 = vmul.f32 %v1105, 0.5
      %v1122 = vmul.f32 %v1110, 0.5
      %v1123 = vmul.f32 %v1113, 0.5
      %v1124 = vsel %vm308, %v1116, -inf
      %1125 = vmax.xlane.f32.xlu0 %v1124
      %v1126 = vpop.xlane.xlu0 %1125
      %v1127 = vsel %vm308, %v1117, -inf
      %1128 = vmax.xlane.f32.xlu0 %v1127
      %v1129 = vpop.xlane.xlu0 %1128
      %v1130 = vsel %vm308, %v1118, -inf
      %1131 = vmax.xlane.f32.xlu0 %v1130
      %v1132 = vpop.xlane.xlu0 %1131
      %v1133 = vsel %vm308, %v1119, -inf
      %1134 = vmax.xlane.f32.xlu0 %v1133
      %v1135 = vpop.xlane.xlu0 %1134
      %v1136 = vsel %vm308, %v1120, -inf
      %1137 = vmax.xlane.f32.xlu0 %v1136
      %v1138 = vpop.xlane.xlu0 %1137
      %v1139 = vsel %vm308, %v1121, -inf
      %1140 = vmax.xlane.f32.xlu0 %v1139
      %v1141 = vpop.xlane.xlu0 %1140
      %v1142 = vsel %vm308, %v1122, -inf
      %1143 = vmax.xlane.f32.xlu0 %v1142
      %v1144 = vpop.xlane.xlu0 %1143
      %v1145 = vsel %vm308, %v1123, -inf
      %1146 = vmax.xlane.f32.xlu0 %v1145
      %v1147 = vpop.xlane.xlu0 %1146
      %v1148 = vsub.f32 %v1116, %v1126
      %v1149 = vsub.f32 %v1117, %v1129
      %v1150 = vsub.f32 %v1118, %v1132
      %v1151 = vsub.f32 %v1119, %v1135
      %v1152 = vsub.f32 %v1120, %v1138
      %v1153 = vsub.f32 %v1121, %v1141
      %v1154 = vsub.f32 %v1122, %v1144
      %v1155 = vsub.f32 %v1123, %v1147
      %v1156 = vmul.f32 %v1148, 1.442695
      %v1157 = vpow.pop %v1156
      %v1158 = vmul.f32 %v1149, 1.442695
      %v1159 = vpow.pop %v1158
      %v1160 = vmul.f32 %v1150, 1.442695
      %v1161 = vpow.pop %v1160
      %v1162 = vmul.f32 %v1151, 1.442695
      %v1163 = vpow.pop %v1162
      %v1164 = vmul.f32 %v1152, 1.442695
      %v1165 = vpow.pop %v1164
      %v1166 = vmul.f32 %v1153, 1.442695
      %v1167 = vpow.pop %v1166
      %v1168 = vmul.f32 %v1154, 1.442695
      %v1169 = vpow.pop %v1168
      %v1170 = vmul.f32 %v1155, 1.442695
      %v1171 = vpow.pop %v1170
      %v1172 = vsel %vm308, %v1157, 0.0
      %1173 = vadd.xlane.f32.xlu0 %v1172
      %v1174 = vpop.xlane.xlu0 %1173
      %v1175 = vsel %vm308, %v1159, 0.0
      %1176 = vadd.xlane.f32.xlu0 %v1175
      %v1177 = vpop.xlane.xlu0 %1176
      %v1178 = vsel %vm308, %v1161, 0.0
      %1179 = vadd.xlane.f32.xlu0 %v1178
      %v1180 = vpop.xlane.xlu0 %1179
      %v1181 = vsel %vm308, %v1163, 0.0
      %1182 = vadd.xlane.f32.xlu0 %v1181
      %v1183 = vpop.xlane.xlu0 %1182
      %v1184 = vsel %vm308, %v1165, 0.0
      %1185 = vadd.xlane.f32.xlu0 %v1184
      %v1186 = vpop.xlane.xlu0 %1185
      %v1187 = vsel %vm308, %v1167, 0.0
      %1188 = vadd.xlane.f32.xlu0 %v1187
      %v1189 = vpop.xlane.xlu0 %1188
      %v1190 = vsel %vm308, %v1169, 0.0
      %1191 = vadd.xlane.f32.xlu0 %v1190
      %v1192 = vpop.xlane.xlu0 %1191
      %v1193 = vsel %vm308, %v1171, 0.0
      %1194 = vadd.xlane.f32.xlu0 %v1193
      %v1195 = vpop.xlane.xlu0 %1194
      %v1196 = vrcp.pop %v1174
      %v1197 = vrcp.pop %v1177
      %v1198 = vrcp.pop %v1180
      %v1199 = vrcp.pop %v1183
      %v1200 = vrcp.pop %v1186
      %v1201 = vrcp.pop %v1189
      %v1202 = vrcp.pop %v1192
      %v1203 = vrcp.pop %v1195
      %v1204 = vmul.f32 %v1157, %v1196
      %v1205 = vmul.f32 %v1159, %v1197
      %v1206 = vmul.f32 %v1161, %v1198
      %v1207 = vmul.f32 %v1163, %v1199
      %v1208 = vmul.f32 %v1165, %v1200
      %v1209 = vmul.f32 %v1167, %v1201
      %v1210 = vmul.f32 %v1169, %v1202
      %v1211 = vmul.f32 %v1171, %v1203
      %v1212 = vpack.c.bf16 %v1205, %v1204
      %v1213 = vpack.c.bf16 %v1207, %v1206
      %v1214 = vpack.c.bf16 %v1209, %v1208
      %v1215 = vpack.c.bf16 %v1211, %v1210
      %1216 = vrot.lane.b32.xlu0 %v218, 100
      %v1217 = vpop.permute.xlu0 %1216
      %v1220 = vsel %vm308, %v1212, 0
      %v1223 = vsel %vm308, %v1213, 0
      %v1226 = vsel %vm308, %v1214, 0
      %v1229 = vsel %vm308, %v1215, 0
      %1231 = vmatprep.subr.bf16.mxu0 0
      %1232 = vmatpush1.bf16.msra.mxu0 %v1217
      %1233 = vmatprep.subr.bf16.mxu0 0
      %1234 = vmatpush1.bf16.msra.mxu0 0
      %1235 = vmatprep.subr.bf16.mxu0 0
      %1236 = vmatpush1.bf16.msra.mxu0 0
      %1237 = vmatprep.subr.bf16.mxu0 0
      %1238 = vmatpush1.bf16.msra.mxu0 0
      %1239 = vmatprep.subr.bf16.mxu0 0
      %1240 = vmatpush1.bf16.msra.mxu0 0
      %1241 = vmatprep.subr.bf16.mxu0 0
      %1242 = vmatpush1.bf16.msra.mxu0 0
      %1243 = vmatprep.subr.bf16.mxu0 0
      %1244 = vmatpush1.bf16.msra.mxu0 0
      %1245 = vmatprep.subr.bf16.mxu0 0
      %1246 = vmatpush1.bf16.msra.mxu0 0
      %1247 = vmatprep.subr.bf16.mxu0 0
      %1248 = vmatpush1.bf16.msra.mxu0 0
      %1249 = vmatprep.subr.bf16.mxu0 0
      %1250 = vmatpush1.bf16.msra.mxu0 0
      %1251 = vmatprep.subr.bf16.mxu0 0
      %1252 = vmatpush1.bf16.msra.mxu0 0
      %1253 = vmatprep.subr.bf16.mxu0 0
      %1254 = vmatpush1.bf16.msra.mxu0 0
      %1255 = vmatprep.subr.bf16.mxu0 0
      %1256 = vmatpush1.bf16.msra.mxu0 0
      %1257 = vmatprep.subr.bf16.mxu0 0
      %1258 = vmatpush1.bf16.msra.mxu0 0
      %1259 = vmatprep.subr.bf16.mxu0 0
      %1260 = vmatpush1.bf16.msra.mxu0 0
      %1261 = vmatprep.subr.bf16.mxu0 0
      %1262 = vmatpush1.bf16.msra.mxu0 0
      %1263 = vmatprep.mubr.bf16.mxu0 0
      %1264 = vmatmul.mubr.bf16.gmra.mrb[0].mxu0 %v1220
      %v1265 = vpop.f32.mrb[0].mxu0
      %v1266 = vadd.f32 0.0, %v1265
      %v1267 = vpop.f32.mrb[0].mxu0
      %v1268 = vpop.f32.mrb[0].mxu0
      %v1269 = vadd.f32 0.0, %v1268
      %v1270 = vpop.f32.mrb[0].mxu0
      %1271 = vmatprep.mubr.bf16.mxu0 0
      %1272 = vmatmul.mubr.bf16.gmra.mrb[0].mxu0 %v1223
      %v1273 = vpop.f32.mrb[0].mxu0
      %v1274 = vadd.f32 0.0, %v1273
      %v1275 = vpop.f32.mrb[0].mxu0
      %v1276 = vpop.f32.mrb[0].mxu0
      %v1277 = vadd.f32 0.0, %v1276
      %v1278 = vpop.f32.mrb[0].mxu0
      %1279 = vmatprep.mubr.bf16.mxu0 0
      %1280 = vmatmul.mubr.bf16.gmra.mrb[0].mxu0 %v1226
      %v1281 = vpop.f32.mrb[0].mxu0
      %v1282 = vadd.f32 0.0, %v1281
      %v1283 = vpop.f32.mrb[0].mxu0
      %v1284 = vpop.f32.mrb[0].mxu0
      %v1285 = vadd.f32 0.0, %v1284
      %v1286 = vpop.f32.mrb[0].mxu0
      %1287 = vmatprep.mubr.bf16.mxu0 0
      %1288 = vmatmul.mubr.bf16.gmra.mrb[0].mxu0 %v1229
      %v1289 = vpop.f32.mrb[0].mxu0
      %v1290 = vadd.f32 0.0, %v1289
      %v1291 = vpop.f32.mrb[0].mxu0
      %v1292 = vpop.f32.mrb[0].mxu0
      %v1293 = vadd.f32 0.0, %v1292
      %v1294 = vpop.f32.mrb[0].mxu0
      %1295 = vdwg.mxu0
      %1304 = vrot.lane.b32.xlu0 %v726, 4
      %v1305 = vpop.permute.xlu0 %1304
      %1306 = vrot.lane.b32.xlu0 %v729, 4
      %v1307 = vpop.permute.xlu0 %1306
      %1308 = vrot.lane.b32.xlu0 %v734, 4
      %v1309 = vpop.permute.xlu0 %1308
      %1310 = vrot.lane.b32.xlu0 %v737, 4
      %v1311 = vpop.permute.xlu0 %1310
      %1312 = vrot.lane.b32.xlu0 %v742, 4
      %v1313 = vpop.permute.xlu0 %1312
      %1314 = vrot.lane.b32.xlu0 %v745, 4
      %v1315 = vpop.permute.xlu0 %1314
      %1316 = vrot.lane.b32.xlu0 %v750, 4
      %v1317 = vpop.permute.xlu0 %1316
      %1318 = vrot.lane.b32.xlu0 %v753, 4
      %v1319 = vpop.permute.xlu0 %1318
      %1336 = vrot.lane.b32.xlu0 %v996, 8
      %v1337 = vpop.permute.xlu0 %1336
      %1338 = vrot.lane.b32.xlu0 %v999, 8
      %v1339 = vpop.permute.xlu0 %1338
      %1340 = vrot.lane.b32.xlu0 %v1004, 8
      %v1341 = vpop.permute.xlu0 %1340
      %1342 = vrot.lane.b32.xlu0 %v1007, 8
      %v1343 = vpop.permute.xlu0 %1342
      %1344 = vrot.lane.b32.xlu0 %v1012, 8
      %v1345 = vpop.permute.xlu0 %1344
      %1346 = vrot.lane.b32.xlu0 %v1015, 8
      %v1347 = vpop.permute.xlu0 %1346
      %1348 = vrot.lane.b32.xlu0 %v1020, 8
      %v1349 = vpop.permute.xlu0 %1348
      %1350 = vrot.lane.b32.xlu0 %v1023, 8
      %v1351 = vpop.permute.xlu0 %1350
      %1368 = vrot.lane.b32.xlu0 %v1266, 12
      %v1369 = vpop.permute.xlu0 %1368
      %1370 = vrot.lane.b32.xlu0 %v1269, 12
      %v1371 = vpop.permute.xlu0 %1370
      %1372 = vrot.lane.b32.xlu0 %v1274, 12
      %v1373 = vpop.permute.xlu0 %1372
      %1374 = vrot.lane.b32.xlu0 %v1277, 12
      %v1375 = vpop.permute.xlu0 %1374
      %1376 = vrot.lane.b32.xlu0 %v1282, 12
      %v1377 = vpop.permute.xlu0 %1376
      %1378 = vrot.lane.b32.xlu0 %v1285, 12
      %v1379 = vpop.permute.xlu0 %1378
      %1380 = vrot.lane.b32.xlu0 %v1290, 12
      %v1381 = vpop.permute.xlu0 %1380
      %1382 = vrot.lane.b32.xlu0 %v1293, 12
      %v1383 = vpop.permute.xlu0 %1382
      %v1392 = vsel %vm219, %v452, %v1305
      %v1393 = vsel %vm219, %v455, %v1307
      %v1394 = vsel %vm219, %v460, %v1309
      %v1395 = vsel %vm219, %v463, %v1311
      %v1396 = vsel %vm219, %v468, %v1313
      %v1397 = vsel %vm219, %v471, %v1315
      %v1398 = vsel %vm219, %v476, %v1317
      %v1399 = vsel %vm219, %v479, %v1319
      %vm1400 = vcmask 64512
      %v1401 = vsel %vm1400, %v1392, %v1337
      %v1402 = vsel %vm1400, %v1393, %v1339
      %v1403 = vsel %vm1400, %v1394, %v1341
      %v1404 = vsel %vm1400, %v1395, %v1343
      %v1405 = vsel %vm1400, %v1396, %v1345
      %v1406 = vsel %vm1400, %v1397, %v1347
      %v1407 = vsel %vm1400, %v1398, %v1349
      %v1408 = vsel %vm1400, %v1399, %v1351
      %vm1409 = vcmask 97280
      %v1410 = vsel %vm1409, %v1401, %v1369
      %v1411 = vsel %vm1409, %v1402, %v1371
      %v1412 = vsel %vm1409, %v1403, %v1373
      %v1413 = vsel %vm1409, %v1404, %v1375
      %v1414 = vsel %vm1409, %v1405, %v1377
      %v1415 = vsel %vm1409, %v1406, %v1379
      %v1416 = vsel %vm1409, %v1407, %v1381
      %v1417 = vsel %vm1409, %v1408, %v1383
      %1418 = vst.msk [vmem:[%s201] sm:$0xff] %vm308, %v1410
      %1419 = vst.msk [vmem:[%s201 + $0x8] sm:$0xff] %vm308, %v1411
      %1420 = vst.msk [vmem:[%s201 + $0x10] sm:$0xff] %vm308, %v1412
      %1421 = vst.msk [vmem:[%s201 + $0x18] sm:$0xff] %vm308, %v1413
      %1422 = vst.msk [vmem:[%s201 + $0x20] sm:$0xff] %vm308, %v1414
      %1423 = vst.msk [vmem:[%s201 + $0x28] sm:$0xff] %vm308, %v1415
      %1424 = vst.msk [vmem:[%s201 + $0x30] sm:$0xff] %vm308, %v1416
      %1425 = vst.msk [vmem:[%s201 + $0x38] sm:$0xff] %vm308, %v1417
      %s1426 = smul.u32 8, %s18
      %p1427 = scmp.lt.s32.totalorder %s17, 1
      %s1428 = scalar_select %p1427, %s17, 1
      %p1429 = scmp.lt.s32.totalorder %s1426, 7
      %s1430 = scalar_select %p1429, %s1426, 7
      %s1431 = smul.addr %s1428, 8
      %s1432 = sadd.s32 %s1430, %s1431
      %s1433 = smul.addr %s1432, 8
      %s1434 = scalar_lea.vmem %s2, %s1433
      // Predicated region
      $region29: #{fc_hilo1_forward.11} parent=27 // pred_check
        %p1435 = pneg %p99
      $region30: #{fc_hilo1_forward.11} parent=27 // pred_check_branch
        %1437 = sbr.rel (%p1435) target = $region32
      $region31: #{fc_hilo1_forward.11} parent=27 // pred_region
        %s1438 = smul.u32 8, %s18
      $region32: #{fc_hilo1_forward.11} parent=27 // pred_fallthru
        _
    $region28: #{fc_hilo1_forward.11} parent=5 // pred_fallthru
      _
    %p1439 = scmp.le.s32.totalorder 2, %s8
    // Predicated region
    $region33: #{fc_hilo1_forward.11} parent=5 // pred_check
      %p1440 = pneg %p1439
    $region34: #{fc_hilo1_forward.11} parent=5 // pred_check_branch
      %1442 = sbr.rel (%p1440) target = $region36
    $region35: #{fc_hilo1_forward.11} parent=5 // pred_region
      %s1443 = ssub.s32 %s8, 2
      // Predicated region
      $region37: #{fc_hilo1_forward.11} parent=35 // pred_check
        %p1444 = pneg %p105
      $region38: #{fc_hilo1_forward.11} parent=35 // pred_check_branch
        %1446 = sbr.rel (%p1444) target = $region40
      $region39: #{fc_hilo1_forward.11} parent=35 // pred_region
        %s1447 = smul.u32 8, %s20
        %p1448 = scmp.lt.s32.totalorder %s19, 1
        %s1449 = scalar_select %p1448, %s19, 1
        %p1450 = scmp.lt.s32.totalorder %s1447, 7
        %s1451 = scalar_select %p1450, %s1447, 7
        %s1452 = smul.addr %s1449, 8
        %s1453 = sadd.s32 %s1451, %s1452
        %s1454 = smul.addr %s1453, 8
        %s1455 = scalar_lea.vmem %s2, %s1454
      $region40: #{fc_hilo1_forward.11} parent=35 // pred_fallthru
        _
    $region36: #{fc_hilo1_forward.11} parent=5 // pred_fallthru
      _
  $region6: #{fc_hilo1_forward.11} parent=0 // loop_footer
    %s12 = sadd.s32 1, %s8
  $region7: #{fc_hilo1_forward.11} parent=0 // loop_footer_branch
    %7 = sbr.rel target = $region3
  $region8: #{fc_hilo1_forward.11} parent=0 // loop_exit
    _

// kernel: fc_hilo1_forward.12
$region0: #{fc_hilo1_forward.12}
  #allocation0 [shape = 'u32[]', space=smem, size = 0x4, offset = 0x4, fixed_abs, tag = 'smem constant byte address 0x4 - core index']
  #allocation1 [shape = 'u32[144,128]{1,0:T(1,128)}', space=vmem, size = 0x12000, scoped, tag = 'internal scratch']
  %s0 = inlined_call_operand.vmem [shape: f32[2,10,10,16], index: 0, kind: input, shape index: {}]
  %s1 = inlined_call_operand.vmem [shape: f32[9,16], index: 1, kind: input, shape index: {}]
  %s2 = inlined_call_operand.vmem [shape: f32[1,16], index: 2, kind: input, shape index: {}]
  %s3 = inlined_call_operand.vmem [shape: f32[16,16], index: 3, kind: input, shape index: {}]
  %s4 = inlined_call_operand.vmem [shape: f32[1,16], index: 4, kind: input, shape index: {}]
  %s5 = inlined_call_operand.vmem [shape: f32[2,8,8,16], index: 5, kind: output, shape index: {}]
  %s6 = sld [smem:[#allocation0]]
  $region53: #{fc_hilo1_forward.12} parent=0
    _
  %s8 = ssub.s32 1, %s6
  %s9 = scalar_select 0, %s8, %s6
  loop: start=0, step=1, limit=4
  $region2: #{fc_hilo1_forward.12} parent=0 // loop_pre_header
    _
  $region3: #{fc_hilo1_forward.12} parent=0 // loop_header
    %s11 = sphi 0, %s15
    %p12 = scmp.ge.s32.totalorder %s11, 4
    %s21 = sphi 0, %s23
    %s24 = sphi 0, %s21
    %s25 = sphi 0, %s24
    %s41 = sphi 0, %s25
    %s45 = sphi 0, %s45
    %s47 = sphi 0, %s45
    %s48 = sphi 0, %s47
    %s62 = sphi 0, %s48
    %s66 = sphi 0, %s66
    %s68 = sphi 0, %s66
    %s69 = sphi 0, %s68
    %s83 = sphi 0, %s69
    %s87 = sphi 0, %s87
    %s89 = sphi 0, %s87
    %s90 = sphi 0, %s89
    %s104 = sphi 0, %s90
    %s108 = sphi 0, %s108
    %s110 = sphi 0, %s108
    %s111 = sphi 0, %s110
    %s125 = sphi 0, %s111
    %s131 = sphi 0, %s133
    %s134 = sphi 0, %s131
    %s135 = sphi 0, %s134
    %s151 = sphi 0, %s135
  $region4: #{fc_hilo1_forward.12} parent=0 // loop_header_branch
    %14 = sbr.rel (%p12) target = $region8
  $region5: #{fc_hilo1_forward.12} parent=0 // loop_body
    %s16 = ssub.s32 %s11, 1
    %s17 = ssub.s32 %s11, 2
    %s18 = sadd.s32 %s11, 1
    %s19 = ssub.s32 %s11, %s18
    %p20 = scmp.eq.s32.totalorder %s19, 0
    %s22 = sadd.s32 %s21, 1
    %s23 = scalar_select %p20, %s21, %s22
    %p26 = pneg %p20
    %p27 = scmp.eq.s32.totalorder %s11, 1
    %p28 = por %p26, %p27
    %p29 = scmp.ne.s32.totalorder %s21, %s24
    %p30 = scmp.eq.s32.totalorder %s11, 0
    %p31 = por %p29, %p30
    %p32 = scmp.ne.s32.totalorder %s21, %s24
    %p33 = scmp.eq.s32.totalorder %s16, 1
    %p34 = por %p32, %p33
    %p35 = scmp.ne.s32.totalorder %s24, %s25
    %p36 = scmp.eq.s32.totalorder %s16, 0
    %p37 = por %p35, %p36
    %p38 = scmp.ne.s32.totalorder %s24, %s25
    %p39 = scmp.eq.s32.totalorder %s17, 1
    %p40 = por %p38, %p39
    %p42 = scmp.ne.s32.totalorder %s25, %s41
    %p43 = scmp.eq.s32.totalorder %s17, 0
    %p44 = por %p42, %p43
    %s46 = sadd.s32 %s45, 1
    %p49 = scmp.eq.s32.totalorder %s11, 1
    %p50 = scmp.ne.s32.totalorder %s45, %s47
    %p51 = scmp.eq.s32.totalorder %s11, 0
    %p52 = por %p50, %p51
    %p53 = scmp.ne.s32.totalorder %s45, %s47
    %p54 = scmp.eq.s32.totalorder %s16, 1
    %p55 = por %p53, %p54
    %p56 = scmp.ne.s32.totalorder %s47, %s48
    %p57 = scmp.eq.s32.totalorder %s16, 0
    %p58 = por %p56, %p57
    %p59 = scmp.ne.s32.totalorder %s47, %s48
    %p60 = scmp.eq.s32.totalorder %s17, 1
    %p61 = por %p59, %p60
    %p63 = scmp.ne.s32.totalorder %s48, %s62
    %p64 = scmp.eq.s32.totalorder %s17, 0
    %p65 = por %p63, %p64
    %s67 = sadd.s32 %s66, 1
    %p70 = scmp.eq.s32.totalorder %s11, 1
    %p71 = scmp.ne.s32.totalorder %s66, %s68
    %p72 = scmp.eq.s32.totalorder %s11, 0
    %p73 = por %p71, %p72
    %p74 = scmp.ne.s32.totalorder %s66, %s68
    %p75 = scmp.eq.s32.totalorder %s16, 1
    %p76 = por %p74, %p75
    %p77 = scmp.ne.s32.totalorder %s68, %s69
    %p78 = scmp.eq.s32.totalorder %s16, 0
    %p79 = por %p77, %p78
    %p80 = scmp.ne.s32.totalorder %s68, %s69
    %p81 = scmp.eq.s32.totalorder %s17, 1
    %p82 = por %p80, %p81
    %p84 = scmp.ne.s32.totalorder %s69, %s83
    %p85 = scmp.eq.s32.totalorder %s17, 0
    %p86 = por %p84, %p85
    %s88 = sadd.s32 %s87, 1
    %p91 = scmp.eq.s32.totalorder %s11, 1
    %p92 = scmp.ne.s32.totalorder %s87, %s89
    %p93 = scmp.eq.s32.totalorder %s11, 0
    %p94 = por %p92, %p93
    %p95 = scmp.ne.s32.totalorder %s87, %s89
    %p96 = scmp.eq.s32.totalorder %s16, 1
    %p97 = por %p95, %p96
    %p98 = scmp.ne.s32.totalorder %s89, %s90
    %p99 = scmp.eq.s32.totalorder %s16, 0
    %p100 = por %p98, %p99
    %p101 = scmp.ne.s32.totalorder %s89, %s90
    %p102 = scmp.eq.s32.totalorder %s17, 1
    %p103 = por %p101, %p102
    %p105 = scmp.ne.s32.totalorder %s90, %s104
    %p106 = scmp.eq.s32.totalorder %s17, 0
    %p107 = por %p105, %p106
    %s109 = sadd.s32 %s108, 1
    %p112 = scmp.eq.s32.totalorder %s11, 1
    %p113 = scmp.ne.s32.totalorder %s108, %s110
    %p114 = scmp.eq.s32.totalorder %s11, 0
    %p115 = por %p113, %p114
    %p116 = scmp.ne.s32.totalorder %s108, %s110
    %p117 = scmp.eq.s32.totalorder %s16, 1
    %p118 = por %p116, %p117
    %p119 = scmp.ne.s32.totalorder %s110, %s111
    %p120 = scmp.eq.s32.totalorder %s16, 0
    %p121 = por %p119, %p120
    %p122 = scmp.ne.s32.totalorder %s110, %s111
    %p123 = scmp.eq.s32.totalorder %s17, 1
    %p124 = por %p122, %p123
    %p126 = scmp.ne.s32.totalorder %s111, %s125
    %p127 = scmp.eq.s32.totalorder %s17, 0
    %p128 = por %p126, %p127
    %s129 = ssub.s32 %s11, %s18
    %p130 = scmp.eq.s32.totalorder %s129, 0
    %s132 = sadd.s32 %s131, 1
    %s133 = scalar_select %p130, %s131, %s132
    %p136 = pneg %p130
    %p137 = scmp.eq.s32.totalorder %s11, 1
    %p138 = por %p136, %p137
    %p139 = scmp.ne.s32.totalorder %s131, %s134
    %p140 = scmp.eq.s32.totalorder %s11, 0
    %p141 = por %p139, %p140
    %p142 = scmp.ne.s32.totalorder %s131, %s134
    %p143 = scmp.eq.s32.totalorder %s16, 1
    %p144 = por %p142, %p143
    %p145 = scmp.ne.s32.totalorder %s134, %s135
    %p146 = scmp.eq.s32.totalorder %s16, 0
    %p147 = por %p145, %p146
    %p148 = scmp.ne.s32.totalorder %s134, %s135
    %p149 = scmp.eq.s32.totalorder %s17, 1
    %p150 = por %p148, %p149
    %p152 = scmp.ne.s32.totalorder %s135, %s151
    %p153 = scmp.eq.s32.totalorder %s17, 0
    %p154 = por %p152, %p153
    %p155 = scmp.le.s32.totalorder 1, %s11
    %p156 = scmp.lt.s32.totalorder %s11, 3
    %p157 = pnand %p155, %p156
    %p158 = pneg %p157
    // Predicated region
    $region9: #{fc_hilo1_forward.12} parent=5 // pred_check
      _
    $region10: #{fc_hilo1_forward.12} parent=5 // pred_check_branch
      %160 = sbr.rel (%p157) target = $region12
    $region11: #{fc_hilo1_forward.12} parent=5 // pred_region
      %s161 = ssub.s32 %s11, 1
      // Predicated region
      $region13: #{fc_hilo1_forward.12} parent=11 // pred_check
        %p162 = pneg %p58
      $region14: #{fc_hilo1_forward.12} parent=11 // pred_check_branch
        %164 = sbr.rel (%p162) target = $region16
      $region15: #{fc_hilo1_forward.12} parent=11 // pred_region
        _
      $region16: #{fc_hilo1_forward.12} parent=11 // pred_fallthru
        _
      // Predicated region
      $region17: #{fc_hilo1_forward.12} parent=11 // pred_check
        %p165 = pneg %p79
      $region18: #{fc_hilo1_forward.12} parent=11 // pred_check_branch
        %167 = sbr.rel (%p165) target = $region20
      $region19: #{fc_hilo1_forward.12} parent=11 // pred_region
        _
      $region20: #{fc_hilo1_forward.12} parent=11 // pred_fallthru
        _
      // Predicated region
      $region21: #{fc_hilo1_forward.12} parent=11 // pred_check
        %p168 = pneg %p100
      $region22: #{fc_hilo1_forward.12} parent=11 // pred_check_branch
        %170 = sbr.rel (%p168) target = $region24
      $region23: #{fc_hilo1_forward.12} parent=11 // pred_region
        _
      $region24: #{fc_hilo1_forward.12} parent=11 // pred_fallthru
        _
      // Predicated region
      $region25: #{fc_hilo1_forward.12} parent=11 // pred_check
        %p171 = pneg %p121
      $region26: #{fc_hilo1_forward.12} parent=11 // pred_check_branch
        %173 = sbr.rel (%p171) target = $region28
      $region27: #{fc_hilo1_forward.12} parent=11 // pred_region
        _
      $region28: #{fc_hilo1_forward.12} parent=11 // pred_fallthru
        _
    $region12: #{fc_hilo1_forward.12} parent=5 // pred_fallthru
      _
    %p174 = scmp.lt.s32.totalorder %s11, 2
    // Predicated region
    $region29: #{fc_hilo1_forward.12} parent=5 // pred_check
      %p175 = pneg %p174
    $region30: #{fc_hilo1_forward.12} parent=5 // pred_check_branch
      %177 = sbr.rel (%p175) target = $region32
    $region31: #{fc_hilo1_forward.12} parent=5 // pred_region
      // Predicated region
      $region33: #{fc_hilo1_forward.12} parent=31 // pred_check
        %p178 = pneg %p31
      $region34: #{fc_hilo1_forward.12} parent=31 // pred_check_branch
        %180 = sbr.rel (%p178) target = $region36
      $region35: #{fc_hilo1_forward.12} parent=31 // pred_region
        %p181 = scmp.lt.s32.totalorder %s11, 1
        %s182 = scalar_select %p181, %s11, 1
        %s183 = smul.addr %s182, 20
        %s184 = smul.addr %s183, 8
        %s185 = scalar_lea.vmem %s0, %s184
      $region36: #{fc_hilo1_forward.12} parent=31 // pred_fallthru
        _
    $region32: #{fc_hilo1_forward.12} parent=5 // pred_fallthru
      _
    %p186 = scmp.le.s32.totalorder 1, %s11
    %p187 = scmp.lt.s32.totalorder %s11, 3
    %p188 = pnand %p186, %p187
    %p189 = pneg %p188
    // Predicated region
    $region37: #{fc_hilo1_forward.12} parent=5 // pred_check
      _
    $region38: #{fc_hilo1_forward.12} parent=5 // pred_check_branch
      %191 = sbr.rel (%p188) target = $region40
    $region39: #{fc_hilo1_forward.12} parent=5 // pred_region
      %s192 = ssub.s32 %s11, 1
      %p193 = scmp.lt.s32.totalorder %s16, 1
      %s194 = scalar_select %p193, %s16, 1
      %s195 = smul.addr %s194, 20
      %s196 = smul.addr %s195, 8
      %s197 = scalar_lea.vmem %s0, %s196
      %p198 = pneg %p37
      %p199 = pneg %p34
      %p200 = pneg %p58
      %p201 = pneg %p55
      %p202 = pneg %p79
      %p203 = pneg %p76
      %p204 = pneg %p100
      %p205 = pneg %p97
      %p206 = pneg %p121
      %p207 = pneg %p118
      %p208 = pneg %p147
      %p209 = pneg %p144
      %p210 = scmp.lt.s32.totalorder %s16, 1
      %s211 = scalar_select %p210, %s16, 1
      %s212 = smul.addr %s211, 8
      %s213 = smul.addr %s212, 8
      %s214 = scalar_lea.vmem %s5, %s213
      %p215 = scmp.lt.s32.totalorder %s16, 1
      %s216 = scalar_select %p215, %s16, 1
      %s217 = smul.addr %s216, 20
      %s218 = smul.addr %s217, 8
      %s219 = scalar_lea.vmem %s0, %s218
      %p220 = scmp.lt.s32.totalorder %s16, 1
      %s221 = scalar_select %p220, %s16, 1
      %s222 = smul.addr %s221, 8
      %s223 = smul.addr %s222, 8
      %s224 = scalar_lea.vmem %s5, %s223
      %v226 = vld [vmem:[%s1] sm:$0xff]
      %v227 = vld [vmem:[%s1 + $0x8] sm:$0x1]
      %v228 = vld [vmem:[%s2] sm:$0x1]
      %v229 = vld [vmem:[%s4] sm:$0x1]
      %v230 = vld [vmem:[%s219] sm:$0xff]
      %v231 = vld [vmem:[%s219 + $0x10] sm:$0xff]
      %v232 = vld [vmem:[%s219 + $0x20] sm:$0xff]
      %v233 = vld [vmem:[%s219 + $0x30] sm:$0xff]
      %v234 = vld [vmem:[%s219 + $0x40] sm:$0xff]
      %v235 = vld [vmem:[%s219 + $0x50] sm:$0xff]
      %v236 = vld [vmem:[%s219 + $0x60] sm:$0xff]
      %v237 = vld [vmem:[%s219 + $0x70] sm:$0xff]
      %v238 = vld [vmem:[%s219 + $0x80] sm:$0xff]
      %v239 = vld [vmem:[%s219 + $0x90] sm:$0xff]
      %v240 = vld [vmem:[%s219 + $0x1] sm:$0xff]
      %v241 = vld [vmem:[%s219 + $0x11] sm:$0xff]
      %v242 = vld [vmem:[%s219 + $0x21] sm:$0xff]
      %v243 = vld [vmem:[%s219 + $0x31] sm:$0xff]
      %v244 = vld [vmem:[%s219 + $0x41] sm:$0xff]
      %v245 = vld [vmem:[%s219 + $0x51] sm:$0xff]
      %v246 = vld [vmem:[%s219 + $0x61] sm:$0xff]
      %v247 = vld [vmem:[%s219 + $0x71] sm:$0xff]
      %v248 = vld [vmem:[%s219 + $0x81] sm:$0xff]
      %v249 = vld [vmem:[%s219 + $0x91] sm:$0xff]
      %v250 = vld [vmem:[%s219 + $0x2] sm:$0xff]
      %v251 = vld [vmem:[%s219 + $0x12] sm:$0xff]
      %v252 = vld [vmem:[%s219 + $0x22] sm:$0xff]
      %v253 = vld [vmem:[%s219 + $0x32] sm:$0xff]
      %v254 = vld [vmem:[%s219 + $0x42] sm:$0xff]
      %v255 = vld [vmem:[%s219 + $0x52] sm:$0xff]
      %v256 = vld [vmem:[%s219 + $0x62] sm:$0xff]
      %v257 = vld [vmem:[%s219 + $0x72] sm:$0xff]
      %v258 = vld [vmem:[%s219 + $0x82] sm:$0xff]
      %v259 = vld [vmem:[%s219 + $0x92] sm:$0xff]
      %v260 = vlaneseq
      %v261 = vshrl.u32 %v260, 7
      %v262 = vsub.s32 0, %v261
      %v263 = vrot.slane %v226, %v262
      %v264 = vmul.f32 %v230, %v263
      %v265 = vmul.f32 %v231, %v263
      %v266 = vmul.f32 %v232, %v263
      %v267 = vmul.f32 %v233, %v263
      %v268 = vmul.f32 %v234, %v263
      %v269 = vmul.f32 %v235, %v263
      %v270 = vmul.f32 %v236, %v263
      %v271 = vmul.f32 %v237, %v263
      %v272 = vadd.f32 %v264, 0.0
      %v273 = vadd.f32 %v265, 0.0
      %v274 = vadd.f32 %v266, 0.0
      %v275 = vadd.f32 %v267, 0.0
      %v276 = vadd.f32 %v268, 0.0
      %v277 = vadd.f32 %v269, 0.0
      %v278 = vadd.f32 %v270, 0.0
      %v279 = vadd.f32 %v271, 0.0
      %v280 = vlaneseq
      %v281 = vshrl.u32 %v280, 7
      %v282 = vsub.s32 1, %v281
      %v283 = vrot.slane %v226, %v282
      %v284 = vmul.f32 %v240, %v283
      %v285 = vmul.f32 %v241, %v283
      %v286 = vmul.f32 %v242, %v283
      %v287 = vmul.f32 %v243, %v283
      %v288 = vmul.f32 %v244, %v283
      %v289 = vmul.f32 %v245, %v283
      %v290 = vmul.f32 %v246, %v283
      %v291 = vmul.f32 %v247, %v283
      %v292 = vadd.f32 %v272, %v284
      %v293 = vadd.f32 %v273, %v285
      %v294 = vadd.f32 %v274, %v286
      %v295 = vadd.f32 %v275, %v287
      %v296 = vadd.f32 %v276, %v288
      %v297 = vadd.f32 %v277, %v289
      %v298 = vadd.f32 %v278, %v290
      %v299 = vadd.f32 %v279, %v291
      %v300 = vlaneseq
      %v301 = vshrl.u32 %v300, 7
      %v302 = vsub.s32 2, %v301
      %v303 = vrot.slane %v226, %v302
      %v304 = vmul.f32 %v250, %v303
      %v305 = vmul.f32 %v251, %v303
      %v306 = vmul.f32 %v252, %v303
      %v307 = vmul.f32 %v253, %v303
      %v308 = vmul.f32 %v254, %v303
      %v309 = vmul.f32 %v255, %v303
      %v310 = vmul.f32 %v256, %v303
      %v311 = vmul.f32 %v257, %v303
      %v312 = vadd.f32 %v292, %v304
      %v313 = vadd.f32 %v293, %v305
      %v314 = vadd.f32 %v294, %v306
      %v315 = vadd.f32 %v295, %v307
      %v316 = vadd.f32 %v296, %v308
      %v317 = vadd.f32 %v297, %v309
      %v318 = vadd.f32 %v298, %v310
      %v319 = vadd.f32 %v299, %v311
      %v320 = vlaneseq
      %v321 = vshrl.u32 %v320, 7
      %v322 = vsub.s32 3, %v321
      %v323 = vrot.slane %v226, %v322
      %v324 = vmul.f32 %v231, %v323
      %v325 = vmul.f32 %v232, %v323
      %v326 = vmul.f32 %v233, %v323
      %v327 = vmul.f32 %v234, %v323
      %v328 = vmul.f32 %v235, %v323
      %v329 = vmul.f32 %v236, %v323
      %v330 = vmul.f32 %v237, %v323
      %v331 = vmul.f32 %v238, %v323
      %v332 = vadd.f32 %v312, %v324
      %v333 = vadd.f32 %v313, %v325
      %v334 = vadd.f32 %v314, %v326
      %v335 = vadd.f32 %v315, %v327
      %v336 = vadd.f32 %v316, %v328
      %v337 = vadd.f32 %v317, %v329
      %v338 = vadd.f32 %v318, %v330
      %v339 = vadd.f32 %v319, %v331
      %v340 = vlaneseq
      %v341 = vshrl.u32 %v340, 7
      %v342 = vsub.s32 4, %v341
      %v343 = vrot.slane %v226, %v342
      %v344 = vmul.f32 %v241, %v343
      %v345 = vmul.f32 %v242, %v343
      %v346 = vmul.f32 %v243, %v343
      %v347 = vmul.f32 %v244, %v343
      %v348 = vmul.f32 %v245, %v343
      %v349 = vmul.f32 %v246, %v343
      %v350 = vmul.f32 %v247, %v343
      %v351 = vmul.f32 %v248, %v343
      %v352 = vadd.f32 %v332, %v344
      %v353 = vadd.f32 %v333, %v345
      %v354 = vadd.f32 %v334, %v346
      %v355 = vadd.f32 %v335, %v347
      %v356 = vadd.f32 %v336, %v348
      %v357 = vadd.f32 %v337, %v349
      %v358 = vadd.f32 %v338, %v350
      %v359 = vadd.f32 %v339, %v351
      %v360 = vlaneseq
      %v361 = vshrl.u32 %v360, 7
      %v362 = vsub.s32 5, %v361
      %v363 = vrot.slane %v226, %v362
      %v364 = vmul.f32 %v251, %v363
      %v365 = vmul.f32 %v252, %v363
      %v366 = vmul.f32 %v253, %v363
      %v367 = vmul.f32 %v254, %v363
      %v368 = vmul.f32 %v255, %v363
      %v369 = vmul.f32 %v256, %v363
      %v370 = vmul.f32 %v257, %v363
      %v371 = vmul.f32 %v258, %v363
      %v372 = vadd.f32 %v352, %v364
      %v373 = vadd.f32 %v353, %v365
      %v374 = vadd.f32 %v354, %v366
      %v375 = vadd.f32 %v355, %v367
      %v376 = vadd.f32 %v356, %v368
      %v377 = vadd.f32 %v357, %v369
      %v378 = vadd.f32 %v358, %v370
      %v379 = vadd.f32 %v359, %v371
      %v380 = vlaneseq
      %v381 = vshrl.u32 %v380, 7
      %v382 = vsub.s32 6, %v381
      %v383 = vrot.slane %v226, %v382
      %v384 = vmul.f32 %v232, %v383
      %v385 = vmul.f32 %v233, %v383
      %v386 = vmul.f32 %v234, %v383
      %v387 = vmul.f32 %v235, %v383
      %v388 = vmul.f32 %v236, %v383
      %v389 = vmul.f32 %v237, %v383
      %v390 = vmul.f32 %v238, %v383
      %v391 = vmul.f32 %v239, %v383
      %v392 = vadd.f32 %v372, %v384
      %v393 = vadd.f32 %v373, %v385
      %v394 = vadd.f32 %v374, %v386
      %v395 = vadd.f32 %v375, %v387
      %v396 = vadd.f32 %v376, %v388
      %v397 = vadd.f32 %v377, %v389
      %v398 = vadd.f32 %v378, %v390
      %v399 = vadd.f32 %v379, %v391
      %v400 = vlaneseq
      %v401 = vshrl.u32 %v400, 7
      %v402 = vsub.s32 7, %v401
      %v403 = vrot.slane %v226, %v402
      %v404 = vmul.f32 %v242, %v403
      %v405 = vmul.f32 %v243, %v403
      %v406 = vmul.f32 %v244, %v403
      %v407 = vmul.f32 %v245, %v403
      %v408 = vmul.f32 %v246, %v403
      %v409 = vmul.f32 %v247, %v403
      %v410 = vmul.f32 %v248, %v403
      %v411 = vmul.f32 %v249, %v403
      %v412 = vadd.f32 %v392, %v404
      %v413 = vadd.f32 %v393, %v405
      %v414 = vadd.f32 %v394, %v406
      %v415 = vadd.f32 %v395, %v407
      %v416 = vadd.f32 %v396, %v408
      %v417 = vadd.f32 %v397, %v409
      %v418 = vadd.f32 %v398, %v410
      %v419 = vadd.f32 %v399, %v411
      %v420 = vlaneseq
      %v421 = vshrl.u32 %v420, 7
      %v422 = vsub.s32 0, %v421
      %v423 = vrot.slane %v227, %v422
      %v424 = vmul.f32 %v252, %v423
      %v425 = vmul.f32 %v253, %v423
      %v426 = vmul.f32 %v254, %v423
      %v427 = vmul.f32 %v255, %v423
      %v428 = vmul.f32 %v256, %v423
      %v429 = vmul.f32 %v257, %v423
      %v430 = vmul.f32 %v258, %v423
      %v431 = vmul.f32 %v259, %v423
      %v432 = vadd.f32 %v412, %v424
      %v433 = vadd.f32 %v413, %v425
      %v434 = vadd.f32 %v414, %v426
      %v435 = vadd.f32 %v415, %v427
      %v436 = vadd.f32 %v416, %v428
      %v437 = vadd.f32 %v417, %v429
      %v438 = vadd.f32 %v418, %v430
      %v439 = vadd.f32 %v419, %v431
      %v441 = vlaneseq
      %v442 = vshrl.u32 %v441, 7
      %v443 = vsub.s32 0, %v442
      %v444 = vrot.slane %v228, %v443
      %v446 = vadd.f32 %v432, %v444
      %v447 = vadd.f32 %v433, %v444
      %v448 = vadd.f32 %v434, %v444
      %v449 = vadd.f32 %v435, %v444
      %v450 = vadd.f32 %v436, %v444
      %v451 = vadd.f32 %v437, %v444
      %v452 = vadd.f32 %v438, %v444
      %v453 = vadd.f32 %v439, %v444
      %v454 = vpack.c.bf16 %v447, %v446
      %v455 = vpack.c.bf16 %v449, %v448
      %v456 = vpack.c.bf16 %v451, %v450
      %v457 = vpack.c.bf16 %v453, %v452
      %v458 = vld [vmem:[%s3] sm:$0xff]
      %v459 = vld [vmem:[%s3 + $0x8] sm:$0xff]
      %v460 = vpack.c.bf16 %v459, %v458
      %v462 = vlaneseq
      %v463 = vshrl.u32 %v462, 7
      %v464 = vsub.s32 0, %v463
      %v465 = vrot.slane %v229, %v464
      %vm467 = vcmask 130048
      %v469 = vsel %vm467, %v454, 0
      %v472 = vsel %vm467, %v455, 0
      %v475 = vsel %vm467, %v456, 0
      %v478 = vsel %vm467, %v457, 0
      %480 = vmatprep.subr.bf16.mxu0 0
      %481 = vmatpush1.bf16.msra.mxu0 %v460
      %482 = vmatprep.subr.bf16.mxu0 0
      %483 = vmatpush1.bf16.msra.mxu0 0
      %484 = vmatprep.subr.bf16.mxu0 0
      %485 = vmatpush1.bf16.msra.mxu0 0
      %486 = vmatprep.subr.bf16.mxu0 0
      %487 = vmatpush1.bf16.msra.mxu0 0
      %488 = vmatprep.subr.bf16.mxu0 0
      %489 = vmatpush1.bf16.msra.mxu0 0
      %490 = vmatprep.subr.bf16.mxu0 0
      %491 = vmatpush1.bf16.msra.mxu0 0
      %492 = vmatprep.subr.bf16.mxu0 0
      %493 = vmatpush1.bf16.msra.mxu0 0
      %494 = vmatprep.subr.bf16.mxu0 0
      %495 = vmatpush1.bf16.msra.mxu0 0
      %496 = vmatprep.subr.bf16.mxu0 0
      %497 = vmatpush1.bf16.msra.mxu0 0
      %498 = vmatprep.subr.bf16.mxu0 0
      %499 = vmatpush1.bf16.msra.mxu0 0
      %500 = vmatprep.subr.bf16.mxu0 0
      %501 = vmatpush1.bf16.msra.mxu0 0
      %502 = vmatprep.subr.bf16.mxu0 0
      %503 = vmatpush1.bf16.msra.mxu0 0
      %504 = vmatprep.subr.bf16.mxu0 0
      %505 = vmatpush1.bf16.msra.mxu0 0
      %506 = vmatprep.subr.bf16.mxu0 0
      %507 = vmatpush1.bf16.msra.mxu0 0
      %508 = vmatprep.subr.bf16.mxu0 0
      %509 = vmatpush1.bf16.msra.mxu0 0
      %510 = vmatprep.subr.bf16.mxu0 0
      %511 = vmatpush1.bf16.msra.mxu0 0
      %512 = vmatprep.mubr.bf16.mxu0 0
      %513 = vmatmul.mubr.bf16.gmra.mrb[0].mxu0 %v469
      %v514 = vpop.f32.mrb[0].mxu0
      %v515 = vadd.f32 %v465, %v514
      %v516 = vpop.f32.mrb[0].mxu0
      %v517 = vpop.f32.mrb[0].mxu0
      %v518 = vadd.f32 %v465, %v517
      %v519 = vpop.f32.mrb[0].mxu0
      %520 = vmatprep.mubr.bf16.mxu0 0
      %521 = vmatmul.mubr.bf16.gmra.mrb[0].mxu0 %v472
      %v522 = vpop.f32.mrb[0].mxu0
      %v523 = vadd.f32 %v465, %v522
      %v524 = vpop.f32.mrb[0].mxu0
      %v525 = vpop.f32.mrb[0].mxu0
      %v526 = vadd.f32 %v465, %v525
      %v527 = vpop.f32.mrb[0].mxu0
      %528 = vmatprep.mubr.bf16.mxu0 0
      %529 = vmatmul.mubr.bf16.gmra.mrb[0].mxu0 %v475
      %v530 = vpop.f32.mrb[0].mxu0
      %v531 = vadd.f32 %v465, %v530
      %v532 = vpop.f32.mrb[0].mxu0
      %v533 = vpop.f32.mrb[0].mxu0
      %v534 = vadd.f32 %v465, %v533
      %v535 = vpop.f32.mrb[0].mxu0
      %536 = vmatprep.mubr.bf16.mxu0 0
      %537 = vmatmul.mubr.bf16.gmra.mrb[0].mxu0 %v478
      %v538 = vpop.f32.mrb[0].mxu0
      %v539 = vadd.f32 %v465, %v538
      %v540 = vpop.f32.mrb[0].mxu0
      %v541 = vpop.f32.mrb[0].mxu0
      %v542 = vadd.f32 %v465, %v541
      %v543 = vpop.f32.mrb[0].mxu0
      %544 = vdwg.mxu0
      %545 = vst.msk [vmem:[%s224] sm:$0xff] %vm467, %v515
      %546 = vst.msk [vmem:[%s224 + $0x8] sm:$0xff] %vm467, %v518
      %547 = vst.msk [vmem:[%s224 + $0x10] sm:$0xff] %vm467, %v523
      %548 = vst.msk [vmem:[%s224 + $0x18] sm:$0xff] %vm467, %v526
      %549 = vst.msk [vmem:[%s224 + $0x20] sm:$0xff] %vm467, %v531
      %550 = vst.msk [vmem:[%s224 + $0x28] sm:$0xff] %vm467, %v534
      %551 = vst.msk [vmem:[%s224 + $0x30] sm:$0xff] %vm467, %v539
      %552 = vst.msk [vmem:[%s224 + $0x38] sm:$0xff] %vm467, %v542
      %p553 = scmp.lt.s32.totalorder %s16, 1
      %s554 = scalar_select %p553, %s16, 1
      %s555 = smul.addr %s554, 8
      %s556 = smul.addr %s555, 8
      %s557 = scalar_lea.vmem %s5, %s556
      // Predicated region
      $region41: #{fc_hilo1_forward.12} parent=39 // pred_check
        %p558 = pneg %p144
      $region42: #{fc_hilo1_forward.12} parent=39 // pred_check_branch
        %560 = sbr.rel (%p558) target = $region44
      $region43: #{fc_hilo1_forward.12} parent=39 // pred_region
        _
      $region44: #{fc_hilo1_forward.12} parent=39 // pred_fallthru
        _
    $region40: #{fc_hilo1_forward.12} parent=5 // pred_fallthru
      _
    %p561 = scmp.le.s32.totalorder 2, %s11
    // Predicated region
    $region45: #{fc_hilo1_forward.12} parent=5 // pred_check
      %p562 = pneg %p561
    $region46: #{fc_hilo1_forward.12} parent=5 // pred_check_branch
      %564 = sbr.rel (%p562) target = $region48
    $region47: #{fc_hilo1_forward.12} parent=5 // pred_region
      %s565 = ssub.s32 %s11, 2
      // Predicated region
      $region49: #{fc_hilo1_forward.12} parent=47 // pred_check
        %p566 = pneg %p150
      $region50: #{fc_hilo1_forward.12} parent=47 // pred_check_branch
        %568 = sbr.rel (%p566) target = $region52
      $region51: #{fc_hilo1_forward.12} parent=47 // pred_region
        %p569 = scmp.lt.s32.totalorder %s17, 1
        %s570 = scalar_select %p569, %s17, 1
        %s571 = smul.addr %s570, 8
        %s572 = smul.addr %s571, 8
        %s573 = scalar_lea.vmem %s5, %s572
      $region52: #{fc_hilo1_forward.12} parent=47 // pred_fallthru
        _
    $region48: #{fc_hilo1_forward.12} parent=5 // pred_fallthru
      _
  $region6: #{fc_hilo1_forward.12} parent=0 // loop_footer
    %s15 = sadd.s32 1, %s11
  $region7: #{fc_hilo1_forward.12} parent=0 // loop_footer_branch
    %10 = sbr.rel target = $region3
  $region8: #{fc_hilo1_forward.12} parent=0 // loop_exit
    _

// kernel: squeeze.5
$region0: #{squeeze.5}
  %s0 = inlined_call_operand.vmem [shape: f32[1,2,2,4,2,4,4,4], index: 0, kind: input, shape index: {}]
  %s1 = inlined_call_operand.vmem [shape: f32[4,4,128], index: 1, kind: output, shape index: {}]
  $region1: #{squeeze.5} parent=0
    #allocation0 [shape = 'u8[16384]{0}', space=vmem, size = 0x4000, scoped, tag = 'scoped mem for output reshape']
    #allocation1 [shape = 'u8[524288]{0}', space=vmem, size = 0x80000, scoped, tag = 'scoped mem for input reshape']
    %s3 = sshllo.u32 0, 4
    %s4 = smul.addr 4, 127
    %s5 = scalar_lea.vmem %s0, %s4
    %v6 = vld [vmem:[%s5] sm:%s3]
    %s7 = scalar_lea.vmem [#allocation1], 1016
    %8 = vst [vmem:[%s7] sm:%s3] %v6
    %s9 = smul.addr 4, 126
    %s10 = scalar_lea.vmem %s0, %s9
    %v11 = vld [vmem:[%s10] sm:%s3]
    %s12 = scalar_lea.vmem [#allocation1], 1008
    %13 = vst [vmem:[%s12] sm:%s3] %v11
    %s14 = smul.addr 4, 125
    %s15 = scalar_lea.vmem %s0, %s14
    %v16 = vld [vmem:[%s15] sm:%s3]
    %s17 = scalar_lea.vmem [#allocation1], 1000
    %18 = vst [vmem:[%s17] sm:%s3] %v16
    %s19 = smul.addr 4, 124
    %s20 = scalar_lea.vmem %s0, %s19
    %v21 = vld [vmem:[%s20] sm:%s3]
    %s22 = scalar_lea.vmem [#allocation1], 992
    %23 = vst [vmem:[%s22] sm:%s3] %v21
    %s24 = smul.addr 4, 123
    %s25 = scalar_lea.vmem %s0, %s24
    %v26 = vld [vmem:[%s25] sm:%s3]
    %s27 = scalar_lea.vmem [#allocation1], 984
    %28 = vst [vmem:[%s27] sm:%s3] %v26
    %s29 = smul.addr 4, 122
    %s30 = scalar_lea.vmem %s0, %s29
    %v31 = vld [vmem:[%s30] sm:%s3]
    %s32 = scalar_lea.vmem [#allocation1], 976
    %33 = vst [vmem:[%s32] sm:%s3] %v31
    %s34 = smul.addr 4, 121
    %s35 = scalar_lea.vmem %s0, %s34
    %v36 = vld [vmem:[%s35] sm:%s3]
    %s37 = scalar_lea.vmem [#allocation1], 968
    %38 = vst [vmem:[%s37] sm:%s3] %v36
    %s39 = smul.addr 4, 120
    %s40 = scalar_lea.vmem %s0, %s39
    %v41 = vld [vmem:[%s40] sm:%s3]
    %s42 = scalar_lea.vmem [#allocation1], 960
    %43 = vst [vmem:[%s42] sm:%s3] %v41
    %s44 = smul.addr 4, 119
    %s45 = scalar_lea.vmem %s0, %s44
    %v46 = vld [vmem:[%s45] sm:%s3]
    %s47 = scalar_lea.vmem [#allocation1], 952
    %48 = vst [vmem:[%s47] sm:%s3] %v46
    %s49 = smul.addr 4, 118
    %s50 = scalar_lea.vmem %s0, %s49
    %v51 = vld [vmem:[%s50] sm:%s3]
    %s52 = scalar_lea.vmem [#allocation1], 944
    %53 = vst [vmem:[%s52] sm:%s3] %v51
    %s54 = smul.addr 4, 117
    %s55 = scalar_lea.vmem %s0, %s54
    %v56 = vld [vmem:[%s55] sm:%s3]
    %s57 = scalar_lea.vmem [#allocation1], 936
    %58 = vst [vmem:[%s57] sm:%s3] %v56
    %s59 = smul.addr 4, 116
    %s60 = scalar_lea.vmem %s0, %s59
    %v61 = vld [vmem:[%s60] sm:%s3]
    %s62 = scalar_lea.vmem [#allocation1], 928
    %63 = vst [vmem:[%s62] sm:%s3] %v61
    %s64 = smul.addr 4, 115
    %s65 = scalar_lea.vmem %s0, %s64
    %v66 = vld [vmem:[%s65] sm:%s3]
    %s67 = scalar_lea.vmem [#allocation1], 920
    %68 = vst [vmem:[%s67] sm:%s3] %v66
    %s69 = smul.addr 4, 114
    %s70 = scalar_lea.vmem %s0, %s69
    %v71 = vld [vmem:[%s70] sm:%s3]
    %s72 = scalar_lea.vmem [#allocation1], 912
    %73 = vst [vmem:[%s72] sm:%s3] %v71
    %s74 = smul.addr 4, 113
    %s75 = scalar_lea.vmem %s0, %s74
    %v76 = vld [vmem:[%s75] sm:%s3]
    %s77 = scalar_lea.vmem [#allocation1], 904
    %78 = vst [vmem:[%s77] sm:%s3] %v76
    %s79 = smul.addr 4, 112
    %s80 = scalar_lea.vmem %s0, %s79
    %v81 = vld [vmem:[%s80] sm:%s3]
    %s82 = scalar_lea.vmem [#allocation1], 896
    %83 = vst [vmem:[%s82] sm:%s3] %v81
    %s84 = smul.addr 4, 111
    %s85 = scalar_lea.vmem %s0, %s84
    %v86 = vld [vmem:[%s85] sm:%s3]
    %s87 = scalar_lea.vmem [#allocation1], 888
    %88 = vst [vmem:[%s87] sm:%s3] %v86
    %s89 = smul.addr 4, 110
    %s90 = scalar_lea.vmem %s0, %s89
    %v91 = vld [vmem:[%s90] sm:%s3]
    %s92 = scalar_lea.vmem [#allocation1], 880
    %93 = vst [vmem:[%s92] sm:%s3] %v91
    %s94 = smul.addr 4, 109
    %s95 = scalar_lea.vmem %s0, %s94
    %v96 = vld [vmem:[%s95] sm:%s3]
    %s97 = scalar_lea.vmem [#allocation1], 872
    %98 = vst [vmem:[%s97] sm:%s3] %v96
    %s99 = smul.addr 4, 108
    %s100 = scalar_lea.vmem %s0, %s99
    %v101 = vld [vmem:[%s100] sm:%s3]
    %s102 = scalar_lea.vmem [#allocation1], 864
    %103 = vst [vmem:[%s102] sm:%s3] %v101
    %s104 = smul.addr 4, 107
    %s105 = scalar_lea.vmem %s0, %s104
    %v106 = vld [vmem:[%s105] sm:%s3]
    %s107 = scalar_lea.vmem [#allocation1], 856
    %108 = vst [vmem:[%s107] sm:%s3] %v106
    %s109 = smul.addr 4, 106
    %s110 = scalar_lea.vmem %s0, %s109
    %v111 = vld [vmem:[%s110] sm:%s3]
    %s112 = scalar_lea.vmem [#allocation1], 848
    %113 = vst [vmem:[%s112] sm:%s3] %v111
    %s114 = smul.addr 4, 105
    %s115 = scalar_lea.vmem %s0, %s114
    %v116 = vld [vmem:[%s115] sm:%s3]
    %s117 = scalar_lea.vmem [#allocation1], 840
    %118 = vst [vmem:[%s117] sm:%s3] %v116
    %s119 = smul.addr 4, 104
    %s120 = scalar_lea.vmem %s0, %s119
    %v121 = vld [vmem:[%s120] sm:%s3]
    %s122 = scalar_lea.vmem [#allocation1], 832
    %123 = vst [vmem:[%s122] sm:%s3] %v121
    %s124 = smul.addr 4, 103
    %s125 = scalar_lea.vmem %s0, %s124
    %v126 = vld [vmem:[%s125] sm:%s3]
    %s127 = scalar_lea.vmem [#allocation1], 824
    %128 = vst [vmem:[%s127] sm:%s3] %v126
    %s129 = smul.addr 4, 102
    %s130 = scalar_lea.vmem %s0, %s129
    %v131 = vld [vmem:[%s130] sm:%s3]
    %s132 = scalar_lea.vmem [#allocation1], 816
    %133 = vst [vmem:[%s132] sm:%s3] %v131
    %s134 = smul.addr 4, 101
    %s135 = scalar_lea.vmem %s0, %s134
    %v136 = vld [vmem:[%s135] sm:%s3]
    %s137 = scalar_lea.vmem [#allocation1], 808
    %138 = vst [vmem:[%s137] sm:%s3] %v136
    %s139 = smul.addr 4, 100
    %s140 = scalar_lea.vmem %s0, %s139
    %v141 = vld [vmem:[%s140] sm:%s3]
    %s142 = scalar_lea.vmem [#allocation1], 800
    %143 = vst [vmem:[%s142] sm:%s3] %v141
    %s144 = smul.addr 4, 99
    %s145 = scalar_lea.vmem %s0, %s144
    %v146 = vld [vmem:[%s145] sm:%s3]
    %s147 = scalar_lea.vmem [#allocation1], 792
    %148 = vst [vmem:[%s147] sm:%s3] %v146
    %s149 = smul.addr 4, 98
    %s150 = scalar_lea.vmem %s0, %s149
    %v151 = vld [vmem:[%s150] sm:%s3]
    %s152 = scalar_lea.vmem [#allocation1], 784
    %153 = vst [vmem:[%s152] sm:%s3] %v151
    %s154 = smul.addr 4, 97
    %s155 = scalar_lea.vmem %s0, %s154
    %v156 = vld [vmem:[%s155] sm:%s3]
    %s157 = scalar_lea.vmem [#allocation1], 776
    %158 = vst [vmem:[%s157] sm:%s3] %v156
    %s159 = smul.addr 4, 96
    %s160 = scalar_lea.vmem %s0, %s159
    %v161 = vld [vmem:[%s160] sm:%s3]
    %s162 = scalar_lea.vmem [#allocation1], 768
    %163 = vst [vmem:[%s162] sm:%s3] %v161
    %s164 = smul.addr 4, 95
    %s165 = scalar_lea.vmem %s0, %s164
    %v166 = vld [vmem:[%s165] sm:%s3]
    %s167 = scalar_lea.vmem [#allocation1], 760
    %168 = vst [vmem:[%s167] sm:%s3] %v166
    %s169 = smul.addr 4, 94
    %s170 = scalar_lea.vmem %s0, %s169
    %v171 = vld [vmem:[%s170] sm:%s3]
    %s172 = scalar_lea.vmem [#allocation1], 752
    %173 = vst [vmem:[%s172] sm:%s3] %v171
    %s174 = smul.addr 4, 93
    %s175 = scalar_lea.vmem %s0, %s174
    %v176 = vld [vmem:[%s175] sm:%s3]
    %s177 = scalar_lea.vmem [#allocation1], 744
    %178 = vst [vmem:[%s177] sm:%s3] %v176
    %s179 = smul.addr 4, 92
    %s180 = scalar_lea.vmem %s0, %s179
    %v181 = vld [vmem:[%s180] sm:%s3]
    %s182 = scalar_lea.vmem [#allocation1], 736
    %183 = vst [vmem:[%s182] sm:%s3] %v181
    %s184 = smul.addr 4, 91
    %s185 = scalar_lea.vmem %s0, %s184
    %v186 = vld [vmem:[%s185] sm:%s3]
    %s187 = scalar_lea.vmem [#allocation1], 728
    %188 = vst [vmem:[%s187] sm:%s3] %v186
    %s189 = smul.addr 4, 90
    %s190 = scalar_lea.vmem %s0, %s189
    %v191 = vld [vmem:[%s190] sm:%s3]
    %s192 = scalar_lea.vmem [#allocation1], 720
    %193 = vst [vmem:[%s192] sm:%s3] %v191
    %s194 = smul.addr 4, 89
    %s195 = scalar_lea.vmem %s0, %s194
    %v196 = vld [vmem:[%s195] sm:%s3]
    %s197 = scalar_lea.vmem [#allocation1], 712
    %198 = vst [vmem:[%s197] sm:%s3] %v196
    %s199 = smul.addr 4, 88
    %s200 = scalar_lea.vmem %s0, %s199
    %v201 = vld [vmem:[%s200] sm:%s3]
    %s202 = scalar_lea.vmem [#allocation1], 704
    %203 = vst [vmem:[%s202] sm:%s3] %v201
    %s204 = smul.addr 4, 87
    %s205 = scalar_lea.vmem %s0, %s204
    %v206 = vld [vmem:[%s205] sm:%s3]
    %s207 = scalar_lea.vmem [#allocation1], 696
    %208 = vst [vmem:[%s207] sm:%s3] %v206
    %s209 = smul.addr 4, 86
    %s210 = scalar_lea.vmem %s0, %s209
    %v211 = vld [vmem:[%s210] sm:%s3]
    %s212 = scalar_lea.vmem [#allocation1], 688
    %213 = vst [vmem:[%s212] sm:%s3] %v211
    %s214 = smul.addr 4, 85
    %s215 = scalar_lea.vmem %s0, %s214
    %v216 = vld [vmem:[%s215] sm:%s3]
    %s217 = scalar_lea.vmem [#allocation1], 680
    %218 = vst [vmem:[%s217] sm:%s3] %v216
    %s219 = smul.addr 4, 84
    %s220 = scalar_lea.vmem %s0, %s219
    %v221 = vld [vmem:[%s220] sm:%s3]
    %s222 = scalar_lea.vmem [#allocation1], 672
    %223 = vst [vmem:[%s222] sm:%s3] %v221
    %s224 = smul.addr 4, 83
    %s225 = scalar_lea.vmem %s0, %s224
    %v226 = vld [vmem:[%s225] sm:%s3]
    %s227 = scalar_lea.vmem [#allocation1], 664
    %228 = vst [vmem:[%s227] sm:%s3] %v226
    %s229 = smul.addr 4, 82
    %s230 = scalar_lea.vmem %s0, %s229
    %v231 = vld [vmem:[%s230] sm:%s3]
    %s232 = scalar_lea.vmem [#allocation1], 656
    %233 = vst [vmem:[%s232] sm:%s3] %v231
    %s234 = smul.addr 4, 81
    %s235 = scalar_lea.vmem %s0, %s234
    %v236 = vld [vmem:[%s235] sm:%s3]
    %s237 = scalar_lea.vmem [#allocation1], 648
    %238 = vst [vmem:[%s237] sm:%s3] %v236
    %s239 = smul.addr 4, 80
    %s240 = scalar_lea.vmem %s0, %s239
    %v241 = vld [vmem:[%s240] sm:%s3]
    %s242 = scalar_lea.vmem [#allocation1], 640
    %243 = vst [vmem:[%s242] sm:%s3] %v241
    %s244 = smul.addr 4, 79
    %s245 = scalar_lea.vmem %s0, %s244
    %v246 = vld [vmem:[%s245] sm:%s3]
    %s247 = scalar_lea.vmem [#allocation1], 632
    %248 = vst [vmem:[%s247] sm:%s3] %v246
    %s249 = smul.addr 4, 78
    %s250 = scalar_lea.vmem %s0, %s249
    %v251 = vld [vmem:[%s250] sm:%s3]
    %s252 = scalar_lea.vmem [#allocation1], 624
    %253 = vst [vmem:[%s252] sm:%s3] %v251
    %s254 = smul.addr 4, 77
    %s255 = scalar_lea.vmem %s0, %s254
    %v256 = vld [vmem:[%s255] sm:%s3]
    %s257 = scalar_lea.vmem [#allocation1], 616
    %258 = vst [vmem:[%s257] sm:%s3] %v256
    %s259 = smul.addr 4, 76
    %s260 = scalar_lea.vmem %s0, %s259
    %v261 = vld [vmem:[%s260] sm:%s3]
    %s262 = scalar_lea.vmem [#allocation1], 608
    %263 = vst [vmem:[%s262] sm:%s3] %v261
    %s264 = smul.addr 4, 75
    %s265 = scalar_lea.vmem %s0, %s264
    %v266 = vld [vmem:[%s265] sm:%s3]
    %s267 = scalar_lea.vmem [#allocation1], 600
    %268 = vst [vmem:[%s267] sm:%s3] %v266
    %s269 = smul.addr 4, 74
    %s270 = scalar_lea.vmem %s0, %s269
    %v271 = vld [vmem:[%s270] sm:%s3]
    %s272 = scalar_lea.vmem [#allocation1], 592
    %273 = vst [vmem:[%s272] sm:%s3] %v271
    %s274 = smul.addr 4, 73
    %s275 = scalar_lea.vmem %s0, %s274
    %v276 = vld [vmem:[%s275] sm:%s3]
    %s277 = scalar_lea.vmem [#allocation1], 584
    %278 = vst [vmem:[%s277] sm:%s3] %v276
    %s279 = smul.addr 4, 72
    %s280 = scalar_lea.vmem %s0, %s279
    %v281 = vld [vmem:[%s280] sm:%s3]
    %s282 = scalar_lea.vmem [#allocation1], 576
    %283 = vst [vmem:[%s282] sm:%s3] %v281
    %s284 = smul.addr 4, 71
    %s285 = scalar_lea.vmem %s0, %s284
    %v286 = vld [vmem:[%s285] sm:%s3]
    %s287 = scalar_lea.vmem [#allocation1], 568
    %288 = vst [vmem:[%s287] sm:%s3] %v286
    %s289 = smul.addr 4, 70
    %s290 = scalar_lea.vmem %s0, %s289
    %v291 = vld [vmem:[%s290] sm:%s3]
    %s292 = scalar_lea.vmem [#allocation1], 560
    %293 = vst [vmem:[%s292] sm:%s3] %v291
    %s294 = smul.addr 4, 69
    %s295 = scalar_lea.vmem %s0, %s294
    %v296 = vld [vmem:[%s295] sm:%s3]
    %s297 = scalar_lea.vmem [#allocation1], 552
    %298 = vst [vmem:[%s297] sm:%s3] %v296
    %s299 = smul.addr 4, 68
    %s300 = scalar_lea.vmem %s0, %s299
    %v301 = vld [vmem:[%s300] sm:%s3]
    %s302 = scalar_lea.vmem [#allocation1], 544
    %303 = vst [vmem:[%s302] sm:%s3] %v301
    %s304 = smul.addr 4, 67
    %s305 = scalar_lea.vmem %s0, %s304
    %v306 = vld [vmem:[%s305] sm:%s3]
    %s307 = scalar_lea.vmem [#allocation1], 536
    %308 = vst [vmem:[%s307] sm:%s3] %v306
    %s309 = smul.addr 4, 66
    %s310 = scalar_lea.vmem %s0, %s309
    %v311 = vld [vmem:[%s310] sm:%s3]
    %s312 = scalar_lea.vmem [#allocation1], 528
    %313 = vst [vmem:[%s312] sm:%s3] %v311
    %s314 = smul.addr 4, 65
    %s315 = scalar_lea.vmem %s0, %s314
    %v316 = vld [vmem:[%s315] sm:%s3]
    %s317 = scalar_lea.vmem [#allocation1], 520
    %318 = vst [vmem:[%s317] sm:%s3] %v316
    %s319 = smul.addr 4, 64
    %s320 = scalar_lea.vmem %s0, %s319
    %v321 = vld [vmem:[%s320] sm:%s3]
    %s322 = scalar_lea.vmem [#allocation1], 512
    %323 = vst [vmem:[%s322] sm:%s3] %v321
    %s324 = smul.addr 4, 63
    %s325 = scalar_lea.vmem %s0, %s324
    %v326 = vld [vmem:[%s325] sm:%s3]
    %s327 = scalar_lea.vmem [#allocation1], 504
    %328 = vst [vmem:[%s327] sm:%s3] %v326
    %s329 = smul.addr 4, 62
    %s330 = scalar_lea.vmem %s0, %s329
    %v331 = vld [vmem:[%s330] sm:%s3]
    %s332 = scalar_lea.vmem [#allocation1], 496
    %333 = vst [vmem:[%s332] sm:%s3] %v331
    %s334 = smul.addr 4, 61
    %s335 = scalar_lea.vmem %s0, %s334
    %v336 = vld [vmem:[%s335] sm:%s3]
    %s337 = scalar_lea.vmem [#allocation1], 488
    %338 = vst [vmem:[%s337] sm:%s3] %v336
    %s339 = smul.addr 4, 60
    %s340 = scalar_lea.vmem %s0, %s339
    %v341 = vld [vmem:[%s340] sm:%s3]
    %s342 = scalar_lea.vmem [#allocation1], 480
    %343 = vst [vmem:[%s342] sm:%s3] %v341
    %s344 = smul.addr 4, 59
    %s345 = scalar_lea.vmem %s0, %s344
    %v346 = vld [vmem:[%s345] sm:%s3]
    %s347 = scalar_lea.vmem [#allocation1], 472
    %348 = vst [vmem:[%s347] sm:%s3] %v346
    %s349 = smul.addr 4, 58
    %s350 = scalar_lea.vmem %s0, %s349
    %v351 = vld [vmem:[%s350] sm:%s3]
    %s352 = scalar_lea.vmem [#allocation1], 464
    %353 = vst [vmem:[%s352] sm:%s3] %v351
    %s354 = smul.addr 4, 57
    %s355 = scalar_lea.vmem %s0, %s354
    %v356 = vld [vmem:[%s355] sm:%s3]
    %s357 = scalar_lea.vmem [#allocation1], 456
    %358 = vst [vmem:[%s357] sm:%s3] %v356
    %s359 = smul.addr 4, 56
    %s360 = scalar_lea.vmem %s0, %s359
    %v361 = vld [vmem:[%s360] sm:%s3]
    %s362 = scalar_lea.vmem [#allocation1], 448
    %363 = vst [vmem:[%s362] sm:%s3] %v361
    %s364 = smul.addr 4, 55
    %s365 = scalar_lea.vmem %s0, %s364
    %v366 = vld [vmem:[%s365] sm:%s3]
    %s367 = scalar_lea.vmem [#allocation1], 440
    %368 = vst [vmem:[%s367] sm:%s3] %v366
    %s369 = smul.addr 4, 54
    %s370 = scalar_lea.vmem %s0, %s369
    %v371 = vld [vmem:[%s370] sm:%s3]
    %s372 = scalar_lea.vmem [#allocation1], 432
    %373 = vst [vmem:[%s372] sm:%s3] %v371
    %s374 = smul.addr 4, 53
    %s375 = scalar_lea.vmem %s0, %s374
    %v376 = vld [vmem:[%s375] sm:%s3]
    %s377 = scalar_lea.vmem [#allocation1], 424
    %378 = vst [vmem:[%s377] sm:%s3] %v376
    %s379 = smul.addr 4, 52
    %s380 = scalar_lea.vmem %s0, %s379
    %v381 = vld [vmem:[%s380] sm:%s3]
    %s382 = scalar_lea.vmem [#allocation1], 416
    %383 = vst [vmem:[%s382] sm:%s3] %v381
    %s384 = smul.addr 4, 51
    %s385 = scalar_lea.vmem %s0, %s384
    %v386 = vld [vmem:[%s385] sm:%s3]
    %s387 = scalar_lea.vmem [#allocation1], 408
    %388 = vst [vmem:[%s387] sm:%s3] %v386
    %s389 = smul.addr 4, 50
    %s390 = scalar_lea.vmem %s0, %s389
    %v391 = vld [vmem:[%s390] sm:%s3]
    %s392 = scalar_lea.vmem [#allocation1], 400
    %393 = vst [vmem:[%s392] sm:%s3] %v391
    %s394 = smul.addr 4, 49
    %s395 = scalar_lea.vmem %s0, %s394
    %v396 = vld [vmem:[%s395] sm:%s3]
    %s397 = scalar_lea.vmem [#allocation1], 392
    %398 = vst [vmem:[%s397] sm:%s3] %v396
    %s399 = smul.addr 4, 48
    %s400 = scalar_lea.vmem %s0, %s399
    %v401 = vld [vmem:[%s400] sm:%s3]
    %s402 = scalar_lea.vmem [#allocation1], 384
    %403 = vst [vmem:[%s402] sm:%s3] %v401
    %s404 = smul.addr 4, 47
    %s405 = scalar_lea.vmem %s0, %s404
    %v406 = vld [vmem:[%s405] sm:%s3]
    %s407 = scalar_lea.vmem [#allocation1], 376
    %408 = vst [vmem:[%s407] sm:%s3] %v406
    %s409 = smul.addr 4, 46
    %s410 = scalar_lea.vmem %s0, %s409
    %v411 = vld [vmem:[%s410] sm:%s3]
    %s412 = scalar_lea.vmem [#allocation1], 368
    %413 = vst [vmem:[%s412] sm:%s3] %v411
    %s414 = smul.addr 4, 45
    %s415 = scalar_lea.vmem %s0, %s414
    %v416 = vld [vmem:[%s415] sm:%s3]
    %s417 = scalar_lea.vmem [#allocation1], 360
    %418 = vst [vmem:[%s417] sm:%s3] %v416
    %s419 = smul.addr 4, 44
    %s420 = scalar_lea.vmem %s0, %s419
    %v421 = vld [vmem:[%s420] sm:%s3]
    %s422 = scalar_lea.vmem [#allocation1], 352
    %423 = vst [vmem:[%s422] sm:%s3] %v421
    %s424 = smul.addr 4, 43
    %s425 = scalar_lea.vmem %s0, %s424
    %v426 = vld [vmem:[%s425] sm:%s3]
    %s427 = scalar_lea.vmem [#allocation1], 344
    %428 = vst [vmem:[%s427] sm:%s3] %v426
    %s429 = smul.addr 4, 42
    %s430 = scalar_lea.vmem %s0, %s429
    %v431 = vld [vmem:[%s430] sm:%s3]
    %s432 = scalar_lea.vmem [#allocation1], 336
    %433 = vst [vmem:[%s432] sm:%s3] %v431
    %s434 = smul.addr 4, 41
    %s435 = scalar_lea.vmem %s0, %s434
    %v436 = vld [vmem:[%s435] sm:%s3]
    %s437 = scalar_lea.vmem [#allocation1], 328
    %438 = vst [vmem:[%s437] sm:%s3] %v436
    %s439 = smul.addr 4, 40
    %s440 = scalar_lea.vmem %s0, %s439
    %v441 = vld [vmem:[%s440] sm:%s3]
    %s442 = scalar_lea.vmem [#allocation1], 320
    %443 = vst [vmem:[%s442] sm:%s3] %v441
    %s444 = smul.addr 4, 39
    %s445 = scalar_lea.vmem %s0, %s444
    %v446 = vld [vmem:[%s445] sm:%s3]
    %s447 = scalar_lea.vmem [#allocation1], 312
    %448 = vst [vmem:[%s447] sm:%s3] %v446
    %s449 = smul.addr 4, 38
    %s450 = scalar_lea.vmem %s0, %s449
    %v451 = vld [vmem:[%s450] sm:%s3]
    %s452 = scalar_lea.vmem [#allocation1], 304
    %453 = vst [vmem:[%s452] sm:%s3] %v451
    %s454 = smul.addr 4, 37
    %s455 = scalar_lea.vmem %s0, %s454
    %v456 = vld [vmem:[%s455] sm:%s3]
    %s457 = scalar_lea.vmem [#allocation1], 296
    %458 = vst [vmem:[%s457] sm:%s3] %v456
    %s459 = smul.addr 4, 36
    %s460 = scalar_lea.vmem %s0, %s459
    %v461 = vld [vmem:[%s460] sm:%s3]
    %s462 = scalar_lea.vmem [#allocation1], 288
    %463 = vst [vmem:[%s462] sm:%s3] %v461
    %s464 = smul.addr 4, 35
    %s465 = scalar_lea.vmem %s0, %s464
    %v466 = vld [vmem:[%s465] sm:%s3]
    %s467 = scalar_lea.vmem [#allocation1], 280
    %468 = vst [vmem:[%s467] sm:%s3] %v466
    %s469 = smul.addr 4, 34
    %s470 = scalar_lea.vmem %s0, %s469
    %v471 = vld [vmem:[%s470] sm:%s3]
    %s472 = scalar_lea.vmem [#allocation1], 272
    %473 = vst [vmem:[%s472] sm:%s3] %v471
    %s474 = smul.addr 4, 33
    %s475 = scalar_lea.vmem %s0, %s474
    %v476 = vld [vmem:[%s475] sm:%s3]
    %s477 = scalar_lea.vmem [#allocation1], 264
    %478 = vst [vmem:[%s477] sm:%s3] %v476
    %s479 = smul.addr 4, 32
    %s480 = scalar_lea.vmem %s0, %s479
    %v481 = vld [vmem:[%s480] sm:%s3]
    %s482 = scalar_lea.vmem [#allocation1], 256
    %483 = vst [vmem:[%s482] sm:%s3] %v481
    %s484 = smul.addr 4, 31
    %s485 = scalar_lea.vmem %s0, %s484
    %v486 = vld [vmem:[%s485] sm:%s3]
    %s487 = scalar_lea.vmem [#allocation1], 248
    %488 = vst [vmem:[%s487] sm:%s3] %v486
    %s489 = smul.addr 4, 30
    %s490 = scalar_lea.vmem %s0, %s489
    %v491 = vld [vmem:[%s490] sm:%s3]
    %s492 = scalar_lea.vmem [#allocation1], 240
    %493 = vst [vmem:[%s492] sm:%s3] %v491
    %s494 = smul.addr 4, 29
    %s495 = scalar_lea.vmem %s0, %s494
    %v496 = vld [vmem:[%s495] sm:%s3]
    %s497 = scalar_lea.vmem [#allocation1], 232
    %498 = vst [vmem:[%s497] sm:%s3] %v496
    %s499 = smul.addr 4, 28
    %s500 = scalar_lea.vmem %s0, %s499
    %v501 = vld [vmem:[%s500] sm:%s3]
    %s502 = scalar_lea.vmem [#allocation1], 224
    %503 = vst [vmem:[%s502] sm:%s3] %v501
    %s504 = smul.addr 4, 27
    %s505 = scalar_lea.vmem %s0, %s504
    %v506 = vld [vmem:[%s505] sm:%s3]
    %s507 = scalar_lea.vmem [#allocation1], 216
    %508 = vst [vmem:[%s507] sm:%s3] %v506
    %s509 = smul.addr 4, 26
    %s510 = scalar_lea.vmem %s0, %s509
    %v511 = vld [vmem:[%s510] sm:%s3]
    %s512 = scalar_lea.vmem [#allocation1], 208
    %513 = vst [vmem:[%s512] sm:%s3] %v511
    %s514 = smul.addr 4, 25
    %s515 = scalar_lea.vmem %s0, %s514
    %v516 = vld [vmem:[%s515] sm:%s3]
    %s517 = scalar_lea.vmem [#allocation1], 200
    %518 = vst [vmem:[%s517] sm:%s3] %v516
    %s519 = smul.addr 4, 24
    %s520 = scalar_lea.vmem %s0, %s519
    %v521 = vld [vmem:[%s520] sm:%s3]
    %s522 = scalar_lea.vmem [#allocation1], 192
    %523 = vst [vmem:[%s522] sm:%s3] %v521
    %s524 = smul.addr 4, 23
    %s525 = scalar_lea.vmem %s0, %s524
    %v526 = vld [vmem:[%s525] sm:%s3]
    %s527 = scalar_lea.vmem [#allocation1], 184
    %528 = vst [vmem:[%s527] sm:%s3] %v526
    %s529 = smul.addr 4, 22
    %s530 = scalar_lea.vmem %s0, %s529
    %v531 = vld [vmem:[%s530] sm:%s3]
    %s532 = scalar_lea.vmem [#allocation1], 176
    %533 = vst [vmem:[%s532] sm:%s3] %v531
    %s534 = smul.addr 4, 21
    %s535 = scalar_lea.vmem %s0, %s534
    %v536 = vld [vmem:[%s535] sm:%s3]
    %s537 = scalar_lea.vmem [#allocation1], 168
    %538 = vst [vmem:[%s537] sm:%s3] %v536
    %s539 = smul.addr 4, 20
    %s540 = scalar_lea.vmem %s0, %s539
    %v541 = vld [vmem:[%s540] sm:%s3]
    %s542 = scalar_lea.vmem [#allocation1], 160
    %543 = vst [vmem:[%s542] sm:%s3] %v541
    %s544 = smul.addr 4, 19
    %s545 = scalar_lea.vmem %s0, %s544
    %v546 = vld [vmem:[%s545] sm:%s3]
    %s547 = scalar_lea.vmem [#allocation1], 152
    %548 = vst [vmem:[%s547] sm:%s3] %v546
    %s549 = smul.addr 4, 18
    %s550 = scalar_lea.vmem %s0, %s549
    %v551 = vld [vmem:[%s550] sm:%s3]
    %s552 = scalar_lea.vmem [#allocation1], 144
    %553 = vst [vmem:[%s552] sm:%s3] %v551
    %s554 = smul.addr 4, 17
    %s555 = scalar_lea.vmem %s0, %s554
    %v556 = vld [vmem:[%s555] sm:%s3]
    %s557 = scalar_lea.vmem [#allocation1], 136
    %558 = vst [vmem:[%s557] sm:%s3] %v556
    %s559 = smul.addr 4, 16
    %s560 = scalar_lea.vmem %s0, %s559
    %v561 = vld [vmem:[%s560] sm:%s3]
    %s562 = scalar_lea.vmem [#allocation1], 128
    %563 = vst [vmem:[%s562] sm:%s3] %v561
    %s564 = smul.addr 4, 15
    %s565 = scalar_lea.vmem %s0, %s564
    %v566 = vld [vmem:[%s565] sm:%s3]
    %s567 = scalar_lea.vmem [#allocation1], 120
    %568 = vst [vmem:[%s567] sm:%s3] %v566
    %s569 = smul.addr 4, 14
    %s570 = scalar_lea.vmem %s0, %s569
    %v571 = vld [vmem:[%s570] sm:%s3]
    %s572 = scalar_lea.vmem [#allocation1], 112
    %573 = vst [vmem:[%s572] sm:%s3] %v571
    %s574 = smul.addr 4, 13
    %s575 = scalar_lea.vmem %s0, %s574
    %v576 = vld [vmem:[%s575] sm:%s3]
    %s577 = scalar_lea.vmem [#allocation1], 104
    %578 = vst [vmem:[%s577] sm:%s3] %v576
    %s579 = smul.addr 4, 12
    %s580 = scalar_lea.vmem %s0, %s579
    %v581 = vld [vmem:[%s580] sm:%s3]
    %s582 = scalar_lea.vmem [#allocation1], 96
    %583 = vst [vmem:[%s582] sm:%s3] %v581
    %s584 = smul.addr 4, 11
    %s585 = scalar_lea.vmem %s0, %s584
    %v586 = vld [vmem:[%s585] sm:%s3]
    %s587 = scalar_lea.vmem [#allocation1], 88
    %588 = vst [vmem:[%s587] sm:%s3] %v586
    %s589 = smul.addr 4, 10
    %s590 = scalar_lea.vmem %s0, %s589
    %v591 = vld [vmem:[%s590] sm:%s3]
    %s592 = scalar_lea.vmem [#allocation1], 80
    %593 = vst [vmem:[%s592] sm:%s3] %v591
    %s594 = smul.addr 4, 9
    %s595 = scalar_lea.vmem %s0, %s594
    %v596 = vld [vmem:[%s595] sm:%s3]
    %s597 = scalar_lea.vmem [#allocation1], 72
    %598 = vst [vmem:[%s597] sm:%s3] %v596
    %s599 = smul.addr 4, 8
    %s600 = scalar_lea.vmem %s0, %s599
    %v601 = vld [vmem:[%s600] sm:%s3]
    %s602 = scalar_lea.vmem [#allocation1], 64
    %603 = vst [vmem:[%s602] sm:%s3] %v601
    %s604 = smul.addr 4, 7
    %s605 = scalar_lea.vmem %s0, %s604
    %v606 = vld [vmem:[%s605] sm:%s3]
    %s607 = scalar_lea.vmem [#allocation1], 56
    %608 = vst [vmem:[%s607] sm:%s3] %v606
    %s609 = smul.addr 4, 6
    %s610 = scalar_lea.vmem %s0, %s609
    %v611 = vld [vmem:[%s610] sm:%s3]
    %s612 = scalar_lea.vmem [#allocation1], 48
    %613 = vst [vmem:[%s612] sm:%s3] %v611
    %s614 = smul.addr 4, 5
    %s615 = scalar_lea.vmem %s0, %s614
    %v616 = vld [vmem:[%s615] sm:%s3]
    %s617 = scalar_lea.vmem [#allocation1], 40
    %618 = vst [vmem:[%s617] sm:%s3] %v616
    %s619 = smul.addr 4, 4
    %s620 = scalar_lea.vmem %s0, %s619
    %v621 = vld [vmem:[%s620] sm:%s3]
    %s622 = scalar_lea.vmem [#allocation1], 32
    %623 = vst [vmem:[%s622] sm:%s3] %v621
    %s624 = smul.addr 4, 3
    %s625 = scalar_lea.vmem %s0, %s624
    %v626 = vld [vmem:[%s625] sm:%s3]
    %s627 = scalar_lea.vmem [#allocation1], 24
    %628 = vst [vmem:[%s627] sm:%s3] %v626
    %s629 = smul.addr 4, 2
    %s630 = scalar_lea.vmem %s0, %s629
    %v631 = vld [vmem:[%s630] sm:%s3]
    %s632 = scalar_lea.vmem [#allocation1], 16
    %633 = vst [vmem:[%s632] sm:%s3] %v631
    %s634 = scalar_lea.vmem %s0, 4
    %v635 = vld [vmem:[%s634] sm:%s3]
    %s636 = scalar_lea.vmem [#allocation1], 8
    %637 = vst [vmem:[%s636] sm:%s3] %v635
    %v638 = vld [vmem:[%s0] sm:%s3]
    %639 = vst [vmem:[#allocation1] sm:%s3] %v638
    %v640 = vld [vmem:[#allocation1] sm:$0x1]
    %s641 = scalar_lea.vmem [#allocation1], 63
    %v642 = vld [vmem:[%s641] sm:$0x2]
    %vm643 = vcmask 1041409
    %v644 = vsel %vm643, %v642, %v640
    %s645 = scalar_lea.vmem [#allocation1], 126
    %v646 = vld [vmem:[%s645] sm:$0x4]
    %vm647 = vcmask 1042434
    %v648 = vsel %vm647, %v646, %v644
    %s649 = scalar_lea.vmem [#allocation1], 189
    %v650 = vld [vmem:[%s649] sm:$0x8]
    %vm651 = vcmask 1043459
    %v652 = vsel %vm651, %v650, %v648
    %s653 = scalar_lea.vmem [#allocation1], 252
    %v654 = vld [vmem:[%s653] sm:$0x10]
    %vm655 = vcmask 1044484
    %v656 = vsel %vm655, %v654, %v652
    %s657 = scalar_lea.vmem [#allocation1], 315
    %v658 = vld [vmem:[%s657] sm:$0x20]
    %vm659 = vcmask 1045509
    %v660 = vsel %vm659, %v658, %v656
    %s661 = scalar_lea.vmem [#allocation1], 378
    %v662 = vld [vmem:[%s661] sm:$0x40]
    %vm663 = vcmask 1046534
    %v664 = vsel %vm663, %v662, %v660
    %s665 = scalar_lea.vmem [#allocation1], 441
    %v666 = vld [vmem:[%s665] sm:$0x80]
    %vm667 = vcmask 1047559
    %v668 = vsel %vm667, %v666, %v664
    %vm669 = vcmask 31744
    %670 = vst.msk [vmem:[#allocation0] sm:$0xf] %vm669, %v668
    %s671 = scalar_lea.vmem [#allocation0], 4
    %672 = vst.msk [vmem:[%s671] sm:$0xf0] %vm669, %v668
    %s673 = scalar_lea.vmem [#allocation1], 512
    %v674 = vld [vmem:[%s673] sm:$0x1]
    %s675 = scalar_lea.vmem [#allocation1], 575
    %v676 = vld [vmem:[%s675] sm:$0x2]
    %vm677 = vcmask 1041409
    %v678 = vsel %vm677, %v676, %v674
    %s679 = scalar_lea.vmem [#allocation1], 638
    %v680 = vld [vmem:[%s679] sm:$0x4]
    %vm681 = vcmask 1042434
    %v682 = vsel %vm681, %v680, %v678
    %s683 = scalar_lea.vmem [#allocation1], 701
    %v684 = vld [vmem:[%s683] sm:$0x8]
    %vm685 = vcmask 1043459
    %v686 = vsel %vm685, %v684, %v682
    %s687 = scalar_lea.vmem [#allocation1], 764
    %v688 = vld [vmem:[%s687] sm:$0x10]
    %vm689 = vcmask 1044484
    %v690 = vsel %vm689, %v688, %v686
    %s691 = scalar_lea.vmem [#allocation1], 827
    %v692 = vld [vmem:[%s691] sm:$0x20]
    %vm693 = vcmask 1045509
    %v694 = vsel %vm693, %v692, %v690
    %s695 = scalar_lea.vmem [#allocation1], 890
    %v696 = vld [vmem:[%s695] sm:$0x40]
    %vm697 = vcmask 1046534
    %v698 = vsel %vm697, %v696, %v694
    %s699 = scalar_lea.vmem [#allocation1], 953
    %v700 = vld [vmem:[%s699] sm:$0x80]
    %vm701 = vcmask 1047559
    %v702 = vsel %vm701, %v700, %v698
    %vm703 = vcmask 31744
    %s704 = scalar_lea.vmem [#allocation0], 16
    %705 = vst.msk [vmem:[%s704] sm:$0xf] %vm703, %v702
    %s706 = scalar_lea.vmem [#allocation0], 20
    %707 = vst.msk [vmem:[%s706] sm:$0xf0] %vm703, %v702
    %s708 = scalar_lea.vmem [#allocation1], 59
    %v709 = vld [vmem:[%s708] sm:$0x1]
    %s710 = scalar_lea.vmem [#allocation1], 122
    %v711 = vld [vmem:[%s710] sm:$0x2]
    %vm712 = vcmask 1041409
    %v713 = vsel %vm712, %v711, %v709
    %s714 = scalar_lea.vmem [#allocation1], 185
    %v715 = vld [vmem:[%s714] sm:$0x4]
    %vm716 = vcmask 1042434
    %v717 = vsel %vm716, %v715, %v713
    %s718 = scalar_lea.vmem [#allocation1], 248
    %v719 = vld [vmem:[%s718] sm:$0x8]
    %vm720 = vcmask 1043459
    %v721 = vsel %vm720, %v719, %v717
    %s722 = scalar_lea.vmem [#allocation1], 311
    %v723 = vld [vmem:[%s722] sm:$0x10]
    %vm724 = vcmask 1044484
    %v725 = vsel %vm724, %v723, %v721
    %s726 = scalar_lea.vmem [#allocation1], 374
    %v727 = vld [vmem:[%s726] sm:$0x20]
    %vm728 = vcmask 1045509
    %v729 = vsel %vm728, %v727, %v725
    %s730 = scalar_lea.vmem [#allocation1], 437
    %v731 = vld [vmem:[%s730] sm:$0x40]
    %vm732 = vcmask 1046534
    %v733 = vsel %vm732, %v731, %v729
    %s734 = scalar_lea.vmem [#allocation1], 500
    %v735 = vld [vmem:[%s734] sm:$0x80]
    %vm736 = vcmask 1047559
    %v737 = vsel %vm736, %v735, %v733
    %738 = vrot.lane.b32.xlu0 %v737, 124
    %v739 = vpop.permute.xlu0 %738
    %vm740 = vcmask 1048544
    %741 = vst.msk [vmem:[#allocation0] sm:$0xf] %vm740, %v739
    %s742 = scalar_lea.vmem [#allocation0], 4
    %743 = vst.msk [vmem:[%s742] sm:$0xf0] %vm740, %v739
    %s744 = scalar_lea.vmem [#allocation1], 571
    %v745 = vld [vmem:[%s744] sm:$0x1]
    %s746 = scalar_lea.vmem [#allocation1], 634
    %v747 = vld [vmem:[%s746] sm:$0x2]
    %vm748 = vcmask 1041409
    %v749 = vsel %vm748, %v747, %v745
    %s750 = scalar_lea.vmem [#allocation1], 697
    %v751 = vld [vmem:[%s750] sm:$0x4]
    %vm752 = vcmask 1042434
    %v753 = vsel %vm752, %v751, %v749
    %s754 = scalar_lea.vmem [#allocation1], 760
    %v755 = vld [vmem:[%s754] sm:$0x8]
    %vm756 = vcmask 1043459
    %v757 = vsel %vm756, %v755, %v753
    %s758 = scalar_lea.vmem [#allocation1], 823
    %v759 = vld [vmem:[%s758] sm:$0x10]
    %vm760 = vcmask 1044484
    %v761 = vsel %vm760, %v759, %v757
    %s762 = scalar_lea.vmem [#allocation1], 886
    %v763 = vld [vmem:[%s762] sm:$0x20]
    %vm764 = vcmask 1045509
    %v765 = vsel %vm764, %v763, %v761
    %s766 = scalar_lea.vmem [#allocation1], 949
    %v767 = vld [vmem:[%s766] sm:$0x40]
    %vm768 = vcmask 1046534
    %v769 = vsel %vm768, %v767, %v765
    %s770 = scalar_lea.vmem [#allocation1], 1012
    %v771 = vld [vmem:[%s770] sm:$0x80]
    %vm772 = vcmask 1047559
    %v773 = vsel %vm772, %v771, %v769
    %774 = vrot.lane.b32.xlu0 %v773, 124
    %v775 = vpop.permute.xlu0 %774
    %vm776 = vcmask 1048544
    %s777 = scalar_lea.vmem [#allocation0], 16
    %778 = vst.msk [vmem:[%s777] sm:$0xf] %vm776, %v775
    %s779 = scalar_lea.vmem [#allocation0], 20
    %780 = vst.msk [vmem:[%s779] sm:$0xf0] %vm776, %v775
    %s781 = scalar_lea.vmem [#allocation1], 58
    %v782 = vld [vmem:[%s781] sm:$0x1]
    %s783 = scalar_lea.vmem [#allocation1], 121
    %v784 = vld [vmem:[%s783] sm:$0x2]
    %vm785 = vcmask 1041409
    %v786 = vsel %vm785, %v784, %v782
    %s787 = scalar_lea.vmem [#allocation1], 184
    %v788 = vld [vmem:[%s787] sm:$0x4]
    %vm789 = vcmask 1042434
    %v790 = vsel %vm789, %v788, %v786
    %s791 = scalar_lea.vmem [#allocation1], 247
    %v792 = vld [vmem:[%s791] sm:$0x8]
    %vm793 = vcmask 1043459
    %v794 = vsel %vm793, %v792, %v790
    %s795 = scalar_lea.vmem [#allocation1], 310
    %v796 = vld [vmem:[%s795] sm:$0x10]
    %vm797 = vcmask 1044484
    %v798 = vsel %vm797, %v796, %v794
    %s799 = scalar_lea.vmem [#allocation1], 373
    %v800 = vld [vmem:[%s799] sm:$0x20]
    %vm801 = vcmask 1045509
    %v802 = vsel %vm801, %v800, %v798
    %s803 = scalar_lea.vmem [#allocation1], 436
    %v804 = vld [vmem:[%s803] sm:$0x40]
    %vm805 = vcmask 1046534
    %v806 = vsel %vm805, %v804, %v802
    %s807 = scalar_lea.vmem [#allocation1], 499
    %v808 = vld [vmem:[%s807] sm:$0x80]
    %vm809 = vcmask 1047559
    %v810 = vsel %vm809, %v808, %v806
    %811 = vrot.lane.b32.xlu0 %v810, 120
    %v812 = vpop.permute.xlu0 %811
    %vm813 = vcmask 1015744
    %814 = vst.msk [vmem:[#allocation0] sm:$0xf] %vm813, %v812
    %s815 = scalar_lea.vmem [#allocation0], 4
    %816 = vst.msk [vmem:[%s815] sm:$0xf0] %vm813, %v812
    %s817 = scalar_lea.vmem [#allocation1], 570
    %v818 = vld [vmem:[%s817] sm:$0x1]
    %s819 = scalar_lea.vmem [#allocation1], 633
    %v820 = vld [vmem:[%s819] sm:$0x2]
    %vm821 = vcmask 1041409
    %v822 = vsel %vm821, %v820, %v818
    %s823 = scalar_lea.vmem [#allocation1], 696
    %v824 = vld [vmem:[%s823] sm:$0x4]
    %vm825 = vcmask 1042434
    %v826 = vsel %vm825, %v824, %v822
    %s827 = scalar_lea.vmem [#allocation1], 759
    %v828 = vld [vmem:[%s827] sm:$0x8]
    %vm829 = vcmask 1043459
    %v830 = vsel %vm829, %v828, %v826
    %s831 = scalar_lea.vmem [#allocation1], 822
    %v832 = vld [vmem:[%s831] sm:$0x10]
    %vm833 = vcmask 1044484
    %v834 = vsel %vm833, %v832, %v830
    %s835 = scalar_lea.vmem [#allocation1], 885
    %v836 = vld [vmem:[%s835] sm:$0x20]
    %vm837 = vcmask 1045509
    %v838 = vsel %vm837, %v836, %v834
    %s839 = scalar_lea.vmem [#allocation1], 948
    %v840 = vld [vmem:[%s839] sm:$0x40]
    %vm841 = vcmask 1046534
    %v842 = vsel %vm841, %v840, %v838
    %s843 = scalar_lea.vmem [#allocation1], 1011
    %v844 = vld [vmem:[%s843] sm:$0x80]
    %vm845 = vcmask 1047559
    %v846 = vsel %vm845, %v844, %v842
    %847 = vrot.lane.b32.xlu0 %v846, 120
    %v848 = vpop.permute.xlu0 %847
    %vm849 = vcmask 1015744
    %s850 = scalar_lea.vmem [#allocation0], 16
    %851 = vst.msk [vmem:[%s850] sm:$0xf] %vm849, %v848
    %s852 = scalar_lea.vmem [#allocation0], 20
    %853 = vst.msk [vmem:[%s852] sm:$0xf0] %vm849, %v848
    %s854 = scalar_lea.vmem [#allocation1], 57
    %v855 = vld [vmem:[%s854] sm:$0x1]
    %s856 = scalar_lea.vmem [#allocation1], 120
    %v857 = vld [vmem:[%s856] sm:$0x2]
    %vm858 = vcmask 1041409
    %v859 = vsel %vm858, %v857, %v855
    %s860 = scalar_lea.vmem [#allocation1], 183
    %v861 = vld [vmem:[%s860] sm:$0x4]
    %vm862 = vcmask 1042434
    %v863 = vsel %vm862, %v861, %v859
    %s864 = scalar_lea.vmem [#allocation1], 246
    %v865 = vld [vmem:[%s864] sm:$0x8]
    %vm866 = vcmask 1043459
    %v867 = vsel %vm866, %v865, %v863
    %s868 = scalar_lea.vmem [#allocation1], 309
    %v869 = vld [vmem:[%s868] sm:$0x10]
    %vm870 = vcmask 1044484
    %v871 = vsel %vm870, %v869, %v867
    %s872 = scalar_lea.vmem [#allocation1], 372
    %v873 = vld [vmem:[%s872] sm:$0x20]
    %vm874 = vcmask 1045509
    %v875 = vsel %vm874, %v873, %v871
    %s876 = scalar_lea.vmem [#allocation1], 435
    %v877 = vld [vmem:[%s876] sm:$0x40]
    %vm878 = vcmask 1046534
    %v879 = vsel %vm878, %v877, %v875
    %s880 = scalar_lea.vmem [#allocation1], 498
    %v881 = vld [vmem:[%s880] sm:$0x80]
    %vm882 = vcmask 1047559
    %v883 = vsel %vm882, %v881, %v879
    %884 = vrot.lane.b32.xlu0 %v883, 116
    %v885 = vpop.permute.xlu0 %884
    %vm886 = vcmask 982944
    %887 = vst.msk [vmem:[#allocation0] sm:$0xf] %vm886, %v885
    %s888 = scalar_lea.vmem [#allocation0], 4
    %889 = vst.msk [vmem:[%s888] sm:$0xf0] %vm886, %v885
    %s890 = scalar_lea.vmem [#allocation1], 569
    %v891 = vld [vmem:[%s890] sm:$0x1]
    %s892 = scalar_lea.vmem [#allocation1], 632
    %v893 = vld [vmem:[%s892] sm:$0x2]
    %vm894 = vcmask 1041409
    %v895 = vsel %vm894, %v893, %v891
    %s896 = scalar_lea.vmem [#allocation1], 695
    %v897 = vld [vmem:[%s896] sm:$0x4]
    %vm898 = vcmask 1042434
    %v899 = vsel %vm898, %v897, %v895
    %s900 = scalar_lea.vmem [#allocation1], 758
    %v901 = vld [vmem:[%s900] sm:$0x8]
    %vm902 = vcmask 1043459
    %v903 = vsel %vm902, %v901, %v899
    %s904 = scalar_lea.vmem [#allocation1], 821
    %v905 = vld [vmem:[%s904] sm:$0x10]
    %vm906 = vcmask 1044484
    %v907 = vsel %vm906, %v905, %v903
    %s908 = scalar_lea.vmem [#allocation1], 884
    %v909 = vld [vmem:[%s908] sm:$0x20]
    %vm910 = vcmask 1045509
    %v911 = vsel %vm910, %v909, %v907
    %s912 = scalar_lea.vmem [#allocation1], 947
    %v913 = vld [vmem:[%s912] sm:$0x40]
    %vm914 = vcmask 1046534
    %v915 = vsel %vm914, %v913, %v911
    %s916 = scalar_lea.vmem [#allocation1], 1010
    %v917 = vld [vmem:[%s916] sm:$0x80]
    %vm918 = vcmask 1047559
    %v919 = vsel %vm918, %v917, %v915
    %920 = vrot.lane.b32.xlu0 %v919, 116
    %v921 = vpop.permute.xlu0 %920
    %vm922 = vcmask 982944
    %s923 = scalar_lea.vmem [#allocation0], 16
    %924 = vst.msk [vmem:[%s923] sm:$0xf] %vm922, %v921
    %s925 = scalar_lea.vmem [#allocation0], 20
    %926 = vst.msk [vmem:[%s925] sm:$0xf0] %vm922, %v921
    %s927 = scalar_lea.vmem [#allocation1], 56
    %v928 = vld [vmem:[%s927] sm:$0x1]
    %s929 = scalar_lea.vmem [#allocation1], 119
    %v930 = vld [vmem:[%s929] sm:$0x2]
    %vm931 = vcmask 1041409
    %v932 = vsel %vm931, %v930, %v928
    %s933 = scalar_lea.vmem [#allocation1], 182
    %v934 = vld [vmem:[%s933] sm:$0x4]
    %vm935 = vcmask 1042434
    %v936 = vsel %vm935, %v934, %v932
    %s937 = scalar_lea.vmem [#allocation1], 245
    %v938 = vld [vmem:[%s937] sm:$0x8]
    %vm939 = vcmask 1043459
    %v940 = vsel %vm939, %v938, %v936
    %s941 = scalar_lea.vmem [#allocation1], 308
    %v942 = vld [vmem:[%s941] sm:$0x10]
    %vm943 = vcmask 1044484
    %v944 = vsel %vm943, %v942, %v940
    %s945 = scalar_lea.vmem [#allocation1], 371
    %v946 = vld [vmem:[%s945] sm:$0x20]
    %vm947 = vcmask 1045509
    %v948 = vsel %vm947, %v946, %v944
    %s949 = scalar_lea.vmem [#allocation1], 434
    %v950 = vld [vmem:[%s949] sm:$0x40]
    %vm951 = vcmask 1046534
    %v952 = vsel %vm951, %v950, %v948
    %s953 = scalar_lea.vmem [#allocation1], 497
    %v954 = vld [vmem:[%s953] sm:$0x80]
    %vm955 = vcmask 1047559
    %v956 = vsel %vm955, %v954, %v952
    %957 = vrot.lane.b32.xlu0 %v956, 112
    %v958 = vpop.permute.xlu0 %957
    %vm959 = vcmask 950144
    %960 = vst.msk [vmem:[#allocation0] sm:$0xf] %vm959, %v958
    %s961 = scalar_lea.vmem [#allocation0], 4
    %962 = vst.msk [vmem:[%s961] sm:$0xf0] %vm959, %v958
    %s963 = scalar_lea.vmem [#allocation1], 568
    %v964 = vld [vmem:[%s963] sm:$0x1]
    %s965 = scalar_lea.vmem [#allocation1], 631
    %v966 = vld [vmem:[%s965] sm:$0x2]
    %vm967 = vcmask 1041409
    %v968 = vsel %vm967, %v966, %v964
    %s969 = scalar_lea.vmem [#allocation1], 694
    %v970 = vld [vmem:[%s969] sm:$0x4]
    %vm971 = vcmask 1042434
    %v972 = vsel %vm971, %v970, %v968
    %s973 = scalar_lea.vmem [#allocation1], 757
    %v974 = vld [vmem:[%s973] sm:$0x8]
    %vm975 = vcmask 1043459
    %v976 = vsel %vm975, %v974, %v972
    %s977 = scalar_lea.vmem [#allocation1], 820
    %v978 = vld [vmem:[%s977] sm:$0x10]
    %vm979 = vcmask 1044484
    %v980 = vsel %vm979, %v978, %v976
    %s981 = scalar_lea.vmem [#allocation1], 883
    %v982 = vld [vmem:[%s981] sm:$0x20]
    %vm983 = vcmask 1045509
    %v984 = vsel %vm983, %v982, %v980
    %s985 = scalar_lea.vmem [#allocation1], 946
    %v986 = vld [vmem:[%s985] sm:$0x40]
    %vm987 = vcmask 1046534
    %v988 = vsel %vm987, %v986, %v984
    %s989 = scalar_lea.vmem [#allocation1], 1009
    %v990 = vld [vmem:[%s989] sm:$0x80]
    %vm991 = vcmask 1047559
    %v992 = vsel %vm991, %v990, %v988
    %993 = vrot.lane.b32.xlu0 %v992, 112
    %v994 = vpop.permute.xlu0 %993
    %vm995 = vcmask 950144
    %s996 = scalar_lea.vmem [#allocation0], 16
    %997 = vst.msk [vmem:[%s996] sm:$0xf] %vm995, %v994
    %s998 = scalar_lea.vmem [#allocation0], 20
    %999 = vst.msk [vmem:[%s998] sm:$0xf0] %vm995, %v994
    %s1000 = scalar_lea.vmem [#allocation1], 51
    %v1001 = vld [vmem:[%s1000] sm:$0x1]
    %s1002 = scalar_lea.vmem [#allocation1], 114
    %v1003 = vld [vmem:[%s1002] sm:$0x2]
    %vm1004 = vcmask 1041409
    %v1005 = vsel %vm1004, %v1003, %v1001
    %s1006 = scalar_lea.vmem [#allocation1], 177
    %v1007 = vld [vmem:[%s1006] sm:$0x4]
    %vm1008 = vcmask 1042434
    %v1009 = vsel %vm1008, %v1007, %v1005
    %s1010 = scalar_lea.vmem [#allocation1], 240
    %v1011 = vld [vmem:[%s1010] sm:$0x8]
    %vm1012 = vcmask 1043459
    %v1013 = vsel %vm1012, %v1011, %v1009
    %s1014 = scalar_lea.vmem [#allocation1], 303
    %v1015 = vld [vmem:[%s1014] sm:$0x10]
    %vm1016 = vcmask 1044484
    %v1017 = vsel %vm1016, %v1015, %v1013
    %s1018 = scalar_lea.vmem [#allocation1], 366
    %v1019 = vld [vmem:[%s1018] sm:$0x20]
    %vm1020 = vcmask 1045509
    %v1021 = vsel %vm1020, %v1019, %v1017
    %s1022 = scalar_lea.vmem [#allocation1], 429
    %v1023 = vld [vmem:[%s1022] sm:$0x40]
    %vm1024 = vcmask 1046534
    %v1025 = vsel %vm1024, %v1023, %v1021
    %s1026 = scalar_lea.vmem [#allocation1], 492
    %v1027 = vld [vmem:[%s1026] sm:$0x80]
    %vm1028 = vcmask 1047559
    %v1029 = vsel %vm1028, %v1027, %v1025
    %1030 = vrot.lane.b32.xlu0 %v1029, 108
    %v1031 = vpop.permute.xlu0 %1030
    %vm1032 = vcmask 917344
    %1033 = vst.msk [vmem:[#allocation0] sm:$0xf] %vm1032, %v1031
    %s1034 = scalar_lea.vmem [#allocation0], 4
    %1035 = vst.msk [vmem:[%s1034] sm:$0xf0] %vm1032, %v1031
    %s1036 = scalar_lea.vmem [#allocation1], 563
    %v1037 = vld [vmem:[%s1036] sm:$0x1]
    %s1038 = scalar_lea.vmem [#allocation1], 626
    %v1039 = vld [vmem:[%s1038] sm:$0x2]
    %vm1040 = vcmask 1041409
    %v1041 = vsel %vm1040, %v1039, %v1037
    %s1042 = scalar_lea.vmem [#allocation1], 689
    %v1043 = vld [vmem:[%s1042] sm:$0x4]
    %vm1044 = vcmask 1042434
    %v1045 = vsel %vm1044, %v1043, %v1041
    %s1046 = scalar_lea.vmem [#allocation1], 752
    %v1047 = vld [vmem:[%s1046] sm:$0x8]
    %vm1048 = vcmask 1043459
    %v1049 = vsel %vm1048, %v1047, %v1045
    %s1050 = scalar_lea.vmem [#allocation1], 815
    %v1051 = vld [vmem:[%s1050] sm:$0x10]
    %vm1052 = vcmask 1044484
    %v1053 = vsel %vm1052, %v1051, %v1049
    %s1054 = scalar_lea.vmem [#allocation1], 878
    %v1055 = vld [vmem:[%s1054] sm:$0x20]
    %vm1056 = vcmask 1045509
    %v1057 = vsel %vm1056, %v1055, %v1053
    %s1058 = scalar_lea.vmem [#allocation1], 941
    %v1059 = vld [vmem:[%s1058] sm:$0x40]
    %vm1060 = vcmask 1046534
    %v1061 = vsel %vm1060, %v1059, %v1057
    %s1062 = scalar_lea.vmem [#allocation1], 1004
    %v1063 = vld [vmem:[%s1062] sm:$0x80]
    %vm1064 = vcmask 1047559
    %v1065 = vsel %vm1064, %v1063, %v1061
    %1066 = vrot.lane.b32.xlu0 %v1065, 108
    %v1067 = vpop.permute.xlu0 %1066
    %vm1068 = vcmask 917344
    %s1069 = scalar_lea.vmem [#allocation0], 16
    %1070 = vst.msk [vmem:[%s1069] sm:$0xf] %vm1068, %v1067
    %s1071 = scalar_lea.vmem [#allocation0], 20
    %1072 = vst.msk [vmem:[%s1071] sm:$0xf0] %vm1068, %v1067
    %s1073 = scalar_lea.vmem [#allocation1], 50
    %v1074 = vld [vmem:[%s1073] sm:$0x1]
    %s1075 = scalar_lea.vmem [#allocation1], 113
    %v1076 = vld [vmem:[%s1075] sm:$0x2]
    %vm1077 = vcmask 1041409
    %v1078 = vsel %vm1077, %v1076, %v1074
    %s1079 = scalar_lea.vmem [#allocation1], 176
    %v1080 = vld [vmem:[%s1079] sm:$0x4]
    %vm1081 = vcmask 1042434
    %v1082 = vsel %vm1081, %v1080, %v1078
    %s1083 = scalar_lea.vmem [#allocation1], 239
    %v1084 = vld [vmem:[%s1083] sm:$0x8]
    %vm1085 = vcmask 1043459
    %v1086 = vsel %vm1085, %v1084, %v1082
    %s1087 = scalar_lea.vmem [#allocation1], 302
    %v1088 = vld [vmem:[%s1087] sm:$0x10]
    %vm1089 = vcmask 1044484
    %v1090 = vsel %vm1089, %v1088, %v1086
    %s1091 = scalar_lea.vmem [#allocation1], 365
    %v1092 = vld [vmem:[%s1091] sm:$0x20]
    %vm1093 = vcmask 1045509
    %v1094 = vsel %vm1093, %v1092, %v1090
    %s1095 = scalar_lea.vmem [#allocation1], 428
    %v1096 = vld [vmem:[%s1095] sm:$0x40]
    %vm1097 = vcmask 1046534
    %v1098 = vsel %vm1097, %v1096, %v1094
    %s1099 = scalar_lea.vmem [#allocation1], 491
    %v1100 = vld [vmem:[%s1099] sm:$0x80]
    %vm1101 = vcmask 1047559
    %v1102 = vsel %vm1101, %v1100, %v1098
    %1103 = vrot.lane.b32.xlu0 %v1102, 104
    %v1104 = vpop.permute.xlu0 %1103
    %vm1105 = vcmask 884544
    %1106 = vst.msk [vmem:[#allocation0] sm:$0xf] %vm1105, %v1104
    %s1107 = scalar_lea.vmem [#allocation0], 4
    %1108 = vst.msk [vmem:[%s1107] sm:$0xf0] %vm1105, %v1104
    %s1109 = scalar_lea.vmem [#allocation1], 562
    %v1110 = vld [vmem:[%s1109] sm:$0x1]
    %s1111 = scalar_lea.vmem [#allocation1], 625
    %v1112 = vld [vmem:[%s1111] sm:$0x2]
    %vm1113 = vcmask 1041409
    %v1114 = vsel %vm1113, %v1112, %v1110
    %s1115 = scalar_lea.vmem [#allocation1], 688
    %v1116 = vld [vmem:[%s1115] sm:$0x4]
    %vm1117 = vcmask 1042434
    %v1118 = vsel %vm1117, %v1116, %v1114
    %s1119 = scalar_lea.vmem [#allocation1], 751
    %v1120 = vld [vmem:[%s1119] sm:$0x8]
    %vm1121 = vcmask 1043459
    %v1122 = vsel %vm1121, %v1120, %v1118
    %s1123 = scalar_lea.vmem [#allocation1], 814
    %v1124 = vld [vmem:[%s1123] sm:$0x10]
    %vm1125 = vcmask 1044484
    %v1126 = vsel %vm1125, %v1124, %v1122
    %s1127 = scalar_lea.vmem [#allocation1], 877
    %v1128 = vld [vmem:[%s1127] sm:$0x20]
    %vm1129 = vcmask 1045509
    %v1130 = vsel %vm1129, %v1128, %v1126
    %s1131 = scalar_lea.vmem [#allocation1], 940
    %v1132 = vld [vmem:[%s1131] sm:$0x40]
    %vm1133 = vcmask 1046534
    %v1134 = vsel %vm1133, %v1132, %v1130
    %s1135 = scalar_lea.vmem [#allocation1], 1003
    %v1136 = vld [vmem:[%s1135] sm:$0x80]
    %vm1137 = vcmask 1047559
    %v1138 = vsel %vm1137, %v1136, %v1134
    %1139 = vrot.lane.b32.xlu0 %v1138, 104
    %v1140 = vpop.permute.xlu0 %1139
    %vm1141 = vcmask 884544
    %s1142 = scalar_lea.vmem [#allocation0], 16
    %1143 = vst.msk [vmem:[%s1142] sm:$0xf] %vm1141, %v1140
    %s1144 = scalar_lea.vmem [#allocation0], 20
    %1145 = vst.msk [vmem:[%s1144] sm:$0xf0] %vm1141, %v1140
    %s1146 = scalar_lea.vmem [#allocation1], 49
    %v1147 = vld [vmem:[%s1146] sm:$0x1]
    %s1148 = scalar_lea.vmem [#allocation1], 112
    %v1149 = vld [vmem:[%s1148] sm:$0x2]
    %vm1150 = vcmask 1041409
    %v1151 = vsel %vm1150, %v1149, %v1147
    %s1152 = scalar_lea.vmem [#allocation1], 175
    %v1153 = vld [vmem:[%s1152] sm:$0x4]
    %vm1154 = vcmask 1042434
    %v1155 = vsel %vm1154, %v1153, %v1151
    %s1156 = scalar_lea.vmem [#allocation1], 238
    %v1157 = vld [vmem:[%s1156] sm:$0x8]
    %vm1158 = vcmask 1043459
    %v1159 = vsel %vm1158, %v1157, %v1155
    %s1160 = scalar_lea.vmem [#allocation1], 301
    %v1161 = vld [vmem:[%s1160] sm:$0x10]
    %vm1162 = vcmask 1044484
    %v1163 = vsel %vm1162, %v1161, %v1159
    %s1164 = scalar_lea.vmem [#allocation1], 364
    %v1165 = vld [vmem:[%s1164] sm:$0x20]
    %vm1166 = vcmask 1045509
    %v1167 = vsel %vm1166, %v1165, %v1163
    %s1168 = scalar_lea.vmem [#allocation1], 427
    %v1169 = vld [vmem:[%s1168] sm:$0x40]
    %vm1170 = vcmask 1046534
    %v1171 = vsel %vm1170, %v1169, %v1167
    %s1172 = scalar_lea.vmem [#allocation1], 490
    %v1173 = vld [vmem:[%s1172] sm:$0x80]
    %vm1174 = vcmask 1047559
    %v1175 = vsel %vm1174, %v1173, %v1171
    %1176 = vrot.lane.b32.xlu0 %v1175, 100
    %v1177 = vpop.permute.xlu0 %1176
    %vm1178 = vcmask 851744
    %1179 = vst.msk [vmem:[#allocation0] sm:$0xf] %vm1178, %v1177
    %s1180 = scalar_lea.vmem [#allocation0], 4
    %1181 = vst.msk [vmem:[%s1180] sm:$0xf0] %vm1178, %v1177
    %s1182 = scalar_lea.vmem [#allocation1], 561
    %v1183 = vld [vmem:[%s1182] sm:$0x1]
    %s1184 = scalar_lea.vmem [#allocation1], 624
    %v1185 = vld [vmem:[%s1184] sm:$0x2]
    %vm1186 = vcmask 1041409
    %v1187 = vsel %vm1186, %v1185, %v1183
    %s1188 = scalar_lea.vmem [#allocation1], 687
    %v1189 = vld [vmem:[%s1188] sm:$0x4]
    %vm1190 = vcmask 1042434
    %v1191 = vsel %vm1190, %v1189, %v1187
    %s1192 = scalar_lea.vmem [#allocation1], 750
    %v1193 = vld [vmem:[%s1192] sm:$0x8]
    %vm1194 = vcmask 1043459
    %v1195 = vsel %vm1194, %v1193, %v1191
    %s1196 = scalar_lea.vmem [#allocation1], 813
    %v1197 = vld [vmem:[%s1196] sm:$0x10]
    %vm1198 = vcmask 1044484
    %v1199 = vsel %vm1198, %v1197, %v1195
    %s1200 = scalar_lea.vmem [#allocation1], 876
    %v1201 = vld [vmem:[%s1200] sm:$0x20]
    %vm1202 = vcmask 1045509
    %v1203 = vsel %vm1202, %v1201, %v1199
    %s1204 = scalar_lea.vmem [#allocation1], 939
    %v1205 = vld [vmem:[%s1204] sm:$0x40]
    %vm1206 = vcmask 1046534
    %v1207 = vsel %vm1206, %v1205, %v1203
    %s1208 = scalar_lea.vmem [#allocation1], 1002
    %v1209 = vld [vmem:[%s1208] sm:$0x80]
    %vm1210 = vcmask 1047559
    %v1211 = vsel %vm1210, %v1209, %v1207
    %1212 = vrot.lane.b32.xlu0 %v1211, 100
    %v1213 = vpop.permute.xlu0 %1212
    %vm1214 = vcmask 851744
    %s1215 = scalar_lea.vmem [#allocation0], 16
    %1216 = vst.msk [vmem:[%s1215] sm:$0xf] %vm1214, %v1213
    %s1217 = scalar_lea.vmem [#allocation0], 20
    %1218 = vst.msk [vmem:[%s1217] sm:$0xf0] %vm1214, %v1213
    %s1219 = scalar_lea.vmem [#allocation1], 48
    %v1220 = vld [vmem:[%s1219] sm:$0x1]
    %s1221 = scalar_lea.vmem [#allocation1], 111
    %v1222 = vld [vmem:[%s1221] sm:$0x2]
    %vm1223 = vcmask 1041409
    %v1224 = vsel %vm1223, %v1222, %v1220
    %s1225 = scalar_lea.vmem [#allocation1], 174
    %v1226 = vld [vmem:[%s1225] sm:$0x4]
    %vm1227 = vcmask 1042434
    %v1228 = vsel %vm1227, %v1226, %v1224
    %s1229 = scalar_lea.vmem [#allocation1], 237
    %v1230 = vld [vmem:[%s1229] sm:$0x8]
    %vm1231 = vcmask 1043459
    %v1232 = vsel %vm1231, %v1230, %v1228
    %s1233 = scalar_lea.vmem [#allocation1], 300
    %v1234 = vld [vmem:[%s1233] sm:$0x10]
    %vm1235 = vcmask 1044484
    %v1236 = vsel %vm1235, %v1234, %v1232
    %s1237 = scalar_lea.vmem [#allocation1], 363
    %v1238 = vld [vmem:[%s1237] sm:$0x20]
    %vm1239 = vcmask 1045509
    %v1240 = vsel %vm1239, %v1238, %v1236
    %s1241 = scalar_lea.vmem [#allocation1], 426
    %v1242 = vld [vmem:[%s1241] sm:$0x40]
    %vm1243 = vcmask 1046534
    %v1244 = vsel %vm1243, %v1242, %v1240
    %s1245 = scalar_lea.vmem [#allocation1], 489
    %v1246 = vld [vmem:[%s1245] sm:$0x80]
    %vm1247 = vcmask 1047559
    %v1248 = vsel %vm1247, %v1246, %v1244
    %1249 = vrot.lane.b32.xlu0 %v1248, 96
    %v1250 = vpop.permute.xlu0 %1249
    %vm1251 = vcmask 818944
    %1252 = vst.msk [vmem:[#allocation0] sm:$0xf] %vm1251, %v1250
    %s1253 = scalar_lea.vmem [#allocation0], 4
    %1254 = vst.msk [vmem:[%s1253] sm:$0xf0] %vm1251, %v1250
    %s1255 = scalar_lea.vmem [#allocation1], 560
    %v1256 = vld [vmem:[%s1255] sm:$0x1]
    %s1257 = scalar_lea.vmem [#allocation1], 623
    %v1258 = vld [vmem:[%s1257] sm:$0x2]
    %vm1259 = vcmask 1041409
    %v1260 = vsel %vm1259, %v1258, %v1256
    %s1261 = scalar_lea.vmem [#allocation1], 686
    %v1262 = vld [vmem:[%s1261] sm:$0x4]
    %vm1263 = vcmask 1042434
    %v1264 = vsel %vm1263, %v1262, %v1260
    %s1265 = scalar_lea.vmem [#allocation1], 749
    %v1266 = vld [vmem:[%s1265] sm:$0x8]
    %vm1267 = vcmask 1043459
    %v1268 = vsel %vm1267, %v1266, %v1264
    %s1269 = scalar_lea.vmem [#allocation1], 812
    %v1270 = vld [vmem:[%s1269] sm:$0x10]
    %vm1271 = vcmask 1044484
    %v1272 = vsel %vm1271, %v1270, %v1268
    %s1273 = scalar_lea.vmem [#allocation1], 875
    %v1274 = vld [vmem:[%s1273] sm:$0x20]
    %vm1275 = vcmask 1045509
    %v1276 = vsel %vm1275, %v1274, %v1272
    %s1277 = scalar_lea.vmem [#allocation1], 938
    %v1278 = vld [vmem:[%s1277] sm:$0x40]
    %vm1279 = vcmask 1046534
    %v1280 = vsel %vm1279, %v1278, %v1276
    %s1281 = scalar_lea.vmem [#allocation1], 1001
    %v1282 = vld [vmem:[%s1281] sm:$0x80]
    %vm1283 = vcmask 1047559
    %v1284 = vsel %vm1283, %v1282, %v1280
    %1285 = vrot.lane.b32.xlu0 %v1284, 96
    %v1286 = vpop.permute.xlu0 %1285
    %vm1287 = vcmask 818944
    %s1288 = scalar_lea.vmem [#allocation0], 16
    %1289 = vst.msk [vmem:[%s1288] sm:$0xf] %vm1287, %v1286
    %s1290 = scalar_lea.vmem [#allocation0], 20
    %1291 = vst.msk [vmem:[%s1290] sm:$0xf0] %vm1287, %v1286
    %s1292 = scalar_lea.vmem [#allocation1], 43
    %v1293 = vld [vmem:[%s1292] sm:$0x1]
    %s1294 = scalar_lea.vmem [#allocation1], 106
    %v1295 = vld [vmem:[%s1294] sm:$0x2]
    %vm1296 = vcmask 1041409
    %v1297 = vsel %vm1296, %v1295, %v1293
    %s1298 = scalar_lea.vmem [#allocation1], 169
    %v1299 = vld [vmem:[%s1298] sm:$0x4]
    %vm1300 = vcmask 1042434
    %v1301 = vsel %vm1300, %v1299, %v1297
    %s1302 = scalar_lea.vmem [#allocation1], 232
    %v1303 = vld [vmem:[%s1302] sm:$0x8]
    %vm1304 = vcmask 1043459
    %v1305 = vsel %vm1304, %v1303, %v1301
    %s1306 = scalar_lea.vmem [#allocation1], 295
    %v1307 = vld [vmem:[%s1306] sm:$0x10]
    %vm1308 = vcmask 1044484
    %v1309 = vsel %vm1308, %v1307, %v1305
    %s1310 = scalar_lea.vmem [#allocation1], 358
    %v1311 = vld [vmem:[%s1310] sm:$0x20]
    %vm1312 = vcmask 1045509
    %v1313 = vsel %vm1312, %v1311, %v1309
    %s1314 = scalar_lea.vmem [#allocation1], 421
    %v1315 = vld [vmem:[%s1314] sm:$0x40]
    %vm1316 = vcmask 1046534
    %v1317 = vsel %vm1316, %v1315, %v1313
    %s1318 = scalar_lea.vmem [#allocation1], 484
    %v1319 = vld [vmem:[%s1318] sm:$0x80]
    %vm1320 = vcmask 1047559
    %v1321 = vsel %vm1320, %v1319, %v1317
    %1322 = vrot.lane.b32.xlu0 %v1321, 92
    %v1323 = vpop.permute.xlu0 %1322
    %vm1324 = vcmask 786144
    %1325 = vst.msk [vmem:[#allocation0] sm:$0xf] %vm1324, %v1323
    %s1326 = scalar_lea.vmem [#allocation0], 4
    %1327 = vst.msk [vmem:[%s1326] sm:$0xf0] %vm1324, %v1323
    %s1328 = scalar_lea.vmem [#allocation1], 555
    %v1329 = vld [vmem:[%s1328] sm:$0x1]
    %s1330 = scalar_lea.vmem [#allocation1], 618
    %v1331 = vld [vmem:[%s1330] sm:$0x2]
    %vm1332 = vcmask 1041409
    %v1333 = vsel %vm1332, %v1331, %v1329
    %s1334 = scalar_lea.vmem [#allocation1], 681
    %v1335 = vld [vmem:[%s1334] sm:$0x4]
    %vm1336 = vcmask 1042434
    %v1337 = vsel %vm1336, %v1335, %v1333
    %s1338 = scalar_lea.vmem [#allocation1], 744
    %v1339 = vld [vmem:[%s1338] sm:$0x8]
    %vm1340 = vcmask 1043459
    %v1341 = vsel %vm1340, %v1339, %v1337
    %s1342 = scalar_lea.vmem [#allocation1], 807
    %v1343 = vld [vmem:[%s1342] sm:$0x10]
    %vm1344 = vcmask 1044484
    %v1345 = vsel %vm1344, %v1343, %v1341
    %s1346 = scalar_lea.vmem [#allocation1], 870
    %v1347 = vld [vmem:[%s1346] sm:$0x20]
    %vm1348 = vcmask 1045509
    %v1349 = vsel %vm1348, %v1347, %v1345
    %s1350 = scalar_lea.vmem [#allocation1], 933
    %v1351 = vld [vmem:[%s1350] sm:$0x40]
    %vm1352 = vcmask 1046534
    %v1353 = vsel %vm1352, %v1351, %v1349
    %s1354 = scalar_lea.vmem [#allocation1], 996
    %v1355 = vld [vmem:[%s1354] sm:$0x80]
    %vm1356 = vcmask 1047559
    %v1357 = vsel %vm1356, %v1355, %v1353
    %1358 = vrot.lane.b32.xlu0 %v1357, 92
    %v1359 = vpop.permute.xlu0 %1358
    %vm1360 = vcmask 786144
    %s1361 = scalar_lea.vmem [#allocation0], 16
    %1362 = vst.msk [vmem:[%s1361] sm:$0xf] %vm1360, %v1359
    %s1363 = scalar_lea.vmem [#allocation0], 20
    %1364 = vst.msk [vmem:[%s1363] sm:$0xf0] %vm1360, %v1359
    %s1365 = scalar_lea.vmem [#allocation1], 42
    %v1366 = vld [vmem:[%s1365] sm:$0x1]
    %s1367 = scalar_lea.vmem [#allocation1], 105
    %v1368 = vld [vmem:[%s1367] sm:$0x2]
    %vm1369 = vcmask 1041409
    %v1370 = vsel %vm1369, %v1368, %v1366
    %s1371 = scalar_lea.vmem [#allocation1], 168
    %v1372 = vld [vmem:[%s1371] sm:$0x4]
    %vm1373 = vcmask 1042434
    %v1374 = vsel %vm1373, %v1372, %v1370
    %s1375 = scalar_lea.vmem [#allocation1], 231
    %v1376 = vld [vmem:[%s1375] sm:$0x8]
    %vm1377 = vcmask 1043459
    %v1378 = vsel %vm1377, %v1376, %v1374
    %s1379 = scalar_lea.vmem [#allocation1], 294
    %v1380 = vld [vmem:[%s1379] sm:$0x10]
    %vm1381 = vcmask 1044484
    %v1382 = vsel %vm1381, %v1380, %v1378
    %s1383 = scalar_lea.vmem [#allocation1], 357
    %v1384 = vld [vmem:[%s1383] sm:$0x20]
    %vm1385 = vcmask 1045509
    %v1386 = vsel %vm1385, %v1384, %v1382
    %s1387 = scalar_lea.vmem [#allocation1], 420
    %v1388 = vld [vmem:[%s1387] sm:$0x40]
    %vm1389 = vcmask 1046534
    %v1390 = vsel %vm1389, %v1388, %v1386
    %s1391 = scalar_lea.vmem [#allocation1], 483
    %v1392 = vld [vmem:[%s1391] sm:$0x80]
    %vm1393 = vcmask 1047559
    %v1394 = vsel %vm1393, %v1392, %v1390
    %1395 = vrot.lane.b32.xlu0 %v1394, 88
    %v1396 = vpop.permute.xlu0 %1395
    %vm1397 = vcmask 753344
    %1398 = vst.msk [vmem:[#allocation0] sm:$0xf] %vm1397, %v1396
    %s1399 = scalar_lea.vmem [#allocation0], 4
    %1400 = vst.msk [vmem:[%s1399] sm:$0xf0] %vm1397, %v1396
    %s1401 = scalar_lea.vmem [#allocation1], 554
    %v1402 = vld [vmem:[%s1401] sm:$0x1]
    %s1403 = scalar_lea.vmem [#allocation1], 617
    %v1404 = vld [vmem:[%s1403] sm:$0x2]
    %vm1405 = vcmask 1041409
    %v1406 = vsel %vm1405, %v1404, %v1402
    %s1407 = scalar_lea.vmem [#allocation1], 680
    %v1408 = vld [vmem:[%s1407] sm:$0x4]
    %vm1409 = vcmask 1042434
    %v1410 = vsel %vm1409, %v1408, %v1406
    %s1411 = scalar_lea.vmem [#allocation1], 743
    %v1412 = vld [vmem:[%s1411] sm:$0x8]
    %vm1413 = vcmask 1043459
    %v1414 = vsel %vm1413, %v1412, %v1410
    %s1415 = scalar_lea.vmem [#allocation1], 806
    %v1416 = vld [vmem:[%s1415] sm:$0x10]
    %vm1417 = vcmask 1044484
    %v1418 = vsel %vm1417, %v1416, %v1414
    %s1419 = scalar_lea.vmem [#allocation1], 869
    %v1420 = vld [vmem:[%s1419] sm:$0x20]
    %vm1421 = vcmask 1045509
    %v1422 = vsel %vm1421, %v1420, %v1418
    %s1423 = scalar_lea.vmem [#allocation1], 932
    %v1424 = vld [vmem:[%s1423] sm:$0x40]
    %vm1425 = vcmask 1046534
    %v1426 = vsel %vm1425, %v1424, %v1422
    %s1427 = scalar_lea.vmem [#allocation1], 995
    %v1428 = vld [vmem:[%s1427] sm:$0x80]
    %vm1429 = vcmask 1047559
    %v1430 = vsel %vm1429, %v1428, %v1426
    %1431 = vrot.lane.b32.xlu0 %v1430, 88
    %v1432 = vpop.permute.xlu0 %1431
    %vm1433 = vcmask 753344
    %s1434 = scalar_lea.vmem [#allocation0], 16
    %1435 = vst.msk [vmem:[%s1434] sm:$0xf] %vm1433, %v1432
    %s1436 = scalar_lea.vmem [#allocation0], 20
    %1437 = vst.msk [vmem:[%s1436] sm:$0xf0] %vm1433, %v1432
    %s1438 = scalar_lea.vmem [#allocation1], 41
    %v1439 = vld [vmem:[%s1438] sm:$0x1]
    %s1440 = scalar_lea.vmem [#allocation1], 104
    %v1441 = vld [vmem:[%s1440] sm:$0x2]
    %vm1442 = vcmask 1041409
    %v1443 = vsel %vm1442, %v1441, %v1439
    %s1444 = scalar_lea.vmem [#allocation1], 167
    %v1445 = vld [vmem:[%s1444] sm:$0x4]
    %vm1446 = vcmask 1042434
    %v1447 = vsel %vm1446, %v1445, %v1443
    %s1448 = scalar_lea.vmem [#allocation1], 230
    %v1449 = vld [vmem:[%s1448] sm:$0x8]
    %vm1450 = vcmask 1043459
    %v1451 = vsel %vm1450, %v1449, %v1447
    %s1452 = scalar_lea.vmem [#allocation1], 293
    %v1453 = vld [vmem:[%s1452] sm:$0x10]
    %vm1454 = vcmask 1044484
    %v1455 = vsel %vm1454, %v1453, %v1451
    %s1456 = scalar_lea.vmem [#allocation1], 356
    %v1457 = vld [vmem:[%s1456] sm:$0x20]
    %vm1458 = vcmask 1045509
    %v1459 = vsel %vm1458, %v1457, %v1455
    %s1460 = scalar_lea.vmem [#allocation1], 419
    %v1461 = vld [vmem:[%s1460] sm:$0x40]
    %vm1462 = vcmask 1046534
    %v1463 = vsel %vm1462, %v1461, %v1459
    %s1464 = scalar_lea.vmem [#allocation1], 482
    %v1465 = vld [vmem:[%s1464] sm:$0x80]
    %vm1466 = vcmask 1047559
    %v1467 = vsel %vm1466, %v1465, %v1463
    %1468 = vrot.lane.b32.xlu0 %v1467, 84
    %v1469 = vpop.permute.xlu0 %1468
    %vm1470 = vcmask 720544
    %1471 = vst.msk [vmem:[#allocation0] sm:$0xf] %vm1470, %v1469
    %s1472 = scalar_lea.vmem [#allocation0], 4
    %1473 = vst.msk [vmem:[%s1472] sm:$0xf0] %vm1470, %v1469
    %s1474 = scalar_lea.vmem [#allocation1], 553
    %v1475 = vld [vmem:[%s1474] sm:$0x1]
    %s1476 = scalar_lea.vmem [#allocation1], 616
    %v1477 = vld [vmem:[%s1476] sm:$0x2]
    %vm1478 = vcmask 1041409
    %v1479 = vsel %vm1478, %v1477, %v1475
    %s1480 = scalar_lea.vmem [#allocation1], 679
    %v1481 = vld [vmem:[%s1480] sm:$0x4]
    %vm1482 = vcmask 1042434
    %v1483 = vsel %vm1482, %v1481, %v1479
    %s1484 = scalar_lea.vmem [#allocation1], 742
    %v1485 = vld [vmem:[%s1484] sm:$0x8]
    %vm1486 = vcmask 1043459
    %v1487 = vsel %vm1486, %v1485, %v1483
    %s1488 = scalar_lea.vmem [#allocation1], 805
    %v1489 = vld [vmem:[%s1488] sm:$0x10]
    %vm1490 = vcmask 1044484
    %v1491 = vsel %vm1490, %v1489, %v1487
    %s1492 = scalar_lea.vmem [#allocation1], 868
    %v1493 = vld [vmem:[%s1492] sm:$0x20]
    %vm1494 = vcmask 1045509
    %v1495 = vsel %vm1494, %v1493, %v1491
    %s1496 = scalar_lea.vmem [#allocation1], 931
    %v1497 = vld [vmem:[%s1496] sm:$0x40]
    %vm1498 = vcmask 1046534
    %v1499 = vsel %vm1498, %v1497, %v1495
    %s1500 = scalar_lea.vmem [#allocation1], 994
    %v1501 = vld [vmem:[%s1500] sm:$0x80]
    %vm1502 = vcmask 1047559
    %v1503 = vsel %vm1502, %v1501, %v1499
    %1504 = vrot.lane.b32.xlu0 %v1503, 84
    %v1505 = vpop.permute.xlu0 %1504
    %vm1506 = vcmask 720544
    %s1507 = scalar_lea.vmem [#allocation0], 16
    %1508 = vst.msk [vmem:[%s1507] sm:$0xf] %vm1506, %v1505
    %s1509 = scalar_lea.vmem [#allocation0], 20
    %1510 = vst.msk [vmem:[%s1509] sm:$0xf0] %vm1506, %v1505
    %s1511 = scalar_lea.vmem [#allocation1], 40
    %v1512 = vld [vmem:[%s1511] sm:$0x1]
    %s1513 = scalar_lea.vmem [#allocation1], 103
    %v1514 = vld [vmem:[%s1513] sm:$0x2]
    %vm1515 = vcmask 1041409
    %v1516 = vsel %vm1515, %v1514, %v1512
    %s1517 = scalar_lea.vmem [#allocation1], 166
    %v1518 = vld [vmem:[%s1517] sm:$0x4]
    %vm1519 = vcmask 1042434
    %v1520 = vsel %vm1519, %v1518, %v1516
    %s1521 = scalar_lea.vmem [#allocation1], 229
    %v1522 = vld [vmem:[%s1521] sm:$0x8]
    %vm1523 = vcmask 1043459
    %v1524 = vsel %vm1523, %v1522, %v1520
    %s1525 = scalar_lea.vmem [#allocation1], 292
    %v1526 = vld [vmem:[%s1525] sm:$0x10]
    %vm1527 = vcmask 1044484
    %v1528 = vsel %vm1527, %v1526, %v1524
    %s1529 = scalar_lea.vmem [#allocation1], 355
    %v1530 = vld [vmem:[%s1529] sm:$0x20]
    %vm1531 = vcmask 1045509
    %v1532 = vsel %vm1531, %v1530, %v1528
    %s1533 = scalar_lea.vmem [#allocation1], 418
    %v1534 = vld [vmem:[%s1533] sm:$0x40]
    %vm1535 = vcmask 1046534
    %v1536 = vsel %vm1535, %v1534, %v1532
    %s1537 = scalar_lea.vmem [#allocation1], 481
    %v1538 = vld [vmem:[%s1537] sm:$0x80]
    %vm1539 = vcmask 1047559
    %v1540 = vsel %vm1539, %v1538, %v1536
    %1541 = vrot.lane.b32.xlu0 %v1540, 80
    %v1542 = vpop.permute.xlu0 %1541
    %vm1543 = vcmask 687744
    %1544 = vst.msk [vmem:[#allocation0] sm:$0xf] %vm1543, %v1542
    %s1545 = scalar_lea.vmem [#allocation0], 4
    %1546 = vst.msk [vmem:[%s1545] sm:$0xf0] %vm1543, %v1542
    %s1547 = scalar_lea.vmem [#allocation1], 552
    %v1548 = vld [vmem:[%s1547] sm:$0x1]
    %s1549 = scalar_lea.vmem [#allocation1], 615
    %v1550 = vld [vmem:[%s1549] sm:$0x2]
    %vm1551 = vcmask 1041409
    %v1552 = vsel %vm1551, %v1550, %v1548
    %s1553 = scalar_lea.vmem [#allocation1], 678
    %v1554 = vld [vmem:[%s1553] sm:$0x4]
    %vm1555 = vcmask 1042434
    %v1556 = vsel %vm1555, %v1554, %v1552
    %s1557 = scalar_lea.vmem [#allocation1], 741
    %v1558 = vld [vmem:[%s1557] sm:$0x8]
    %vm1559 = vcmask 1043459
    %v1560 = vsel %vm1559, %v1558, %v1556
    %s1561 = scalar_lea.vmem [#allocation1], 804
    %v1562 = vld [vmem:[%s1561] sm:$0x10]
    %vm1563 = vcmask 1044484
    %v1564 = vsel %vm1563, %v1562, %v1560
    %s1565 = scalar_lea.vmem [#allocation1], 867
    %v1566 = vld [vmem:[%s1565] sm:$0x20]
    %vm1567 = vcmask 1045509
    %v1568 = vsel %vm1567, %v1566, %v1564
    %s1569 = scalar_lea.vmem [#allocation1], 930
    %v1570 = vld [vmem:[%s1569] sm:$0x40]
    %vm1571 = vcmask 1046534
    %v1572 = vsel %vm1571, %v1570, %v1568
    %s1573 = scalar_lea.vmem [#allocation1], 993
    %v1574 = vld [vmem:[%s1573] sm:$0x80]
    %vm1575 = vcmask 1047559
    %v1576 = vsel %vm1575, %v1574, %v1572
    %1577 = vrot.lane.b32.xlu0 %v1576, 80
    %v1578 = vpop.permute.xlu0 %1577
    %vm1579 = vcmask 687744
    %s1580 = scalar_lea.vmem [#allocation0], 16
    %1581 = vst.msk [vmem:[%s1580] sm:$0xf] %vm1579, %v1578
    %s1582 = scalar_lea.vmem [#allocation0], 20
    %1583 = vst.msk [vmem:[%s1582] sm:$0xf0] %vm1579, %v1578
    %s1584 = scalar_lea.vmem [#allocation1], 35
    %v1585 = vld [vmem:[%s1584] sm:$0x1]
    %s1586 = scalar_lea.vmem [#allocation1], 98
    %v1587 = vld [vmem:[%s1586] sm:$0x2]
    %vm1588 = vcmask 1041409
    %v1589 = vsel %vm1588, %v1587, %v1585
    %s1590 = scalar_lea.vmem [#allocation1], 161
    %v1591 = vld [vmem:[%s1590] sm:$0x4]
    %vm1592 = vcmask 1042434
    %v1593 = vsel %vm1592, %v1591, %v1589
    %s1594 = scalar_lea.vmem [#allocation1], 224
    %v1595 = vld [vmem:[%s1594] sm:$0x8]
    %vm1596 = vcmask 1043459
    %v1597 = vsel %vm1596, %v1595, %v1593
    %s1598 = scalar_lea.vmem [#allocation1], 287
    %v1599 = vld [vmem:[%s1598] sm:$0x10]
    %vm1600 = vcmask 1044484
    %v1601 = vsel %vm1600, %v1599, %v1597
    %s1602 = scalar_lea.vmem [#allocation1], 350
    %v1603 = vld [vmem:[%s1602] sm:$0x20]
    %vm1604 = vcmask 1045509
    %v1605 = vsel %vm1604, %v1603, %v1601
    %s1606 = scalar_lea.vmem [#allocation1], 413
    %v1607 = vld [vmem:[%s1606] sm:$0x40]
    %vm1608 = vcmask 1046534
    %v1609 = vsel %vm1608, %v1607, %v1605
    %s1610 = scalar_lea.vmem [#allocation1], 476
    %v1611 = vld [vmem:[%s1610] sm:$0x80]
    %vm1612 = vcmask 1047559
    %v1613 = vsel %vm1612, %v1611, %v1609
    %1614 = vrot.lane.b32.xlu0 %v1613, 76
    %v1615 = vpop.permute.xlu0 %1614
    %vm1616 = vcmask 654944
    %1617 = vst.msk [vmem:[#allocation0] sm:$0xf] %vm1616, %v1615
    %s1618 = scalar_lea.vmem [#allocation0], 4
    %1619 = vst.msk [vmem:[%s1618] sm:$0xf0] %vm1616, %v1615
    %s1620 = scalar_lea.vmem [#allocation1], 547
    %v1621 = vld [vmem:[%s1620] sm:$0x1]
    %s1622 = scalar_lea.vmem [#allocation1], 610
    %v1623 = vld [vmem:[%s1622] sm:$0x2]
    %vm1624 = vcmask 1041409
    %v1625 = vsel %vm1624, %v1623, %v1621
    %s1626 = scalar_lea.vmem [#allocation1], 673
    %v1627 = vld [vmem:[%s1626] sm:$0x4]
    %vm1628 = vcmask 1042434
    %v1629 = vsel %vm1628, %v1627, %v1625
    %s1630 = scalar_lea.vmem [#allocation1], 736
    %v1631 = vld [vmem:[%s1630] sm:$0x8]
    %vm1632 = vcmask 1043459
    %v1633 = vsel %vm1632, %v1631, %v1629
    %s1634 = scalar_lea.vmem [#allocation1], 799
    %v1635 = vld [vmem:[%s1634] sm:$0x10]
    %vm1636 = vcmask 1044484
    %v1637 = vsel %vm1636, %v1635, %v1633
    %s1638 = scalar_lea.vmem [#allocation1], 862
    %v1639 = vld [vmem:[%s1638] sm:$0x20]
    %vm1640 = vcmask 1045509
    %v1641 = vsel %vm1640, %v1639, %v1637
    %s1642 = scalar_lea.vmem [#allocation1], 925
    %v1643 = vld [vmem:[%s1642] sm:$0x40]
    %vm1644 = vcmask 1046534
    %v1645 = vsel %vm1644, %v1643, %v1641
    %s1646 = scalar_lea.vmem [#allocation1], 988
    %v1647 = vld [vmem:[%s1646] sm:$0x80]
    %vm1648 = vcmask 1047559
    %v1649 = vsel %vm1648, %v1647, %v1645
    %1650 = vrot.lane.b32.xlu0 %v1649, 76
    %v1651 = vpop.permute.xlu0 %1650
    %vm1652 = vcmask 654944
    %s1653 = scalar_lea.vmem [#allocation0], 16
    %1654 = vst.msk [vmem:[%s1653] sm:$0xf] %vm1652, %v1651
    %s1655 = scalar_lea.vmem [#allocation0], 20
    %1656 = vst.msk [vmem:[%s1655] sm:$0xf0] %vm1652, %v1651
    %s1657 = scalar_lea.vmem [#allocation1], 34
    %v1658 = vld [vmem:[%s1657] sm:$0x1]
    %s1659 = scalar_lea.vmem [#allocation1], 97
    %v1660 = vld [vmem:[%s1659] sm:$0x2]
    %vm1661 = vcmask 1041409
    %v1662 = vsel %vm1661, %v1660, %v1658
    %s1663 = scalar_lea.vmem [#allocation1], 160
    %v1664 = vld [vmem:[%s1663] sm:$0x4]
    %vm1665 = vcmask 1042434
    %v1666 = vsel %vm1665, %v1664, %v1662
    %s1667 = scalar_lea.vmem [#allocation1], 223
    %v1668 = vld [vmem:[%s1667] sm:$0x8]
    %vm1669 = vcmask 1043459
    %v1670 = vsel %vm1669, %v1668, %v1666
    %s1671 = scalar_lea.vmem [#allocation1], 286
    %v1672 = vld [vmem:[%s1671] sm:$0x10]
    %vm1673 = vcmask 1044484
    %v1674 = vsel %vm1673, %v1672, %v1670
    %s1675 = scalar_lea.vmem [#allocation1], 349
    %v1676 = vld [vmem:[%s1675] sm:$0x20]
    %vm1677 = vcmask 1045509
    %v1678 = vsel %vm1677, %v1676, %v1674
    %s1679 = scalar_lea.vmem [#allocation1], 412
    %v1680 = vld [vmem:[%s1679] sm:$0x40]
    %vm1681 = vcmask 1046534
    %v1682 = vsel %vm1681, %v1680, %v1678
    %s1683 = scalar_lea.vmem [#allocation1], 475
    %v1684 = vld [vmem:[%s1683] sm:$0x80]
    %vm1685 = vcmask 1047559
    %v1686 = vsel %vm1685, %v1684, %v1682
    %1687 = vrot.lane.b32.xlu0 %v1686, 72
    %v1688 = vpop.permute.xlu0 %1687
    %vm1689 = vcmask 622144
    %1690 = vst.msk [vmem:[#allocation0] sm:$0xf] %vm1689, %v1688
    %s1691 = scalar_lea.vmem [#allocation0], 4
    %1692 = vst.msk [vmem:[%s1691] sm:$0xf0] %vm1689, %v1688
    %s1693 = scalar_lea.vmem [#allocation1], 546
    %v1694 = vld [vmem:[%s1693] sm:$0x1]
    %s1695 = scalar_lea.vmem [#allocation1], 609
    %v1696 = vld [vmem:[%s1695] sm:$0x2]
    %vm1697 = vcmask 1041409
    %v1698 = vsel %vm1697, %v1696, %v1694
    %s1699 = scalar_lea.vmem [#allocation1], 672
    %v1700 = vld [vmem:[%s1699] sm:$0x4]
    %vm1701 = vcmask 1042434
    %v1702 = vsel %vm1701, %v1700, %v1698
    %s1703 = scalar_lea.vmem [#allocation1], 735
    %v1704 = vld [vmem:[%s1703] sm:$0x8]
    %vm1705 = vcmask 1043459
    %v1706 = vsel %vm1705, %v1704, %v1702
    %s1707 = scalar_lea.vmem [#allocation1], 798
    %v1708 = vld [vmem:[%s1707] sm:$0x10]
    %vm1709 = vcmask 1044484
    %v1710 = vsel %vm1709, %v1708, %v1706
    %s1711 = scalar_lea.vmem [#allocation1], 861
    %v1712 = vld [vmem:[%s1711] sm:$0x20]
    %vm1713 = vcmask 1045509
    %v1714 = vsel %vm1713, %v1712, %v1710
    %s1715 = scalar_lea.vmem [#allocation1], 924
    %v1716 = vld [vmem:[%s1715] sm:$0x40]
    %vm1717 = vcmask 1046534
    %v1718 = vsel %vm1717, %v1716, %v1714
    %s1719 = scalar_lea.vmem [#allocation1], 987
    %v1720 = vld [vmem:[%s1719] sm:$0x80]
    %vm1721 = vcmask 1047559
    %v1722 = vsel %vm1721, %v1720, %v1718
    %1723 = vrot.lane.b32.xlu0 %v1722, 72
    %v1724 = vpop.permute.xlu0 %1723
    %vm1725 = vcmask 622144
    %s1726 = scalar_lea.vmem [#allocation0], 16
    %1727 = vst.msk [vmem:[%s1726] sm:$0xf] %vm1725, %v1724
    %s1728 = scalar_lea.vmem [#allocation0], 20
    %1729 = vst.msk [vmem:[%s1728] sm:$0xf0] %vm1725, %v1724
    %s1730 = scalar_lea.vmem [#allocation1], 33
    %v1731 = vld [vmem:[%s1730] sm:$0x1]
    %s1732 = scalar_lea.vmem [#allocation1], 96
    %v1733 = vld [vmem:[%s1732] sm:$0x2]
    %vm1734 = vcmask 1041409
    %v1735 = vsel %vm1734, %v1733, %v1731
    %s1736 = scalar_lea.vmem [#allocation1], 159
    %v1737 = vld [vmem:[%s1736] sm:$0x4]
    %vm1738 = vcmask 1042434
    %v1739 = vsel %vm1738, %v1737, %v1735
    %s1740 = scalar_lea.vmem [#allocation1], 222
    %v1741 = vld [vmem:[%s1740] sm:$0x8]
    %vm1742 = vcmask 1043459
    %v1743 = vsel %vm1742, %v1741, %v1739
    %s1744 = scalar_lea.vmem [#allocation1], 285
    %v1745 = vld [vmem:[%s1744] sm:$0x10]
    %vm1746 = vcmask 1044484
    %v1747 = vsel %vm1746, %v1745, %v1743
    %s1748 = scalar_lea.vmem [#allocation1], 348
    %v1749 = vld [vmem:[%s1748] sm:$0x20]
    %vm1750 = vcmask 1045509
    %v1751 = vsel %vm1750, %v1749, %v1747
    %s1752 = scalar_lea.vmem [#allocation1], 411
    %v1753 = vld [vmem:[%s1752] sm:$0x40]
    %vm1754 = vcmask 1046534
    %v1755 = vsel %vm1754, %v1753, %v1751
    %s1756 = scalar_lea.vmem [#allocation1], 474
    %v1757 = vld [vmem:[%s1756] sm:$0x80]
    %vm1758 = vcmask 1047559
    %v1759 = vsel %vm1758, %v1757, %v1755
    %1760 = vrot.lane.b32.xlu0 %v1759, 68
    %v1761 = vpop.permute.xlu0 %1760
    %vm1762 = vcmask 589344
    %1763 = vst.msk [vmem:[#allocation0] sm:$0xf] %vm1762, %v1761
    %s1764 = scalar_lea.vmem [#allocation0], 4
    %1765 = vst.msk [vmem:[%s1764] sm:$0xf0] %vm1762, %v1761
    %s1766 = scalar_lea.vmem [#allocation1], 545
    %v1767 = vld [vmem:[%s1766] sm:$0x1]
    %s1768 = scalar_lea.vmem [#allocation1], 608
    %v1769 = vld [vmem:[%s1768] sm:$0x2]
    %vm1770 = vcmask 1041409
    %v1771 = vsel %vm1770, %v1769, %v1767
    %s1772 = scalar_lea.vmem [#allocation1], 671
    %v1773 = vld [vmem:[%s1772] sm:$0x4]
    %vm1774 = vcmask 1042434
    %v1775 = vsel %vm1774, %v1773, %v1771
    %s1776 = scalar_lea.vmem [#allocation1], 734
    %v1777 = vld [vmem:[%s1776] sm:$0x8]
    %vm1778 = vcmask 1043459
    %v1779 = vsel %vm1778, %v1777, %v1775
    %s1780 = scalar_lea.vmem [#allocation1], 797
    %v1781 = vld [vmem:[%s1780] sm:$0x10]
    %vm1782 = vcmask 1044484
    %v1783 = vsel %vm1782, %v1781, %v1779
    %s1784 = scalar_lea.vmem [#allocation1], 860
    %v1785 = vld [vmem:[%s1784] sm:$0x20]
    %vm1786 = vcmask 1045509
    %v1787 = vsel %vm1786, %v1785, %v1783
    %s1788 = scalar_lea.vmem [#allocation1], 923
    %v1789 = vld [vmem:[%s1788] sm:$0x40]
    %vm1790 = vcmask 1046534
    %v1791 = vsel %vm1790, %v1789, %v1787
    %s1792 = scalar_lea.vmem [#allocation1], 986
    %v1793 = vld [vmem:[%s1792] sm:$0x80]
    %vm1794 = vcmask 1047559
    %v1795 = vsel %vm1794, %v1793, %v1791
    %1796 = vrot.lane.b32.xlu0 %v1795, 68
    %v1797 = vpop.permute.xlu0 %1796
    %vm1798 = vcmask 589344
    %s1799 = scalar_lea.vmem [#allocation0], 16
    %1800 = vst.msk [vmem:[%s1799] sm:$0xf] %vm1798, %v1797
    %s1801 = scalar_lea.vmem [#allocation0], 20
    %1802 = vst.msk [vmem:[%s1801] sm:$0xf0] %vm1798, %v1797
    %s1803 = scalar_lea.vmem [#allocation1], 32
    %v1804 = vld [vmem:[%s1803] sm:$0x1]
    %s1805 = scalar_lea.vmem [#allocation1], 95
    %v1806 = vld [vmem:[%s1805] sm:$0x2]
    %vm1807 = vcmask 1041409
    %v1808 = vsel %vm1807, %v1806, %v1804
    %s1809 = scalar_lea.vmem [#allocation1], 158
    %v1810 = vld [vmem:[%s1809] sm:$0x4]
    %vm1811 = vcmask 1042434
    %v1812 = vsel %vm1811, %v1810, %v1808
    %s1813 = scalar_lea.vmem [#allocation1], 221
    %v1814 = vld [vmem:[%s1813] sm:$0x8]
    %vm1815 = vcmask 1043459
    %v1816 = vsel %vm1815, %v1814, %v1812
    %s1817 = scalar_lea.vmem [#allocation1], 284
    %v1818 = vld [vmem:[%s1817] sm:$0x10]
    %vm1819 = vcmask 1044484
    %v1820 = vsel %vm1819, %v1818, %v1816
    %s1821 = scalar_lea.vmem [#allocation1], 347
    %v1822 = vld [vmem:[%s1821] sm:$0x20]
    %vm1823 = vcmask 1045509
    %v1824 = vsel %vm1823, %v1822, %v1820
    %s1825 = scalar_lea.vmem [#allocation1], 410
    %v1826 = vld [vmem:[%s1825] sm:$0x40]
    %vm1827 = vcmask 1046534
    %v1828 = vsel %vm1827, %v1826, %v1824
    %s1829 = scalar_lea.vmem [#allocation1], 473
    %v1830 = vld [vmem:[%s1829] sm:$0x80]
    %vm1831 = vcmask 1047559
    %v1832 = vsel %vm1831, %v1830, %v1828
    %1833 = vrot.lane.b32.xlu0 %v1832, 64
    %v1834 = vpop.permute.xlu0 %1833
    %vm1835 = vcmask 556544
    %1836 = vst.msk [vmem:[#allocation0] sm:$0xf] %vm1835, %v1834
    %s1837 = scalar_lea.vmem [#allocation0], 4
    %1838 = vst.msk [vmem:[%s1837] sm:$0xf0] %vm1835, %v1834
    %s1839 = scalar_lea.vmem [#allocation1], 544
    %v1840 = vld [vmem:[%s1839] sm:$0x1]
    %s1841 = scalar_lea.vmem [#allocation1], 607
    %v1842 = vld [vmem:[%s1841] sm:$0x2]
    %vm1843 = vcmask 1041409
    %v1844 = vsel %vm1843, %v1842, %v1840
    %s1845 = scalar_lea.vmem [#allocation1], 670
    %v1846 = vld [vmem:[%s1845] sm:$0x4]
    %vm1847 = vcmask 1042434
    %v1848 = vsel %vm1847, %v1846, %v1844
    %s1849 = scalar_lea.vmem [#allocation1], 733
    %v1850 = vld [vmem:[%s1849] sm:$0x8]
    %vm1851 = vcmask 1043459
    %v1852 = vsel %vm1851, %v1850, %v1848
    %s1853 = scalar_lea.vmem [#allocation1], 796
    %v1854 = vld [vmem:[%s1853] sm:$0x10]
    %vm1855 = vcmask 1044484
    %v1856 = vsel %vm1855, %v1854, %v1852
    %s1857 = scalar_lea.vmem [#allocation1], 859
    %v1858 = vld [vmem:[%s1857] sm:$0x20]
    %vm1859 = vcmask 1045509
    %v1860 = vsel %vm1859, %v1858, %v1856
    %s1861 = scalar_lea.vmem [#allocation1], 922
    %v1862 = vld [vmem:[%s1861] sm:$0x40]
    %vm1863 = vcmask 1046534
    %v1864 = vsel %vm1863, %v1862, %v1860
    %s1865 = scalar_lea.vmem [#allocation1], 985
    %v1866 = vld [vmem:[%s1865] sm:$0x80]
    %vm1867 = vcmask 1047559
    %v1868 = vsel %vm1867, %v1866, %v1864
    %1869 = vrot.lane.b32.xlu0 %v1868, 64
    %v1870 = vpop.permute.xlu0 %1869
    %vm1871 = vcmask 556544
    %s1872 = scalar_lea.vmem [#allocation0], 16
    %1873 = vst.msk [vmem:[%s1872] sm:$0xf] %vm1871, %v1870
    %s1874 = scalar_lea.vmem [#allocation0], 20
    %1875 = vst.msk [vmem:[%s1874] sm:$0xf0] %vm1871, %v1870
    %s1876 = scalar_lea.vmem [#allocation1], 27
    %v1877 = vld [vmem:[%s1876] sm:$0x1]
    %s1878 = scalar_lea.vmem [#allocation1], 90
    %v1879 = vld [vmem:[%s1878] sm:$0x2]
    %vm1880 = vcmask 1041409
    %v1881 = vsel %vm1880, %v1879, %v1877
    %s1882 = scalar_lea.vmem [#allocation1], 153
    %v1883 = vld [vmem:[%s1882] sm:$0x4]
    %vm1884 = vcmask 1042434
    %v1885 = vsel %vm1884, %v1883, %v1881
    %s1886 = scalar_lea.vmem [#allocation1], 216
    %v1887 = vld [vmem:[%s1886] sm:$0x8]
    %vm1888 = vcmask 1043459
    %v1889 = vsel %vm1888, %v1887, %v1885
    %s1890 = scalar_lea.vmem [#allocation1], 279
    %v1891 = vld [vmem:[%s1890] sm:$0x10]
    %vm1892 = vcmask 1044484
    %v1893 = vsel %vm1892, %v1891, %v1889
    %s1894 = scalar_lea.vmem [#allocation1], 342
    %v1895 = vld [vmem:[%s1894] sm:$0x20]
    %vm1896 = vcmask 1045509
    %v1897 = vsel %vm1896, %v1895, %v1893
    %s1898 = scalar_lea.vmem [#allocation1], 405
    %v1899 = vld [vmem:[%s1898] sm:$0x40]
    %vm1900 = vcmask 1046534
    %v1901 = vsel %vm1900, %v1899, %v1897
    %s1902 = scalar_lea.vmem [#allocation1], 468
    %v1903 = vld [vmem:[%s1902] sm:$0x80]
    %vm1904 = vcmask 1047559
    %v1905 = vsel %vm1904, %v1903, %v1901
    %1906 = vrot.lane.b32.xlu0 %v1905, 60
    %v1907 = vpop.permute.xlu0 %1906
    %vm1908 = vcmask 523744
    %1909 = vst.msk [vmem:[#allocation0] sm:$0xf] %vm1908, %v1907
    %s1910 = scalar_lea.vmem [#allocation0], 4
    %1911 = vst.msk [vmem:[%s1910] sm:$0xf0] %vm1908, %v1907
    %s1912 = scalar_lea.vmem [#allocation1], 539
    %v1913 = vld [vmem:[%s1912] sm:$0x1]
    %s1914 = scalar_lea.vmem [#allocation1], 602
    %v1915 = vld [vmem:[%s1914] sm:$0x2]
    %vm1916 = vcmask 1041409
    %v1917 = vsel %vm1916, %v1915, %v1913
    %s1918 = scalar_lea.vmem [#allocation1], 665
    %v1919 = vld [vmem:[%s1918] sm:$0x4]
    %vm1920 = vcmask 1042434
    %v1921 = vsel %vm1920, %v1919, %v1917
    %s1922 = scalar_lea.vmem [#allocation1], 728
    %v1923 = vld [vmem:[%s1922] sm:$0x8]
    %vm1924 = vcmask 1043459
    %v1925 = vsel %vm1924, %v1923, %v1921
    %s1926 = scalar_lea.vmem [#allocation1], 791
    %v1927 = vld [vmem:[%s1926] sm:$0x10]
    %vm1928 = vcmask 1044484
    %v1929 = vsel %vm1928, %v1927, %v1925
    %s1930 = scalar_lea.vmem [#allocation1], 854
    %v1931 = vld [vmem:[%s1930] sm:$0x20]
    %vm1932 = vcmask 1045509
    %v1933 = vsel %vm1932, %v1931, %v1929
    %s1934 = scalar_lea.vmem [#allocation1], 917
    %v1935 = vld [vmem:[%s1934] sm:$0x40]
    %vm1936 = vcmask 1046534
    %v1937 = vsel %vm1936, %v1935, %v1933
    %s1938 = scalar_lea.vmem [#allocation1], 980
    %v1939 = vld [vmem:[%s1938] sm:$0x80]
    %vm1940 = vcmask 1047559
    %v1941 = vsel %vm1940, %v1939, %v1937
    %1942 = vrot.lane.b32.xlu0 %v1941, 60
    %v1943 = vpop.permute.xlu0 %1942
    %vm1944 = vcmask 523744
    %s1945 = scalar_lea.vmem [#allocation0], 16
    %1946 = vst.msk [vmem:[%s1945] sm:$0xf] %vm1944, %v1943
    %s1947 = scalar_lea.vmem [#allocation0], 20
    %1948 = vst.msk [vmem:[%s1947] sm:$0xf0] %vm1944, %v1943
    %s1949 = scalar_lea.vmem [#allocation1], 26
    %v1950 = vld [vmem:[%s1949] sm:$0x1]
    %s1951 = scalar_lea.vmem [#allocation1], 89
    %v1952 = vld [vmem:[%s1951] sm:$0x2]
    %vm1953 = vcmask 1041409
    %v1954 = vsel %vm1953, %v1952, %v1950
    %s1955 = scalar_lea.vmem [#allocation1], 152
    %v1956 = vld [vmem:[%s1955] sm:$0x4]
    %vm1957 = vcmask 1042434
    %v1958 = vsel %vm1957, %v1956, %v1954
    %s1959 = scalar_lea.vmem [#allocation1], 215
    %v1960 = vld [vmem:[%s1959] sm:$0x8]
    %vm1961 = vcmask 1043459
    %v1962 = vsel %vm1961, %v1960, %v1958
    %s1963 = scalar_lea.vmem [#allocation1], 278
    %v1964 = vld [vmem:[%s1963] sm:$0x10]
    %vm1965 = vcmask 1044484
    %v1966 = vsel %vm1965, %v1964, %v1962
    %s1967 = scalar_lea.vmem [#allocation1], 341
    %v1968 = vld [vmem:[%s1967] sm:$0x20]
    %vm1969 = vcmask 1045509
    %v1970 = vsel %vm1969, %v1968, %v1966
    %s1971 = scalar_lea.vmem [#allocation1], 404
    %v1972 = vld [vmem:[%s1971] sm:$0x40]
    %vm1973 = vcmask 1046534
    %v1974 = vsel %vm1973, %v1972, %v1970
    %s1975 = scalar_lea.vmem [#allocation1], 467
    %v1976 = vld [vmem:[%s1975] sm:$0x80]
    %vm1977 = vcmask 1047559
    %v1978 = vsel %vm1977, %v1976, %v1974
    %1979 = vrot.lane.b32.xlu0 %v1978, 56
    %v1980 = vpop.permute.xlu0 %1979
    %vm1981 = vcmask 490944
    %1982 = vst.msk [vmem:[#allocation0] sm:$0xf] %vm1981, %v1980
    %s1983 = scalar_lea.vmem [#allocation0], 4
    %1984 = vst.msk [vmem:[%s1983] sm:$0xf0] %vm1981, %v1980
    %s1985 = scalar_lea.vmem [#allocation1], 538
    %v1986 = vld [vmem:[%s1985] sm:$0x1]
    %s1987 = scalar_lea.vmem [#allocation1], 601
    %v1988 = vld [vmem:[%s1987] sm:$0x2]
    %vm1989 = vcmask 1041409
    %v1990 = vsel %vm1989, %v1988, %v1986
    %s1991 = scalar_lea.vmem [#allocation1], 664
    %v1992 = vld [vmem:[%s1991] sm:$0x4]
    %vm1993 = vcmask 1042434
    %v1994 = vsel %vm1993, %v1992, %v1990
    %s1995 = scalar_lea.vmem [#allocation1], 727
    %v1996 = vld [vmem:[%s1995] sm:$0x8]
    %vm1997 = vcmask 1043459
    %v1998 = vsel %vm1997, %v1996, %v1994
    %s1999 = scalar_lea.vmem [#allocation1], 790
    %v2000 = vld [vmem:[%s1999] sm:$0x10]
    %vm2001 = vcmask 1044484
    %v2002 = vsel %vm2001, %v2000, %v1998
    %s2003 = scalar_lea.vmem [#allocation1], 853
    %v2004 = vld [vmem:[%s2003] sm:$0x20]
    %vm2005 = vcmask 1045509
    %v2006 = vsel %vm2005, %v2004, %v2002
    %s2007 = scalar_lea.vmem [#allocation1], 916
    %v2008 = vld [vmem:[%s2007] sm:$0x40]
    %vm2009 = vcmask 1046534
    %v2010 = vsel %vm2009, %v2008, %v2006
    %s2011 = scalar_lea.vmem [#allocation1], 979
    %v2012 = vld [vmem:[%s2011] sm:$0x80]
    %vm2013 = vcmask 1047559
    %v2014 = vsel %vm2013, %v2012, %v2010
    %2015 = vrot.lane.b32.xlu0 %v2014, 56
    %v2016 = vpop.permute.xlu0 %2015
    %vm2017 = vcmask 490944
    %s2018 = scalar_lea.vmem [#allocation0], 16
    %2019 = vst.msk [vmem:[%s2018] sm:$0xf] %vm2017, %v2016
    %s2020 = scalar_lea.vmem [#allocation0], 20
    %2021 = vst.msk [vmem:[%s2020] sm:$0xf0] %vm2017, %v2016
    %s2022 = scalar_lea.vmem [#allocation1], 25
    %v2023 = vld [vmem:[%s2022] sm:$0x1]
    %s2024 = scalar_lea.vmem [#allocation1], 88
    %v2025 = vld [vmem:[%s2024] sm:$0x2]
    %vm2026 = vcmask 1041409
    %v2027 = vsel %vm2026, %v2025, %v2023
    %s2028 = scalar_lea.vmem [#allocation1], 151
    %v2029 = vld [vmem:[%s2028] sm:$0x4]
    %vm2030 = vcmask 1042434
    %v2031 = vsel %vm2030, %v2029, %v2027
    %s2032 = scalar_lea.vmem [#allocation1], 214
    %v2033 = vld [vmem:[%s2032] sm:$0x8]
    %vm2034 = vcmask 1043459
    %v2035 = vsel %vm2034, %v2033, %v2031
    %s2036 = scalar_lea.vmem [#allocation1], 277
    %v2037 = vld [vmem:[%s2036] sm:$0x10]
    %vm2038 = vcmask 1044484
    %v2039 = vsel %vm2038, %v2037, %v2035
    %s2040 = scalar_lea.vmem [#allocation1], 340
    %v2041 = vld [vmem:[%s2040] sm:$0x20]
    %vm2042 = vcmask 1045509
    %v2043 = vsel %vm2042, %v2041, %v2039
    %s2044 = scalar_lea.vmem [#allocation1], 403
    %v2045 = vld [vmem:[%s2044] sm:$0x40]
    %vm2046 = vcmask 1046534
    %v2047 = vsel %vm2046, %v2045, %v2043
    %s2048 = scalar_lea.vmem [#allocation1], 466
    %v2049 = vld [vmem:[%s2048] sm:$0x80]
    %vm2050 = vcmask 1047559
    %v2051 = vsel %vm2050, %v2049, %v2047
    %2052 = vrot.lane.b32.xlu0 %v2051, 52
    %v2053 = vpop.permute.xlu0 %2052
    %vm2054 = vcmask 458144
    %2055 = vst.msk [vmem:[#allocation0] sm:$0xf] %vm2054, %v2053
    %s2056 = scalar_lea.vmem [#allocation0], 4
    %2057 = vst.msk [vmem:[%s2056] sm:$0xf0] %vm2054, %v2053
    %s2058 = scalar_lea.vmem [#allocation1], 537
    %v2059 = vld [vmem:[%s2058] sm:$0x1]
    %s2060 = scalar_lea.vmem [#allocation1], 600
    %v2061 = vld [vmem:[%s2060] sm:$0x2]
    %vm2062 = vcmask 1041409
    %v2063 = vsel %vm2062, %v2061, %v2059
    %s2064 = scalar_lea.vmem [#allocation1], 663
    %v2065 = vld [vmem:[%s2064] sm:$0x4]
    %vm2066 = vcmask 1042434
    %v2067 = vsel %vm2066, %v2065, %v2063
    %s2068 = scalar_lea.vmem [#allocation1], 726
    %v2069 = vld [vmem:[%s2068] sm:$0x8]
    %vm2070 = vcmask 1043459
    %v2071 = vsel %vm2070, %v2069, %v2067
    %s2072 = scalar_lea.vmem [#allocation1], 789
    %v2073 = vld [vmem:[%s2072] sm:$0x10]
    %vm2074 = vcmask 1044484
    %v2075 = vsel %vm2074, %v2073, %v2071
    %s2076 = scalar_lea.vmem [#allocation1], 852
    %v2077 = vld [vmem:[%s2076] sm:$0x20]
    %vm2078 = vcmask 1045509
    %v2079 = vsel %vm2078, %v2077, %v2075
    %s2080 = scalar_lea.vmem [#allocation1], 915
    %v2081 = vld [vmem:[%s2080] sm:$0x40]
    %vm2082 = vcmask 1046534
    %v2083 = vsel %vm2082, %v2081, %v2079
    %s2084 = scalar_lea.vmem [#allocation1], 978
    %v2085 = vld [vmem:[%s2084] sm:$0x80]
    %vm2086 = vcmask 1047559
    %v2087 = vsel %vm2086, %v2085, %v2083
    %2088 = vrot.lane.b32.xlu0 %v2087, 52
    %v2089 = vpop.permute.xlu0 %2088
    %vm2090 = vcmask 458144
    %s2091 = scalar_lea.vmem [#allocation0], 16
    %2092 = vst.msk [vmem:[%s2091] sm:$0xf] %vm2090, %v2089
    %s2093 = scalar_lea.vmem [#allocation0], 20
    %2094 = vst.msk [vmem:[%s2093] sm:$0xf0] %vm2090, %v2089
    %s2095 = scalar_lea.vmem [#allocation1], 24
    %v2096 = vld [vmem:[%s2095] sm:$0x1]
    %s2097 = scalar_lea.vmem [#allocation1], 87
    %v2098 = vld [vmem:[%s2097] sm:$0x2]
    %vm2099 = vcmask 1041409
    %v2100 = vsel %vm2099, %v2098, %v2096
    %s2101 = scalar_lea.vmem [#allocation1], 150
    %v2102 = vld [vmem:[%s2101] sm:$0x4]
    %vm2103 = vcmask 1042434
    %v2104 = vsel %vm2103, %v2102, %v2100
    %s2105 = scalar_lea.vmem [#allocation1], 213
    %v2106 = vld [vmem:[%s2105] sm:$0x8]
    %vm2107 = vcmask 1043459
    %v2108 = vsel %vm2107, %v2106, %v2104
    %s2109 = scalar_lea.vmem [#allocation1], 276
    %v2110 = vld [vmem:[%s2109] sm:$0x10]
    %vm2111 = vcmask 1044484
    %v2112 = vsel %vm2111, %v2110, %v2108
    %s2113 = scalar_lea.vmem [#allocation1], 339
    %v2114 = vld [vmem:[%s2113] sm:$0x20]
    %vm2115 = vcmask 1045509
    %v2116 = vsel %vm2115, %v2114, %v2112
    %s2117 = scalar_lea.vmem [#allocation1], 402
    %v2118 = vld [vmem:[%s2117] sm:$0x40]
    %vm2119 = vcmask 1046534
    %v2120 = vsel %vm2119, %v2118, %v2116
    %s2121 = scalar_lea.vmem [#allocation1], 465
    %v2122 = vld [vmem:[%s2121] sm:$0x80]
    %vm2123 = vcmask 1047559
    %v2124 = vsel %vm2123, %v2122, %v2120
    %2125 = vrot.lane.b32.xlu0 %v2124, 48
    %v2126 = vpop.permute.xlu0 %2125
    %vm2127 = vcmask 425344
    %2128 = vst.msk [vmem:[#allocation0] sm:$0xf] %vm2127, %v2126
    %s2129 = scalar_lea.vmem [#allocation0], 4
    %2130 = vst.msk [vmem:[%s2129] sm:$0xf0] %vm2127, %v2126
    %s2131 = scalar_lea.vmem [#allocation1], 536
    %v2132 = vld [vmem:[%s2131] sm:$0x1]
    %s2133 = scalar_lea.vmem [#allocation1], 599
    %v2134 = vld [vmem:[%s2133] sm:$0x2]
    %vm2135 = vcmask 1041409
    %v2136 = vsel %vm2135, %v2134, %v2132
    %s2137 = scalar_lea.vmem [#allocation1], 662
    %v2138 = vld [vmem:[%s2137] sm:$0x4]
    %vm2139 = vcmask 1042434
    %v2140 = vsel %vm2139, %v2138, %v2136
    %s2141 = scalar_lea.vmem [#allocation1], 725
    %v2142 = vld [vmem:[%s2141] sm:$0x8]
    %vm2143 = vcmask 1043459
    %v2144 = vsel %vm2143, %v2142, %v2140
    %s2145 = scalar_lea.vmem [#allocation1], 788
    %v2146 = vld [vmem:[%s2145] sm:$0x10]
    %vm2147 = vcmask 1044484
    %v2148 = vsel %vm2147, %v2146, %v2144
    %s2149 = scalar_lea.vmem [#allocation1], 851
    %v2150 = vld [vmem:[%s2149] sm:$0x20]
    %vm2151 = vcmask 1045509
    %v2152 = vsel %vm2151, %v2150, %v2148
    %s2153 = scalar_lea.vmem [#allocation1], 914
    %v2154 = vld [vmem:[%s2153] sm:$0x40]
    %vm2155 = vcmask 1046534
    %v2156 = vsel %vm2155, %v2154, %v2152
    %s2157 = scalar_lea.vmem [#allocation1], 977
    %v2158 = vld [vmem:[%s2157] sm:$0x80]
    %vm2159 = vcmask 1047559
    %v2160 = vsel %vm2159, %v2158, %v2156
    %2161 = vrot.lane.b32.xlu0 %v2160, 48
    %v2162 = vpop.permute.xlu0 %2161
    %vm2163 = vcmask 425344
    %s2164 = scalar_lea.vmem [#allocation0], 16
    %2165 = vst.msk [vmem:[%s2164] sm:$0xf] %vm2163, %v2162
    %s2166 = scalar_lea.vmem [#allocation0], 20
    %2167 = vst.msk [vmem:[%s2166] sm:$0xf0] %vm2163, %v2162
    %s2168 = scalar_lea.vmem [#allocation1], 19
    %v2169 = vld [vmem:[%s2168] sm:$0x1]
    %s2170 = scalar_lea.vmem [#allocation1], 82
    %v2171 = vld [vmem:[%s2170] sm:$0x2]
    %vm2172 = vcmask 1041409
    %v2173 = vsel %vm2172, %v2171, %v2169
    %s2174 = scalar_lea.vmem [#allocation1], 145
    %v2175 = vld [vmem:[%s2174] sm:$0x4]
    %vm2176 = vcmask 1042434
    %v2177 = vsel %vm2176, %v2175, %v2173
    %s2178 = scalar_lea.vmem [#allocation1], 208
    %v2179 = vld [vmem:[%s2178] sm:$0x8]
    %vm2180 = vcmask 1043459
    %v2181 = vsel %vm2180, %v2179, %v2177
    %s2182 = scalar_lea.vmem [#allocation1], 271
    %v2183 = vld [vmem:[%s2182] sm:$0x10]
    %vm2184 = vcmask 1044484
    %v2185 = vsel %vm2184, %v2183, %v2181
    %s2186 = scalar_lea.vmem [#allocation1], 334
    %v2187 = vld [vmem:[%s2186] sm:$0x20]
    %vm2188 = vcmask 1045509
    %v2189 = vsel %vm2188, %v2187, %v2185
    %s2190 = scalar_lea.vmem [#allocation1], 397
    %v2191 = vld [vmem:[%s2190] sm:$0x40]
    %vm2192 = vcmask 1046534
    %v2193 = vsel %vm2192, %v2191, %v2189
    %s2194 = scalar_lea.vmem [#allocation1], 460
    %v2195 = vld [vmem:[%s2194] sm:$0x80]
    %vm2196 = vcmask 1047559
    %v2197 = vsel %vm2196, %v2195, %v2193
    %2198 = vrot.lane.b32.xlu0 %v2197, 44
    %v2199 = vpop.permute.xlu0 %2198
    %vm2200 = vcmask 392544
    %2201 = vst.msk [vmem:[#allocation0] sm:$0xf] %vm2200, %v2199
    %s2202 = scalar_lea.vmem [#allocation0], 4
    %2203 = vst.msk [vmem:[%s2202] sm:$0xf0] %vm2200, %v2199
    %s2204 = scalar_lea.vmem [#allocation1], 531
    %v2205 = vld [vmem:[%s2204] sm:$0x1]
    %s2206 = scalar_lea.vmem [#allocation1], 594
    %v2207 = vld [vmem:[%s2206] sm:$0x2]
    %vm2208 = vcmask 1041409
    %v2209 = vsel %vm2208, %v2207, %v2205
    %s2210 = scalar_lea.vmem [#allocation1], 657
    %v2211 = vld [vmem:[%s2210] sm:$0x4]
    %vm2212 = vcmask 1042434
    %v2213 = vsel %vm2212, %v2211, %v2209
    %s2214 = scalar_lea.vmem [#allocation1], 720
    %v2215 = vld [vmem:[%s2214] sm:$0x8]
    %vm2216 = vcmask 1043459
    %v2217 = vsel %vm2216, %v2215, %v2213
    %s2218 = scalar_lea.vmem [#allocation1], 783
    %v2219 = vld [vmem:[%s2218] sm:$0x10]
    %vm2220 = vcmask 1044484
    %v2221 = vsel %vm2220, %v2219, %v2217
    %s2222 = scalar_lea.vmem [#allocation1], 846
    %v2223 = vld [vmem:[%s2222] sm:$0x20]
    %vm2224 = vcmask 1045509
    %v2225 = vsel %vm2224, %v2223, %v2221
    %s2226 = scalar_lea.vmem [#allocation1], 909
    %v2227 = vld [vmem:[%s2226] sm:$0x40]
    %vm2228 = vcmask 1046534
    %v2229 = vsel %vm2228, %v2227, %v2225
    %s2230 = scalar_lea.vmem [#allocation1], 972
    %v2231 = vld [vmem:[%s2230] sm:$0x80]
    %vm2232 = vcmask 1047559
    %v2233 = vsel %vm2232, %v2231, %v2229
    %2234 = vrot.lane.b32.xlu0 %v2233, 44
    %v2235 = vpop.permute.xlu0 %2234
    %vm2236 = vcmask 392544
    %s2237 = scalar_lea.vmem [#allocation0], 16
    %2238 = vst.msk [vmem:[%s2237] sm:$0xf] %vm2236, %v2235
    %s2239 = scalar_lea.vmem [#allocation0], 20
    %2240 = vst.msk [vmem:[%s2239] sm:$0xf0] %vm2236, %v2235
    %s2241 = scalar_lea.vmem [#allocation1], 18
    %v2242 = vld [vmem:[%s2241] sm:$0x1]
    %s2243 = scalar_lea.vmem [#allocation1], 81
    %v2244 = vld [vmem:[%s2243] sm:$0x2]
    %vm2245 = vcmask 1041409
    %v2246 = vsel %vm2245, %v2244, %v2242
    %s2247 = scalar_lea.vmem [#allocation1], 144
    %v2248 = vld [vmem:[%s2247] sm:$0x4]
    %vm2249 = vcmask 1042434
    %v2250 = vsel %vm2249, %v2248, %v2246
    %s2251 = scalar_lea.vmem [#allocation1], 207
    %v2252 = vld [vmem:[%s2251] sm:$0x8]
    %vm2253 = vcmask 1043459
    %v2254 = vsel %vm2253, %v2252, %v2250
    %s2255 = scalar_lea.vmem [#allocation1], 270
    %v2256 = vld [vmem:[%s2255] sm:$0x10]
    %vm2257 = vcmask 1044484
    %v2258 = vsel %vm2257, %v2256, %v2254
    %s2259 = scalar_lea.vmem [#allocation1], 333
    %v2260 = vld [vmem:[%s2259] sm:$0x20]
    %vm2261 = vcmask 1045509
    %v2262 = vsel %vm2261, %v2260, %v2258
    %s2263 = scalar_lea.vmem [#allocation1], 396
    %v2264 = vld [vmem:[%s2263] sm:$0x40]
    %vm2265 = vcmask 1046534
    %v2266 = vsel %vm2265, %v2264, %v2262
    %s2267 = scalar_lea.vmem [#allocation1], 459
    %v2268 = vld [vmem:[%s2267] sm:$0x80]
    %vm2269 = vcmask 1047559
    %v2270 = vsel %vm2269, %v2268, %v2266
    %2271 = vrot.lane.b32.xlu0 %v2270, 40
    %v2272 = vpop.permute.xlu0 %2271
    %vm2273 = vcmask 359744
    %2274 = vst.msk [vmem:[#allocation0] sm:$0xf] %vm2273, %v2272
    %s2275 = scalar_lea.vmem [#allocation0], 4
    %2276 = vst.msk [vmem:[%s2275] sm:$0xf0] %vm2273, %v2272
    %s2277 = scalar_lea.vmem [#allocation1], 530
    %v2278 = vld [vmem:[%s2277] sm:$0x1]
    %s2279 = scalar_lea.vmem [#allocation1], 593
    %v2280 = vld [vmem:[%s2279] sm:$0x2]
    %vm2281 = vcmask 1041409
    %v2282 = vsel %vm2281, %v2280, %v2278
    %s2283 = scalar_lea.vmem [#allocation1], 656
    %v2284 = vld [vmem:[%s2283] sm:$0x4]
    %vm2285 = vcmask 1042434
    %v2286 = vsel %vm2285, %v2284, %v2282
    %s2287 = scalar_lea.vmem [#allocation1], 719
    %v2288 = vld [vmem:[%s2287] sm:$0x8]
    %vm2289 = vcmask 1043459
    %v2290 = vsel %vm2289, %v2288, %v2286
    %s2291 = scalar_lea.vmem [#allocation1], 782
    %v2292 = vld [vmem:[%s2291] sm:$0x10]
    %vm2293 = vcmask 1044484
    %v2294 = vsel %vm2293, %v2292, %v2290
    %s2295 = scalar_lea.vmem [#allocation1], 845
    %v2296 = vld [vmem:[%s2295] sm:$0x20]
    %vm2297 = vcmask 1045509
    %v2298 = vsel %vm2297, %v2296, %v2294
    %s2299 = scalar_lea.vmem [#allocation1], 908
    %v2300 = vld [vmem:[%s2299] sm:$0x40]
    %vm2301 = vcmask 1046534
    %v2302 = vsel %vm2301, %v2300, %v2298
    %s2303 = scalar_lea.vmem [#allocation1], 971
    %v2304 = vld [vmem:[%s2303] sm:$0x80]
    %vm2305 = vcmask 1047559
    %v2306 = vsel %vm2305, %v2304, %v2302
    %2307 = vrot.lane.b32.xlu0 %v2306, 40
    %v2308 = vpop.permute.xlu0 %2307
    %vm2309 = vcmask 359744
    %s2310 = scalar_lea.vmem [#allocation0], 16
    %2311 = vst.msk [vmem:[%s2310] sm:$0xf] %vm2309, %v2308
    %s2312 = scalar_lea.vmem [#allocation0], 20
    %2313 = vst.msk [vmem:[%s2312] sm:$0xf0] %vm2309, %v2308
    %s2314 = scalar_lea.vmem [#allocation1], 17
    %v2315 = vld [vmem:[%s2314] sm:$0x1]
    %s2316 = scalar_lea.vmem [#allocation1], 80
    %v2317 = vld [vmem:[%s2316] sm:$0x2]
    %vm2318 = vcmask 1041409
    %v2319 = vsel %vm2318, %v2317, %v2315
    %s2320 = scalar_lea.vmem [#allocation1], 143
    %v2321 = vld [vmem:[%s2320] sm:$0x4]
    %vm2322 = vcmask 1042434
    %v2323 = vsel %vm2322, %v2321, %v2319
    %s2324 = scalar_lea.vmem [#allocation1], 206
    %v2325 = vld [vmem:[%s2324] sm:$0x8]
    %vm2326 = vcmask 1043459
    %v2327 = vsel %vm2326, %v2325, %v2323
    %s2328 = scalar_lea.vmem [#allocation1], 269
    %v2329 = vld [vmem:[%s2328] sm:$0x10]
    %vm2330 = vcmask 1044484
    %v2331 = vsel %vm2330, %v2329, %v2327
    %s2332 = scalar_lea.vmem [#allocation1], 332
    %v2333 = vld [vmem:[%s2332] sm:$0x20]
    %vm2334 = vcmask 1045509
    %v2335 = vsel %vm2334, %v2333, %v2331
    %s2336 = scalar_lea.vmem [#allocation1], 395
    %v2337 = vld [vmem:[%s2336] sm:$0x40]
    %vm2338 = vcmask 1046534
    %v2339 = vsel %vm2338, %v2337, %v2335
    %s2340 = scalar_lea.vmem [#allocation1], 458
    %v2341 = vld [vmem:[%s2340] sm:$0x80]
    %vm2342 = vcmask 1047559
    %v2343 = vsel %vm2342, %v2341, %v2339
    %2344 = vrot.lane.b32.xlu0 %v2343, 36
    %v2345 = vpop.permute.xlu0 %2344
    %vm2346 = vcmask 326944
    %2347 = vst.msk [vmem:[#allocation0] sm:$0xf] %vm2346, %v2345
    %s2348 = scalar_lea.vmem [#allocation0], 4
    %2349 = vst.msk [vmem:[%s2348] sm:$0xf0] %vm2346, %v2345
    %s2350 = scalar_lea.vmem [#allocation1], 529
    %v2351 = vld [vmem:[%s2350] sm:$0x1]
    %s2352 = scalar_lea.vmem [#allocation1], 592
    %v2353 = vld [vmem:[%s2352] sm:$0x2]
    %vm2354 = vcmask 1041409
    %v2355 = vsel %vm2354, %v2353, %v2351
    %s2356 = scalar_lea.vmem [#allocation1], 655
    %v2357 = vld [vmem:[%s2356] sm:$0x4]
    %vm2358 = vcmask 1042434
    %v2359 = vsel %vm2358, %v2357, %v2355
    %s2360 = scalar_lea.vmem [#allocation1], 718
    %v2361 = vld [vmem:[%s2360] sm:$0x8]
    %vm2362 = vcmask 1043459
    %v2363 = vsel %vm2362, %v2361, %v2359
    %s2364 = scalar_lea.vmem [#allocation1], 781
    %v2365 = vld [vmem:[%s2364] sm:$0x10]
    %vm2366 = vcmask 1044484
    %v2367 = vsel %vm2366, %v2365, %v2363
    %s2368 = scalar_lea.vmem [#allocation1], 844
    %v2369 = vld [vmem:[%s2368] sm:$0x20]
    %vm2370 = vcmask 1045509
    %v2371 = vsel %vm2370, %v2369, %v2367
    %s2372 = scalar_lea.vmem [#allocation1], 907
    %v2373 = vld [vmem:[%s2372] sm:$0x40]
    %vm2374 = vcmask 1046534
    %v2375 = vsel %vm2374, %v2373, %v2371
    %s2376 = scalar_lea.vmem [#allocation1], 970
    %v2377 = vld [vmem:[%s2376] sm:$0x80]
    %vm2378 = vcmask 1047559
    %v2379 = vsel %vm2378, %v2377, %v2375
    %2380 = vrot.lane.b32.xlu0 %v2379, 36
    %v2381 = vpop.permute.xlu0 %2380
    %vm2382 = vcmask 326944
    %s2383 = scalar_lea.vmem [#allocation0], 16
    %2384 = vst.msk [vmem:[%s2383] sm:$0xf] %vm2382, %v2381
    %s2385 = scalar_lea.vmem [#allocation0], 20
    %2386 = vst.msk [vmem:[%s2385] sm:$0xf0] %vm2382, %v2381
    %s2387 = scalar_lea.vmem [#allocation1], 16
    %v2388 = vld [vmem:[%s2387] sm:$0x1]
    %s2389 = scalar_lea.vmem [#allocation1], 79
    %v2390 = vld [vmem:[%s2389] sm:$0x2]
    %vm2391 = vcmask 1041409
    %v2392 = vsel %vm2391, %v2390, %v2388
    %s2393 = scalar_lea.vmem [#allocation1], 142
    %v2394 = vld [vmem:[%s2393] sm:$0x4]
    %vm2395 = vcmask 1042434
    %v2396 = vsel %vm2395, %v2394, %v2392
    %s2397 = scalar_lea.vmem [#allocation1], 205
    %v2398 = vld [vmem:[%s2397] sm:$0x8]
    %vm2399 = vcmask 1043459
    %v2400 = vsel %vm2399, %v2398, %v2396
    %s2401 = scalar_lea.vmem [#allocation1], 268
    %v2402 = vld [vmem:[%s2401] sm:$0x10]
    %vm2403 = vcmask 1044484
    %v2404 = vsel %vm2403, %v2402, %v2400
    %s2405 = scalar_lea.vmem [#allocation1], 331
    %v2406 = vld [vmem:[%s2405] sm:$0x20]
    %vm2407 = vcmask 1045509
    %v2408 = vsel %vm2407, %v2406, %v2404
    %s2409 = scalar_lea.vmem [#allocation1], 394
    %v2410 = vld [vmem:[%s2409] sm:$0x40]
    %vm2411 = vcmask 1046534
    %v2412 = vsel %vm2411, %v2410, %v2408
    %s2413 = scalar_lea.vmem [#allocation1], 457
    %v2414 = vld [vmem:[%s2413] sm:$0x80]
    %vm2415 = vcmask 1047559
    %v2416 = vsel %vm2415, %v2414, %v2412
    %2417 = vrot.lane.b32.xlu0 %v2416, 32
    %v2418 = vpop.permute.xlu0 %2417
    %vm2419 = vcmask 294144
    %2420 = vst.msk [vmem:[#allocation0] sm:$0xf] %vm2419, %v2418
    %s2421 = scalar_lea.vmem [#allocation0], 4
    %2422 = vst.msk [vmem:[%s2421] sm:$0xf0] %vm2419, %v2418
    %s2423 = scalar_lea.vmem [#allocation1], 528
    %v2424 = vld [vmem:[%s2423] sm:$0x1]
    %s2425 = scalar_lea.vmem [#allocation1], 591
    %v2426 = vld [vmem:[%s2425] sm:$0x2]
    %vm2427 = vcmask 1041409
    %v2428 = vsel %vm2427, %v2426, %v2424
    %s2429 = scalar_lea.vmem [#allocation1], 654
    %v2430 = vld [vmem:[%s2429] sm:$0x4]
    %vm2431 = vcmask 1042434
    %v2432 = vsel %vm2431, %v2430, %v2428
    %s2433 = scalar_lea.vmem [#allocation1], 717
    %v2434 = vld [vmem:[%s2433] sm:$0x8]
    %vm2435 = vcmask 1043459
    %v2436 = vsel %vm2435, %v2434, %v2432
    %s2437 = scalar_lea.vmem [#allocation1], 780
    %v2438 = vld [vmem:[%s2437] sm:$0x10]
    %vm2439 = vcmask 1044484
    %v2440 = vsel %vm2439, %v2438, %v2436
    %s2441 = scalar_lea.vmem [#allocation1], 843
    %v2442 = vld [vmem:[%s2441] sm:$0x20]
    %vm2443 = vcmask 1045509
    %v2444 = vsel %vm2443, %v2442, %v2440
    %s2445 = scalar_lea.vmem [#allocation1], 906
    %v2446 = vld [vmem:[%s2445] sm:$0x40]
    %vm2447 = vcmask 1046534
    %v2448 = vsel %vm2447, %v2446, %v2444
    %s2449 = scalar_lea.vmem [#allocation1], 969
    %v2450 = vld [vmem:[%s2449] sm:$0x80]
    %vm2451 = vcmask 1047559
    %v2452 = vsel %vm2451, %v2450, %v2448
    %2453 = vrot.lane.b32.xlu0 %v2452, 32
    %v2454 = vpop.permute.xlu0 %2453
    %vm2455 = vcmask 294144
    %s2456 = scalar_lea.vmem [#allocation0], 16
    %2457 = vst.msk [vmem:[%s2456] sm:$0xf] %vm2455, %v2454
    %s2458 = scalar_lea.vmem [#allocation0], 20
    %2459 = vst.msk [vmem:[%s2458] sm:$0xf0] %vm2455, %v2454
    %s2460 = scalar_lea.vmem [#allocation1], 11
    %v2461 = vld [vmem:[%s2460] sm:$0x1]
    %s2462 = scalar_lea.vmem [#allocation1], 74
    %v2463 = vld [vmem:[%s2462] sm:$0x2]
    %vm2464 = vcmask 1041409
    %v2465 = vsel %vm2464, %v2463, %v2461
    %s2466 = scalar_lea.vmem [#allocation1], 137
    %v2467 = vld [vmem:[%s2466] sm:$0x4]
    %vm2468 = vcmask 1042434
    %v2469 = vsel %vm2468, %v2467, %v2465
    %s2470 = scalar_lea.vmem [#allocation1], 200
    %v2471 = vld [vmem:[%s2470] sm:$0x8]
    %vm2472 = vcmask 1043459
    %v2473 = vsel %vm2472, %v2471, %v2469
    %s2474 = scalar_lea.vmem [#allocation1], 263
    %v2475 = vld [vmem:[%s2474] sm:$0x10]
    %vm2476 = vcmask 1044484
    %v2477 = vsel %vm2476, %v2475, %v2473
    %s2478 = scalar_lea.vmem [#allocation1], 326
    %v2479 = vld [vmem:[%s2478] sm:$0x20]
    %vm2480 = vcmask 1045509
    %v2481 = vsel %vm2480, %v2479, %v2477
    %s2482 = scalar_lea.vmem [#allocation1], 389
    %v2483 = vld [vmem:[%s2482] sm:$0x40]
    %vm2484 = vcmask 1046534
    %v2485 = vsel %vm2484, %v2483, %v2481
    %s2486 = scalar_lea.vmem [#allocation1], 452
    %v2487 = vld [vmem:[%s2486] sm:$0x80]
    %vm2488 = vcmask 1047559
    %v2489 = vsel %vm2488, %v2487, %v2485
    %2490 = vrot.lane.b32.xlu0 %v2489, 28
    %v2491 = vpop.permute.xlu0 %2490
    %vm2492 = vcmask 261344
    %2493 = vst.msk [vmem:[#allocation0] sm:$0xf] %vm2492, %v2491
    %s2494 = scalar_lea.vmem [#allocation0], 4
    %2495 = vst.msk [vmem:[%s2494] sm:$0xf0] %vm2492, %v2491
    %s2496 = scalar_lea.vmem [#allocation1], 523
    %v2497 = vld [vmem:[%s2496] sm:$0x1]
    %s2498 = scalar_lea.vmem [#allocation1], 586
    %v2499 = vld [vmem:[%s2498] sm:$0x2]
    %vm2500 = vcmask 1041409
    %v2501 = vsel %vm2500, %v2499, %v2497
    %s2502 = scalar_lea.vmem [#allocation1], 649
    %v2503 = vld [vmem:[%s2502] sm:$0x4]
    %vm2504 = vcmask 1042434
    %v2505 = vsel %vm2504, %v2503, %v2501
    %s2506 = scalar_lea.vmem [#allocation1], 712
    %v2507 = vld [vmem:[%s2506] sm:$0x8]
    %vm2508 = vcmask 1043459
    %v2509 = vsel %vm2508, %v2507, %v2505
    %s2510 = scalar_lea.vmem [#allocation1], 775
    %v2511 = vld [vmem:[%s2510] sm:$0x10]
    %vm2512 = vcmask 1044484
    %v2513 = vsel %vm2512, %v2511, %v2509
    %s2514 = scalar_lea.vmem [#allocation1], 838
    %v2515 = vld [vmem:[%s2514] sm:$0x20]
    %vm2516 = vcmask 1045509
    %v2517 = vsel %vm2516, %v2515, %v2513
    %s2518 = scalar_lea.vmem [#allocation1], 901
    %v2519 = vld [vmem:[%s2518] sm:$0x40]
    %vm2520 = vcmask 1046534
    %v2521 = vsel %vm2520, %v2519, %v2517
    %s2522 = scalar_lea.vmem [#allocation1], 964
    %v2523 = vld [vmem:[%s2522] sm:$0x80]
    %vm2524 = vcmask 1047559
    %v2525 = vsel %vm2524, %v2523, %v2521
    %2526 = vrot.lane.b32.xlu0 %v2525, 28
    %v2527 = vpop.permute.xlu0 %2526
    %vm2528 = vcmask 261344
    %s2529 = scalar_lea.vmem [#allocation0], 16
    %2530 = vst.msk [vmem:[%s2529] sm:$0xf] %vm2528, %v2527
    %s2531 = scalar_lea.vmem [#allocation0], 20
    %2532 = vst.msk [vmem:[%s2531] sm:$0xf0] %vm2528, %v2527
    %s2533 = scalar_lea.vmem [#allocation1], 10
    %v2534 = vld [vmem:[%s2533] sm:$0x1]
    %s2535 = scalar_lea.vmem [#allocation1], 73
    %v2536 = vld [vmem:[%s2535] sm:$0x2]
    %vm2537 = vcmask 1041409
    %v2538 = vsel %vm2537, %v2536, %v2534
    %s2539 = scalar_lea.vmem [#allocation1], 136
    %v2540 = vld [vmem:[%s2539] sm:$0x4]
    %vm2541 = vcmask 1042434
    %v2542 = vsel %vm2541, %v2540, %v2538
    %s2543 = scalar_lea.vmem [#allocation1], 199
    %v2544 = vld [vmem:[%s2543] sm:$0x8]
    %vm2545 = vcmask 1043459
    %v2546 = vsel %vm2545, %v2544, %v2542
    %s2547 = scalar_lea.vmem [#allocation1], 262
    %v2548 = vld [vmem:[%s2547] sm:$0x10]
    %vm2549 = vcmask 1044484
    %v2550 = vsel %vm2549, %v2548, %v2546
    %s2551 = scalar_lea.vmem [#allocation1], 325
    %v2552 = vld [vmem:[%s2551] sm:$0x20]
    %vm2553 = vcmask 1045509
    %v2554 = vsel %vm2553, %v2552, %v2550
    %s2555 = scalar_lea.vmem [#allocation1], 388
    %v2556 = vld [vmem:[%s2555] sm:$0x40]
    %vm2557 = vcmask 1046534
    %v2558 = vsel %vm2557, %v2556, %v2554
    %s2559 = scalar_lea.vmem [#allocation1], 451
    %v2560 = vld [vmem:[%s2559] sm:$0x80]
    %vm2561 = vcmask 1047559
    %v2562 = vsel %vm2561, %v2560, %v2558
    %2563 = vrot.lane.b32.xlu0 %v2562, 24
    %v2564 = vpop.permute.xlu0 %2563
    %vm2565 = vcmask 228544
    %2566 = vst.msk [vmem:[#allocation0] sm:$0xf] %vm2565, %v2564
    %s2567 = scalar_lea.vmem [#allocation0], 4
    %2568 = vst.msk [vmem:[%s2567] sm:$0xf0] %vm2565, %v2564
    %s2569 = scalar_lea.vmem [#allocation1], 522
    %v2570 = vld [vmem:[%s2569] sm:$0x1]
    %s2571 = scalar_lea.vmem [#allocation1], 585
    %v2572 = vld [vmem:[%s2571] sm:$0x2]
    %vm2573 = vcmask 1041409
    %v2574 = vsel %vm2573, %v2572, %v2570
    %s2575 = scalar_lea.vmem [#allocation1], 648
    %v2576 = vld [vmem:[%s2575] sm:$0x4]
    %vm2577 = vcmask 1042434
    %v2578 = vsel %vm2577, %v2576, %v2574
    %s2579 = scalar_lea.vmem [#allocation1], 711
    %v2580 = vld [vmem:[%s2579] sm:$0x8]
    %vm2581 = vcmask 1043459
    %v2582 = vsel %vm2581, %v2580, %v2578
    %s2583 = scalar_lea.vmem [#allocation1], 774
    %v2584 = vld [vmem:[%s2583] sm:$0x10]
    %vm2585 = vcmask 1044484
    %v2586 = vsel %vm2585, %v2584, %v2582
    %s2587 = scalar_lea.vmem [#allocation1], 837
    %v2588 = vld [vmem:[%s2587] sm:$0x20]
    %vm2589 = vcmask 1045509
    %v2590 = vsel %vm2589, %v2588, %v2586
    %s2591 = scalar_lea.vmem [#allocation1], 900
    %v2592 = vld [vmem:[%s2591] sm:$0x40]
    %vm2593 = vcmask 1046534
    %v2594 = vsel %vm2593, %v2592, %v2590
    %s2595 = scalar_lea.vmem [#allocation1], 963
    %v2596 = vld [vmem:[%s2595] sm:$0x80]
    %vm2597 = vcmask 1047559
    %v2598 = vsel %vm2597, %v2596, %v2594
    %2599 = vrot.lane.b32.xlu0 %v2598, 24
    %v2600 = vpop.permute.xlu0 %2599
    %vm2601 = vcmask 228544
    %s2602 = scalar_lea.vmem [#allocation0], 16
    %2603 = vst.msk [vmem:[%s2602] sm:$0xf] %vm2601, %v2600
    %s2604 = scalar_lea.vmem [#allocation0], 20
    %2605 = vst.msk [vmem:[%s2604] sm:$0xf0] %vm2601, %v2600
    %s2606 = scalar_lea.vmem [#allocation1], 9
    %v2607 = vld [vmem:[%s2606] sm:$0x1]
    %s2608 = scalar_lea.vmem [#allocation1], 72
    %v2609 = vld [vmem:[%s2608] sm:$0x2]
    %vm2610 = vcmask 1041409
    %v2611 = vsel %vm2610, %v2609, %v2607
    %s2612 = scalar_lea.vmem [#allocation1], 135
    %v2613 = vld [vmem:[%s2612] sm:$0x4]
    %vm2614 = vcmask 1042434
    %v2615 = vsel %vm2614, %v2613, %v2611
    %s2616 = scalar_lea.vmem [#allocation1], 198
    %v2617 = vld [vmem:[%s2616] sm:$0x8]
    %vm2618 = vcmask 1043459
    %v2619 = vsel %vm2618, %v2617, %v2615
    %s2620 = scalar_lea.vmem [#allocation1], 261
    %v2621 = vld [vmem:[%s2620] sm:$0x10]
    %vm2622 = vcmask 1044484
    %v2623 = vsel %vm2622, %v2621, %v2619
    %s2624 = scalar_lea.vmem [#allocation1], 324
    %v2625 = vld [vmem:[%s2624] sm:$0x20]
    %vm2626 = vcmask 1045509
    %v2627 = vsel %vm2626, %v2625, %v2623
    %s2628 = scalar_lea.vmem [#allocation1], 387
    %v2629 = vld [vmem:[%s2628] sm:$0x40]
    %vm2630 = vcmask 1046534
    %v2631 = vsel %vm2630, %v2629, %v2627
    %s2632 = scalar_lea.vmem [#allocation1], 450
    %v2633 = vld [vmem:[%s2632] sm:$0x80]
    %vm2634 = vcmask 1047559
    %v2635 = vsel %vm2634, %v2633, %v2631
    %2636 = vrot.lane.b32.xlu0 %v2635, 20
    %v2637 = vpop.permute.xlu0 %2636
    %vm2638 = vcmask 195744
    %2639 = vst.msk [vmem:[#allocation0] sm:$0xf] %vm2638, %v2637
    %s2640 = scalar_lea.vmem [#allocation0], 4
    %2641 = vst.msk [vmem:[%s2640] sm:$0xf0] %vm2638, %v2637
    %s2642 = scalar_lea.vmem [#allocation1], 521
    %v2643 = vld [vmem:[%s2642] sm:$0x1]
    %s2644 = scalar_lea.vmem [#allocation1], 584
    %v2645 = vld [vmem:[%s2644] sm:$0x2]
    %vm2646 = vcmask 1041409
    %v2647 = vsel %vm2646, %v2645, %v2643
    %s2648 = scalar_lea.vmem [#allocation1], 647
    %v2649 = vld [vmem:[%s2648] sm:$0x4]
    %vm2650 = vcmask 1042434
    %v2651 = vsel %vm2650, %v2649, %v2647
    %s2652 = scalar_lea.vmem [#allocation1], 710
    %v2653 = vld [vmem:[%s2652] sm:$0x8]
    %vm2654 = vcmask 1043459
    %v2655 = vsel %vm2654, %v2653, %v2651
    %s2656 = scalar_lea.vmem [#allocation1], 773
    %v2657 = vld [vmem:[%s2656] sm:$0x10]
    %vm2658 = vcmask 1044484
    %v2659 = vsel %vm2658, %v2657, %v2655
    %s2660 = scalar_lea.vmem [#allocation1], 836
    %v2661 = vld [vmem:[%s2660] sm:$0x20]
    %vm2662 = vcmask 1045509
    %v2663 = vsel %vm2662, %v2661, %v2659
    %s2664 = scalar_lea.vmem [#allocation1], 899
    %v2665 = vld [vmem:[%s2664] sm:$0x40]
    %vm2666 = vcmask 1046534
    %v2667 = vsel %vm2666, %v2665, %v2663
    %s2668 = scalar_lea.vmem [#allocation1], 962
    %v2669 = vld [vmem:[%s2668] sm:$0x80]
    %vm2670 = vcmask 1047559
    %v2671 = vsel %vm2670, %v2669, %v2667
    %2672 = vrot.lane.b32.xlu0 %v2671, 20
    %v2673 = vpop.permute.xlu0 %2672
    %vm2674 = vcmask 195744
    %s2675 = scalar_lea.vmem [#allocation0], 16
    %2676 = vst.msk [vmem:[%s2675] sm:$0xf] %vm2674, %v2673
    %s2677 = scalar_lea.vmem [#allocation0], 20
    %2678 = vst.msk [vmem:[%s2677] sm:$0xf0] %vm2674, %v2673
    %s2679 = scalar_lea.vmem [#allocation1], 8
    %v2680 = vld [vmem:[%s2679] sm:$0x1]
    %s2681 = scalar_lea.vmem [#allocation1], 71
    %v2682 = vld [vmem:[%s2681] sm:$0x2]
    %vm2683 = vcmask 1041409
    %v2684 = vsel %vm2683, %v2682, %v2680
    %s2685 = scalar_lea.vmem [#allocation1], 134
    %v2686 = vld [vmem:[%s2685] sm:$0x4]
    %vm2687 = vcmask 1042434
    %v2688 = vsel %vm2687, %v2686, %v2684
    %s2689 = scalar_lea.vmem [#allocation1], 197
    %v2690 = vld [vmem:[%s2689] sm:$0x8]
    %vm2691 = vcmask 1043459
    %v2692 = vsel %vm2691, %v2690, %v2688
    %s2693 = scalar_lea.vmem [#allocation1], 260
    %v2694 = vld [vmem:[%s2693] sm:$0x10]
    %vm2695 = vcmask 1044484
    %v2696 = vsel %vm2695, %v2694, %v2692
    %s2697 = scalar_lea.vmem [#allocation1], 323
    %v2698 = vld [vmem:[%s2697] sm:$0x20]
    %vm2699 = vcmask 1045509
    %v2700 = vsel %vm2699, %v2698, %v2696
    %s2701 = scalar_lea.vmem [#allocation1], 386
    %v2702 = vld [vmem:[%s2701] sm:$0x40]
    %vm2703 = vcmask 1046534
    %v2704 = vsel %vm2703, %v2702, %v2700
    %s2705 = scalar_lea.vmem [#allocation1], 449
    %v2706 = vld [vmem:[%s2705] sm:$0x80]
    %vm2707 = vcmask 1047559
    %v2708 = vsel %vm2707, %v2706, %v2704
    %2709 = vrot.lane.b32.xlu0 %v2708, 16
    %v2710 = vpop.permute.xlu0 %2709
    %vm2711 = vcmask 162944
    %2712 = vst.msk [vmem:[#allocation0] sm:$0xf] %vm2711, %v2710
    %s2713 = scalar_lea.vmem [#allocation0], 4
    %2714 = vst.msk [vmem:[%s2713] sm:$0xf0] %vm2711, %v2710
    %s2715 = scalar_lea.vmem [#allocation1], 520
    %v2716 = vld [vmem:[%s2715] sm:$0x1]
    %s2717 = scalar_lea.vmem [#allocation1], 583
    %v2718 = vld [vmem:[%s2717] sm:$0x2]
    %vm2719 = vcmask 1041409
    %v2720 = vsel %vm2719, %v2718, %v2716
    %s2721 = scalar_lea.vmem [#allocation1], 646
    %v2722 = vld [vmem:[%s2721] sm:$0x4]
    %vm2723 = vcmask 1042434
    %v2724 = vsel %vm2723, %v2722, %v2720
    %s2725 = scalar_lea.vmem [#allocation1], 709
    %v2726 = vld [vmem:[%s2725] sm:$0x8]
    %vm2727 = vcmask 1043459
    %v2728 = vsel %vm2727, %v2726, %v2724
    %s2729 = scalar_lea.vmem [#allocation1], 772
    %v2730 = vld [vmem:[%s2729] sm:$0x10]
    %vm2731 = vcmask 1044484
    %v2732 = vsel %vm2731, %v2730, %v2728
    %s2733 = scalar_lea.vmem [#allocation1], 835
    %v2734 = vld [vmem:[%s2733] sm:$0x20]
    %vm2735 = vcmask 1045509
    %v2736 = vsel %vm2735, %v2734, %v2732
    %s2737 = scalar_lea.vmem [#allocation1], 898
    %v2738 = vld [vmem:[%s2737] sm:$0x40]
    %vm2739 = vcmask 1046534
    %v2740 = vsel %vm2739, %v2738, %v2736
    %s2741 = scalar_lea.vmem [#allocation1], 961
    %v2742 = vld [vmem:[%s2741] sm:$0x80]
    %vm2743 = vcmask 1047559
    %v2744 = vsel %vm2743, %v2742, %v2740
    %2745 = vrot.lane.b32.xlu0 %v2744, 16
    %v2746 = vpop.permute.xlu0 %2745
    %vm2747 = vcmask 162944
    %s2748 = scalar_lea.vmem [#allocation0], 16
    %2749 = vst.msk [vmem:[%s2748] sm:$0xf] %vm2747, %v2746
    %s2750 = scalar_lea.vmem [#allocation0], 20
    %2751 = vst.msk [vmem:[%s2750] sm:$0xf0] %vm2747, %v2746
    %s2752 = scalar_lea.vmem [#allocation1], 3
    %v2753 = vld [vmem:[%s2752] sm:$0x1]
    %s2754 = scalar_lea.vmem [#allocation1], 66
    %v2755 = vld [vmem:[%s2754] sm:$0x2]
    %vm2756 = vcmask 1041409
    %v2757 = vsel %vm2756, %v2755, %v2753
    %s2758 = scalar_lea.vmem [#allocation1], 129
    %v2759 = vld [vmem:[%s2758] sm:$0x4]
    %vm2760 = vcmask 1042434
    %v2761 = vsel %vm2760, %v2759, %v2757
    %s2762 = scalar_lea.vmem [#allocation1], 192
    %v2763 = vld [vmem:[%s2762] sm:$0x8]
    %vm2764 = vcmask 1043459
    %v2765 = vsel %vm2764, %v2763, %v2761
    %s2766 = scalar_lea.vmem [#allocation1], 255
    %v2767 = vld [vmem:[%s2766] sm:$0x10]
    %vm2768 = vcmask 1044484
    %v2769 = vsel %vm2768, %v2767, %v2765
    %s2770 = scalar_lea.vmem [#allocation1], 318
    %v2771 = vld [vmem:[%s2770] sm:$0x20]
    %vm2772 = vcmask 1045509
    %v2773 = vsel %vm2772, %v2771, %v2769
    %s2774 = scalar_lea.vmem [#allocation1], 381
    %v2775 = vld [vmem:[%s2774] sm:$0x40]
    %vm2776 = vcmask 1046534
    %v2777 = vsel %vm2776, %v2775, %v2773
    %s2778 = scalar_lea.vmem [#allocation1], 444
    %v2779 = vld [vmem:[%s2778] sm:$0x80]
    %vm2780 = vcmask 1047559
    %v2781 = vsel %vm2780, %v2779, %v2777
    %2782 = vrot.lane.b32.xlu0 %v2781, 12
    %v2783 = vpop.permute.xlu0 %2782
    %vm2784 = vcmask 130144
    %2785 = vst.msk [vmem:[#allocation0] sm:$0xf] %vm2784, %v2783
    %s2786 = scalar_lea.vmem [#allocation0], 4
    %2787 = vst.msk [vmem:[%s2786] sm:$0xf0] %vm2784, %v2783
    %s2788 = scalar_lea.vmem [#allocation1], 515
    %v2789 = vld [vmem:[%s2788] sm:$0x1]
    %s2790 = scalar_lea.vmem [#allocation1], 578
    %v2791 = vld [vmem:[%s2790] sm:$0x2]
    %vm2792 = vcmask 1041409
    %v2793 = vsel %vm2792, %v2791, %v2789
    %s2794 = scalar_lea.vmem [#allocation1], 641
    %v2795 = vld [vmem:[%s2794] sm:$0x4]
    %vm2796 = vcmask 1042434
    %v2797 = vsel %vm2796, %v2795, %v2793
    %s2798 = scalar_lea.vmem [#allocation1], 704
    %v2799 = vld [vmem:[%s2798] sm:$0x8]
    %vm2800 = vcmask 1043459
    %v2801 = vsel %vm2800, %v2799, %v2797
    %s2802 = scalar_lea.vmem [#allocation1], 767
    %v2803 = vld [vmem:[%s2802] sm:$0x10]
    %vm2804 = vcmask 1044484
    %v2805 = vsel %vm2804, %v2803, %v2801
    %s2806 = scalar_lea.vmem [#allocation1], 830
    %v2807 = vld [vmem:[%s2806] sm:$0x20]
    %vm2808 = vcmask 1045509
    %v2809 = vsel %vm2808, %v2807, %v2805
    %s2810 = scalar_lea.vmem [#allocation1], 893
    %v2811 = vld [vmem:[%s2810] sm:$0x40]
    %vm2812 = vcmask 1046534
    %v2813 = vsel %vm2812, %v2811, %v2809
    %s2814 = scalar_lea.vmem [#allocation1], 956
    %v2815 = vld [vmem:[%s2814] sm:$0x80]
    %vm2816 = vcmask 1047559
    %v2817 = vsel %vm2816, %v2815, %v2813
    %2818 = vrot.lane.b32.xlu0 %v2817, 12
    %v2819 = vpop.permute.xlu0 %2818
    %vm2820 = vcmask 130144
    %s2821 = scalar_lea.vmem [#allocation0], 16
    %2822 = vst.msk [vmem:[%s2821] sm:$0xf] %vm2820, %v2819
    %s2823 = scalar_lea.vmem [#allocation0], 20
    %2824 = vst.msk [vmem:[%s2823] sm:$0xf0] %vm2820, %v2819
    %s2825 = scalar_lea.vmem [#allocation1], 2
    %v2826 = vld [vmem:[%s2825] sm:$0x1]
    %s2827 = scalar_lea.vmem [#allocation1], 65
    %v2828 = vld [vmem:[%s2827] sm:$0x2]
    %vm2829 = vcmask 1041409
    %v2830 = vsel %vm2829, %v2828, %v2826
    %s2831 = scalar_lea.vmem [#allocation1], 128
    %v2832 = vld [vmem:[%s2831] sm:$0x4]
    %vm2833 = vcmask 1042434
    %v2834 = vsel %vm2833, %v2832, %v2830
    %s2835 = scalar_lea.vmem [#allocation1], 191
    %v2836 = vld [vmem:[%s2835] sm:$0x8]
    %vm2837 = vcmask 1043459
    %v2838 = vsel %vm2837, %v2836, %v2834
    %s2839 = scalar_lea.vmem [#allocation1], 254
    %v2840 = vld [vmem:[%s2839] sm:$0x10]
    %vm2841 = vcmask 1044484
    %v2842 = vsel %vm2841, %v2840, %v2838
    %s2843 = scalar_lea.vmem [#allocation1], 317
    %v2844 = vld [vmem:[%s2843] sm:$0x20]
    %vm2845 = vcmask 1045509
    %v2846 = vsel %vm2845, %v2844, %v2842
    %s2847 = scalar_lea.vmem [#allocation1], 380
    %v2848 = vld [vmem:[%s2847] sm:$0x40]
    %vm2849 = vcmask 1046534
    %v2850 = vsel %vm2849, %v2848, %v2846
    %s2851 = scalar_lea.vmem [#allocation1], 443
    %v2852 = vld [vmem:[%s2851] sm:$0x80]
    %vm2853 = vcmask 1047559
    %v2854 = vsel %vm2853, %v2852, %v2850
    %2855 = vrot.lane.b32.xlu0 %v2854, 8
    %v2856 = vpop.permute.xlu0 %2855
    %vm2857 = vcmask 97344
    %2858 = vst.msk [vmem:[#allocation0] sm:$0xf] %vm2857, %v2856
    %s2859 = scalar_lea.vmem [#allocation0], 4
    %2860 = vst.msk [vmem:[%s2859] sm:$0xf0] %vm2857, %v2856
    %s2861 = scalar_lea.vmem [#allocation1], 514
    %v2862 = vld [vmem:[%s2861] sm:$0x1]
    %s2863 = scalar_lea.vmem [#allocation1], 577
    %v2864 = vld [vmem:[%s2863] sm:$0x2]
    %vm2865 = vcmask 1041409
    %v2866 = vsel %vm2865, %v2864, %v2862
    %s2867 = scalar_lea.vmem [#allocation1], 640
    %v2868 = vld [vmem:[%s2867] sm:$0x4]
    %vm2869 = vcmask 1042434
    %v2870 = vsel %vm2869, %v2868, %v2866
    %s2871 = scalar_lea.vmem [#allocation1], 703
    %v2872 = vld [vmem:[%s2871] sm:$0x8]
    %vm2873 = vcmask 1043459
    %v2874 = vsel %vm2873, %v2872, %v2870
    %s2875 = scalar_lea.vmem [#allocation1], 766
    %v2876 = vld [vmem:[%s2875] sm:$0x10]
    %vm2877 = vcmask 1044484
    %v2878 = vsel %vm2877, %v2876, %v2874
    %s2879 = scalar_lea.vmem [#allocation1], 829
    %v2880 = vld [vmem:[%s2879] sm:$0x20]
    %vm2881 = vcmask 1045509
    %v2882 = vsel %vm2881, %v2880, %v2878
    %s2883 = scalar_lea.vmem [#allocation1], 892
    %v2884 = vld [vmem:[%s2883] sm:$0x40]
    %vm2885 = vcmask 1046534
    %v2886 = vsel %vm2885, %v2884, %v2882
    %s2887 = scalar_lea.vmem [#allocation1], 955
    %v2888 = vld [vmem:[%s2887] sm:$0x80]
    %vm2889 = vcmask 1047559
    %v2890 = vsel %vm2889, %v2888, %v2886
    %2891 = vrot.lane.b32.xlu0 %v2890, 8
    %v2892 = vpop.permute.xlu0 %2891
    %vm2893 = vcmask 97344
    %s2894 = scalar_lea.vmem [#allocation0], 16
    %2895 = vst.msk [vmem:[%s2894] sm:$0xf] %vm2893, %v2892
    %s2896 = scalar_lea.vmem [#allocation0], 20
    %2897 = vst.msk [vmem:[%s2896] sm:$0xf0] %vm2893, %v2892
    %s2898 = scalar_lea.vmem [#allocation1], 1
    %v2899 = vld [vmem:[%s2898] sm:$0x1]
    %s2900 = scalar_lea.vmem [#allocation1], 64
    %v2901 = vld [vmem:[%s2900] sm:$0x2]
    %vm2902 = vcmask 1041409
    %v2903 = vsel %vm2902, %v2901, %v2899
    %s2904 = scalar_lea.vmem [#allocation1], 127
    %v2905 = vld [vmem:[%s2904] sm:$0x4]
    %vm2906 = vcmask 1042434
    %v2907 = vsel %vm2906, %v2905, %v2903
    %s2908 = scalar_lea.vmem [#allocation1], 190
    %v2909 = vld [vmem:[%s2908] sm:$0x8]
    %vm2910 = vcmask 1043459
    %v2911 = vsel %vm2910, %v2909, %v2907
    %s2912 = scalar_lea.vmem [#allocation1], 253
    %v2913 = vld [vmem:[%s2912] sm:$0x10]
    %vm2914 = vcmask 1044484
    %v2915 = vsel %vm2914, %v2913, %v2911
    %s2916 = scalar_lea.vmem [#allocation1], 316
    %v2917 = vld [vmem:[%s2916] sm:$0x20]
    %vm2918 = vcmask 1045509
    %v2919 = vsel %vm2918, %v2917, %v2915
    %s2920 = scalar_lea.vmem [#allocation1], 379
    %v2921 = vld [vmem:[%s2920] sm:$0x40]
    %vm2922 = vcmask 1046534
    %v2923 = vsel %vm2922, %v2921, %v2919
    %s2924 = scalar_lea.vmem [#allocation1], 442
    %v2925 = vld [vmem:[%s2924] sm:$0x80]
    %vm2926 = vcmask 1047559
    %v2927 = vsel %vm2926, %v2925, %v2923
    %2928 = vrot.lane.b32.xlu0 %v2927, 4
    %v2929 = vpop.permute.xlu0 %2928
    %vm2930 = vcmask 64544
    %2931 = vst.msk [vmem:[#allocation0] sm:$0xf] %vm2930, %v2929
    %s2932 = scalar_lea.vmem [#allocation0], 4
    %2933 = vst.msk [vmem:[%s2932] sm:$0xf0] %vm2930, %v2929
    %s2934 = scalar_lea.vmem [#allocation1], 513
    %v2935 = vld [vmem:[%s2934] sm:$0x1]
    %s2936 = scalar_lea.vmem [#allocation1], 576
    %v2937 = vld [vmem:[%s2936] sm:$0x2]
    %vm2938 = vcmask 1041409
    %v2939 = vsel %vm2938, %v2937, %v2935
    %s2940 = scalar_lea.vmem [#allocation1], 639
    %v2941 = vld [vmem:[%s2940] sm:$0x4]
    %vm2942 = vcmask 1042434
    %v2943 = vsel %vm2942, %v2941, %v2939
    %s2944 = scalar_lea.vmem [#allocation1], 702
    %v2945 = vld [vmem:[%s2944] sm:$0x8]
    %vm2946 = vcmask 1043459
    %v2947 = vsel %vm2946, %v2945, %v2943
    %s2948 = scalar_lea.vmem [#allocation1], 765
    %v2949 = vld [vmem:[%s2948] sm:$0x10]
    %vm2950 = vcmask 1044484
    %v2951 = vsel %vm2950, %v2949, %v2947
    %s2952 = scalar_lea.vmem [#allocation1], 828
    %v2953 = vld [vmem:[%s2952] sm:$0x20]
    %vm2954 = vcmask 1045509
    %v2955 = vsel %vm2954, %v2953, %v2951
    %s2956 = scalar_lea.vmem [#allocation1], 891
    %v2957 = vld [vmem:[%s2956] sm:$0x40]
    %vm2958 = vcmask 1046534
    %v2959 = vsel %vm2958, %v2957, %v2955
    %s2960 = scalar_lea.vmem [#allocation1], 954
    %v2961 = vld [vmem:[%s2960] sm:$0x80]
    %vm2962 = vcmask 1047559
    %v2963 = vsel %vm2962, %v2961, %v2959
    %2964 = vrot.lane.b32.xlu0 %v2963, 4
    %v2965 = vpop.permute.xlu0 %2964
    %vm2966 = vcmask 64544
    %s2967 = scalar_lea.vmem [#allocation0], 16
    %2968 = vst.msk [vmem:[%s2967] sm:$0xf] %vm2966, %v2965
    %s2969 = scalar_lea.vmem [#allocation0], 20
    %2970 = vst.msk [vmem:[%s2969] sm:$0xf0] %vm2966, %v2965
    %s2972 = sshllo.u32 0, 4
    %v2974 = vld [vmem:[#allocation0] sm:%s2972]
    %s2975 = sshllo.u32 0, 4
    %2976 = vst [vmem:[%s1] sm:%s2975] %v2974
    %s2977 = scalar_lea.vmem [#allocation0], 8
    %v2978 = vld [vmem:[%s2977] sm:%s2972]
    %s2979 = sshllo.u32 0, 4
    %s2980 = scalar_lea.vmem %s1, 4
    %2981 = vst [vmem:[%s2980] sm:%s2979] %v2978
    %s2982 = scalar_lea.vmem [#allocation0], 16
    %v2983 = vld [vmem:[%s2982] sm:%s2972]
    %s2984 = sshllo.u32 0, 4
    %s2985 = smul.addr 4, 2
    %s2986 = scalar_lea.vmem %s1, %s2985
    %2987 = vst [vmem:[%s2986] sm:%s2984] %v2983
    %s2988 = scalar_lea.vmem [#allocation0], 24
    %v2989 = vld [vmem:[%s2988] sm:%s2972]
    %s2990 = sshllo.u32 0, 4
    %s2991 = smul.addr 4, 3
    %s2992 = scalar_lea.vmem %s1, %s2991
    %2993 = vst [vmem:[%s2992] sm:%s2990] %v2989

// kernel: fc_hilo1_forward.14
$region0: #{fc_hilo1_forward.14}
  #allocation0 [shape = 'u32[]', space=smem, size = 0x4, offset = 0x4, fixed_abs, tag = 'smem constant byte address 0x4 - core index']
  #allocation1 [shape = 'u32[144,128]{1,0:T(1,128)}', space=vmem, size = 0x12000, scoped, tag = 'internal scratch']
  %s0 = inlined_call_operand.vmem [shape: f32[4,4,128], index: 0, kind: input, shape index: {}]
  %s1 = inlined_call_operand.vmem [shape: f32[4,4,128], index: 1, kind: input, shape index: {}]
  %s2 = inlined_call_operand.vmem [shape: f32[4,4,128], index: 2, kind: input, shape index: {}]
  %s3 = inlined_call_operand.vmem [shape: f32[4,4,128], index: 3, kind: output, shape index: {}]
  %s4 = sld [smem:[#allocation0]]
  $region22: #{fc_hilo1_forward.14} parent=0
    _
  %s6 = ssub.s32 1, %s4
  %s7 = scalar_select 0, %s6, %s4
  // Predicated region
  $region2: #{fc_hilo1_forward.14} parent=0 // pred_check
    _
  $region3: #{fc_hilo1_forward.14} parent=0 // pred_check_branch
    %9 = sbr.rel (0) target = $region5
  $region4: #{fc_hilo1_forward.14} parent=0 // pred_region
    _
  $region5: #{fc_hilo1_forward.14} parent=0 // pred_fallthru
    _
  // Predicated region
  $region6: #{fc_hilo1_forward.14} parent=0 // pred_check
    _
  $region7: #{fc_hilo1_forward.14} parent=0 // pred_check_branch
    %11 = sbr.rel (0) target = $region9
  $region8: #{fc_hilo1_forward.14} parent=0 // pred_region
    _
  $region9: #{fc_hilo1_forward.14} parent=0 // pred_fallthru
    _
  // Predicated region
  $region10: #{fc_hilo1_forward.14} parent=0 // pred_check
    _
  $region11: #{fc_hilo1_forward.14} parent=0 // pred_check_branch
    %13 = sbr.rel (0) target = $region13
  $region12: #{fc_hilo1_forward.14} parent=0 // pred_region
    _
  $region13: #{fc_hilo1_forward.14} parent=0 // pred_fallthru
    _
  %v14 = vld [vmem:[%s0] sm:$0xf]
  %v15 = vld [vmem:[%s0 + $0x4] sm:$0xf]
  %v16 = vld [vmem:[%s0 + $0x8] sm:$0xf]
  %v17 = vld [vmem:[%s0 + $0xc] sm:$0xf]
  %v18 = vld [vmem:[%s1] sm:$0xf]
  %v19 = vld [vmem:[%s1 + $0x4] sm:$0xf]
  %v20 = vld [vmem:[%s1 + $0x8] sm:$0xf]
  %v21 = vld [vmem:[%s1 + $0xc] sm:$0xf]
  %v22 = vld [vmem:[%s2] sm:$0xf]
  %v23 = vld [vmem:[%s2 + $0x4] sm:$0xf]
  %v24 = vld [vmem:[%s2 + $0x8] sm:$0xf]
  %v25 = vld [vmem:[%s2 + $0xc] sm:$0xf]
  %v26 = vmul.f32 %v14, %v18
  %v27 = vmul.f32 %v14, %v19
  %v28 = vmul.f32 %v14, %v20
  %v29 = vmul.f32 %v14, %v21
  %v30 = vmul.f32 %v15, %v18
  %v31 = vmul.f32 %v15, %v19
  %v32 = vmul.f32 %v15, %v20
  %v33 = vmul.f32 %v15, %v21
  %v34 = vmul.f32 %v16, %v18
  %v35 = vmul.f32 %v16, %v19
  %v36 = vmul.f32 %v16, %v20
  %v37 = vmul.f32 %v16, %v21
  %v38 = vmul.f32 %v17, %v18
  %v39 = vmul.f32 %v17, %v19
  %v40 = vmul.f32 %v17, %v20
  %v41 = vmul.f32 %v17, %v21
  %vm42 = vcmask 1043456
  %v43 = vsel %vm42, %v26, 0.0
  %v44 = vrot.slane %v43, 4
  %v45 = vadd.f32 %v43, %v44
  %v46 = vrot.slane %v45, 2
  %v47 = vadd.f32 %v45, %v46
  %v48 = vrot.slane %v47, 1
  %v49 = vadd.f32 %v47, %v48
  %v50 = vsel %vm42, %v27, 0.0
  %v51 = vrot.slane %v50, 4
  %v52 = vadd.f32 %v50, %v51
  %v53 = vrot.slane %v52, 2
  %v54 = vadd.f32 %v52, %v53
  %v55 = vrot.slane %v54, 1
  %v56 = vadd.f32 %v54, %v55
  %v57 = vsel %vm42, %v28, 0.0
  %v58 = vrot.slane %v57, 4
  %v59 = vadd.f32 %v57, %v58
  %v60 = vrot.slane %v59, 2
  %v61 = vadd.f32 %v59, %v60
  %v62 = vrot.slane %v61, 1
  %v63 = vadd.f32 %v61, %v62
  %v64 = vsel %vm42, %v29, 0.0
  %v65 = vrot.slane %v64, 4
  %v66 = vadd.f32 %v64, %v65
  %v67 = vrot.slane %v66, 2
  %v68 = vadd.f32 %v66, %v67
  %v69 = vrot.slane %v68, 1
  %v70 = vadd.f32 %v68, %v69
  %v71 = vsel %vm42, %v30, 0.0
  %v72 = vrot.slane %v71, 4
  %v73 = vadd.f32 %v71, %v72
  %v74 = vrot.slane %v73, 2
  %v75 = vadd.f32 %v73, %v74
  %v76 = vrot.slane %v75, 1
  %v77 = vadd.f32 %v75, %v76
  %v78 = vsel %vm42, %v31, 0.0
  %v79 = vrot.slane %v78, 4
  %v80 = vadd.f32 %v78, %v79
  %v81 = vrot.slane %v80, 2
  %v82 = vadd.f32 %v80, %v81
  %v83 = vrot.slane %v82, 1
  %v84 = vadd.f32 %v82, %v83
  %v85 = vsel %vm42, %v32, 0.0
  %v86 = vrot.slane %v85, 4
  %v87 = vadd.f32 %v85, %v86
  %v88 = vrot.slane %v87, 2
  %v89 = vadd.f32 %v87, %v88
  %v90 = vrot.slane %v89, 1
  %v91 = vadd.f32 %v89, %v90
  %v92 = vsel %vm42, %v33, 0.0
  %v93 = vrot.slane %v92, 4
  %v94 = vadd.f32 %v92, %v93
  %v95 = vrot.slane %v94, 2
  %v96 = vadd.f32 %v94, %v95
  %v97 = vrot.slane %v96, 1
  %v98 = vadd.f32 %v96, %v97
  %v99 = vsel %vm42, %v34, 0.0
  %v100 = vrot.slane %v99, 4
  %v101 = vadd.f32 %v99, %v100
  %v102 = vrot.slane %v101, 2
  %v103 = vadd.f32 %v101, %v102
  %v104 = vrot.slane %v103, 1
  %v105 = vadd.f32 %v103, %v104
  %v106 = vsel %vm42, %v35, 0.0
  %v107 = vrot.slane %v106, 4
  %v108 = vadd.f32 %v106, %v107
  %v109 = vrot.slane %v108, 2
  %v110 = vadd.f32 %v108, %v109
  %v111 = vrot.slane %v110, 1
  %v112 = vadd.f32 %v110, %v111
  %v113 = vsel %vm42, %v36, 0.0
  %v114 = vrot.slane %v113, 4
  %v115 = vadd.f32 %v113, %v114
  %v116 = vrot.slane %v115, 2
  %v117 = vadd.f32 %v115, %v116
  %v118 = vrot.slane %v117, 1
  %v119 = vadd.f32 %v117, %v118
  %v120 = vsel %vm42, %v37, 0.0
  %v121 = vrot.slane %v120, 4
  %v122 = vadd.f32 %v120, %v121
  %v123 = vrot.slane %v122, 2
  %v124 = vadd.f32 %v122, %v123
  %v125 = vrot.slane %v124, 1
  %v126 = vadd.f32 %v124, %v125
  %v127 = vsel %vm42, %v38, 0.0
  %v128 = vrot.slane %v127, 4
  %v129 = vadd.f32 %v127, %v128
  %v130 = vrot.slane %v129, 2
  %v131 = vadd.f32 %v129, %v130
  %v132 = vrot.slane %v131, 1
  %v133 = vadd.f32 %v131, %v132
  %v134 = vsel %vm42, %v39, 0.0
  %v135 = vrot.slane %v134, 4
  %v136 = vadd.f32 %v134, %v135
  %v137 = vrot.slane %v136, 2
  %v138 = vadd.f32 %v136, %v137
  %v139 = vrot.slane %v138, 1
  %v140 = vadd.f32 %v138, %v139
  %v141 = vsel %vm42, %v40, 0.0
  %v142 = vrot.slane %v141, 4
  %v143 = vadd.f32 %v141, %v142
  %v144 = vrot.slane %v143, 2
  %v145 = vadd.f32 %v143, %v144
  %v146 = vrot.slane %v145, 1
  %v147 = vadd.f32 %v145, %v146
  %v148 = vsel %vm42, %v41, 0.0
  %v149 = vrot.slane %v148, 4
  %v150 = vadd.f32 %v148, %v149
  %v151 = vrot.slane %v150, 2
  %v152 = vadd.f32 %v150, %v151
  %v153 = vrot.slane %v152, 1
  %v154 = vadd.f32 %v152, %v153
  %v155 = vmul.f32 %v49, 0.5
  %v156 = vmul.f32 %v56, 0.5
  %v157 = vmul.f32 %v63, 0.5
  %v158 = vmul.f32 %v70, 0.5
  %v159 = vmul.f32 %v77, 0.5
  %v160 = vmul.f32 %v84, 0.5
  %v161 = vmul.f32 %v91, 0.5
  %v162 = vmul.f32 %v98, 0.5
  %v163 = vmul.f32 %v105, 0.5
  %v164 = vmul.f32 %v112, 0.5
  %v165 = vmul.f32 %v119, 0.5
  %v166 = vmul.f32 %v126, 0.5
  %v167 = vmul.f32 %v133, 0.5
  %v168 = vmul.f32 %v140, 0.5
  %v169 = vmul.f32 %v147, 0.5
  %v170 = vmul.f32 %v154, 0.5
  %v171 = vmax.f32 %v155, %v156
  %v172 = vmax.f32 %v171, %v157
  %v173 = vmax.f32 %v172, %v158
  %v174 = vmax.f32 %v159, %v160
  %v175 = vmax.f32 %v174, %v161
  %v176 = vmax.f32 %v175, %v162
  %v177 = vmax.f32 %v163, %v164
  %v178 = vmax.f32 %v177, %v165
  %v179 = vmax.f32 %v178, %v166
  %v180 = vmax.f32 %v167, %v168
  %v181 = vmax.f32 %v180, %v169
  %v182 = vmax.f32 %v181, %v170
  %v183 = vsub.f32 %v155, %v173
  %v184 = vsub.f32 %v156, %v173
  %v185 = vsub.f32 %v157, %v173
  %v186 = vsub.f32 %v158, %v173
  %v187 = vsub.f32 %v159, %v176
  %v188 = vsub.f32 %v160, %v176
  %v189 = vsub.f32 %v161, %v176
  %v190 = vsub.f32 %v162, %v176
  %v191 = vsub.f32 %v163, %v179
  %v192 = vsub.f32 %v164, %v179
  %v193 = vsub.f32 %v165, %v179
  %v194 = vsub.f32 %v166, %v179
  %v195 = vsub.f32 %v167, %v182
  %v196 = vsub.f32 %v168, %v182
  %v197 = vsub.f32 %v169, %v182
  %v198 = vsub.f32 %v170, %v182
  %v199 = vmul.f32 %v183, 1.442695
  %v200 = vpow.pop %v199
  %v201 = vmul.f32 %v184, 1.442695
  %v202 = vpow.pop %v201
  %v203 = vmul.f32 %v185, 1.442695
  %v204 = vpow.pop %v203
  %v205 = vmul.f32 %v186, 1.442695
  %v206 = vpow.pop %v205
  %v207 = vmul.f32 %v187, 1.442695
  %v208 = vpow.pop %v207
  %v209 = vmul.f32 %v188, 1.442695
  %v210 = vpow.pop %v209
  %v211 = vmul.f32 %v189, 1.442695
  %v212 = vpow.pop %v211
  %v213 = vmul.f32 %v190, 1.442695
  %v214 = vpow.pop %v213
  %v215 = vmul.f32 %v191, 1.442695
  %v216 = vpow.pop %v215
  %v217 = vmul.f32 %v192, 1.442695
  %v218 = vpow.pop %v217
  %v219 = vmul.f32 %v193, 1.442695
  %v220 = vpow.pop %v219
  %v221 = vmul.f32 %v194, 1.442695
  %v222 = vpow.pop %v221
  %v223 = vmul.f32 %v195, 1.442695
  %v224 = vpow.pop %v223
  %v225 = vmul.f32 %v196, 1.442695
  %v226 = vpow.pop %v225
  %v227 = vmul.f32 %v197, 1.442695
  %v228 = vpow.pop %v227
  %v229 = vmul.f32 %v198, 1.442695
  %v230 = vpow.pop %v229
  %v231 = vadd.f32 %v200, %v202
  %v232 = vadd.f32 %v231, %v204
  %v233 = vadd.f32 %v232, %v206
  %v234 = vadd.f32 %v208, %v210
  %v235 = vadd.f32 %v234, %v212
  %v236 = vadd.f32 %v235, %v214
  %v237 = vadd.f32 %v216, %v218
  %v238 = vadd.f32 %v237, %v220
  %v239 = vadd.f32 %v238, %v222
  %v240 = vadd.f32 %v224, %v226
  %v241 = vadd.f32 %v240, %v228
  %v242 = vadd.f32 %v241, %v230
  %v243 = vrcp.pop %v233
  %v244 = vrcp.pop %v236
  %v245 = vrcp.pop %v239
  %v246 = vrcp.pop %v242
  %v247 = vmul.f32 %v200, %v243
  %v248 = vmul.f32 %v202, %v243
  %v249 = vmul.f32 %v204, %v243
  %v250 = vmul.f32 %v206, %v243
  %v251 = vmul.f32 %v208, %v244
  %v252 = vmul.f32 %v210, %v244
  %v253 = vmul.f32 %v212, %v244
  %v254 = vmul.f32 %v214, %v244
  %v255 = vmul.f32 %v216, %v245
  %v256 = vmul.f32 %v218, %v245
  %v257 = vmul.f32 %v220, %v245
  %v258 = vmul.f32 %v222, %v245
  %v259 = vmul.f32 %v224, %v246
  %v260 = vmul.f32 %v226, %v246
  %v261 = vmul.f32 %v228, %v246
  %v262 = vmul.f32 %v230, %v246
  %v263 = vmul.f32 %v247, %v22
  %v264 = vmul.f32 %v248, %v23
  %v265 = vmul.f32 %v249, %v24
  %v266 = vmul.f32 %v250, %v25
  %v267 = vmul.f32 %v251, %v22
  %v268 = vmul.f32 %v252, %v23
  %v269 = vmul.f32 %v253, %v24
  %v270 = vmul.f32 %v254, %v25
  %v271 = vmul.f32 %v255, %v22
  %v272 = vmul.f32 %v256, %v23
  %v273 = vmul.f32 %v257, %v24
  %v274 = vmul.f32 %v258, %v25
  %v275 = vmul.f32 %v259, %v22
  %v276 = vmul.f32 %v260, %v23
  %v277 = vmul.f32 %v261, %v24
  %v278 = vmul.f32 %v262, %v25
  %v279 = vsel %vm42, %v263, 0.0
  %v280 = vsel %vm42, %v264, 0.0
  %v281 = vadd.f32 %v279, %v280
  %v282 = vsel %vm42, %v265, 0.0
  %v283 = vadd.f32 %v281, %v282
  %v284 = vsel %vm42, %v266, 0.0
  %v285 = vadd.f32 %v283, %v284
  %v286 = vsel %vm42, %v267, 0.0
  %v287 = vsel %vm42, %v268, 0.0
  %v288 = vadd.f32 %v286, %v287
  %v289 = vsel %vm42, %v269, 0.0
  %v290 = vadd.f32 %v288, %v289
  %v291 = vsel %vm42, %v270, 0.0
  %v292 = vadd.f32 %v290, %v291
  %v293 = vsel %vm42, %v271, 0.0
  %v294 = vsel %vm42, %v272, 0.0
  %v295 = vadd.f32 %v293, %v294
  %v296 = vsel %vm42, %v273, 0.0
  %v297 = vadd.f32 %v295, %v296
  %v298 = vsel %vm42, %v274, 0.0
  %v299 = vadd.f32 %v297, %v298
  %v300 = vsel %vm42, %v275, 0.0
  %v301 = vsel %vm42, %v276, 0.0
  %v302 = vadd.f32 %v300, %v301
  %v303 = vsel %vm42, %v277, 0.0
  %v304 = vadd.f32 %v302, %v303
  %v305 = vsel %vm42, %v278, 0.0
  %v306 = vadd.f32 %v304, %v305
  %307 = vst [vmem:[%s3] sm:$0xf] %v285
  %308 = vst [vmem:[%s3 + $0x4] sm:$0xf] %v292
  %309 = vst [vmem:[%s3 + $0x8] sm:$0xf] %v299
  %310 = vst [vmem:[%s3 + $0xc] sm:$0xf] %v306
  // Predicated region
  $region14: #{fc_hilo1_forward.14} parent=0 // pred_check
    _
  $region15: #{fc_hilo1_forward.14} parent=0 // pred_check_branch
    %312 = sbr.rel (0) target = $region17
  $region16: #{fc_hilo1_forward.14} parent=0 // pred_region
    _
  $region17: #{fc_hilo1_forward.14} parent=0 // pred_fallthru
    _
  // Predicated region
  $region18: #{fc_hilo1_forward.14} parent=0 // pred_check
    _
  $region19: #{fc_hilo1_forward.14} parent=0 // pred_check_branch
    %314 = sbr.rel (0) target = $region21
  $region20: #{fc_hilo1_forward.14} parent=0 // pred_region
    _
  $region21: #{fc_hilo1_forward.14} parent=0 // pred_fallthru
    _

</llo_original>
